<compile_context>
chip_gen: v7x
topology: tpu7x:2x2x1
jax: 0.10.0
libtpu: 0.0.40
codegen_flags: <defaults>
</compile_context>

<pallas_src>
import functools

import jax
import jax.numpy as jnp
from jax.experimental import pallas as pl
from jax.experimental.pallas import tpu as pltpu  # noqa: F401  (TPU backend assumed)


# --------------------------------------------------------------------------
# Config (small, consistent with the module's forward semantics)
# --------------------------------------------------------------------------
EMBED_DIM = 32
DEPTH = 2
VIT_HEADS = 4
VIT_MLP_RATIO = 4.0

FUSION_TKNS = (2, 4, 4)          # num_fusion_tkns -> nF = 10
NUM_FUSION = sum(FUSION_TKNS)    # 10 real fusion tokens
NUM_FUSION_PAD = 16              # padded to a sublane multiple; pad rows masked
FUSION_HEADS = 2                 # fusion_num_heads (scaled down)
FUSION_ATTN_RATIO = 0.25         # attn dim = 8
FUSION_MLP_RATIO = 1.0

VIDEO_SHAPE = (2, 3, 4, 16, 16)  # (B, C, T, H, W)
VIDEO_PATCH = (2, 8, 8)          # (pt, ph, pw) -> nV = 2*2*2 = 8
AUDIO_SHAPE = (2, 1, 16, 16)     # (B, C, F, T)
AUDIO_PATCH = (8, 8)             # -> nA = 4

LN_EPS = 1e-5
LANE = 128                       # lane width of packed weight segments / slabs
NEG_INF = -1e30


# --------------------------------------------------------------------------
# In-kernel math helpers (operate on VMEM-resident jnp values)
# --------------------------------------------------------------------------
def _layernorm(x, g, b):
    x = x.astype(jnp.float32)
    mu = jnp.mean(x, axis=-1, keepdims=True)
    xc = x - mu
    var = jnp.mean(xc * xc, axis=-1, keepdims=True)
    return xc * jax.lax.rsqrt(var + LN_EPS) * g + b


def _matmul(x, w):
    """(..., K) @ (K, N) -> (..., N) in f32; inputs fed to the MXU as-is (bf16)."""
    lead = x.shape[:-1]
    y = jnp.dot(x.reshape(-1, x.shape[-1]), w, preferred_element_type=jnp.float32)
    return y.reshape(lead + (w.shape[-1],))


def _softmax_rows(s):
    s = s - jnp.max(s, axis=-1, keepdims=True)
    p = jnp.exp(s)
    return p / jnp.sum(p, axis=-1, keepdims=True)   # exact normalization


def _mha(q, k, v, heads, bias=None):
    """q: (B, Nq, d), k/v: (B, Nk, d). Statically-unrolled per-head attention.
    `bias` is a precomputed additive mask, hoisted out of the head loop."""
    dh = q.shape[-1] // heads
    scale = dh ** -0.5
    qb = q.astype(jnp.bfloat16)
    kb = k.astype(jnp.bfloat16)
    vb = v.astype(jnp.bfloat16)
    outs = []
    for h in range(heads):
        sl = slice(h * dh, (h + 1) * dh)
        s = jnp.einsum('bqd,bkd->bqk', qb[..., sl], kb[..., sl],
                       preferred_element_type=jnp.float32) * scale
        if bias is not None:
            s = s + bias[None, :, :]
        p = _softmax_rows(s).astype(jnp.bfloat16)
        outs.append(jnp.einsum('bqk,bkd->bqd', p, vb[..., sl],
                               preferred_element_type=jnp.float32))
    return jnp.concatenate(outs, axis=-1)


def _vit_block(xf, x, wrow, fc2_w, vec, heads, key_bias):
    """Pre-norm ViT block over concat([xf_pad, x]); returns only the x rows
    (fusion rows are K/V-only context — their outputs are discarded by the
    reference forward).  Padded fusion key rows are removed via `key_bias`."""
    B, N, D = x.shape
    nfp = xf.shape[1]
    hidden = fc2_w.shape[0]

    ln1_g, ln1_b = vec[0:1, :D], vec[1:2, :D]
    ln2_g, ln2_b = vec[2:3, :D], vec[3:4, :D]
    q_b, k_b, v_b = vec[4:5, :D], vec[5:6, :D], vec[6:7, :D]
    proj_b = vec[7:8, :D]
    fc1_b = vec[8:9, :hidden]
    fc2_b = vec[9:10, :D]

    ctx = jnp.concatenate([xf, x], axis=1)                       # sublane-aligned
    h = _layernorm(ctx, ln1_g, ln1_b).astype(jnp.bfloat16)

    # one full-width (128-lane, zero-padded) MXU dot per Q/K/V segment
    q = _matmul(h, wrow[:, 0 * LANE:1 * LANE])[..., :D] + q_b
    k = _matmul(h, wrow[:, 1 * LANE:2 * LANE])[..., :D] + k_b
    v = _matmul(h, wrow[:, 2 * LANE:3 * LANE])[..., :D] + v_b

    o = _mha(q[:, nfp:], k, v, heads, bias=key_bias)             # (B, N, D)
    x = x + _matmul(o.astype(jnp.bfloat16),
                    wrow[:, 3 * LANE:4 * LANE])[..., :D] + proj_b

    h2 = _layernorm(x, ln2_g, ln2_b).astype(jnp.bfloat16)
    h2 = jax.nn.gelu(_matmul(h2, wrow[:, 4 * LANE:4 * LANE + hidden]) + fc1_b,
                     approximate=True)
    return x + _matmul(h2.astype(jnp.bfloat16), fc2_w) + fc2_b


def _fusion_block(xf, xv, xa, wrow, proj_w, fc2_w, vec, heads, da, fbias):
    """Factorized AV interaction: fusion-token groups cross-attend to video /
    audio / both keys, realized as one additive-bias-masked attention over the
    concatenated AV keys."""
    B, nfp, D = xf.shape
    hidden = fc2_w.shape[0]

    lnq_g, lnq_b = vec[0:1, :D], vec[1:2, :D]
    lnkv_g, lnkv_b = vec[2:3, :D], vec[3:4, :D]
    ln2_g, ln2_b = vec[4:5, :D], vec[5:6, :D]
    q_b, k_b, v_b = vec[6:7, :da], vec[7:8, :da], vec[8:9, :da]
    proj_b = vec[9:10, :D]
    fc1_b = vec[10:11, :hidden]
    fc2_b = vec[11:12, :D]

    hq = _layernorm(xf, lnq_g, lnq_b).astype(jnp.bfloat16)
    hkv = _layernorm(jnp.concatenate([xv, xa], axis=1),          # 8-aligned concat
                     lnkv_g, lnkv_b).astype(jnp.bfloat16)

    q = _matmul(hq, wrow[:, 0 * LANE:1 * LANE])[..., :da] + q_b
    k = _matmul(hkv, wrow[:, 1 * LANE:2 * LANE])[..., :da] + k_b
    v = _matmul(hkv, wrow[:, 2 * LANE:3 * LANE])[..., :da] + v_b

    o = _mha(q, k, v, heads, bias=fbias)                         # (B, nFp, da)
    xf = xf + _matmul(o.astype(jnp.bfloat16), proj_w) + proj_b

    h2 = _layernorm(xf, ln2_g, ln2_b).astype(jnp.bfloat16)
    h2 = jax.nn.gelu(_matmul(h2, wrow[:, 3 * LANE:3 * LANE + hidden]) + fc1_b,
                     approximate=True)
    return xf + _matmul(h2.astype(jnp.bfloat16), fc2_w) + fc2_b


# --------------------------------------------------------------------------
# Single fused forward kernel (one grid-less pallas_call for the whole module)
# --------------------------------------------------------------------------
def _forward_kernel(vp_ref, ap_ref, pw_ref, tok_ref,
                    mod_wrow_ref, mod_fc2_ref, mod_vec_ref,
                    f_wrow_ref, f_proj_ref, f_fc2_ref, f_vec_ref, fin_ref,
                    out_ref, *, depth, vit_heads, fusion_heads,
                    n1, n2, n_fusion, da, pv_rows):
    B, nV, _ = vp_ref.shape
    nA = ap_ref.shape[1]
    D = pw_ref.shape[1]
    nFp = tok_ref.shape[1] - nV - nA

    pw = pw_ref[...]                                   # (Pv+Pa, D) bf16
    tok = tok_ref[...]                                 # (1, nFp+nV+nA, D) f32

    # --- patch embeds + positional embeds (patch-proj bias folded into slab)
    xv = _matmul(vp_ref[...].astype(jnp.bfloat16), pw[:pv_rows]) + tok[:, nFp:nFp + nV]
    xa = _matmul(ap_ref[...].astype(jnp.bfloat16), pw[pv_rows:]) + tok[:, nFp + nV:]
    xf = jnp.broadcast_to(tok[:, :nFp], (B, nFp, D))

    # --- additive attention biases: built ONCE, reused every layer / head
    def pad_key_bias(nc):
        kidx = jax.lax.broadcasted_iota(jnp.int32, (1, nc), 1)
        return jnp.where((kidx >= n_fusion) & (kidx < nFp),
                         jnp.float32(NEG_INF), jnp.float32(0.0))

    v_key_bias = pad_key_bias(nFp + nV)                # mask padded fusion keys
    a_key_bias = pad_key_bias(nFp + nA)

    nK = nV + nA
    qi = jax.lax.broadcasted_iota(jnp.int32, (nFp, nK), 0)
    ki = jax.lax.broadcasted_iota(jnp.int32, (nFp, nK), 1)
    allowed = (((qi < n1) & (ki < nV))                              # group 0 -> video
               | ((qi >= n1) & (qi < n1 + n2) & (ki >= nV))         # group 1 -> audio
               | (qi >= n1 + n2))                                   # group 2 -> both
    f_bias = jnp.where(allowed, jnp.float32(0.0), jnp.float32(NEG_INF))

    # keep padded fusion rows pinned to zero so garbage never accumulates
    f_row_mask = (jax.lax.broadcasted_iota(jnp.int32, (nFp, D), 0)
                  < n_fusion).astype(jnp.float32)[None]

    for i in range(depth):
        new_xv = _vit_block(xf, xv, mod_wrow_ref[2 * i], mod_fc2_ref[2 * i],
                            mod_vec_ref[2 * i], vit_heads, v_key_bias)
        new_xa = _vit_block(xf, xa, mod_wrow_ref[2 * i + 1], mod_fc2_ref[2 * i + 1],
                            mod_vec_ref[2 * i + 1], vit_heads, a_key_bias)
        # fusion block consumes the *pre-block* video/audio tokens (as in PyTorch)
        new_xf = _fusion_block(xf, xv, xa, f_wrow_ref[i], f_proj_ref[i],
                               f_fc2_ref[i], f_vec_ref[i], fusion_heads, da, f_bias)
        xv, xa, xf = new_xv, new_xa, new_xf * f_row_mask

    fin = fin_ref[...]
    out_v = _layernorm(xv, fin[0:1, :D], fin[1:2, :D])
    out_a = _layernorm(xa, fin[2:3, :D], fin[3:4, :D])
    out_f = _layernorm(xf, fin[4:5, :D], fin[5:6, :D])
    # single aligned output slab: [video(8) | fusion(16, padded) | audio(4)]
    out_ref[...] = jnp.concatenate([out_v, out_f, out_a], axis=1).astype(out_ref.dtype)


# --------------------------------------------------------------------------
# Host-side glue: patchify (pure reshape/transpose of the raw inputs)
# --------------------------------------------------------------------------
def patchify_video(video, pt, ph, pw):
    B, C, T, H, W = video.shape
    x = video.reshape(B, C, T // pt, pt, H // ph, ph, W // pw, pw)
    x = x.transpose(0, 2, 4, 6, 1, 3, 5, 7)
    return x.reshape(B, (T // pt) * (H // ph) * (W // pw), C * pt * ph * pw)


def patchify_audio(audio, pf, pt):
    B, C, Fr, T = audio.shape
    x = audio.reshape(B, C, Fr // pf, pf, T // pt, pt)
    x = x.transpose(0, 2, 4, 1, 3, 5)
    return x.reshape(B, (Fr // pf) * (T // pt), C * pf * pt)


def video_earlyfusion_forward(params, video, audio):
    B = video.shape[0]
    D = EMBED_DIM
    vp = patchify_video(video, *VIDEO_PATCH)      # (B, nV, Pv)
    ap = patchify_audio(audio, *AUDIO_PATCH)      # (B, nA, Pa)
    nV, nA = vp.shape[1], ap.shape[1]
    nFp = params["pos_tok"].shape[1] - nV - nA

    kernel = functools.partial(
        _forward_kernel, depth=DEPTH, vit_heads=VIT_HEADS,
        fusion_heads=FUSION_HEADS, n1=FUSION_TKNS[0], n2=FUSION_TKNS[1],
        n_fusion=NUM_FUSION, da=int(D * FUSION_ATTN_RATIO), pv_rows=vp.shape[2])

    # Grid-less call: every operand is a full-array VMEM block; one launch total.
    out = pl.pallas_call(
        kernel,
        out_shape=jax.ShapeDtypeStruct((B, nV + nFp + nA, D), jnp.float32),
    )(vp, ap, params["patch_w"], params["pos_tok"],
      params["mod_wrow"], params["mod_fc2"], params["mod_vec"],
      params["f_wrow"], params["f_proj"], params["f_fc2"], params["f_vec"],
      params["final_vec"])

    x_video = out[:, :nV]
    x_fusion = out[:, nV:nV + NUM_FUSION]
    x_audio = out[:, nV + nFp:nV + nFp + nA]
    return x_video, x_audio, x_fusion


# --------------------------------------------------------------------------
# Deterministic parameter init (xavier linears, ones/zeros LN, N(0,0.02) tokens)
# --------------------------------------------------------------------------
def xavier_uniform(key, shape):
    limit = (6.0 / (shape[0] + shape[1])) ** 0.5
    return jax.random.uniform(key, shape, jnp.float32, -limit, limit)


def _pad_lanes(w, width=LANE):
    return jnp.pad(w, ((0, 0), (0, width - w.shape[1])))


def pack_vec_rows(vecs, width=LANE):
    return jnp.stack([jnp.pad(v.astype(jnp.float32), (0, width - v.shape[0]))
                      for v in vecs], axis=0)


def init_vit_block(key, D, mlp_ratio):
    hidden = int(D * mlp_ratio)
    assert hidden <= LANE
    k = jax.random.split(key, 4)
    qkv_w = xavier_uniform(k[0], (D, 3 * D))
    proj_w = xavier_uniform(k[1], (D, D))
    fc1_w = xavier_uniform(k[2], (D, hidden))
    fc2_w = xavier_uniform(k[3], (hidden, D))
    # 128-lane-aligned segments: [Q | K | V | proj | fc1]
    wrow = jnp.concatenate(
        [_pad_lanes(qkv_w[:, :D]), _pad_lanes(qkv_w[:, D:2 * D]),
         _pad_lanes(qkv_w[:, 2 * D:]), _pad_lanes(proj_w), _pad_lanes(fc1_w)], axis=1)
    vec = pack_vec_rows([
        jnp.ones((D,), jnp.float32), jnp.zeros((D,), jnp.float32),      # ln1 g/b
        jnp.ones((D,), jnp.float32), jnp.zeros((D,), jnp.float32),      # ln2 g/b
        jnp.zeros((D,), jnp.float32), jnp.zeros((D,), jnp.float32),     # q_b, k_b
        jnp.zeros((D,), jnp.float32),                                   # v_b
        jnp.zeros((D,), jnp.float32),                                   # proj_b
        jnp.zeros((hidden,), jnp.float32),                              # fc1_b
        jnp.zeros((D,), jnp.float32),                                   # fc2_b
    ])
    return dict(wrow=wrow, fc2=fc2_w, vec=vec)


def init_fusion_block(key, D, attn_ratio, mlp_ratio):
    da = int(D * attn_ratio)
    hidden = int(D * mlp_ratio)
    assert hidden <= LANE and da <= LANE
    k = jax.random.split(key, 5)
    q_w = xavier_uniform(k[0], (D, da))
    kv_w = xavier_uniform(k[1], (D, 2 * da))
    proj_w = xavier_uniform(k[2], (da, D))
    fc1_w = xavier_uniform(k[3], (D, hidden))
    fc2_w = xavier_uniform(k[4], (hidden, D))
    # 128-lane-aligned segments: [Q | K | V | fc1]
    wrow = jnp.concatenate(
        [_pad_lanes(q_w), _pad_lanes(kv_w[:, :da]), _pad_lanes(kv_w[:, da:]),
         _pad_lanes(fc1_w)], axis=1)
    vec = pack_vec_rows([
        jnp.ones((D,), jnp.float32), jnp.zeros((D,), jnp.float32),      # lnq g/b
        jnp.ones((D,), jnp.float32), jnp.zeros((D,), jnp.float32),      # lnkv g/b
        jnp.ones((D,), jnp.float32), jnp.zeros((D,), jnp.float32),      # ln2 g/b
        jnp.zeros((da,), jnp.float32), jnp.zeros((da,), jnp.float32),   # q_b, k_b
        jnp.zeros((da,), jnp.float32),                                  # v_b
        jnp.zeros((D,), jnp.float32),                                   # proj_b
        jnp.zeros((hidden,), jnp.float32),                              # fc1_b
        jnp.zeros((D,), jnp.float32),                                   # fc2_b
    ])
    return dict(wrow=wrow, proj=proj_w, fc2=fc2_w, vec=vec)


def init_params(key):
    D = EMBED_DIM
    nF, nFp = NUM_FUSION, NUM_FUSION_PAD
    _, C, T, H, W = VIDEO_SHAPE
    pt_, ph_, pw_ = VIDEO_PATCH
    nV = (T // pt_) * (H // ph_) * (W // pw_)
    Pv = C * pt_ * ph_ * pw_
    _, Ca, Fr, Ta = AUDIO_SHAPE
    pf_, pta_ = AUDIO_PATCH
    nA = (Fr // pf_) * (Ta // pta_)
    Pa = Ca * pf_ * pta_

    keys = jax.random.split(key, 5 + 3 * DEPTH)
    v_patch_w = 0.02 * jax.random.normal(keys[0], (Pv, D), jnp.float32)
    a_patch_w = 0.02 * jax.random.normal(keys[1], (Pa, D), jnp.float32)
    v_patch_b = jnp.zeros((D,), jnp.float32)
    a_patch_b = jnp.zeros((D,), jnp.float32)
    v_pos = 0.02 * jax.random.normal(keys[2], (1, nV, D), jnp.float32)
    a_pos = 0.02 * jax.random.normal(keys[3], (1, nA, D), jnp.float32)
    f_tok = 0.02 * jax.random.normal(keys[4], (1, nF, D), jnp.float32)
    f_tok = jnp.concatenate([f_tok, jnp.zeros((1, nFp - nF, D), jnp.float32)], axis=1)

    # token/pos slab: [fusion tokens (padded to 16) | video pos+bias | audio pos+bias]
    pos_tok = jnp.concatenate(
        [f_tok, v_pos + v_patch_b[None, None, :], a_pos + a_patch_b[None, None, :]],
        axis=1)

    vblocks = [init_vit_block(keys[5 + i], D, VIT_MLP_RATIO) for i in range(DEPTH)]
    ablocks = [init_vit_block(keys[5 + DEPTH + i], D, VIT_MLP_RATIO) for i in range(DEPTH)]
    fblocks = [init_fusion_block(keys[5 + 2 * DEPTH + i], D,
                                 FUSION_ATTN_RATIO, FUSION_MLP_RATIO)
               for i in range(DEPTH)]
    mod = []
    for i in range(DEPTH):
        mod += [vblocks[i], ablocks[i]]          # kernel indexes video=2i, audio=2i+1

    return dict(
        patch_w=jnp.concatenate([v_patch_w, a_patch_w], axis=0).astype(jnp.bfloat16),
        pos_tok=pos_tok,
        mod_wrow=jnp.stack([b["wrow"] for b in mod]).astype(jnp.bfloat16),
        mod_fc2=jnp.stack([b["fc2"] for b in mod]).astype(jnp.bfloat16),
        mod_vec=jnp.stack([b["vec"] for b in mod]),
        f_wrow=jnp.stack([b["wrow"] for b in fblocks]).astype(jnp.bfloat16),
        f_proj=jnp.stack([b["proj"] for b in fblocks]).astype(jnp.bfloat16),
        f_fc2=jnp.stack([b["fc2"] for b in fblocks]).astype(jnp.bfloat16),
        f_vec=jnp.stack([b["vec"] for b in fblocks]),
        final_vec=pack_vec_rows([
            jnp.ones((D,), jnp.float32), jnp.zeros((D,), jnp.float32),   # video norm
            jnp.ones((D,), jnp.float32), jnp.zeros((D,), jnp.float32),   # audio norm
            jnp.ones((D,), jnp.float32), jnp.zeros((D,), jnp.float32),   # fusion norm
        ]),
    )


# --------------------------------------------------------------------------
if __name__ == "__main__":
    key = jax.random.PRNGKey(0)
    k_param, k_video, k_audio = jax.random.split(key, 3)

    params = init_params(k_param)
    video = jax.random.normal(k_video, VIDEO_SHAPE, jnp.float32)   # (B, C, T, H, W)
    audio = jax.random.normal(k_audio, AUDIO_SHAPE, jnp.float32)   # (B, C, F, T)

    fwd = jax.jit(video_earlyfusion_forward)
    x_video, x_audio, x_fusion = fwd(params, video, audio)
    jax.block_until_ready((x_video, x_audio, x_fusion))

    assert x_video.shape == (VIDEO_SHAPE[0], 8, EMBED_DIM)
    assert x_audio.shape == (AUDIO_SHAPE[0], 4, EMBED_DIM)
    assert x_fusion.shape == (VIDEO_SHAPE[0], NUM_FUSION, EMBED_DIM)
    assert bool(jnp.all(jnp.isfinite(x_video))) \
        and bool(jnp.all(jnp.isfinite(x_audio))) \
        and bool(jnp.all(jnp.isfinite(x_fusion)))
    print("KERNEL_OK")
</pallas_src>

<mosaic_0001>
module attributes {stable_mosaic.version = 11 : i64} {
  func.func @_forward_kernel(%arg0: memref<2x8x384xf32, #tpu.memory_space<vmem>>, %arg1: memref<2x4x64xf32, #tpu.memory_space<vmem>>, %arg2: memref<448x32xbf16, #tpu.memory_space<vmem>>, %arg3: memref<1x28x32xf32, #tpu.memory_space<vmem>>, %arg4: memref<4x32x640xbf16, #tpu.memory_space<vmem>>, %arg5: memref<4x128x32xbf16, #tpu.memory_space<vmem>>, %arg6: memref<4x10x128xf32, #tpu.memory_space<vmem>>, %arg7: memref<2x32x512xbf16, #tpu.memory_space<vmem>>, %arg8: memref<2x8x32xbf16, #tpu.memory_space<vmem>>, %arg9: memref<2x32x32xbf16, #tpu.memory_space<vmem>>, %arg10: memref<2x12x128xf32, #tpu.memory_space<vmem>>, %arg11: memref<6x128xf32, #tpu.memory_space<vmem>>, %arg12: memref<2x28x32xf32, #tpu.memory_space<vmem>>) attributes {dimension_semantics = [], scalar_prefetch = 0 : i64, scratch_operands = 0 : i64, tpu.core_type = #tpu.core_type<tc>} {
    %c0 = arith.constant 0 : index
    %c0_0 = arith.constant 0 : index
    %0 = vector.load %arg2[%c0, %c0_0] : memref<448x32xbf16, #tpu.memory_space<vmem>>, vector<448x32xbf16>
    %c0_1 = arith.constant 0 : index
    %c0_2 = arith.constant 0 : index
    %c0_3 = arith.constant 0 : index
    %1 = vector.load %arg3[%c0_1, %c0_2, %c0_3] : memref<1x28x32xf32, #tpu.memory_space<vmem>>, vector<1x28x32xf32>
    %c0_4 = arith.constant 0 : index
    %c0_5 = arith.constant 0 : index
    %c0_6 = arith.constant 0 : index
    %2 = vector.load %arg0[%c0_4, %c0_5, %c0_6] : memref<2x8x384xf32, #tpu.memory_space<vmem>>, vector<2x8x384xf32>
    %3 = arith.truncf %2 : vector<2x8x384xf32> to vector<2x8x384xbf16>
    %4 = vector.extract_strided_slice %0 {offsets = [0, 0], sizes = [384, 32], strides = [1, 1]} : vector<448x32xbf16> to vector<384x32xbf16>
    %5 = vector.shape_cast %3 : vector<2x8x384xbf16> to vector<16x384xbf16>
    %cst = arith.constant dense<0.000000e+00> : vector<16x32xf32>
    %6 = tpu.matmul %5, %4, %cst {dimension_numbers = #tpu.dot_dimension_numbers<[1], [0], [0], [1], [0, 0, 1, 1], [], []>} : vector<16x384xbf16>, vector<384x32xbf16>, vector<16x32xf32> -> vector<16x32xf32>
    %7 = vector.shape_cast %6 : vector<16x32xf32> to vector<2x8x32xf32>
    %8 = vector.extract_strided_slice %1 {offsets = [0, 16, 0], sizes = [1, 8, 32], strides = [1, 1, 1]} : vector<1x28x32xf32> to vector<1x8x32xf32>
    %9 = vector.broadcast %8 : vector<1x8x32xf32> to vector<2x8x32xf32>
    %10 = arith.addf %7, %9 : vector<2x8x32xf32>
    %c0_7 = arith.constant 0 : index
    %c0_8 = arith.constant 0 : index
    %c0_9 = arith.constant 0 : index
    %11 = vector.load %arg1[%c0_7, %c0_8, %c0_9] : memref<2x4x64xf32, #tpu.memory_space<vmem>>, vector<2x4x64xf32>
    %12 = arith.truncf %11 : vector<2x4x64xf32> to vector<2x4x64xbf16>
    %13 = vector.extract_strided_slice %0 {offsets = [384, 0], sizes = [64, 32], strides = [1, 1]} : vector<448x32xbf16> to vector<64x32xbf16>
    %14 = vector.shape_cast %12 : vector<2x4x64xbf16> to vector<8x64xbf16>
    %cst_10 = arith.constant dense<0.000000e+00> : vector<8x32xf32>
    %15 = tpu.matmul %14, %13, %cst_10 {dimension_numbers = #tpu.dot_dimension_numbers<[1], [0], [0], [1], [0, 0, 1, 1], [], []>} : vector<8x64xbf16>, vector<64x32xbf16>, vector<8x32xf32> -> vector<8x32xf32>
    %16 = vector.shape_cast %15 : vector<8x32xf32> to vector<2x4x32xf32>
    %17 = vector.extract_strided_slice %1 {offsets = [0, 24, 0], sizes = [1, 4, 32], strides = [1, 1, 1]} : vector<1x28x32xf32> to vector<1x4x32xf32>
    %18 = vector.broadcast %17 : vector<1x4x32xf32> to vector<2x4x32xf32>
    %19 = arith.addf %16, %18 : vector<2x4x32xf32>
    %20 = vector.extract_strided_slice %1 {offsets = [0, 0, 0], sizes = [1, 16, 32], strides = [1, 1, 1]} : vector<1x28x32xf32> to vector<1x16x32xf32>
    %21 = vector.shape_cast %20 : vector<1x16x32xf32> to vector<1x16x32xf32>
    %22 = vector.broadcast %21 : vector<1x16x32xf32> to vector<2x16x32xf32>
    %23 = tpu.iota {dimensions = array<i32: 1>} : vector<1x24xi32>
    %c10_i32 = arith.constant 10 : i32
    %24 = vector.broadcast %c10_i32 : i32 to vector<1x24xi32>
    %25 = arith.cmpi sge, %23, %24 : vector<1x24xi32>
    %c16_i32 = arith.constant 16 : i32
    %26 = vector.broadcast %c16_i32 : i32 to vector<1x24xi32>
    %27 = arith.cmpi slt, %23, %26 : vector<1x24xi32>
    %28 = arith.andi %25, %27 : vector<1x24xi1>
    %cst_11 = arith.constant -1.000000e+30 : f32
    %cst_12 = arith.constant 0.000000e+00 : f32
    %29 = vector.broadcast %cst_11 : f32 to vector<1x24xf32>
    %30 = vector.broadcast %cst_12 : f32 to vector<1x24xf32>
    %31 = arith.select %28, %29, %30 : vector<1x24xi1>, vector<1x24xf32>
    %32 = tpu.iota {dimensions = array<i32: 1>} : vector<1x20xi32>
    %c10_i32_13 = arith.constant 10 : i32
    %33 = vector.broadcast %c10_i32_13 : i32 to vector<1x20xi32>
    %34 = arith.cmpi sge, %32, %33 : vector<1x20xi32>
    %c16_i32_14 = arith.constant 16 : i32
    %35 = vector.broadcast %c16_i32_14 : i32 to vector<1x20xi32>
    %36 = arith.cmpi slt, %32, %35 : vector<1x20xi32>
    %37 = arith.andi %34, %36 : vector<1x20xi1>
    %cst_15 = arith.constant -1.000000e+30 : f32
    %cst_16 = arith.constant 0.000000e+00 : f32
    %38 = vector.broadcast %cst_15 : f32 to vector<1x20xf32>
    %39 = vector.broadcast %cst_16 : f32 to vector<1x20xf32>
    %40 = arith.select %37, %38, %39 : vector<1x20xi1>, vector<1x20xf32>
    %41 = tpu.iota {dimensions = array<i32: 0>} : vector<16x12xi32>
    %42 = tpu.iota {dimensions = array<i32: 1>} : vector<16x12xi32>
    %c2_i32 = arith.constant 2 : i32
    %43 = vector.broadcast %c2_i32 : i32 to vector<16x12xi32>
    %44 = arith.cmpi slt, %41, %43 : vector<16x12xi32>
    %c8_i32 = arith.constant 8 : i32
    %45 = vector.broadcast %c8_i32 : i32 to vector<16x12xi32>
    %46 = arith.cmpi slt, %42, %45 : vector<16x12xi32>
    %47 = arith.andi %44, %46 : vector<16x12xi1>
    %c2_i32_17 = arith.constant 2 : i32
    %48 = vector.broadcast %c2_i32_17 : i32 to vector<16x12xi32>
    %49 = arith.cmpi sge, %41, %48 : vector<16x12xi32>
    %c6_i32 = arith.constant 6 : i32
    %50 = vector.broadcast %c6_i32 : i32 to vector<16x12xi32>
    %51 = arith.cmpi slt, %41, %50 : vector<16x12xi32>
    %52 = arith.andi %49, %51 : vector<16x12xi1>
    %c8_i32_18 = arith.constant 8 : i32
    %53 = vector.broadcast %c8_i32_18 : i32 to vector<16x12xi32>
    %54 = arith.cmpi sge, %42, %53 : vector<16x12xi32>
    %55 = arith.andi %52, %54 : vector<16x12xi1>
    %56 = arith.ori %47, %55 : vector<16x12xi1>
    %c6_i32_19 = arith.constant 6 : i32
    %57 = vector.broadcast %c6_i32_19 : i32 to vector<16x12xi32>
    %58 = arith.cmpi sge, %41, %57 : vector<16x12xi32>
    %59 = arith.ori %56, %58 : vector<16x12xi1>
    %cst_20 = arith.constant 0.000000e+00 : f32
    %cst_21 = arith.constant -1.000000e+30 : f32
    %60 = vector.broadcast %cst_20 : f32 to vector<16x12xf32>
    %61 = vector.broadcast %cst_21 : f32 to vector<16x12xf32>
    %62 = arith.select %59, %60, %61 : vector<16x12xi1>, vector<16x12xf32>
    %63 = tpu.iota {dimensions = array<i32: 0>} : vector<16x32xi32>
    %c10_i32_22 = arith.constant 10 : i32
    %64 = vector.broadcast %c10_i32_22 : i32 to vector<16x32xi32>
    %65 = arith.cmpi slt, %63, %64 : vector<16x32xi32>
    %66 = arith.extui %65 : vector<16x32xi1> to vector<16x32xi32>
    %67 = arith.sitofp %66 : vector<16x32xi32> to vector<16x32xf32>
    %68 = vector.shape_cast %67 : vector<16x32xf32> to vector<1x16x32xf32>
    %c0_23 = arith.constant 0 : index
    %c0_24 = arith.constant 0 : index
    %c0_25 = arith.constant 0 : index
    %69 = vector.load %arg4[%c0_23, %c0_24, %c0_25] : memref<4x32x640xbf16, #tpu.memory_space<vmem>>, vector<1x32x640xbf16>
    %70 = vector.shape_cast %69 : vector<1x32x640xbf16> to vector<32x640xbf16>
    %c0_26 = arith.constant 0 : index
    %c0_27 = arith.constant 0 : index
    %c0_28 = arith.constant 0 : index
    %71 = vector.load %arg5[%c0_26, %c0_27, %c0_28] : memref<4x128x32xbf16, #tpu.memory_space<vmem>>, vector<1x128x32xbf16>
    %72 = vector.shape_cast %71 : vector<1x128x32xbf16> to vector<128x32xbf16>
    %c0_29 = arith.constant 0 : index
    %c0_30 = arith.constant 0 : index
    %c0_31 = arith.constant 0 : index
    %73 = vector.load %arg6[%c0_29, %c0_30, %c0_31] : memref<4x10x128xf32, #tpu.memory_space<vmem>>, vector<1x10x128xf32>
    %74 = vector.shape_cast %73 : vector<1x10x128xf32> to vector<10x128xf32>
    %75 = vector.extract_strided_slice %74 {offsets = [0, 0], sizes = [1, 32], strides = [1, 1]} : vector<10x128xf32> to vector<1x32xf32>
    %76 = vector.extract_strided_slice %74 {offsets = [1, 0], sizes = [1, 32], strides = [1, 1]} : vector<10x128xf32> to vector<1x32xf32>
    %77 = vector.extract_strided_slice %74 {offsets = [2, 0], sizes = [1, 32], strides = [1, 1]} : vector<10x128xf32> to vector<1x32xf32>
    %78 = vector.extract_strided_slice %74 {offsets = [3, 0], sizes = [1, 32], strides = [1, 1]} : vector<10x128xf32> to vector<1x32xf32>
    %79 = vector.extract_strided_slice %74 {offsets = [4, 0], sizes = [1, 32], strides = [1, 1]} : vector<10x128xf32> to vector<1x32xf32>
    %80 = vector.extract_strided_slice %74 {offsets = [5, 0], sizes = [1, 32], strides = [1, 1]} : vector<10x128xf32> to vector<1x32xf32>
    %81 = vector.extract_strided_slice %74 {offsets = [6, 0], sizes = [1, 32], strides = [1, 1]} : vector<10x128xf32> to vector<1x32xf32>
    %82 = vector.extract_strided_slice %74 {offsets = [7, 0], sizes = [1, 32], strides = [1, 1]} : vector<10x128xf32> to vector<1x32xf32>
    %83 = vector.extract_strided_slice %74 {offsets = [8, 0], sizes = [1, 128], strides = [1, 1]} : vector<10x128xf32> to vector<1x128xf32>
    %84 = vector.extract_strided_slice %74 {offsets = [9, 0], sizes = [1, 32], strides = [1, 1]} : vector<10x128xf32> to vector<1x32xf32>
    %85 = tpu.concatenate %22, %10 in 1 : vector<2x16x32xf32>, vector<2x8x32xf32> -> vector<2x24x32xf32>
    %cst_32 = arith.constant dense<0.000000e+00> : vector<2x24xf32>
    %86 = vector.multi_reduction <add>, %85, %cst_32 [2] : vector<2x24x32xf32> to vector<2x24xf32>
    %87 = vector.shape_cast %86 : vector<2x24xf32> to vector<2x24x1xf32>
    %cst_33 = arith.constant 3.200000e+01 : f32
    %88 = vector.broadcast %cst_33 : f32 to vector<2x24x1xf32>
    %89 = arith.divf %87, %88 : vector<2x24x1xf32>
    %90 = vector.broadcast %89 : vector<2x24x1xf32> to vector<2x24x32xf32>
    %91 = arith.subf %85, %90 : vector<2x24x32xf32>
    %92 = arith.mulf %91, %91 : vector<2x24x32xf32>
    %cst_34 = arith.constant dense<0.000000e+00> : vector<2x24xf32>
    %93 = vector.multi_reduction <add>, %92, %cst_34 [2] : vector<2x24x32xf32> to vector<2x24xf32>
    %94 = vector.shape_cast %93 : vector<2x24xf32> to vector<2x24x1xf32>
    %cst_35 = arith.constant 3.200000e+01 : f32
    %95 = vector.broadcast %cst_35 : f32 to vector<2x24x1xf32>
    %96 = arith.divf %94, %95 : vector<2x24x1xf32>
    %cst_36 = arith.constant 9.99999974E-6 : f32
    %97 = vector.broadcast %cst_36 : f32 to vector<2x24x1xf32>
    %98 = arith.addf %96, %97 : vector<2x24x1xf32>
    %99 = math.rsqrt %98 : vector<2x24x1xf32>
    %100 = vector.broadcast %99 : vector<2x24x1xf32> to vector<2x24x32xf32>
    %101 = arith.mulf %91, %100 : vector<2x24x32xf32>
    %102 = vector.shape_cast %75 : vector<1x32xf32> to vector<1x1x32xf32>
    %103 = vector.broadcast %102 : vector<1x1x32xf32> to vector<2x24x32xf32>
    %104 = arith.mulf %101, %103 : vector<2x24x32xf32>
    %105 = vector.shape_cast %76 : vector<1x32xf32> to vector<1x1x32xf32>
    %106 = vector.broadcast %105 : vector<1x1x32xf32> to vector<2x24x32xf32>
    %107 = arith.addf %104, %106 : vector<2x24x32xf32>
    %108 = arith.truncf %107 : vector<2x24x32xf32> to vector<2x24x32xbf16>
    %109 = vector.extract_strided_slice %70 {offsets = [0, 0], sizes = [32, 128], strides = [1, 1]} : vector<32x640xbf16> to vector<32x128xbf16>
    %110 = vector.shape_cast %108 : vector<2x24x32xbf16> to vector<48x32xbf16>
    %cst_37 = arith.constant dense<0.000000e+00> : vector<48x128xf32>
    %111 = tpu.matmul %110, %109, %cst_37 {dimension_numbers = #tpu.dot_dimension_numbers<[1], [0], [0], [1], [0, 0, 1, 1], [], []>} : vector<48x32xbf16>, vector<32x128xbf16>, vector<48x128xf32> -> vector<48x128xf32>
    %112 = vector.shape_cast %111 : vector<48x128xf32> to vector<2x24x128xf32>
    %113 = vector.extract_strided_slice %112 {offsets = [0, 0, 0], sizes = [2, 24, 32], strides = [1, 1, 1]} : vector<2x24x128xf32> to vector<2x24x32xf32>
    %114 = vector.shape_cast %79 : vector<1x32xf32> to vector<1x1x32xf32>
    %115 = vector.broadcast %114 : vector<1x1x32xf32> to vector<2x24x32xf32>
    %116 = arith.addf %113, %115 : vector<2x24x32xf32>
    %117 = vector.extract_strided_slice %70 {offsets = [0, 128], sizes = [32, 128], strides = [1, 1]} : vector<32x640xbf16> to vector<32x128xbf16>
    %118 = vector.shape_cast %108 : vector<2x24x32xbf16> to vector<48x32xbf16>
    %cst_38 = arith.constant dense<0.000000e+00> : vector<48x128xf32>
    %119 = tpu.matmul %118, %117, %cst_38 {dimension_numbers = #tpu.dot_dimension_numbers<[1], [0], [0], [1], [0, 0, 1, 1], [], []>} : vector<48x32xbf16>, vector<32x128xbf16>, vector<48x128xf32> -> vector<48x128xf32>
    %120 = vector.shape_cast %119 : vector<48x128xf32> to vector<2x24x128xf32>
    %121 = vector.extract_strided_slice %120 {offsets = [0, 0, 0], sizes = [2, 24, 32], strides = [1, 1, 1]} : vector<2x24x128xf32> to vector<2x24x32xf32>
    %122 = vector.shape_cast %80 : vector<1x32xf32> to vector<1x1x32xf32>
    %123 = vector.broadcast %122 : vector<1x1x32xf32> to vector<2x24x32xf32>
    %124 = arith.addf %121, %123 : vector<2x24x32xf32>
    %125 = vector.extract_strided_slice %70 {offsets = [0, 256], sizes = [32, 128], strides = [1, 1]} : vector<32x640xbf16> to vector<32x128xbf16>
    %126 = vector.shape_cast %108 : vector<2x24x32xbf16> to vector<48x32xbf16>
    %cst_39 = arith.constant dense<0.000000e+00> : vector<48x128xf32>
    %127 = tpu.matmul %126, %125, %cst_39 {dimension_numbers = #tpu.dot_dimension_numbers<[1], [0], [0], [1], [0, 0, 1, 1], [], []>} : vector<48x32xbf16>, vector<32x128xbf16>, vector<48x128xf32> -> vector<48x128xf32>
    %128 = vector.shape_cast %127 : vector<48x128xf32> to vector<2x24x128xf32>
    %129 = vector.extract_strided_slice %128 {offsets = [0, 0, 0], sizes = [2, 24, 32], strides = [1, 1, 1]} : vector<2x24x128xf32> to vector<2x24x32xf32>
    %130 = vector.shape_cast %81 : vector<1x32xf32> to vector<1x1x32xf32>
    %131 = vector.broadcast %130 : vector<1x1x32xf32> to vector<2x24x32xf32>
    %132 = arith.addf %129, %131 : vector<2x24x32xf32>
    %133 = vector.extract_strided_slice %116 {offsets = [0, 16, 0], sizes = [2, 8, 32], strides = [1, 1, 1]} : vector<2x24x32xf32> to vector<2x8x32xf32>
    %134 = arith.truncf %133 : vector<2x8x32xf32> to vector<2x8x32xbf16>
    %135 = arith.truncf %124 : vector<2x24x32xf32> to vector<2x24x32xbf16>
    %136 = arith.truncf %132 : vector<2x24x32xf32> to vector<2x24x32xbf16>
    %137 = vector.extract_strided_slice %134 {offsets = [0, 0, 0], sizes = [2, 8, 8], strides = [1, 1, 1]} : vector<2x8x32xbf16> to vector<2x8x8xbf16>
    %138 = vector.extract_strided_slice %135 {offsets = [0, 0, 0], sizes = [2, 24, 8], strides = [1, 1, 1]} : vector<2x24x32xbf16> to vector<2x24x8xbf16>
    "tpu.trace_start"() <{level = 10 : i32, message = "bqd,bkd->bqk"}> : () -> ()
    %cst_40 = arith.constant dense<0.000000e+00> : vector<2x8x24xf32>
    %139 = tpu.matmul %137, %138, %cst_40 {dimension_numbers = #tpu.dot_dimension_numbers<[2], [2], [1], [1], [0, 0, 0, 1, 1, 1], [0], [0]>} : vector<2x8x8xbf16>, vector<2x24x8xbf16>, vector<2x8x24xf32> -> vector<2x8x24xf32>
    "tpu.trace_stop"() : () -> ()
    %cst_41 = arith.constant 0.353553385 : f32
    %140 = vector.broadcast %cst_41 : f32 to vector<2x8x24xf32>
    %141 = arith.mulf %139, %140 : vector<2x8x24xf32>
    %142 = vector.shape_cast %31 : vector<1x24xf32> to vector<1x1x24xf32>
    %143 = vector.broadcast %142 : vector<1x1x24xf32> to vector<2x8x24xf32>
    %144 = arith.addf %141, %143 : vector<2x8x24xf32>
    %cst_42 = arith.constant dense<0xFF800000> : vector<2x8xf32>
    %145 = vector.multi_reduction <maximumf>, %144, %cst_42 [2] : vector<2x8x24xf32> to vector<2x8xf32>
    %146 = vector.shape_cast %145 : vector<2x8xf32> to vector<2x8x1xf32>
    %147 = vector.broadcast %146 : vector<2x8x1xf32> to vector<2x8x24xf32>
    %148 = arith.subf %144, %147 : vector<2x8x24xf32>
    %149 = math.exp %148 : vector<2x8x24xf32>
    %cst_43 = arith.constant dense<0.000000e+00> : vector<2x8xf32>
    %150 = vector.multi_reduction <add>, %149, %cst_43 [2] : vector<2x8x24xf32> to vector<2x8xf32>
    %151 = vector.shape_cast %150 : vector<2x8xf32> to vector<2x8x1xf32>
    %152 = vector.broadcast %151 : vector<2x8x1xf32> to vector<2x8x24xf32>
    %153 = arith.divf %149, %152 : vector<2x8x24xf32>
    %154 = arith.truncf %153 : vector<2x8x24xf32> to vector<2x8x24xbf16>
    %155 = vector.extract_strided_slice %136 {offsets = [0, 0, 0], sizes = [2, 24, 8], strides = [1, 1, 1]} : vector<2x24x32xbf16> to vector<2x24x8xbf16>
    "tpu.trace_start"() <{level = 10 : i32, message = "bqk,bkd->bqd"}> : () -> ()
    %cst_44 = arith.constant dense<0.000000e+00> : vector<2x8x8xf32>
    %156 = tpu.matmul %154, %155, %cst_44 {dimension_numbers = #tpu.dot_dimension_numbers<[2], [1], [1], [2], [0, 0, 0, 1, 1, 2], [0], [0]>} : vector<2x8x24xbf16>, vector<2x24x8xbf16>, vector<2x8x8xf32> -> vector<2x8x8xf32>
    "tpu.trace_stop"() : () -> ()
    %157 = vector.extract_strided_slice %134 {offsets = [0, 0, 8], sizes = [2, 8, 8], strides = [1, 1, 1]} : vector<2x8x32xbf16> to vector<2x8x8xbf16>
    %158 = vector.extract_strided_slice %135 {offsets = [0, 0, 8], sizes = [2, 24, 8], strides = [1, 1, 1]} : vector<2x24x32xbf16> to vector<2x24x8xbf16>
    "tpu.trace_start"() <{level = 10 : i32, message = "bqd,bkd->bqk"}> : () -> ()
    %cst_45 = arith.constant dense<0.000000e+00> : vector<2x8x24xf32>
    %159 = tpu.matmul %157, %158, %cst_45 {dimension_numbers = #tpu.dot_dimension_numbers<[2], [2], [1], [1], [0, 0, 0, 1, 1, 1], [0], [0]>} : vector<2x8x8xbf16>, vector<2x24x8xbf16>, vector<2x8x24xf32> -> vector<2x8x24xf32>
    "tpu.trace_stop"() : () -> ()
    %cst_46 = arith.constant 0.353553385 : f32
    %160 = vector.broadcast %cst_46 : f32 to vector<2x8x24xf32>
    %161 = arith.mulf %159, %160 : vector<2x8x24xf32>
    %162 = vector.shape_cast %31 : vector<1x24xf32> to vector<1x1x24xf32>
    %163 = vector.broadcast %162 : vector<1x1x24xf32> to vector<2x8x24xf32>
    %164 = arith.addf %161, %163 : vector<2x8x24xf32>
    %cst_47 = arith.constant dense<0xFF800000> : vector<2x8xf32>
    %165 = vector.multi_reduction <maximumf>, %164, %cst_47 [2] : vector<2x8x24xf32> to vector<2x8xf32>
    %166 = vector.shape_cast %165 : vector<2x8xf32> to vector<2x8x1xf32>
    %167 = vector.broadcast %166 : vector<2x8x1xf32> to vector<2x8x24xf32>
    %168 = arith.subf %164, %167 : vector<2x8x24xf32>
    %169 = math.exp %168 : vector<2x8x24xf32>
    %cst_48 = arith.constant dense<0.000000e+00> : vector<2x8xf32>
    %170 = vector.multi_reduction <add>, %169, %cst_48 [2] : vector<2x8x24xf32> to vector<2x8xf32>
    %171 = vector.shape_cast %170 : vector<2x8xf32> to vector<2x8x1xf32>
    %172 = vector.broadcast %171 : vector<2x8x1xf32> to vector<2x8x24xf32>
    %173 = arith.divf %169, %172 : vector<2x8x24xf32>
    %174 = arith.truncf %173 : vector<2x8x24xf32> to vector<2x8x24xbf16>
    %175 = vector.extract_strided_slice %136 {offsets = [0, 0, 8], sizes = [2, 24, 8], strides = [1, 1, 1]} : vector<2x24x32xbf16> to vector<2x24x8xbf16>
    "tpu.trace_start"() <{level = 10 : i32, message = "bqk,bkd->bqd"}> : () -> ()
    %cst_49 = arith.constant dense<0.000000e+00> : vector<2x8x8xf32>
    %176 = tpu.matmul %174, %175, %cst_49 {dimension_numbers = #tpu.dot_dimension_numbers<[2], [1], [1], [2], [0, 0, 0, 1, 1, 2], [0], [0]>} : vector<2x8x24xbf16>, vector<2x24x8xbf16>, vector<2x8x8xf32> -> vector<2x8x8xf32>
    "tpu.trace_stop"() : () -> ()
    %177 = vector.extract_strided_slice %134 {offsets = [0, 0, 16], sizes = [2, 8, 8], strides = [1, 1, 1]} : vector<2x8x32xbf16> to vector<2x8x8xbf16>
    %178 = vector.extract_strided_slice %135 {offsets = [0, 0, 16], sizes = [2, 24, 8], strides = [1, 1, 1]} : vector<2x24x32xbf16> to vector<2x24x8xbf16>
    "tpu.trace_start"() <{level = 10 : i32, message = "bqd,bkd->bqk"}> : () -> ()
    %cst_50 = arith.constant dense<0.000000e+00> : vector<2x8x24xf32>
    %179 = tpu.matmul %177, %178, %cst_50 {dimension_numbers = #tpu.dot_dimension_numbers<[2], [2], [1], [1], [0, 0, 0, 1, 1, 1], [0], [0]>} : vector<2x8x8xbf16>, vector<2x24x8xbf16>, vector<2x8x24xf32> -> vector<2x8x24xf32>
    "tpu.trace_stop"() : () -> ()
    %cst_51 = arith.constant 0.353553385 : f32
    %180 = vector.broadcast %cst_51 : f32 to vector<2x8x24xf32>
    %181 = arith.mulf %179, %180 : vector<2x8x24xf32>
    %182 = vector.shape_cast %31 : vector<1x24xf32> to vector<1x1x24xf32>
    %183 = vector.broadcast %182 : vector<1x1x24xf32> to vector<2x8x24xf32>
    %184 = arith.addf %181, %183 : vector<2x8x24xf32>
    %cst_52 = arith.constant dense<0xFF800000> : vector<2x8xf32>
    %185 = vector.multi_reduction <maximumf>, %184, %cst_52 [2] : vector<2x8x24xf32> to vector<2x8xf32>
    %186 = vector.shape_cast %185 : vector<2x8xf32> to vector<2x8x1xf32>
    %187 = vector.broadcast %186 : vector<2x8x1xf32> to vector<2x8x24xf32>
    %188 = arith.subf %184, %187 : vector<2x8x24xf32>
    %189 = math.exp %188 : vector<2x8x24xf32>
    %cst_53 = arith.constant dense<0.000000e+00> : vector<2x8xf32>
    %190 = vector.multi_reduction <add>, %189, %cst_53 [2] : vector<2x8x24xf32> to vector<2x8xf32>
    %191 = vector.shape_cast %190 : vector<2x8xf32> to vector<2x8x1xf32>
    %192 = vector.broadcast %191 : vector<2x8x1xf32> to vector<2x8x24xf32>
    %193 = arith.divf %189, %192 : vector<2x8x24xf32>
    %194 = arith.truncf %193 : vector<2x8x24xf32> to vector<2x8x24xbf16>
    %195 = vector.extract_strided_slice %136 {offsets = [0, 0, 16], sizes = [2, 24, 8], strides = [1, 1, 1]} : vector<2x24x32xbf16> to vector<2x24x8xbf16>
    "tpu.trace_start"() <{level = 10 : i32, message = "bqk,bkd->bqd"}> : () -> ()
    %cst_54 = arith.constant dense<0.000000e+00> : vector<2x8x8xf32>
    %196 = tpu.matmul %194, %195, %cst_54 {dimension_numbers = #tpu.dot_dimension_numbers<[2], [1], [1], [2], [0, 0, 0, 1, 1, 2], [0], [0]>} : vector<2x8x24xbf16>, vector<2x24x8xbf16>, vector<2x8x8xf32> -> vector<2x8x8xf32>
    "tpu.trace_stop"() : () -> ()
    %197 = vector.extract_strided_slice %134 {offsets = [0, 0, 24], sizes = [2, 8, 8], strides = [1, 1, 1]} : vector<2x8x32xbf16> to vector<2x8x8xbf16>
    %198 = vector.extract_strided_slice %135 {offsets = [0, 0, 24], sizes = [2, 24, 8], strides = [1, 1, 1]} : vector<2x24x32xbf16> to vector<2x24x8xbf16>
    "tpu.trace_start"() <{level = 10 : i32, message = "bqd,bkd->bqk"}> : () -> ()
    %cst_55 = arith.constant dense<0.000000e+00> : vector<2x8x24xf32>
    %199 = tpu.matmul %197, %198, %cst_55 {dimension_numbers = #tpu.dot_dimension_numbers<[2], [2], [1], [1], [0, 0, 0, 1, 1, 1], [0], [0]>} : vector<2x8x8xbf16>, vector<2x24x8xbf16>, vector<2x8x24xf32> -> vector<2x8x24xf32>
    "tpu.trace_stop"() : () -> ()
    %cst_56 = arith.constant 0.353553385 : f32
    %200 = vector.broadcast %cst_56 : f32 to vector<2x8x24xf32>
    %201 = arith.mulf %199, %200 : vector<2x8x24xf32>
    %202 = vector.shape_cast %31 : vector<1x24xf32> to vector<1x1x24xf32>
    %203 = vector.broadcast %202 : vector<1x1x24xf32> to vector<2x8x24xf32>
    %204 = arith.addf %201, %203 : vector<2x8x24xf32>
    %cst_57 = arith.constant dense<0xFF800000> : vector<2x8xf32>
    %205 = vector.multi_reduction <maximumf>, %204, %cst_57 [2] : vector<2x8x24xf32> to vector<2x8xf32>
    %206 = vector.shape_cast %205 : vector<2x8xf32> to vector<2x8x1xf32>
    %207 = vector.broadcast %206 : vector<2x8x1xf32> to vector<2x8x24xf32>
    %208 = arith.subf %204, %207 : vector<2x8x24xf32>
    %209 = math.exp %208 : vector<2x8x24xf32>
    %cst_58 = arith.constant dense<0.000000e+00> : vector<2x8xf32>
    %210 = vector.multi_reduction <add>, %209, %cst_58 [2] : vector<2x8x24xf32> to vector<2x8xf32>
    %211 = vector.shape_cast %210 : vector<2x8xf32> to vector<2x8x1xf32>
    %212 = vector.broadcast %211 : vector<2x8x1xf32> to vector<2x8x24xf32>
    %213 = arith.divf %209, %212 : vector<2x8x24xf32>
    %214 = arith.truncf %213 : vector<2x8x24xf32> to vector<2x8x24xbf16>
    %215 = vector.extract_strided_slice %136 {offsets = [0, 0, 24], sizes = [2, 24, 8], strides = [1, 1, 1]} : vector<2x24x32xbf16> to vector<2x24x8xbf16>
    "tpu.trace_start"() <{level = 10 : i32, message = "bqk,bkd->bqd"}> : () -> ()
    %cst_59 = arith.constant dense<0.000000e+00> : vector<2x8x8xf32>
    %216 = tpu.matmul %214, %215, %cst_59 {dimension_numbers = #tpu.dot_dimension_numbers<[2], [1], [1], [2], [0, 0, 0, 1, 1, 2], [0], [0]>} : vector<2x8x24xbf16>, vector<2x24x8xbf16>, vector<2x8x8xf32> -> vector<2x8x8xf32>
    "tpu.trace_stop"() : () -> ()
    %217 = tpu.concatenate %156, %176, %196, %216 in 2 : vector<2x8x8xf32>, vector<2x8x8xf32>, vector<2x8x8xf32>, vector<2x8x8xf32> -> vector<2x8x32xf32>
    %218 = arith.truncf %217 : vector<2x8x32xf32> to vector<2x8x32xbf16>
    %219 = vector.extract_strided_slice %70 {offsets = [0, 384], sizes = [32, 128], strides = [1, 1]} : vector<32x640xbf16> to vector<32x128xbf16>
    %220 = vector.shape_cast %218 : vector<2x8x32xbf16> to vector<16x32xbf16>
    %cst_60 = arith.constant dense<0.000000e+00> : vector<16x128xf32>
    %221 = tpu.matmul %220, %219, %cst_60 {dimension_numbers = #tpu.dot_dimension_numbers<[1], [0], [0], [1], [0, 0, 1, 1], [], []>} : vector<16x32xbf16>, vector<32x128xbf16>, vector<16x128xf32> -> vector<16x128xf32>
    %222 = vector.shape_cast %221 : vector<16x128xf32> to vector<2x8x128xf32>
    %223 = vector.extract_strided_slice %222 {offsets = [0, 0, 0], sizes = [2, 8, 32], strides = [1, 1, 1]} : vector<2x8x128xf32> to vector<2x8x32xf32>
    %224 = arith.addf %10, %223 : vector<2x8x32xf32>
    %225 = vector.shape_cast %82 : vector<1x32xf32> to vector<1x1x32xf32>
    %226 = vector.broadcast %225 : vector<1x1x32xf32> to vector<2x8x32xf32>
    %227 = arith.addf %224, %226 : vector<2x8x32xf32>
    %cst_61 = arith.constant dense<0.000000e+00> : vector<2x8xf32>
    %228 = vector.multi_reduction <add>, %227, %cst_61 [2] : vector<2x8x32xf32> to vector<2x8xf32>
    %229 = vector.shape_cast %228 : vector<2x8xf32> to vector<2x8x1xf32>
    %cst_62 = arith.constant 3.200000e+01 : f32
    %230 = vector.broadcast %cst_62 : f32 to vector<2x8x1xf32>
    %231 = arith.divf %229, %230 : vector<2x8x1xf32>
    %232 = vector.broadcast %231 : vector<2x8x1xf32> to vector<2x8x32xf32>
    %233 = arith.subf %227, %232 : vector<2x8x32xf32>
    %234 = arith.mulf %233, %233 : vector<2x8x32xf32>
    %cst_63 = arith.constant dense<0.000000e+00> : vector<2x8xf32>
    %235 = vector.multi_reduction <add>, %234, %cst_63 [2] : vector<2x8x32xf32> to vector<2x8xf32>
    %236 = vector.shape_cast %235 : vector<2x8xf32> to vector<2x8x1xf32>
    %cst_64 = arith.constant 3.200000e+01 : f32
    %237 = vector.broadcast %cst_64 : f32 to vector<2x8x1xf32>
    %238 = arith.divf %236, %237 : vector<2x8x1xf32>
    %cst_65 = arith.constant 9.99999974E-6 : f32
    %239 = vector.broadcast %cst_65 : f32 to vector<2x8x1xf32>
    %240 = arith.addf %238, %239 : vector<2x8x1xf32>
    %241 = math.rsqrt %240 : vector<2x8x1xf32>
    %242 = vector.broadcast %241 : vector<2x8x1xf32> to vector<2x8x32xf32>
    %243 = arith.mulf %233, %242 : vector<2x8x32xf32>
    %244 = vector.shape_cast %77 : vector<1x32xf32> to vector<1x1x32xf32>
    %245 = vector.broadcast %244 : vector<1x1x32xf32> to vector<2x8x32xf32>
    %246 = arith.mulf %243, %245 : vector<2x8x32xf32>
    %247 = vector.shape_cast %78 : vector<1x32xf32> to vector<1x1x32xf32>
    %248 = vector.broadcast %247 : vector<1x1x32xf32> to vector<2x8x32xf32>
    %249 = arith.addf %246, %248 : vector<2x8x32xf32>
    %250 = arith.truncf %249 : vector<2x8x32xf32> to vector<2x8x32xbf16>
    %251 = vector.extract_strided_slice %70 {offsets = [0, 512], sizes = [32, 128], strides = [1, 1]} : vector<32x640xbf16> to vector<32x128xbf16>
    %252 = vector.shape_cast %250 : vector<2x8x32xbf16> to vector<16x32xbf16>
    %cst_66 = arith.constant dense<0.000000e+00> : vector<16x128xf32>
    %253 = tpu.matmul %252, %251, %cst_66 {dimension_numbers = #tpu.dot_dimension_numbers<[1], [0], [0], [1], [0, 0, 1, 1], [], []>} : vector<16x32xbf16>, vector<32x128xbf16>, vector<16x128xf32> -> vector<16x128xf32>
    %254 = vector.shape_cast %253 : vector<16x128xf32> to vector<2x8x128xf32>
    %255 = vector.shape_cast %83 : vector<1x128xf32> to vector<1x1x128xf32>
    %256 = vector.broadcast %255 : vector<1x1x128xf32> to vector<2x8x128xf32>
    %257 = arith.addf %254, %256 : vector<2x8x128xf32>
    %258 = arith.mulf %257, %257 : vector<2x8x128xf32>
    %259 = arith.mulf %257, %258 : vector<2x8x128xf32>
    %cst_67 = arith.constant 4.471500e-02 : f32
    %260 = vector.broadcast %cst_67 : f32 to vector<2x8x128xf32>
    %261 = arith.mulf %260, %259 : vector<2x8x128xf32>
    %262 = arith.addf %257, %261 : vector<2x8x128xf32>
    %cst_68 = arith.constant 0.797884583 : f32
    %263 = vector.broadcast %cst_68 : f32 to vector<2x8x128xf32>
    %264 = arith.mulf %263, %262 : vector<2x8x128xf32>
    %265 = math.tanh %264 : vector<2x8x128xf32>
    %cst_69 = arith.constant 1.000000e+00 : f32
    %266 = vector.broadcast %cst_69 : f32 to vector<2x8x128xf32>
    %267 = arith.addf %266, %265 : vector<2x8x128xf32>
    %cst_70 = arith.constant 5.000000e-01 : f32
    %268 = vector.broadcast %cst_70 : f32 to vector<2x8x128xf32>
    %269 = arith.mulf %268, %267 : vector<2x8x128xf32>
    %270 = arith.mulf %257, %269 : vector<2x8x128xf32>
    %271 = arith.truncf %270 : vector<2x8x128xf32> to vector<2x8x128xbf16>
    %272 = vector.shape_cast %271 : vector<2x8x128xbf16> to vector<16x128xbf16>
    %cst_71 = arith.constant dense<0.000000e+00> : vector<16x32xf32>
    %273 = tpu.matmul %272, %72, %cst_71 {dimension_numbers = #tpu.dot_dimension_numbers<[1], [0], [0], [1], [0, 0, 1, 1], [], []>} : vector<16x128xbf16>, vector<128x32xbf16>, vector<16x32xf32> -> vector<16x32xf32>
    %274 = vector.shape_cast %273 : vector<16x32xf32> to vector<2x8x32xf32>
    %275 = arith.addf %227, %274 : vector<2x8x32xf32>
    %276 = vector.shape_cast %84 : vector<1x32xf32> to vector<1x1x32xf32>
    %277 = vector.broadcast %276 : vector<1x1x32xf32> to vector<2x8x32xf32>
    %278 = arith.addf %275, %277 : vector<2x8x32xf32>
    %c1 = arith.constant 1 : index
    %c0_72 = arith.constant 0 : index
    %c0_73 = arith.constant 0 : index
    %279 = vector.load %arg4[%c1, %c0_72, %c0_73] : memref<4x32x640xbf16, #tpu.memory_space<vmem>>, vector<1x32x640xbf16>
    %280 = vector.shape_cast %279 : vector<1x32x640xbf16> to vector<32x640xbf16>
    %c1_74 = arith.constant 1 : index
    %c0_75 = arith.constant 0 : index
    %c0_76 = arith.constant 0 : index
    %281 = vector.load %arg5[%c1_74, %c0_75, %c0_76] : memref<4x128x32xbf16, #tpu.memory_space<vmem>>, vector<1x128x32xbf16>
    %282 = vector.shape_cast %281 : vector<1x128x32xbf16> to vector<128x32xbf16>
    %c1_77 = arith.constant 1 : index
    %c0_78 = arith.constant 0 : index
    %c0_79 = arith.constant 0 : index
    %283 = vector.load %arg6[%c1_77, %c0_78, %c0_79] : memref<4x10x128xf32, #tpu.memory_space<vmem>>, vector<1x10x128xf32>
    %284 = vector.shape_cast %283 : vector<1x10x128xf32> to vector<10x128xf32>
    %285 = vector.extract_strided_slice %284 {offsets = [0, 0], sizes = [1, 32], strides = [1, 1]} : vector<10x128xf32> to vector<1x32xf32>
    %286 = vector.extract_strided_slice %284 {offsets = [1, 0], sizes = [1, 32], strides = [1, 1]} : vector<10x128xf32> to vector<1x32xf32>
    %287 = vector.extract_strided_slice %284 {offsets = [2, 0], sizes = [1, 32], strides = [1, 1]} : vector<10x128xf32> to vector<1x32xf32>
    %288 = vector.extract_strided_slice %284 {offsets = [3, 0], sizes = [1, 32], strides = [1, 1]} : vector<10x128xf32> to vector<1x32xf32>
    %289 = vector.extract_strided_slice %284 {offsets = [4, 0], sizes = [1, 32], strides = [1, 1]} : vector<10x128xf32> to vector<1x32xf32>
    %290 = vector.extract_strided_slice %284 {offsets = [5, 0], sizes = [1, 32], strides = [1, 1]} : vector<10x128xf32> to vector<1x32xf32>
    %291 = vector.extract_strided_slice %284 {offsets = [6, 0], sizes = [1, 32], strides = [1, 1]} : vector<10x128xf32> to vector<1x32xf32>
    %292 = vector.extract_strided_slice %284 {offsets = [7, 0], sizes = [1, 32], strides = [1, 1]} : vector<10x128xf32> to vector<1x32xf32>
    %293 = vector.extract_strided_slice %284 {offsets = [8, 0], sizes = [1, 128], strides = [1, 1]} : vector<10x128xf32> to vector<1x128xf32>
    %294 = vector.extract_strided_slice %284 {offsets = [9, 0], sizes = [1, 32], strides = [1, 1]} : vector<10x128xf32> to vector<1x32xf32>
    %295 = tpu.concatenate %22, %19 in 1 : vector<2x16x32xf32>, vector<2x4x32xf32> -> vector<2x20x32xf32>
    %cst_80 = arith.constant dense<0.000000e+00> : vector<2x20xf32>
    %296 = vector.multi_reduction <add>, %295, %cst_80 [2] : vector<2x20x32xf32> to vector<2x20xf32>
    %297 = vector.shape_cast %296 : vector<2x20xf32> to vector<2x20x1xf32>
    %cst_81 = arith.constant 3.200000e+01 : f32
    %298 = vector.broadcast %cst_81 : f32 to vector<2x20x1xf32>
    %299 = arith.divf %297, %298 : vector<2x20x1xf32>
    %300 = vector.broadcast %299 : vector<2x20x1xf32> to vector<2x20x32xf32>
    %301 = arith.subf %295, %300 : vector<2x20x32xf32>
    %302 = arith.mulf %301, %301 : vector<2x20x32xf32>
    %cst_82 = arith.constant dense<0.000000e+00> : vector<2x20xf32>
    %303 = vector.multi_reduction <add>, %302, %cst_82 [2] : vector<2x20x32xf32> to vector<2x20xf32>
    %304 = vector.shape_cast %303 : vector<2x20xf32> to vector<2x20x1xf32>
    %cst_83 = arith.constant 3.200000e+01 : f32
    %305 = vector.broadcast %cst_83 : f32 to vector<2x20x1xf32>
    %306 = arith.divf %304, %305 : vector<2x20x1xf32>
    %cst_84 = arith.constant 9.99999974E-6 : f32
    %307 = vector.broadcast %cst_84 : f32 to vector<2x20x1xf32>
    %308 = arith.addf %306, %307 : vector<2x20x1xf32>
    %309 = math.rsqrt %308 : vector<2x20x1xf32>
    %310 = vector.broadcast %309 : vector<2x20x1xf32> to vector<2x20x32xf32>
    %311 = arith.mulf %301, %310 : vector<2x20x32xf32>
    %312 = vector.shape_cast %285 : vector<1x32xf32> to vector<1x1x32xf32>
    %313 = vector.broadcast %312 : vector<1x1x32xf32> to vector<2x20x32xf32>
    %314 = arith.mulf %311, %313 : vector<2x20x32xf32>
    %315 = vector.shape_cast %286 : vector<1x32xf32> to vector<1x1x32xf32>
    %316 = vector.broadcast %315 : vector<1x1x32xf32> to vector<2x20x32xf32>
    %317 = arith.addf %314, %316 : vector<2x20x32xf32>
    %318 = arith.truncf %317 : vector<2x20x32xf32> to vector<2x20x32xbf16>
    %319 = vector.extract_strided_slice %280 {offsets = [0, 0], sizes = [32, 128], strides = [1, 1]} : vector<32x640xbf16> to vector<32x128xbf16>
    %320 = vector.shape_cast %318 : vector<2x20x32xbf16> to vector<40x32xbf16>
    %cst_85 = arith.constant dense<0.000000e+00> : vector<40x128xf32>
    %321 = tpu.matmul %320, %319, %cst_85 {dimension_numbers = #tpu.dot_dimension_numbers<[1], [0], [0], [1], [0, 0, 1, 1], [], []>} : vector<40x32xbf16>, vector<32x128xbf16>, vector<40x128xf32> -> vector<40x128xf32>
    %322 = vector.shape_cast %321 : vector<40x128xf32> to vector<2x20x128xf32>
    %323 = vector.extract_strided_slice %322 {offsets = [0, 0, 0], sizes = [2, 20, 32], strides = [1, 1, 1]} : vector<2x20x128xf32> to vector<2x20x32xf32>
    %324 = vector.shape_cast %289 : vector<1x32xf32> to vector<1x1x32xf32>
    %325 = vector.broadcast %324 : vector<1x1x32xf32> to vector<2x20x32xf32>
    %326 = arith.addf %323, %325 : vector<2x20x32xf32>
    %327 = vector.extract_strided_slice %280 {offsets = [0, 128], sizes = [32, 128], strides = [1, 1]} : vector<32x640xbf16> to vector<32x128xbf16>
    %328 = vector.shape_cast %318 : vector<2x20x32xbf16> to vector<40x32xbf16>
    %cst_86 = arith.constant dense<0.000000e+00> : vector<40x128xf32>
    %329 = tpu.matmul %328, %327, %cst_86 {dimension_numbers = #tpu.dot_dimension_numbers<[1], [0], [0], [1], [0, 0, 1, 1], [], []>} : vector<40x32xbf16>, vector<32x128xbf16>, vector<40x128xf32> -> vector<40x128xf32>
    %330 = vector.shape_cast %329 : vector<40x128xf32> to vector<2x20x128xf32>
    %331 = vector.extract_strided_slice %330 {offsets = [0, 0, 0], sizes = [2, 20, 32], strides = [1, 1, 1]} : vector<2x20x128xf32> to vector<2x20x32xf32>
    %332 = vector.shape_cast %290 : vector<1x32xf32> to vector<1x1x32xf32>
    %333 = vector.broadcast %332 : vector<1x1x32xf32> to vector<2x20x32xf32>
    %334 = arith.addf %331, %333 : vector<2x20x32xf32>
    %335 = vector.extract_strided_slice %280 {offsets = [0, 256], sizes = [32, 128], strides = [1, 1]} : vector<32x640xbf16> to vector<32x128xbf16>
    %336 = vector.shape_cast %318 : vector<2x20x32xbf16> to vector<40x32xbf16>
    %cst_87 = arith.constant dense<0.000000e+00> : vector<40x128xf32>
    %337 = tpu.matmul %336, %335, %cst_87 {dimension_numbers = #tpu.dot_dimension_numbers<[1], [0], [0], [1], [0, 0, 1, 1], [], []>} : vector<40x32xbf16>, vector<32x128xbf16>, vector<40x128xf32> -> vector<40x128xf32>
    %338 = vector.shape_cast %337 : vector<40x128xf32> to vector<2x20x128xf32>
    %339 = vector.extract_strided_slice %338 {offsets = [0, 0, 0], sizes = [2, 20, 32], strides = [1, 1, 1]} : vector<2x20x128xf32> to vector<2x20x32xf32>
    %340 = vector.shape_cast %291 : vector<1x32xf32> to vector<1x1x32xf32>
    %341 = vector.broadcast %340 : vector<1x1x32xf32> to vector<2x20x32xf32>
    %342 = arith.addf %339, %341 : vector<2x20x32xf32>
    %343 = vector.extract_strided_slice %326 {offsets = [0, 16, 0], sizes = [2, 4, 32], strides = [1, 1, 1]} : vector<2x20x32xf32> to vector<2x4x32xf32>
    %344 = arith.truncf %343 : vector<2x4x32xf32> to vector<2x4x32xbf16>
    %345 = arith.truncf %334 : vector<2x20x32xf32> to vector<2x20x32xbf16>
    %346 = arith.truncf %342 : vector<2x20x32xf32> to vector<2x20x32xbf16>
    %347 = vector.extract_strided_slice %344 {offsets = [0, 0, 0], sizes = [2, 4, 8], strides = [1, 1, 1]} : vector<2x4x32xbf16> to vector<2x4x8xbf16>
    %348 = vector.extract_strided_slice %345 {offsets = [0, 0, 0], sizes = [2, 20, 8], strides = [1, 1, 1]} : vector<2x20x32xbf16> to vector<2x20x8xbf16>
    "tpu.trace_start"() <{level = 10 : i32, message = "bqd,bkd->bqk"}> : () -> ()
    %cst_88 = arith.constant dense<0.000000e+00> : vector<2x4x20xf32>
    %349 = tpu.matmul %347, %348, %cst_88 {dimension_numbers = #tpu.dot_dimension_numbers<[2], [2], [1], [1], [0, 0, 0, 1, 1, 1], [0], [0]>} : vector<2x4x8xbf16>, vector<2x20x8xbf16>, vector<2x4x20xf32> -> vector<2x4x20xf32>
    "tpu.trace_stop"() : () -> ()
    %cst_89 = arith.constant 0.353553385 : f32
    %350 = vector.broadcast %cst_89 : f32 to vector<2x4x20xf32>
    %351 = arith.mulf %349, %350 : vector<2x4x20xf32>
    %352 = vector.shape_cast %40 : vector<1x20xf32> to vector<1x1x20xf32>
    %353 = vector.broadcast %352 : vector<1x1x20xf32> to vector<2x4x20xf32>
    %354 = arith.addf %351, %353 : vector<2x4x20xf32>
    %cst_90 = arith.constant dense<0xFF800000> : vector<2x4xf32>
    %355 = vector.multi_reduction <maximumf>, %354, %cst_90 [2] : vector<2x4x20xf32> to vector<2x4xf32>
    %356 = vector.shape_cast %355 : vector<2x4xf32> to vector<2x4x1xf32>
    %357 = vector.broadcast %356 : vector<2x4x1xf32> to vector<2x4x20xf32>
    %358 = arith.subf %354, %357 : vector<2x4x20xf32>
    %359 = math.exp %358 : vector<2x4x20xf32>
    %cst_91 = arith.constant dense<0.000000e+00> : vector<2x4xf32>
    %360 = vector.multi_reduction <add>, %359, %cst_91 [2] : vector<2x4x20xf32> to vector<2x4xf32>
    %361 = vector.shape_cast %360 : vector<2x4xf32> to vector<2x4x1xf32>
    %362 = vector.broadcast %361 : vector<2x4x1xf32> to vector<2x4x20xf32>
    %363 = arith.divf %359, %362 : vector<2x4x20xf32>
    %364 = arith.truncf %363 : vector<2x4x20xf32> to vector<2x4x20xbf16>
    %365 = vector.extract_strided_slice %346 {offsets = [0, 0, 0], sizes = [2, 20, 8], strides = [1, 1, 1]} : vector<2x20x32xbf16> to vector<2x20x8xbf16>
    "tpu.trace_start"() <{level = 10 : i32, message = "bqk,bkd->bqd"}> : () -> ()
    %cst_92 = arith.constant dense<0.000000e+00> : vector<2x4x8xf32>
    %366 = tpu.matmul %364, %365, %cst_92 {dimension_numbers = #tpu.dot_dimension_numbers<[2], [1], [1], [2], [0, 0, 0, 1, 1, 2], [0], [0]>} : vector<2x4x20xbf16>, vector<2x20x8xbf16>, vector<2x4x8xf32> -> vector<2x4x8xf32>
    "tpu.trace_stop"() : () -> ()
    %367 = vector.extract_strided_slice %344 {offsets = [0, 0, 8], sizes = [2, 4, 8], strides = [1, 1, 1]} : vector<2x4x32xbf16> to vector<2x4x8xbf16>
    %368 = vector.extract_strided_slice %345 {offsets = [0, 0, 8], sizes = [2, 20, 8], strides = [1, 1, 1]} : vector<2x20x32xbf16> to vector<2x20x8xbf16>
    "tpu.trace_start"() <{level = 10 : i32, message = "bqd,bkd->bqk"}> : () -> ()
    %cst_93 = arith.constant dense<0.000000e+00> : vector<2x4x20xf32>
    %369 = tpu.matmul %367, %368, %cst_93 {dimension_numbers = #tpu.dot_dimension_numbers<[2], [2], [1], [1], [0, 0, 0, 1, 1, 1], [0], [0]>} : vector<2x4x8xbf16>, vector<2x20x8xbf16>, vector<2x4x20xf32> -> vector<2x4x20xf32>
    "tpu.trace_stop"() : () -> ()
    %cst_94 = arith.constant 0.353553385 : f32
    %370 = vector.broadcast %cst_94 : f32 to vector<2x4x20xf32>
    %371 = arith.mulf %369, %370 : vector<2x4x20xf32>
    %372 = vector.shape_cast %40 : vector<1x20xf32> to vector<1x1x20xf32>
    %373 = vector.broadcast %372 : vector<1x1x20xf32> to vector<2x4x20xf32>
    %374 = arith.addf %371, %373 : vector<2x4x20xf32>
    %cst_95 = arith.constant dense<0xFF800000> : vector<2x4xf32>
    %375 = vector.multi_reduction <maximumf>, %374, %cst_95 [2] : vector<2x4x20xf32> to vector<2x4xf32>
    %376 = vector.shape_cast %375 : vector<2x4xf32> to vector<2x4x1xf32>
    %377 = vector.broadcast %376 : vector<2x4x1xf32> to vector<2x4x20xf32>
    %378 = arith.subf %374, %377 : vector<2x4x20xf32>
    %379 = math.exp %378 : vector<2x4x20xf32>
    %cst_96 = arith.constant dense<0.000000e+00> : vector<2x4xf32>
    %380 = vector.multi_reduction <add>, %379, %cst_96 [2] : vector<2x4x20xf32> to vector<2x4xf32>
    %381 = vector.shape_cast %380 : vector<2x4xf32> to vector<2x4x1xf32>
    %382 = vector.broadcast %381 : vector<2x4x1xf32> to vector<2x4x20xf32>
    %383 = arith.divf %379, %382 : vector<2x4x20xf32>
    %384 = arith.truncf %383 : vector<2x4x20xf32> to vector<2x4x20xbf16>
    %385 = vector.extract_strided_slice %346 {offsets = [0, 0, 8], sizes = [2, 20, 8], strides = [1, 1, 1]} : vector<2x20x32xbf16> to vector<2x20x8xbf16>
    "tpu.trace_start"() <{level = 10 : i32, message = "bqk,bkd->bqd"}> : () -> ()
    %cst_97 = arith.constant dense<0.000000e+00> : vector<2x4x8xf32>
    %386 = tpu.matmul %384, %385, %cst_97 {dimension_numbers = #tpu.dot_dimension_numbers<[2], [1], [1], [2], [0, 0, 0, 1, 1, 2], [0], [0]>} : vector<2x4x20xbf16>, vector<2x20x8xbf16>, vector<2x4x8xf32> -> vector<2x4x8xf32>
    "tpu.trace_stop"() : () -> ()
    %387 = vector.extract_strided_slice %344 {offsets = [0, 0, 16], sizes = [2, 4, 8], strides = [1, 1, 1]} : vector<2x4x32xbf16> to vector<2x4x8xbf16>
    %388 = vector.extract_strided_slice %345 {offsets = [0, 0, 16], sizes = [2, 20, 8], strides = [1, 1, 1]} : vector<2x20x32xbf16> to vector<2x20x8xbf16>
    "tpu.trace_start"() <{level = 10 : i32, message = "bqd,bkd->bqk"}> : () -> ()
    %cst_98 = arith.constant dense<0.000000e+00> : vector<2x4x20xf32>
    %389 = tpu.matmul %387, %388, %cst_98 {dimension_numbers = #tpu.dot_dimension_numbers<[2], [2], [1], [1], [0, 0, 0, 1, 1, 1], [0], [0]>} : vector<2x4x8xbf16>, vector<2x20x8xbf16>, vector<2x4x20xf32> -> vector<2x4x20xf32>
    "tpu.trace_stop"() : () -> ()
    %cst_99 = arith.constant 0.353553385 : f32
    %390 = vector.broadcast %cst_99 : f32 to vector<2x4x20xf32>
    %391 = arith.mulf %389, %390 : vector<2x4x20xf32>
    %392 = vector.shape_cast %40 : vector<1x20xf32> to vector<1x1x20xf32>
    %393 = vector.broadcast %392 : vector<1x1x20xf32> to vector<2x4x20xf32>
    %394 = arith.addf %391, %393 : vector<2x4x20xf32>
    %cst_100 = arith.constant dense<0xFF800000> : vector<2x4xf32>
    %395 = vector.multi_reduction <maximumf>, %394, %cst_100 [2] : vector<2x4x20xf32> to vector<2x4xf32>
    %396 = vector.shape_cast %395 : vector<2x4xf32> to vector<2x4x1xf32>
    %397 = vector.broadcast %396 : vector<2x4x1xf32> to vector<2x4x20xf32>
    %398 = arith.subf %394, %397 : vector<2x4x20xf32>
    %399 = math.exp %398 : vector<2x4x20xf32>
    %cst_101 = arith.constant dense<0.000000e+00> : vector<2x4xf32>
    %400 = vector.multi_reduction <add>, %399, %cst_101 [2] : vector<2x4x20xf32> to vector<2x4xf32>
    %401 = vector.shape_cast %400 : vector<2x4xf32> to vector<2x4x1xf32>
    %402 = vector.broadcast %401 : vector<2x4x1xf32> to vector<2x4x20xf32>
    %403 = arith.divf %399, %402 : vector<2x4x20xf32>
    %404 = arith.truncf %403 : vector<2x4x20xf32> to vector<2x4x20xbf16>
    %405 = vector.extract_strided_slice %346 {offsets = [0, 0, 16], sizes = [2, 20, 8], strides = [1, 1, 1]} : vector<2x20x32xbf16> to vector<2x20x8xbf16>
    "tpu.trace_start"() <{level = 10 : i32, message = "bqk,bkd->bqd"}> : () -> ()
    %cst_102 = arith.constant dense<0.000000e+00> : vector<2x4x8xf32>
    %406 = tpu.matmul %404, %405, %cst_102 {dimension_numbers = #tpu.dot_dimension_numbers<[2], [1], [1], [2], [0, 0, 0, 1, 1, 2], [0], [0]>} : vector<2x4x20xbf16>, vector<2x20x8xbf16>, vector<2x4x8xf32> -> vector<2x4x8xf32>
    "tpu.trace_stop"() : () -> ()
    %407 = vector.extract_strided_slice %344 {offsets = [0, 0, 24], sizes = [2, 4, 8], strides = [1, 1, 1]} : vector<2x4x32xbf16> to vector<2x4x8xbf16>
    %408 = vector.extract_strided_slice %345 {offsets = [0, 0, 24], sizes = [2, 20, 8], strides = [1, 1, 1]} : vector<2x20x32xbf16> to vector<2x20x8xbf16>
    "tpu.trace_start"() <{level = 10 : i32, message = "bqd,bkd->bqk"}> : () -> ()
    %cst_103 = arith.constant dense<0.000000e+00> : vector<2x4x20xf32>
    %409 = tpu.matmul %407, %408, %cst_103 {dimension_numbers = #tpu.dot_dimension_numbers<[2], [2], [1], [1], [0, 0, 0, 1, 1, 1], [0], [0]>} : vector<2x4x8xbf16>, vector<2x20x8xbf16>, vector<2x4x20xf32> -> vector<2x4x20xf32>
    "tpu.trace_stop"() : () -> ()
    %cst_104 = arith.constant 0.353553385 : f32
    %410 = vector.broadcast %cst_104 : f32 to vector<2x4x20xf32>
    %411 = arith.mulf %409, %410 : vector<2x4x20xf32>
    %412 = vector.shape_cast %40 : vector<1x20xf32> to vector<1x1x20xf32>
    %413 = vector.broadcast %412 : vector<1x1x20xf32> to vector<2x4x20xf32>
    %414 = arith.addf %411, %413 : vector<2x4x20xf32>
    %cst_105 = arith.constant dense<0xFF800000> : vector<2x4xf32>
    %415 = vector.multi_reduction <maximumf>, %414, %cst_105 [2] : vector<2x4x20xf32> to vector<2x4xf32>
    %416 = vector.shape_cast %415 : vector<2x4xf32> to vector<2x4x1xf32>
    %417 = vector.broadcast %416 : vector<2x4x1xf32> to vector<2x4x20xf32>
    %418 = arith.subf %414, %417 : vector<2x4x20xf32>
    %419 = math.exp %418 : vector<2x4x20xf32>
    %cst_106 = arith.constant dense<0.000000e+00> : vector<2x4xf32>
    %420 = vector.multi_reduction <add>, %419, %cst_106 [2] : vector<2x4x20xf32> to vector<2x4xf32>
    %421 = vector.shape_cast %420 : vector<2x4xf32> to vector<2x4x1xf32>
    %422 = vector.broadcast %421 : vector<2x4x1xf32> to vector<2x4x20xf32>
    %423 = arith.divf %419, %422 : vector<2x4x20xf32>
    %424 = arith.truncf %423 : vector<2x4x20xf32> to vector<2x4x20xbf16>
    %425 = vector.extract_strided_slice %346 {offsets = [0, 0, 24], sizes = [2, 20, 8], strides = [1, 1, 1]} : vector<2x20x32xbf16> to vector<2x20x8xbf16>
    "tpu.trace_start"() <{level = 10 : i32, message = "bqk,bkd->bqd"}> : () -> ()
    %cst_107 = arith.constant dense<0.000000e+00> : vector<2x4x8xf32>
    %426 = tpu.matmul %424, %425, %cst_107 {dimension_numbers = #tpu.dot_dimension_numbers<[2], [1], [1], [2], [0, 0, 0, 1, 1, 2], [0], [0]>} : vector<2x4x20xbf16>, vector<2x20x8xbf16>, vector<2x4x8xf32> -> vector<2x4x8xf32>
    "tpu.trace_stop"() : () -> ()
    %427 = tpu.concatenate %366, %386, %406, %426 in 2 : vector<2x4x8xf32>, vector<2x4x8xf32>, vector<2x4x8xf32>, vector<2x4x8xf32> -> vector<2x4x32xf32>
    %428 = arith.truncf %427 : vector<2x4x32xf32> to vector<2x4x32xbf16>
    %429 = vector.extract_strided_slice %280 {offsets = [0, 384], sizes = [32, 128], strides = [1, 1]} : vector<32x640xbf16> to vector<32x128xbf16>
    %430 = vector.shape_cast %428 : vector<2x4x32xbf16> to vector<8x32xbf16>
    %cst_108 = arith.constant dense<0.000000e+00> : vector<8x128xf32>
    %431 = tpu.matmul %430, %429, %cst_108 {dimension_numbers = #tpu.dot_dimension_numbers<[1], [0], [0], [1], [0, 0, 1, 1], [], []>} : vector<8x32xbf16>, vector<32x128xbf16>, vector<8x128xf32> -> vector<8x128xf32>
    %432 = vector.shape_cast %431 : vector<8x128xf32> to vector<2x4x128xf32>
    %433 = vector.extract_strided_slice %432 {offsets = [0, 0, 0], sizes = [2, 4, 32], strides = [1, 1, 1]} : vector<2x4x128xf32> to vector<2x4x32xf32>
    %434 = arith.addf %19, %433 : vector<2x4x32xf32>
    %435 = vector.shape_cast %292 : vector<1x32xf32> to vector<1x1x32xf32>
    %436 = vector.broadcast %435 : vector<1x1x32xf32> to vector<2x4x32xf32>
    %437 = arith.addf %434, %436 : vector<2x4x32xf32>
    %cst_109 = arith.constant dense<0.000000e+00> : vector<2x4xf32>
    %438 = vector.multi_reduction <add>, %437, %cst_109 [2] : vector<2x4x32xf32> to vector<2x4xf32>
    %439 = vector.shape_cast %438 : vector<2x4xf32> to vector<2x4x1xf32>
    %cst_110 = arith.constant 3.200000e+01 : f32
    %440 = vector.broadcast %cst_110 : f32 to vector<2x4x1xf32>
    %441 = arith.divf %439, %440 : vector<2x4x1xf32>
    %442 = vector.broadcast %441 : vector<2x4x1xf32> to vector<2x4x32xf32>
    %443 = arith.subf %437, %442 : vector<2x4x32xf32>
    %444 = arith.mulf %443, %443 : vector<2x4x32xf32>
    %cst_111 = arith.constant dense<0.000000e+00> : vector<2x4xf32>
    %445 = vector.multi_reduction <add>, %444, %cst_111 [2] : vector<2x4x32xf32> to vector<2x4xf32>
    %446 = vector.shape_cast %445 : vector<2x4xf32> to vector<2x4x1xf32>
    %cst_112 = arith.constant 3.200000e+01 : f32
    %447 = vector.broadcast %cst_112 : f32 to vector<2x4x1xf32>
    %448 = arith.divf %446, %447 : vector<2x4x1xf32>
    %cst_113 = arith.constant 9.99999974E-6 : f32
    %449 = vector.broadcast %cst_113 : f32 to vector<2x4x1xf32>
    %450 = arith.addf %448, %449 : vector<2x4x1xf32>
    %451 = math.rsqrt %450 : vector<2x4x1xf32>
    %452 = vector.broadcast %451 : vector<2x4x1xf32> to vector<2x4x32xf32>
    %453 = arith.mulf %443, %452 : vector<2x4x32xf32>
    %454 = vector.shape_cast %287 : vector<1x32xf32> to vector<1x1x32xf32>
    %455 = vector.broadcast %454 : vector<1x1x32xf32> to vector<2x4x32xf32>
    %456 = arith.mulf %453, %455 : vector<2x4x32xf32>
    %457 = vector.shape_cast %288 : vector<1x32xf32> to vector<1x1x32xf32>
    %458 = vector.broadcast %457 : vector<1x1x32xf32> to vector<2x4x32xf32>
    %459 = arith.addf %456, %458 : vector<2x4x32xf32>
    %460 = arith.truncf %459 : vector<2x4x32xf32> to vector<2x4x32xbf16>
    %461 = vector.extract_strided_slice %280 {offsets = [0, 512], sizes = [32, 128], strides = [1, 1]} : vector<32x640xbf16> to vector<32x128xbf16>
    %462 = vector.shape_cast %460 : vector<2x4x32xbf16> to vector<8x32xbf16>
    %cst_114 = arith.constant dense<0.000000e+00> : vector<8x128xf32>
    %463 = tpu.matmul %462, %461, %cst_114 {dimension_numbers = #tpu.dot_dimension_numbers<[1], [0], [0], [1], [0, 0, 1, 1], [], []>} : vector<8x32xbf16>, vector<32x128xbf16>, vector<8x128xf32> -> vector<8x128xf32>
    %464 = vector.shape_cast %463 : vector<8x128xf32> to vector<2x4x128xf32>
    %465 = vector.shape_cast %293 : vector<1x128xf32> to vector<1x1x128xf32>
    %466 = vector.broadcast %465 : vector<1x1x128xf32> to vector<2x4x128xf32>
    %467 = arith.addf %464, %466 : vector<2x4x128xf32>
    %468 = arith.mulf %467, %467 : vector<2x4x128xf32>
    %469 = arith.mulf %467, %468 : vector<2x4x128xf32>
    %cst_115 = arith.constant 4.471500e-02 : f32
    %470 = vector.broadcast %cst_115 : f32 to vector<2x4x128xf32>
    %471 = arith.mulf %470, %469 : vector<2x4x128xf32>
    %472 = arith.addf %467, %471 : vector<2x4x128xf32>
    %cst_116 = arith.constant 0.797884583 : f32
    %473 = vector.broadcast %cst_116 : f32 to vector<2x4x128xf32>
    %474 = arith.mulf %473, %472 : vector<2x4x128xf32>
    %475 = math.tanh %474 : vector<2x4x128xf32>
    %cst_117 = arith.constant 1.000000e+00 : f32
    %476 = vector.broadcast %cst_117 : f32 to vector<2x4x128xf32>
    %477 = arith.addf %476, %475 : vector<2x4x128xf32>
    %cst_118 = arith.constant 5.000000e-01 : f32
    %478 = vector.broadcast %cst_118 : f32 to vector<2x4x128xf32>
    %479 = arith.mulf %478, %477 : vector<2x4x128xf32>
    %480 = arith.mulf %467, %479 : vector<2x4x128xf32>
    %481 = arith.truncf %480 : vector<2x4x128xf32> to vector<2x4x128xbf16>
    %482 = vector.shape_cast %481 : vector<2x4x128xbf16> to vector<8x128xbf16>
    %cst_119 = arith.constant dense<0.000000e+00> : vector<8x32xf32>
    %483 = tpu.matmul %482, %282, %cst_119 {dimension_numbers = #tpu.dot_dimension_numbers<[1], [0], [0], [1], [0, 0, 1, 1], [], []>} : vector<8x128xbf16>, vector<128x32xbf16>, vector<8x32xf32> -> vector<8x32xf32>
    %484 = vector.shape_cast %483 : vector<8x32xf32> to vector<2x4x32xf32>
    %485 = arith.addf %437, %484 : vector<2x4x32xf32>
    %486 = vector.shape_cast %294 : vector<1x32xf32> to vector<1x1x32xf32>
    %487 = vector.broadcast %486 : vector<1x1x32xf32> to vector<2x4x32xf32>
    %488 = arith.addf %485, %487 : vector<2x4x32xf32>
    %c0_120 = arith.constant 0 : index
    %c0_121 = arith.constant 0 : index
    %c0_122 = arith.constant 0 : index
    %489 = vector.load %arg7[%c0_120, %c0_121, %c0_122] : memref<2x32x512xbf16, #tpu.memory_space<vmem>>, vector<1x32x512xbf16>
    %490 = vector.shape_cast %489 : vector<1x32x512xbf16> to vector<32x512xbf16>
    %c0_123 = arith.constant 0 : index
    %c0_124 = arith.constant 0 : index
    %c0_125 = arith.constant 0 : index
    %491 = vector.load %arg8[%c0_123, %c0_124, %c0_125] : memref<2x8x32xbf16, #tpu.memory_space<vmem>>, vector<1x8x32xbf16>
    %492 = vector.shape_cast %491 : vector<1x8x32xbf16> to vector<8x32xbf16>
    %c0_126 = arith.constant 0 : index
    %c0_127 = arith.constant 0 : index
    %c0_128 = arith.constant 0 : index
    %493 = vector.load %arg9[%c0_126, %c0_127, %c0_128] : memref<2x32x32xbf16, #tpu.memory_space<vmem>>, vector<1x32x32xbf16>
    %494 = vector.shape_cast %493 : vector<1x32x32xbf16> to vector<32x32xbf16>
    %c0_129 = arith.constant 0 : index
    %c0_130 = arith.constant 0 : index
    %c0_131 = arith.constant 0 : index
    %495 = vector.load %arg10[%c0_129, %c0_130, %c0_131] : memref<2x12x128xf32, #tpu.memory_space<vmem>>, vector<1x12x128xf32>
    %496 = vector.shape_cast %495 : vector<1x12x128xf32> to vector<12x128xf32>
    %497 = vector.extract_strided_slice %496 {offsets = [0, 0], sizes = [1, 32], strides = [1, 1]} : vector<12x128xf32> to vector<1x32xf32>
    %498 = vector.extract_strided_slice %496 {offsets = [1, 0], sizes = [1, 32], strides = [1, 1]} : vector<12x128xf32> to vector<1x32xf32>
    %499 = vector.extract_strided_slice %496 {offsets = [2, 0], sizes = [1, 32], strides = [1, 1]} : vector<12x128xf32> to vector<1x32xf32>
    %500 = vector.extract_strided_slice %496 {offsets = [3, 0], sizes = [1, 32], strides = [1, 1]} : vector<12x128xf32> to vector<1x32xf32>
    %501 = vector.extract_strided_slice %496 {offsets = [4, 0], sizes = [1, 32], strides = [1, 1]} : vector<12x128xf32> to vector<1x32xf32>
    %502 = vector.extract_strided_slice %496 {offsets = [5, 0], sizes = [1, 32], strides = [1, 1]} : vector<12x128xf32> to vector<1x32xf32>
    %503 = vector.extract_strided_slice %496 {offsets = [6, 0], sizes = [1, 8], strides = [1, 1]} : vector<12x128xf32> to vector<1x8xf32>
    %504 = vector.extract_strided_slice %496 {offsets = [7, 0], sizes = [1, 8], strides = [1, 1]} : vector<12x128xf32> to vector<1x8xf32>
    %505 = vector.extract_strided_slice %496 {offsets = [8, 0], sizes = [1, 8], strides = [1, 1]} : vector<12x128xf32> to vector<1x8xf32>
    %506 = vector.extract_strided_slice %496 {offsets = [9, 0], sizes = [1, 32], strides = [1, 1]} : vector<12x128xf32> to vector<1x32xf32>
    %507 = vector.extract_strided_slice %496 {offsets = [10, 0], sizes = [1, 32], strides = [1, 1]} : vector<12x128xf32> to vector<1x32xf32>
    %508 = vector.extract_strided_slice %496 {offsets = [11, 0], sizes = [1, 32], strides = [1, 1]} : vector<12x128xf32> to vector<1x32xf32>
    %cst_132 = arith.constant dense<0.000000e+00> : vector<2x16xf32>
    %509 = vector.multi_reduction <add>, %22, %cst_132 [2] : vector<2x16x32xf32> to vector<2x16xf32>
    %510 = vector.shape_cast %509 : vector<2x16xf32> to vector<2x16x1xf32>
    %cst_133 = arith.constant 3.200000e+01 : f32
    %511 = vector.broadcast %cst_133 : f32 to vector<2x16x1xf32>
    %512 = arith.divf %510, %511 : vector<2x16x1xf32>
    %513 = vector.broadcast %512 : vector<2x16x1xf32> to vector<2x16x32xf32>
    %514 = arith.subf %22, %513 : vector<2x16x32xf32>
    %515 = arith.mulf %514, %514 : vector<2x16x32xf32>
    %cst_134 = arith.constant dense<0.000000e+00> : vector<2x16xf32>
    %516 = vector.multi_reduction <add>, %515, %cst_134 [2] : vector<2x16x32xf32> to vector<2x16xf32>
    %517 = vector.shape_cast %516 : vector<2x16xf32> to vector<2x16x1xf32>
    %cst_135 = arith.constant 3.200000e+01 : f32
    %518 = vector.broadcast %cst_135 : f32 to vector<2x16x1xf32>
    %519 = arith.divf %517, %518 : vector<2x16x1xf32>
    %cst_136 = arith.constant 9.99999974E-6 : f32
    %520 = vector.broadcast %cst_136 : f32 to vector<2x16x1xf32>
    %521 = arith.addf %519, %520 : vector<2x16x1xf32>
    %522 = math.rsqrt %521 : vector<2x16x1xf32>
    %523 = vector.broadcast %522 : vector<2x16x1xf32> to vector<2x16x32xf32>
    %524 = arith.mulf %514, %523 : vector<2x16x32xf32>
    %525 = vector.shape_cast %497 : vector<1x32xf32> to vector<1x1x32xf32>
    %526 = vector.broadcast %525 : vector<1x1x32xf32> to vector<2x16x32xf32>
    %527 = arith.mulf %524, %526 : vector<2x16x32xf32>
    %528 = vector.shape_cast %498 : vector<1x32xf32> to vector<1x1x32xf32>
    %529 = vector.broadcast %528 : vector<1x1x32xf32> to vector<2x16x32xf32>
    %530 = arith.addf %527, %529 : vector<2x16x32xf32>
    %531 = arith.truncf %530 : vector<2x16x32xf32> to vector<2x16x32xbf16>
    %532 = tpu.concatenate %10, %19 in 1 : vector<2x8x32xf32>, vector<2x4x32xf32> -> vector<2x12x32xf32>
    %cst_137 = arith.constant dense<0.000000e+00> : vector<2x12xf32>
    %533 = vector.multi_reduction <add>, %532, %cst_137 [2] : vector<2x12x32xf32> to vector<2x12xf32>
    %534 = vector.shape_cast %533 : vector<2x12xf32> to vector<2x12x1xf32>
    %cst_138 = arith.constant 3.200000e+01 : f32
    %535 = vector.broadcast %cst_138 : f32 to vector<2x12x1xf32>
    %536 = arith.divf %534, %535 : vector<2x12x1xf32>
    %537 = vector.broadcast %536 : vector<2x12x1xf32> to vector<2x12x32xf32>
    %538 = arith.subf %532, %537 : vector<2x12x32xf32>
    %539 = arith.mulf %538, %538 : vector<2x12x32xf32>
    %cst_139 = arith.constant dense<0.000000e+00> : vector<2x12xf32>
    %540 = vector.multi_reduction <add>, %539, %cst_139 [2] : vector<2x12x32xf32> to vector<2x12xf32>
    %541 = vector.shape_cast %540 : vector<2x12xf32> to vector<2x12x1xf32>
    %cst_140 = arith.constant 3.200000e+01 : f32
    %542 = vector.broadcast %cst_140 : f32 to vector<2x12x1xf32>
    %543 = arith.divf %541, %542 : vector<2x12x1xf32>
    %cst_141 = arith.constant 9.99999974E-6 : f32
    %544 = vector.broadcast %cst_141 : f32 to vector<2x12x1xf32>
    %545 = arith.addf %543, %544 : vector<2x12x1xf32>
    %546 = math.rsqrt %545 : vector<2x12x1xf32>
    %547 = vector.broadcast %546 : vector<2x12x1xf32> to vector<2x12x32xf32>
    %548 = arith.mulf %538, %547 : vector<2x12x32xf32>
    %549 = vector.shape_cast %499 : vector<1x32xf32> to vector<1x1x32xf32>
    %550 = vector.broadcast %549 : vector<1x1x32xf32> to vector<2x12x32xf32>
    %551 = arith.mulf %548, %550 : vector<2x12x32xf32>
    %552 = vector.shape_cast %500 : vector<1x32xf32> to vector<1x1x32xf32>
    %553 = vector.broadcast %552 : vector<1x1x32xf32> to vector<2x12x32xf32>
    %554 = arith.addf %551, %553 : vector<2x12x32xf32>
    %555 = arith.truncf %554 : vector<2x12x32xf32> to vector<2x12x32xbf16>
    %556 = vector.extract_strided_slice %490 {offsets = [0, 0], sizes = [32, 128], strides = [1, 1]} : vector<32x512xbf16> to vector<32x128xbf16>
    %557 = vector.shape_cast %531 : vector<2x16x32xbf16> to vector<32x32xbf16>
    %cst_142 = arith.constant dense<0.000000e+00> : vector<32x128xf32>
    %558 = tpu.matmul %557, %556, %cst_142 {dimension_numbers = #tpu.dot_dimension_numbers<[1], [0], [0], [1], [0, 0, 1, 1], [], []>} : vector<32x32xbf16>, vector<32x128xbf16>, vector<32x128xf32> -> vector<32x128xf32>
    %559 = vector.shape_cast %558 : vector<32x128xf32> to vector<2x16x128xf32>
    %560 = vector.extract_strided_slice %559 {offsets = [0, 0, 0], sizes = [2, 16, 8], strides = [1, 1, 1]} : vector<2x16x128xf32> to vector<2x16x8xf32>
    %561 = vector.shape_cast %503 : vector<1x8xf32> to vector<1x1x8xf32>
    %562 = vector.broadcast %561 : vector<1x1x8xf32> to vector<2x16x8xf32>
    %563 = arith.addf %560, %562 : vector<2x16x8xf32>
    %564 = vector.extract_strided_slice %490 {offsets = [0, 128], sizes = [32, 128], strides = [1, 1]} : vector<32x512xbf16> to vector<32x128xbf16>
    %565 = vector.shape_cast %555 : vector<2x12x32xbf16> to vector<24x32xbf16>
    %cst_143 = arith.constant dense<0.000000e+00> : vector<24x128xf32>
    %566 = tpu.matmul %565, %564, %cst_143 {dimension_numbers = #tpu.dot_dimension_numbers<[1], [0], [0], [1], [0, 0, 1, 1], [], []>} : vector<24x32xbf16>, vector<32x128xbf16>, vector<24x128xf32> -> vector<24x128xf32>
    %567 = vector.shape_cast %566 : vector<24x128xf32> to vector<2x12x128xf32>
    %568 = vector.extract_strided_slice %567 {offsets = [0, 0, 0], sizes = [2, 12, 8], strides = [1, 1, 1]} : vector<2x12x128xf32> to vector<2x12x8xf32>
    %569 = vector.shape_cast %504 : vector<1x8xf32> to vector<1x1x8xf32>
    %570 = vector.broadcast %569 : vector<1x1x8xf32> to vector<2x12x8xf32>
    %571 = arith.addf %568, %570 : vector<2x12x8xf32>
    %572 = vector.extract_strided_slice %490 {offsets = [0, 256], sizes = [32, 128], strides = [1, 1]} : vector<32x512xbf16> to vector<32x128xbf16>
    %573 = vector.shape_cast %555 : vector<2x12x32xbf16> to vector<24x32xbf16>
    %cst_144 = arith.constant dense<0.000000e+00> : vector<24x128xf32>
    %574 = tpu.matmul %573, %572, %cst_144 {dimension_numbers = #tpu.dot_dimension_numbers<[1], [0], [0], [1], [0, 0, 1, 1], [], []>} : vector<24x32xbf16>, vector<32x128xbf16>, vector<24x128xf32> -> vector<24x128xf32>
    %575 = vector.shape_cast %574 : vector<24x128xf32> to vector<2x12x128xf32>
    %576 = vector.extract_strided_slice %575 {offsets = [0, 0, 0], sizes = [2, 12, 8], strides = [1, 1, 1]} : vector<2x12x128xf32> to vector<2x12x8xf32>
    %577 = vector.shape_cast %505 : vector<1x8xf32> to vector<1x1x8xf32>
    %578 = vector.broadcast %577 : vector<1x1x8xf32> to vector<2x12x8xf32>
    %579 = arith.addf %576, %578 : vector<2x12x8xf32>
    %580 = arith.truncf %563 : vector<2x16x8xf32> to vector<2x16x8xbf16>
    %581 = arith.truncf %571 : vector<2x12x8xf32> to vector<2x12x8xbf16>
    %582 = arith.truncf %579 : vector<2x12x8xf32> to vector<2x12x8xbf16>
    %583 = vector.extract_strided_slice %580 {offsets = [0, 0, 0], sizes = [2, 16, 4], strides = [1, 1, 1]} : vector<2x16x8xbf16> to vector<2x16x4xbf16>
    %584 = vector.extract_strided_slice %581 {offsets = [0, 0, 0], sizes = [2, 12, 4], strides = [1, 1, 1]} : vector<2x12x8xbf16> to vector<2x12x4xbf16>
    "tpu.trace_start"() <{level = 10 : i32, message = "bqd,bkd->bqk"}> : () -> ()
    %cst_145 = arith.constant dense<0.000000e+00> : vector<2x16x12xf32>
    %585 = tpu.matmul %583, %584, %cst_145 {dimension_numbers = #tpu.dot_dimension_numbers<[2], [2], [1], [1], [0, 0, 0, 1, 1, 1], [0], [0]>} : vector<2x16x4xbf16>, vector<2x12x4xbf16>, vector<2x16x12xf32> -> vector<2x16x12xf32>
    "tpu.trace_stop"() : () -> ()
    %cst_146 = arith.constant 5.000000e-01 : f32
    %586 = vector.broadcast %cst_146 : f32 to vector<2x16x12xf32>
    %587 = arith.mulf %585, %586 : vector<2x16x12xf32>
    %588 = vector.shape_cast %62 : vector<16x12xf32> to vector<1x16x12xf32>
    %589 = vector.broadcast %588 : vector<1x16x12xf32> to vector<2x16x12xf32>
    %590 = arith.addf %587, %589 : vector<2x16x12xf32>
    %cst_147 = arith.constant dense<0xFF800000> : vector<2x16xf32>
    %591 = vector.multi_reduction <maximumf>, %590, %cst_147 [2] : vector<2x16x12xf32> to vector<2x16xf32>
    %592 = vector.shape_cast %591 : vector<2x16xf32> to vector<2x16x1xf32>
    %593 = vector.broadcast %592 : vector<2x16x1xf32> to vector<2x16x12xf32>
    %594 = arith.subf %590, %593 : vector<2x16x12xf32>
    %595 = math.exp %594 : vector<2x16x12xf32>
    %cst_148 = arith.constant dense<0.000000e+00> : vector<2x16xf32>
    %596 = vector.multi_reduction <add>, %595, %cst_148 [2] : vector<2x16x12xf32> to vector<2x16xf32>
    %597 = vector.shape_cast %596 : vector<2x16xf32> to vector<2x16x1xf32>
    %598 = vector.broadcast %597 : vector<2x16x1xf32> to vector<2x16x12xf32>
    %599 = arith.divf %595, %598 : vector<2x16x12xf32>
    %600 = arith.truncf %599 : vector<2x16x12xf32> to vector<2x16x12xbf16>
    %601 = vector.extract_strided_slice %582 {offsets = [0, 0, 0], sizes = [2, 12, 4], strides = [1, 1, 1]} : vector<2x12x8xbf16> to vector<2x12x4xbf16>
    "tpu.trace_start"() <{level = 10 : i32, message = "bqk,bkd->bqd"}> : () -> ()
    %cst_149 = arith.constant dense<0.000000e+00> : vector<2x16x4xf32>
    %602 = tpu.matmul %600, %601, %cst_149 {dimension_numbers = #tpu.dot_dimension_numbers<[2], [1], [1], [2], [0, 0, 0, 1, 1, 2], [0], [0]>} : vector<2x16x12xbf16>, vector<2x12x4xbf16>, vector<2x16x4xf32> -> vector<2x16x4xf32>
    "tpu.trace_stop"() : () -> ()
    %603 = vector.extract_strided_slice %580 {offsets = [0, 0, 4], sizes = [2, 16, 4], strides = [1, 1, 1]} : vector<2x16x8xbf16> to vector<2x16x4xbf16>
    %604 = vector.extract_strided_slice %581 {offsets = [0, 0, 4], sizes = [2, 12, 4], strides = [1, 1, 1]} : vector<2x12x8xbf16> to vector<2x12x4xbf16>
    "tpu.trace_start"() <{level = 10 : i32, message = "bqd,bkd->bqk"}> : () -> ()
    %cst_150 = arith.constant dense<0.000000e+00> : vector<2x16x12xf32>
    %605 = tpu.matmul %603, %604, %cst_150 {dimension_numbers = #tpu.dot_dimension_numbers<[2], [2], [1], [1], [0, 0, 0, 1, 1, 1], [0], [0]>} : vector<2x16x4xbf16>, vector<2x12x4xbf16>, vector<2x16x12xf32> -> vector<2x16x12xf32>
    "tpu.trace_stop"() : () -> ()
    %cst_151 = arith.constant 5.000000e-01 : f32
    %606 = vector.broadcast %cst_151 : f32 to vector<2x16x12xf32>
    %607 = arith.mulf %605, %606 : vector<2x16x12xf32>
    %608 = vector.shape_cast %62 : vector<16x12xf32> to vector<1x16x12xf32>
    %609 = vector.broadcast %608 : vector<1x16x12xf32> to vector<2x16x12xf32>
    %610 = arith.addf %607, %609 : vector<2x16x12xf32>
    %cst_152 = arith.constant dense<0xFF800000> : vector<2x16xf32>
    %611 = vector.multi_reduction <maximumf>, %610, %cst_152 [2] : vector<2x16x12xf32> to vector<2x16xf32>
    %612 = vector.shape_cast %611 : vector<2x16xf32> to vector<2x16x1xf32>
    %613 = vector.broadcast %612 : vector<2x16x1xf32> to vector<2x16x12xf32>
    %614 = arith.subf %610, %613 : vector<2x16x12xf32>
    %615 = math.exp %614 : vector<2x16x12xf32>
    %cst_153 = arith.constant dense<0.000000e+00> : vector<2x16xf32>
    %616 = vector.multi_reduction <add>, %615, %cst_153 [2] : vector<2x16x12xf32> to vector<2x16xf32>
    %617 = vector.shape_cast %616 : vector<2x16xf32> to vector<2x16x1xf32>
    %618 = vector.broadcast %617 : vector<2x16x1xf32> to vector<2x16x12xf32>
    %619 = arith.divf %615, %618 : vector<2x16x12xf32>
    %620 = arith.truncf %619 : vector<2x16x12xf32> to vector<2x16x12xbf16>
    %621 = vector.extract_strided_slice %582 {offsets = [0, 0, 4], sizes = [2, 12, 4], strides = [1, 1, 1]} : vector<2x12x8xbf16> to vector<2x12x4xbf16>
    "tpu.trace_start"() <{level = 10 : i32, message = "bqk,bkd->bqd"}> : () -> ()
    %cst_154 = arith.constant dense<0.000000e+00> : vector<2x16x4xf32>
    %622 = tpu.matmul %620, %621, %cst_154 {dimension_numbers = #tpu.dot_dimension_numbers<[2], [1], [1], [2], [0, 0, 0, 1, 1, 2], [0], [0]>} : vector<2x16x12xbf16>, vector<2x12x4xbf16>, vector<2x16x4xf32> -> vector<2x16x4xf32>
    "tpu.trace_stop"() : () -> ()
    %623 = tpu.concatenate %602, %622 in 2 : vector<2x16x4xf32>, vector<2x16x4xf32> -> vector<2x16x8xf32>
    %624 = arith.truncf %623 : vector<2x16x8xf32> to vector<2x16x8xbf16>
    %625 = vector.shape_cast %624 : vector<2x16x8xbf16> to vector<32x8xbf16>
    %cst_155 = arith.constant dense<0.000000e+00> : vector<32x32xf32>
    %626 = tpu.matmul %625, %492, %cst_155 {dimension_numbers = #tpu.dot_dimension_numbers<[1], [0], [0], [1], [0, 0, 1, 1], [], []>} : vector<32x8xbf16>, vector<8x32xbf16>, vector<32x32xf32> -> vector<32x32xf32>
    %627 = vector.shape_cast %626 : vector<32x32xf32> to vector<2x16x32xf32>
    %628 = arith.addf %22, %627 : vector<2x16x32xf32>
    %629 = vector.shape_cast %506 : vector<1x32xf32> to vector<1x1x32xf32>
    %630 = vector.broadcast %629 : vector<1x1x32xf32> to vector<2x16x32xf32>
    %631 = arith.addf %628, %630 : vector<2x16x32xf32>
    %cst_156 = arith.constant dense<0.000000e+00> : vector<2x16xf32>
    %632 = vector.multi_reduction <add>, %631, %cst_156 [2] : vector<2x16x32xf32> to vector<2x16xf32>
    %633 = vector.shape_cast %632 : vector<2x16xf32> to vector<2x16x1xf32>
    %cst_157 = arith.constant 3.200000e+01 : f32
    %634 = vector.broadcast %cst_157 : f32 to vector<2x16x1xf32>
    %635 = arith.divf %633, %634 : vector<2x16x1xf32>
    %636 = vector.broadcast %635 : vector<2x16x1xf32> to vector<2x16x32xf32>
    %637 = arith.subf %631, %636 : vector<2x16x32xf32>
    %638 = arith.mulf %637, %637 : vector<2x16x32xf32>
    %cst_158 = arith.constant dense<0.000000e+00> : vector<2x16xf32>
    %639 = vector.multi_reduction <add>, %638, %cst_158 [2] : vector<2x16x32xf32> to vector<2x16xf32>
    %640 = vector.shape_cast %639 : vector<2x16xf32> to vector<2x16x1xf32>
    %cst_159 = arith.constant 3.200000e+01 : f32
    %641 = vector.broadcast %cst_159 : f32 to vector<2x16x1xf32>
    %642 = arith.divf %640, %641 : vector<2x16x1xf32>
    %cst_160 = arith.constant 9.99999974E-6 : f32
    %643 = vector.broadcast %cst_160 : f32 to vector<2x16x1xf32>
    %644 = arith.addf %642, %643 : vector<2x16x1xf32>
    %645 = math.rsqrt %644 : vector<2x16x1xf32>
    %646 = vector.broadcast %645 : vector<2x16x1xf32> to vector<2x16x32xf32>
    %647 = arith.mulf %637, %646 : vector<2x16x32xf32>
    %648 = vector.shape_cast %501 : vector<1x32xf32> to vector<1x1x32xf32>
    %649 = vector.broadcast %648 : vector<1x1x32xf32> to vector<2x16x32xf32>
    %650 = arith.mulf %647, %649 : vector<2x16x32xf32>
    %651 = vector.shape_cast %502 : vector<1x32xf32> to vector<1x1x32xf32>
    %652 = vector.broadcast %651 : vector<1x1x32xf32> to vector<2x16x32xf32>
    %653 = arith.addf %650, %652 : vector<2x16x32xf32>
    %654 = arith.truncf %653 : vector<2x16x32xf32> to vector<2x16x32xbf16>
    %655 = vector.extract_strided_slice %490 {offsets = [0, 384], sizes = [32, 32], strides = [1, 1]} : vector<32x512xbf16> to vector<32x32xbf16>
    %656 = vector.shape_cast %654 : vector<2x16x32xbf16> to vector<32x32xbf16>
    %cst_161 = arith.constant dense<0.000000e+00> : vector<32x32xf32>
    %657 = tpu.matmul %656, %655, %cst_161 {dimension_numbers = #tpu.dot_dimension_numbers<[1], [0], [0], [1], [0, 0, 1, 1], [], []>} : vector<32x32xbf16>, vector<32x32xbf16>, vector<32x32xf32> -> vector<32x32xf32>
    %658 = vector.shape_cast %657 : vector<32x32xf32> to vector<2x16x32xf32>
    %659 = vector.shape_cast %507 : vector<1x32xf32> to vector<1x1x32xf32>
    %660 = vector.broadcast %659 : vector<1x1x32xf32> to vector<2x16x32xf32>
    %661 = arith.addf %658, %660 : vector<2x16x32xf32>
    %662 = arith.mulf %661, %661 : vector<2x16x32xf32>
    %663 = arith.mulf %661, %662 : vector<2x16x32xf32>
    %cst_162 = arith.constant 4.471500e-02 : f32
    %664 = vector.broadcast %cst_162 : f32 to vector<2x16x32xf32>
    %665 = arith.mulf %664, %663 : vector<2x16x32xf32>
    %666 = arith.addf %661, %665 : vector<2x16x32xf32>
    %cst_163 = arith.constant 0.797884583 : f32
    %667 = vector.broadcast %cst_163 : f32 to vector<2x16x32xf32>
    %668 = arith.mulf %667, %666 : vector<2x16x32xf32>
    %669 = math.tanh %668 : vector<2x16x32xf32>
    %cst_164 = arith.constant 1.000000e+00 : f32
    %670 = vector.broadcast %cst_164 : f32 to vector<2x16x32xf32>
    %671 = arith.addf %670, %669 : vector<2x16x32xf32>
    %cst_165 = arith.constant 5.000000e-01 : f32
    %672 = vector.broadcast %cst_165 : f32 to vector<2x16x32xf32>
    %673 = arith.mulf %672, %671 : vector<2x16x32xf32>
    %674 = arith.mulf %661, %673 : vector<2x16x32xf32>
    %675 = arith.truncf %674 : vector<2x16x32xf32> to vector<2x16x32xbf16>
    %676 = vector.shape_cast %675 : vector<2x16x32xbf16> to vector<32x32xbf16>
    %cst_166 = arith.constant dense<0.000000e+00> : vector<32x32xf32>
    %677 = tpu.matmul %676, %494, %cst_166 {dimension_numbers = #tpu.dot_dimension_numbers<[1], [0], [0], [1], [0, 0, 1, 1], [], []>} : vector<32x32xbf16>, vector<32x32xbf16>, vector<32x32xf32> -> vector<32x32xf32>
    %678 = vector.shape_cast %677 : vector<32x32xf32> to vector<2x16x32xf32>
    %679 = arith.addf %631, %678 : vector<2x16x32xf32>
    %680 = vector.shape_cast %508 : vector<1x32xf32> to vector<1x1x32xf32>
    %681 = vector.broadcast %680 : vector<1x1x32xf32> to vector<2x16x32xf32>
    %682 = arith.addf %679, %681 : vector<2x16x32xf32>
    %683 = vector.broadcast %68 : vector<1x16x32xf32> to vector<2x16x32xf32>
    %684 = arith.mulf %682, %683 : vector<2x16x32xf32>
    %c2 = arith.constant 2 : index
    %c0_167 = arith.constant 0 : index
    %c0_168 = arith.constant 0 : index
    %685 = vector.load %arg4[%c2, %c0_167, %c0_168] : memref<4x32x640xbf16, #tpu.memory_space<vmem>>, vector<1x32x640xbf16>
    %686 = vector.shape_cast %685 : vector<1x32x640xbf16> to vector<32x640xbf16>
    %c2_169 = arith.constant 2 : index
    %c0_170 = arith.constant 0 : index
    %c0_171 = arith.constant 0 : index
    %687 = vector.load %arg5[%c2_169, %c0_170, %c0_171] : memref<4x128x32xbf16, #tpu.memory_space<vmem>>, vector<1x128x32xbf16>
    %688 = vector.shape_cast %687 : vector<1x128x32xbf16> to vector<128x32xbf16>
    %c2_172 = arith.constant 2 : index
    %c0_173 = arith.constant 0 : index
    %c0_174 = arith.constant 0 : index
    %689 = vector.load %arg6[%c2_172, %c0_173, %c0_174] : memref<4x10x128xf32, #tpu.memory_space<vmem>>, vector<1x10x128xf32>
    %690 = vector.shape_cast %689 : vector<1x10x128xf32> to vector<10x128xf32>
    %691 = vector.extract_strided_slice %690 {offsets = [0, 0], sizes = [1, 32], strides = [1, 1]} : vector<10x128xf32> to vector<1x32xf32>
    %692 = vector.extract_strided_slice %690 {offsets = [1, 0], sizes = [1, 32], strides = [1, 1]} : vector<10x128xf32> to vector<1x32xf32>
    %693 = vector.extract_strided_slice %690 {offsets = [2, 0], sizes = [1, 32], strides = [1, 1]} : vector<10x128xf32> to vector<1x32xf32>
    %694 = vector.extract_strided_slice %690 {offsets = [3, 0], sizes = [1, 32], strides = [1, 1]} : vector<10x128xf32> to vector<1x32xf32>
    %695 = vector.extract_strided_slice %690 {offsets = [4, 0], sizes = [1, 32], strides = [1, 1]} : vector<10x128xf32> to vector<1x32xf32>
    %696 = vector.extract_strided_slice %690 {offsets = [5, 0], sizes = [1, 32], strides = [1, 1]} : vector<10x128xf32> to vector<1x32xf32>
    %697 = vector.extract_strided_slice %690 {offsets = [6, 0], sizes = [1, 32], strides = [1, 1]} : vector<10x128xf32> to vector<1x32xf32>
    %698 = vector.extract_strided_slice %690 {offsets = [7, 0], sizes = [1, 32], strides = [1, 1]} : vector<10x128xf32> to vector<1x32xf32>
    %699 = vector.extract_strided_slice %690 {offsets = [8, 0], sizes = [1, 128], strides = [1, 1]} : vector<10x128xf32> to vector<1x128xf32>
    %700 = vector.extract_strided_slice %690 {offsets = [9, 0], sizes = [1, 32], strides = [1, 1]} : vector<10x128xf32> to vector<1x32xf32>
    %701 = tpu.concatenate %684, %278 in 1 : vector<2x16x32xf32>, vector<2x8x32xf32> -> vector<2x24x32xf32>
    %cst_175 = arith.constant dense<0.000000e+00> : vector<2x24xf32>
    %702 = vector.multi_reduction <add>, %701, %cst_175 [2] : vector<2x24x32xf32> to vector<2x24xf32>
    %703 = vector.shape_cast %702 : vector<2x24xf32> to vector<2x24x1xf32>
    %cst_176 = arith.constant 3.200000e+01 : f32
    %704 = vector.broadcast %cst_176 : f32 to vector<2x24x1xf32>
    %705 = arith.divf %703, %704 : vector<2x24x1xf32>
    %706 = vector.broadcast %705 : vector<2x24x1xf32> to vector<2x24x32xf32>
    %707 = arith.subf %701, %706 : vector<2x24x32xf32>
    %708 = arith.mulf %707, %707 : vector<2x24x32xf32>
    %cst_177 = arith.constant dense<0.000000e+00> : vector<2x24xf32>
    %709 = vector.multi_reduction <add>, %708, %cst_177 [2] : vector<2x24x32xf32> to vector<2x24xf32>
    %710 = vector.shape_cast %709 : vector<2x24xf32> to vector<2x24x1xf32>
    %cst_178 = arith.constant 3.200000e+01 : f32
    %711 = vector.broadcast %cst_178 : f32 to vector<2x24x1xf32>
    %712 = arith.divf %710, %711 : vector<2x24x1xf32>
    %cst_179 = arith.constant 9.99999974E-6 : f32
    %713 = vector.broadcast %cst_179 : f32 to vector<2x24x1xf32>
    %714 = arith.addf %712, %713 : vector<2x24x1xf32>
    %715 = math.rsqrt %714 : vector<2x24x1xf32>
    %716 = vector.broadcast %715 : vector<2x24x1xf32> to vector<2x24x32xf32>
    %717 = arith.mulf %707, %716 : vector<2x24x32xf32>
    %718 = vector.shape_cast %691 : vector<1x32xf32> to vector<1x1x32xf32>
    %719 = vector.broadcast %718 : vector<1x1x32xf32> to vector<2x24x32xf32>
    %720 = arith.mulf %717, %719 : vector<2x24x32xf32>
    %721 = vector.shape_cast %692 : vector<1x32xf32> to vector<1x1x32xf32>
    %722 = vector.broadcast %721 : vector<1x1x32xf32> to vector<2x24x32xf32>
    %723 = arith.addf %720, %722 : vector<2x24x32xf32>
    %724 = arith.truncf %723 : vector<2x24x32xf32> to vector<2x24x32xbf16>
    %725 = vector.extract_strided_slice %686 {offsets = [0, 0], sizes = [32, 128], strides = [1, 1]} : vector<32x640xbf16> to vector<32x128xbf16>
    %726 = vector.shape_cast %724 : vector<2x24x32xbf16> to vector<48x32xbf16>
    %cst_180 = arith.constant dense<0.000000e+00> : vector<48x128xf32>
    %727 = tpu.matmul %726, %725, %cst_180 {dimension_numbers = #tpu.dot_dimension_numbers<[1], [0], [0], [1], [0, 0, 1, 1], [], []>} : vector<48x32xbf16>, vector<32x128xbf16>, vector<48x128xf32> -> vector<48x128xf32>
    %728 = vector.shape_cast %727 : vector<48x128xf32> to vector<2x24x128xf32>
    %729 = vector.extract_strided_slice %728 {offsets = [0, 0, 0], sizes = [2, 24, 32], strides = [1, 1, 1]} : vector<2x24x128xf32> to vector<2x24x32xf32>
    %730 = vector.shape_cast %695 : vector<1x32xf32> to vector<1x1x32xf32>
    %731 = vector.broadcast %730 : vector<1x1x32xf32> to vector<2x24x32xf32>
    %732 = arith.addf %729, %731 : vector<2x24x32xf32>
    %733 = vector.extract_strided_slice %686 {offsets = [0, 128], sizes = [32, 128], strides = [1, 1]} : vector<32x640xbf16> to vector<32x128xbf16>
    %734 = vector.shape_cast %724 : vector<2x24x32xbf16> to vector<48x32xbf16>
    %cst_181 = arith.constant dense<0.000000e+00> : vector<48x128xf32>
    %735 = tpu.matmul %734, %733, %cst_181 {dimension_numbers = #tpu.dot_dimension_numbers<[1], [0], [0], [1], [0, 0, 1, 1], [], []>} : vector<48x32xbf16>, vector<32x128xbf16>, vector<48x128xf32> -> vector<48x128xf32>
    %736 = vector.shape_cast %735 : vector<48x128xf32> to vector<2x24x128xf32>
    %737 = vector.extract_strided_slice %736 {offsets = [0, 0, 0], sizes = [2, 24, 32], strides = [1, 1, 1]} : vector<2x24x128xf32> to vector<2x24x32xf32>
    %738 = vector.shape_cast %696 : vector<1x32xf32> to vector<1x1x32xf32>
    %739 = vector.broadcast %738 : vector<1x1x32xf32> to vector<2x24x32xf32>
    %740 = arith.addf %737, %739 : vector<2x24x32xf32>
    %741 = vector.extract_strided_slice %686 {offsets = [0, 256], sizes = [32, 128], strides = [1, 1]} : vector<32x640xbf16> to vector<32x128xbf16>
    %742 = vector.shape_cast %724 : vector<2x24x32xbf16> to vector<48x32xbf16>
    %cst_182 = arith.constant dense<0.000000e+00> : vector<48x128xf32>
    %743 = tpu.matmul %742, %741, %cst_182 {dimension_numbers = #tpu.dot_dimension_numbers<[1], [0], [0], [1], [0, 0, 1, 1], [], []>} : vector<48x32xbf16>, vector<32x128xbf16>, vector<48x128xf32> -> vector<48x128xf32>
    %744 = vector.shape_cast %743 : vector<48x128xf32> to vector<2x24x128xf32>
    %745 = vector.extract_strided_slice %744 {offsets = [0, 0, 0], sizes = [2, 24, 32], strides = [1, 1, 1]} : vector<2x24x128xf32> to vector<2x24x32xf32>
    %746 = vector.shape_cast %697 : vector<1x32xf32> to vector<1x1x32xf32>
    %747 = vector.broadcast %746 : vector<1x1x32xf32> to vector<2x24x32xf32>
    %748 = arith.addf %745, %747 : vector<2x24x32xf32>
    %749 = vector.extract_strided_slice %732 {offsets = [0, 16, 0], sizes = [2, 8, 32], strides = [1, 1, 1]} : vector<2x24x32xf32> to vector<2x8x32xf32>
    %750 = arith.truncf %749 : vector<2x8x32xf32> to vector<2x8x32xbf16>
    %751 = arith.truncf %740 : vector<2x24x32xf32> to vector<2x24x32xbf16>
    %752 = arith.truncf %748 : vector<2x24x32xf32> to vector<2x24x32xbf16>
    %753 = vector.extract_strided_slice %750 {offsets = [0, 0, 0], sizes = [2, 8, 8], strides = [1, 1, 1]} : vector<2x8x32xbf16> to vector<2x8x8xbf16>
    %754 = vector.extract_strided_slice %751 {offsets = [0, 0, 0], sizes = [2, 24, 8], strides = [1, 1, 1]} : vector<2x24x32xbf16> to vector<2x24x8xbf16>
    "tpu.trace_start"() <{level = 10 : i32, message = "bqd,bkd->bqk"}> : () -> ()
    %cst_183 = arith.constant dense<0.000000e+00> : vector<2x8x24xf32>
    %755 = tpu.matmul %753, %754, %cst_183 {dimension_numbers = #tpu.dot_dimension_numbers<[2], [2], [1], [1], [0, 0, 0, 1, 1, 1], [0], [0]>} : vector<2x8x8xbf16>, vector<2x24x8xbf16>, vector<2x8x24xf32> -> vector<2x8x24xf32>
    "tpu.trace_stop"() : () -> ()
    %cst_184 = arith.constant 0.353553385 : f32
    %756 = vector.broadcast %cst_184 : f32 to vector<2x8x24xf32>
    %757 = arith.mulf %755, %756 : vector<2x8x24xf32>
    %758 = vector.shape_cast %31 : vector<1x24xf32> to vector<1x1x24xf32>
    %759 = vector.broadcast %758 : vector<1x1x24xf32> to vector<2x8x24xf32>
    %760 = arith.addf %757, %759 : vector<2x8x24xf32>
    %cst_185 = arith.constant dense<0xFF800000> : vector<2x8xf32>
    %761 = vector.multi_reduction <maximumf>, %760, %cst_185 [2] : vector<2x8x24xf32> to vector<2x8xf32>
    %762 = vector.shape_cast %761 : vector<2x8xf32> to vector<2x8x1xf32>
    %763 = vector.broadcast %762 : vector<2x8x1xf32> to vector<2x8x24xf32>
    %764 = arith.subf %760, %763 : vector<2x8x24xf32>
    %765 = math.exp %764 : vector<2x8x24xf32>
    %cst_186 = arith.constant dense<0.000000e+00> : vector<2x8xf32>
    %766 = vector.multi_reduction <add>, %765, %cst_186 [2] : vector<2x8x24xf32> to vector<2x8xf32>
    %767 = vector.shape_cast %766 : vector<2x8xf32> to vector<2x8x1xf32>
    %768 = vector.broadcast %767 : vector<2x8x1xf32> to vector<2x8x24xf32>
    %769 = arith.divf %765, %768 : vector<2x8x24xf32>
    %770 = arith.truncf %769 : vector<2x8x24xf32> to vector<2x8x24xbf16>
    %771 = vector.extract_strided_slice %752 {offsets = [0, 0, 0], sizes = [2, 24, 8], strides = [1, 1, 1]} : vector<2x24x32xbf16> to vector<2x24x8xbf16>
    "tpu.trace_start"() <{level = 10 : i32, message = "bqk,bkd->bqd"}> : () -> ()
    %cst_187 = arith.constant dense<0.000000e+00> : vector<2x8x8xf32>
    %772 = tpu.matmul %770, %771, %cst_187 {dimension_numbers = #tpu.dot_dimension_numbers<[2], [1], [1], [2], [0, 0, 0, 1, 1, 2], [0], [0]>} : vector<2x8x24xbf16>, vector<2x24x8xbf16>, vector<2x8x8xf32> -> vector<2x8x8xf32>
    "tpu.trace_stop"() : () -> ()
    %773 = vector.extract_strided_slice %750 {offsets = [0, 0, 8], sizes = [2, 8, 8], strides = [1, 1, 1]} : vector<2x8x32xbf16> to vector<2x8x8xbf16>
    %774 = vector.extract_strided_slice %751 {offsets = [0, 0, 8], sizes = [2, 24, 8], strides = [1, 1, 1]} : vector<2x24x32xbf16> to vector<2x24x8xbf16>
    "tpu.trace_start"() <{level = 10 : i32, message = "bqd,bkd->bqk"}> : () -> ()
    %cst_188 = arith.constant dense<0.000000e+00> : vector<2x8x24xf32>
    %775 = tpu.matmul %773, %774, %cst_188 {dimension_numbers = #tpu.dot_dimension_numbers<[2], [2], [1], [1], [0, 0, 0, 1, 1, 1], [0], [0]>} : vector<2x8x8xbf16>, vector<2x24x8xbf16>, vector<2x8x24xf32> -> vector<2x8x24xf32>
    "tpu.trace_stop"() : () -> ()
    %cst_189 = arith.constant 0.353553385 : f32
    %776 = vector.broadcast %cst_189 : f32 to vector<2x8x24xf32>
    %777 = arith.mulf %775, %776 : vector<2x8x24xf32>
    %778 = vector.shape_cast %31 : vector<1x24xf32> to vector<1x1x24xf32>
    %779 = vector.broadcast %778 : vector<1x1x24xf32> to vector<2x8x24xf32>
    %780 = arith.addf %777, %779 : vector<2x8x24xf32>
    %cst_190 = arith.constant dense<0xFF800000> : vector<2x8xf32>
    %781 = vector.multi_reduction <maximumf>, %780, %cst_190 [2] : vector<2x8x24xf32> to vector<2x8xf32>
    %782 = vector.shape_cast %781 : vector<2x8xf32> to vector<2x8x1xf32>
    %783 = vector.broadcast %782 : vector<2x8x1xf32> to vector<2x8x24xf32>
    %784 = arith.subf %780, %783 : vector<2x8x24xf32>
    %785 = math.exp %784 : vector<2x8x24xf32>
    %cst_191 = arith.constant dense<0.000000e+00> : vector<2x8xf32>
    %786 = vector.multi_reduction <add>, %785, %cst_191 [2] : vector<2x8x24xf32> to vector<2x8xf32>
    %787 = vector.shape_cast %786 : vector<2x8xf32> to vector<2x8x1xf32>
    %788 = vector.broadcast %787 : vector<2x8x1xf32> to vector<2x8x24xf32>
    %789 = arith.divf %785, %788 : vector<2x8x24xf32>
    %790 = arith.truncf %789 : vector<2x8x24xf32> to vector<2x8x24xbf16>
    %791 = vector.extract_strided_slice %752 {offsets = [0, 0, 8], sizes = [2, 24, 8], strides = [1, 1, 1]} : vector<2x24x32xbf16> to vector<2x24x8xbf16>
    "tpu.trace_start"() <{level = 10 : i32, message = "bqk,bkd->bqd"}> : () -> ()
    %cst_192 = arith.constant dense<0.000000e+00> : vector<2x8x8xf32>
    %792 = tpu.matmul %790, %791, %cst_192 {dimension_numbers = #tpu.dot_dimension_numbers<[2], [1], [1], [2], [0, 0, 0, 1, 1, 2], [0], [0]>} : vector<2x8x24xbf16>, vector<2x24x8xbf16>, vector<2x8x8xf32> -> vector<2x8x8xf32>
    "tpu.trace_stop"() : () -> ()
    %793 = vector.extract_strided_slice %750 {offsets = [0, 0, 16], sizes = [2, 8, 8], strides = [1, 1, 1]} : vector<2x8x32xbf16> to vector<2x8x8xbf16>
    %794 = vector.extract_strided_slice %751 {offsets = [0, 0, 16], sizes = [2, 24, 8], strides = [1, 1, 1]} : vector<2x24x32xbf16> to vector<2x24x8xbf16>
    "tpu.trace_start"() <{level = 10 : i32, message = "bqd,bkd->bqk"}> : () -> ()
    %cst_193 = arith.constant dense<0.000000e+00> : vector<2x8x24xf32>
    %795 = tpu.matmul %793, %794, %cst_193 {dimension_numbers = #tpu.dot_dimension_numbers<[2], [2], [1], [1], [0, 0, 0, 1, 1, 1], [0], [0]>} : vector<2x8x8xbf16>, vector<2x24x8xbf16>, vector<2x8x24xf32> -> vector<2x8x24xf32>
    "tpu.trace_stop"() : () -> ()
    %cst_194 = arith.constant 0.353553385 : f32
    %796 = vector.broadcast %cst_194 : f32 to vector<2x8x24xf32>
    %797 = arith.mulf %795, %796 : vector<2x8x24xf32>
    %798 = vector.shape_cast %31 : vector<1x24xf32> to vector<1x1x24xf32>
    %799 = vector.broadcast %798 : vector<1x1x24xf32> to vector<2x8x24xf32>
    %800 = arith.addf %797, %799 : vector<2x8x24xf32>
    %cst_195 = arith.constant dense<0xFF800000> : vector<2x8xf32>
    %801 = vector.multi_reduction <maximumf>, %800, %cst_195 [2] : vector<2x8x24xf32> to vector<2x8xf32>
    %802 = vector.shape_cast %801 : vector<2x8xf32> to vector<2x8x1xf32>
    %803 = vector.broadcast %802 : vector<2x8x1xf32> to vector<2x8x24xf32>
    %804 = arith.subf %800, %803 : vector<2x8x24xf32>
    %805 = math.exp %804 : vector<2x8x24xf32>
    %cst_196 = arith.constant dense<0.000000e+00> : vector<2x8xf32>
    %806 = vector.multi_reduction <add>, %805, %cst_196 [2] : vector<2x8x24xf32> to vector<2x8xf32>
    %807 = vector.shape_cast %806 : vector<2x8xf32> to vector<2x8x1xf32>
    %808 = vector.broadcast %807 : vector<2x8x1xf32> to vector<2x8x24xf32>
    %809 = arith.divf %805, %808 : vector<2x8x24xf32>
    %810 = arith.truncf %809 : vector<2x8x24xf32> to vector<2x8x24xbf16>
    %811 = vector.extract_strided_slice %752 {offsets = [0, 0, 16], sizes = [2, 24, 8], strides = [1, 1, 1]} : vector<2x24x32xbf16> to vector<2x24x8xbf16>
    "tpu.trace_start"() <{level = 10 : i32, message = "bqk,bkd->bqd"}> : () -> ()
    %cst_197 = arith.constant dense<0.000000e+00> : vector<2x8x8xf32>
    %812 = tpu.matmul %810, %811, %cst_197 {dimension_numbers = #tpu.dot_dimension_numbers<[2], [1], [1], [2], [0, 0, 0, 1, 1, 2], [0], [0]>} : vector<2x8x24xbf16>, vector<2x24x8xbf16>, vector<2x8x8xf32> -> vector<2x8x8xf32>
    "tpu.trace_stop"() : () -> ()
    %813 = vector.extract_strided_slice %750 {offsets = [0, 0, 24], sizes = [2, 8, 8], strides = [1, 1, 1]} : vector<2x8x32xbf16> to vector<2x8x8xbf16>
    %814 = vector.extract_strided_slice %751 {offsets = [0, 0, 24], sizes = [2, 24, 8], strides = [1, 1, 1]} : vector<2x24x32xbf16> to vector<2x24x8xbf16>
    "tpu.trace_start"() <{level = 10 : i32, message = "bqd,bkd->bqk"}> : () -> ()
    %cst_198 = arith.constant dense<0.000000e+00> : vector<2x8x24xf32>
    %815 = tpu.matmul %813, %814, %cst_198 {dimension_numbers = #tpu.dot_dimension_numbers<[2], [2], [1], [1], [0, 0, 0, 1, 1, 1], [0], [0]>} : vector<2x8x8xbf16>, vector<2x24x8xbf16>, vector<2x8x24xf32> -> vector<2x8x24xf32>
    "tpu.trace_stop"() : () -> ()
    %cst_199 = arith.constant 0.353553385 : f32
    %816 = vector.broadcast %cst_199 : f32 to vector<2x8x24xf32>
    %817 = arith.mulf %815, %816 : vector<2x8x24xf32>
    %818 = vector.shape_cast %31 : vector<1x24xf32> to vector<1x1x24xf32>
    %819 = vector.broadcast %818 : vector<1x1x24xf32> to vector<2x8x24xf32>
    %820 = arith.addf %817, %819 : vector<2x8x24xf32>
    %cst_200 = arith.constant dense<0xFF800000> : vector<2x8xf32>
    %821 = vector.multi_reduction <maximumf>, %820, %cst_200 [2] : vector<2x8x24xf32> to vector<2x8xf32>
    %822 = vector.shape_cast %821 : vector<2x8xf32> to vector<2x8x1xf32>
    %823 = vector.broadcast %822 : vector<2x8x1xf32> to vector<2x8x24xf32>
    %824 = arith.subf %820, %823 : vector<2x8x24xf32>
    %825 = math.exp %824 : vector<2x8x24xf32>
    %cst_201 = arith.constant dense<0.000000e+00> : vector<2x8xf32>
    %826 = vector.multi_reduction <add>, %825, %cst_201 [2] : vector<2x8x24xf32> to vector<2x8xf32>
    %827 = vector.shape_cast %826 : vector<2x8xf32> to vector<2x8x1xf32>
    %828 = vector.broadcast %827 : vector<2x8x1xf32> to vector<2x8x24xf32>
    %829 = arith.divf %825, %828 : vector<2x8x24xf32>
    %830 = arith.truncf %829 : vector<2x8x24xf32> to vector<2x8x24xbf16>
    %831 = vector.extract_strided_slice %752 {offsets = [0, 0, 24], sizes = [2, 24, 8], strides = [1, 1, 1]} : vector<2x24x32xbf16> to vector<2x24x8xbf16>
    "tpu.trace_start"() <{level = 10 : i32, message = "bqk,bkd->bqd"}> : () -> ()
    %cst_202 = arith.constant dense<0.000000e+00> : vector<2x8x8xf32>
    %832 = tpu.matmul %830, %831, %cst_202 {dimension_numbers = #tpu.dot_dimension_numbers<[2], [1], [1], [2], [0, 0, 0, 1, 1, 2], [0], [0]>} : vector<2x8x24xbf16>, vector<2x24x8xbf16>, vector<2x8x8xf32> -> vector<2x8x8xf32>
    "tpu.trace_stop"() : () -> ()
    %833 = tpu.concatenate %772, %792, %812, %832 in 2 : vector<2x8x8xf32>, vector<2x8x8xf32>, vector<2x8x8xf32>, vector<2x8x8xf32> -> vector<2x8x32xf32>
    %834 = arith.truncf %833 : vector<2x8x32xf32> to vector<2x8x32xbf16>
    %835 = vector.extract_strided_slice %686 {offsets = [0, 384], sizes = [32, 128], strides = [1, 1]} : vector<32x640xbf16> to vector<32x128xbf16>
    %836 = vector.shape_cast %834 : vector<2x8x32xbf16> to vector<16x32xbf16>
    %cst_203 = arith.constant dense<0.000000e+00> : vector<16x128xf32>
    %837 = tpu.matmul %836, %835, %cst_203 {dimension_numbers = #tpu.dot_dimension_numbers<[1], [0], [0], [1], [0, 0, 1, 1], [], []>} : vector<16x32xbf16>, vector<32x128xbf16>, vector<16x128xf32> -> vector<16x128xf32>
    %838 = vector.shape_cast %837 : vector<16x128xf32> to vector<2x8x128xf32>
    %839 = vector.extract_strided_slice %838 {offsets = [0, 0, 0], sizes = [2, 8, 32], strides = [1, 1, 1]} : vector<2x8x128xf32> to vector<2x8x32xf32>
    %840 = arith.addf %278, %839 : vector<2x8x32xf32>
    %841 = vector.shape_cast %698 : vector<1x32xf32> to vector<1x1x32xf32>
    %842 = vector.broadcast %841 : vector<1x1x32xf32> to vector<2x8x32xf32>
    %843 = arith.addf %840, %842 : vector<2x8x32xf32>
    %cst_204 = arith.constant dense<0.000000e+00> : vector<2x8xf32>
    %844 = vector.multi_reduction <add>, %843, %cst_204 [2] : vector<2x8x32xf32> to vector<2x8xf32>
    %845 = vector.shape_cast %844 : vector<2x8xf32> to vector<2x8x1xf32>
    %cst_205 = arith.constant 3.200000e+01 : f32
    %846 = vector.broadcast %cst_205 : f32 to vector<2x8x1xf32>
    %847 = arith.divf %845, %846 : vector<2x8x1xf32>
    %848 = vector.broadcast %847 : vector<2x8x1xf32> to vector<2x8x32xf32>
    %849 = arith.subf %843, %848 : vector<2x8x32xf32>
    %850 = arith.mulf %849, %849 : vector<2x8x32xf32>
    %cst_206 = arith.constant dense<0.000000e+00> : vector<2x8xf32>
    %851 = vector.multi_reduction <add>, %850, %cst_206 [2] : vector<2x8x32xf32> to vector<2x8xf32>
    %852 = vector.shape_cast %851 : vector<2x8xf32> to vector<2x8x1xf32>
    %cst_207 = arith.constant 3.200000e+01 : f32
    %853 = vector.broadcast %cst_207 : f32 to vector<2x8x1xf32>
    %854 = arith.divf %852, %853 : vector<2x8x1xf32>
    %cst_208 = arith.constant 9.99999974E-6 : f32
    %855 = vector.broadcast %cst_208 : f32 to vector<2x8x1xf32>
    %856 = arith.addf %854, %855 : vector<2x8x1xf32>
    %857 = math.rsqrt %856 : vector<2x8x1xf32>
    %858 = vector.broadcast %857 : vector<2x8x1xf32> to vector<2x8x32xf32>
    %859 = arith.mulf %849, %858 : vector<2x8x32xf32>
    %860 = vector.shape_cast %693 : vector<1x32xf32> to vector<1x1x32xf32>
    %861 = vector.broadcast %860 : vector<1x1x32xf32> to vector<2x8x32xf32>
    %862 = arith.mulf %859, %861 : vector<2x8x32xf32>
    %863 = vector.shape_cast %694 : vector<1x32xf32> to vector<1x1x32xf32>
    %864 = vector.broadcast %863 : vector<1x1x32xf32> to vector<2x8x32xf32>
    %865 = arith.addf %862, %864 : vector<2x8x32xf32>
    %866 = arith.truncf %865 : vector<2x8x32xf32> to vector<2x8x32xbf16>
    %867 = vector.extract_strided_slice %686 {offsets = [0, 512], sizes = [32, 128], strides = [1, 1]} : vector<32x640xbf16> to vector<32x128xbf16>
    %868 = vector.shape_cast %866 : vector<2x8x32xbf16> to vector<16x32xbf16>
    %cst_209 = arith.constant dense<0.000000e+00> : vector<16x128xf32>
    %869 = tpu.matmul %868, %867, %cst_209 {dimension_numbers = #tpu.dot_dimension_numbers<[1], [0], [0], [1], [0, 0, 1, 1], [], []>} : vector<16x32xbf16>, vector<32x128xbf16>, vector<16x128xf32> -> vector<16x128xf32>
    %870 = vector.shape_cast %869 : vector<16x128xf32> to vector<2x8x128xf32>
    %871 = vector.shape_cast %699 : vector<1x128xf32> to vector<1x1x128xf32>
    %872 = vector.broadcast %871 : vector<1x1x128xf32> to vector<2x8x128xf32>
    %873 = arith.addf %870, %872 : vector<2x8x128xf32>
    %874 = arith.mulf %873, %873 : vector<2x8x128xf32>
    %875 = arith.mulf %873, %874 : vector<2x8x128xf32>
    %cst_210 = arith.constant 4.471500e-02 : f32
    %876 = vector.broadcast %cst_210 : f32 to vector<2x8x128xf32>
    %877 = arith.mulf %876, %875 : vector<2x8x128xf32>
    %878 = arith.addf %873, %877 : vector<2x8x128xf32>
    %cst_211 = arith.constant 0.797884583 : f32
    %879 = vector.broadcast %cst_211 : f32 to vector<2x8x128xf32>
    %880 = arith.mulf %879, %878 : vector<2x8x128xf32>
    %881 = math.tanh %880 : vector<2x8x128xf32>
    %cst_212 = arith.constant 1.000000e+00 : f32
    %882 = vector.broadcast %cst_212 : f32 to vector<2x8x128xf32>
    %883 = arith.addf %882, %881 : vector<2x8x128xf32>
    %cst_213 = arith.constant 5.000000e-01 : f32
    %884 = vector.broadcast %cst_213 : f32 to vector<2x8x128xf32>
    %885 = arith.mulf %884, %883 : vector<2x8x128xf32>
    %886 = arith.mulf %873, %885 : vector<2x8x128xf32>
    %887 = arith.truncf %886 : vector<2x8x128xf32> to vector<2x8x128xbf16>
    %888 = vector.shape_cast %887 : vector<2x8x128xbf16> to vector<16x128xbf16>
    %cst_214 = arith.constant dense<0.000000e+00> : vector<16x32xf32>
    %889 = tpu.matmul %888, %688, %cst_214 {dimension_numbers = #tpu.dot_dimension_numbers<[1], [0], [0], [1], [0, 0, 1, 1], [], []>} : vector<16x128xbf16>, vector<128x32xbf16>, vector<16x32xf32> -> vector<16x32xf32>
    %890 = vector.shape_cast %889 : vector<16x32xf32> to vector<2x8x32xf32>
    %891 = arith.addf %843, %890 : vector<2x8x32xf32>
    %892 = vector.shape_cast %700 : vector<1x32xf32> to vector<1x1x32xf32>
    %893 = vector.broadcast %892 : vector<1x1x32xf32> to vector<2x8x32xf32>
    %894 = arith.addf %891, %893 : vector<2x8x32xf32>
    %c3 = arith.constant 3 : index
    %c0_215 = arith.constant 0 : index
    %c0_216 = arith.constant 0 : index
    %895 = vector.load %arg4[%c3, %c0_215, %c0_216] : memref<4x32x640xbf16, #tpu.memory_space<vmem>>, vector<1x32x640xbf16>
    %896 = vector.shape_cast %895 : vector<1x32x640xbf16> to vector<32x640xbf16>
    %c3_217 = arith.constant 3 : index
    %c0_218 = arith.constant 0 : index
    %c0_219 = arith.constant 0 : index
    %897 = vector.load %arg5[%c3_217, %c0_218, %c0_219] : memref<4x128x32xbf16, #tpu.memory_space<vmem>>, vector<1x128x32xbf16>
    %898 = vector.shape_cast %897 : vector<1x128x32xbf16> to vector<128x32xbf16>
    %c3_220 = arith.constant 3 : index
    %c0_221 = arith.constant 0 : index
    %c0_222 = arith.constant 0 : index
    %899 = vector.load %arg6[%c3_220, %c0_221, %c0_222] : memref<4x10x128xf32, #tpu.memory_space<vmem>>, vector<1x10x128xf32>
    %900 = vector.shape_cast %899 : vector<1x10x128xf32> to vector<10x128xf32>
    %901 = vector.extract_strided_slice %900 {offsets = [0, 0], sizes = [1, 32], strides = [1, 1]} : vector<10x128xf32> to vector<1x32xf32>
    %902 = vector.extract_strided_slice %900 {offsets = [1, 0], sizes = [1, 32], strides = [1, 1]} : vector<10x128xf32> to vector<1x32xf32>
    %903 = vector.extract_strided_slice %900 {offsets = [2, 0], sizes = [1, 32], strides = [1, 1]} : vector<10x128xf32> to vector<1x32xf32>
    %904 = vector.extract_strided_slice %900 {offsets = [3, 0], sizes = [1, 32], strides = [1, 1]} : vector<10x128xf32> to vector<1x32xf32>
    %905 = vector.extract_strided_slice %900 {offsets = [4, 0], sizes = [1, 32], strides = [1, 1]} : vector<10x128xf32> to vector<1x32xf32>
    %906 = vector.extract_strided_slice %900 {offsets = [5, 0], sizes = [1, 32], strides = [1, 1]} : vector<10x128xf32> to vector<1x32xf32>
    %907 = vector.extract_strided_slice %900 {offsets = [6, 0], sizes = [1, 32], strides = [1, 1]} : vector<10x128xf32> to vector<1x32xf32>
    %908 = vector.extract_strided_slice %900 {offsets = [7, 0], sizes = [1, 32], strides = [1, 1]} : vector<10x128xf32> to vector<1x32xf32>
    %909 = vector.extract_strided_slice %900 {offsets = [8, 0], sizes = [1, 128], strides = [1, 1]} : vector<10x128xf32> to vector<1x128xf32>
    %910 = vector.extract_strided_slice %900 {offsets = [9, 0], sizes = [1, 32], strides = [1, 1]} : vector<10x128xf32> to vector<1x32xf32>
    %911 = tpu.concatenate %684, %488 in 1 : vector<2x16x32xf32>, vector<2x4x32xf32> -> vector<2x20x32xf32>
    %cst_223 = arith.constant dense<0.000000e+00> : vector<2x20xf32>
    %912 = vector.multi_reduction <add>, %911, %cst_223 [2] : vector<2x20x32xf32> to vector<2x20xf32>
    %913 = vector.shape_cast %912 : vector<2x20xf32> to vector<2x20x1xf32>
    %cst_224 = arith.constant 3.200000e+01 : f32
    %914 = vector.broadcast %cst_224 : f32 to vector<2x20x1xf32>
    %915 = arith.divf %913, %914 : vector<2x20x1xf32>
    %916 = vector.broadcast %915 : vector<2x20x1xf32> to vector<2x20x32xf32>
    %917 = arith.subf %911, %916 : vector<2x20x32xf32>
    %918 = arith.mulf %917, %917 : vector<2x20x32xf32>
    %cst_225 = arith.constant dense<0.000000e+00> : vector<2x20xf32>
    %919 = vector.multi_reduction <add>, %918, %cst_225 [2] : vector<2x20x32xf32> to vector<2x20xf32>
    %920 = vector.shape_cast %919 : vector<2x20xf32> to vector<2x20x1xf32>
    %cst_226 = arith.constant 3.200000e+01 : f32
    %921 = vector.broadcast %cst_226 : f32 to vector<2x20x1xf32>
    %922 = arith.divf %920, %921 : vector<2x20x1xf32>
    %cst_227 = arith.constant 9.99999974E-6 : f32
    %923 = vector.broadcast %cst_227 : f32 to vector<2x20x1xf32>
    %924 = arith.addf %922, %923 : vector<2x20x1xf32>
    %925 = math.rsqrt %924 : vector<2x20x1xf32>
    %926 = vector.broadcast %925 : vector<2x20x1xf32> to vector<2x20x32xf32>
    %927 = arith.mulf %917, %926 : vector<2x20x32xf32>
    %928 = vector.shape_cast %901 : vector<1x32xf32> to vector<1x1x32xf32>
    %929 = vector.broadcast %928 : vector<1x1x32xf32> to vector<2x20x32xf32>
    %930 = arith.mulf %927, %929 : vector<2x20x32xf32>
    %931 = vector.shape_cast %902 : vector<1x32xf32> to vector<1x1x32xf32>
    %932 = vector.broadcast %931 : vector<1x1x32xf32> to vector<2x20x32xf32>
    %933 = arith.addf %930, %932 : vector<2x20x32xf32>
    %934 = arith.truncf %933 : vector<2x20x32xf32> to vector<2x20x32xbf16>
    %935 = vector.extract_strided_slice %896 {offsets = [0, 0], sizes = [32, 128], strides = [1, 1]} : vector<32x640xbf16> to vector<32x128xbf16>
    %936 = vector.shape_cast %934 : vector<2x20x32xbf16> to vector<40x32xbf16>
    %cst_228 = arith.constant dense<0.000000e+00> : vector<40x128xf32>
    %937 = tpu.matmul %936, %935, %cst_228 {dimension_numbers = #tpu.dot_dimension_numbers<[1], [0], [0], [1], [0, 0, 1, 1], [], []>} : vector<40x32xbf16>, vector<32x128xbf16>, vector<40x128xf32> -> vector<40x128xf32>
    %938 = vector.shape_cast %937 : vector<40x128xf32> to vector<2x20x128xf32>
    %939 = vector.extract_strided_slice %938 {offsets = [0, 0, 0], sizes = [2, 20, 32], strides = [1, 1, 1]} : vector<2x20x128xf32> to vector<2x20x32xf32>
    %940 = vector.shape_cast %905 : vector<1x32xf32> to vector<1x1x32xf32>
    %941 = vector.broadcast %940 : vector<1x1x32xf32> to vector<2x20x32xf32>
    %942 = arith.addf %939, %941 : vector<2x20x32xf32>
    %943 = vector.extract_strided_slice %896 {offsets = [0, 128], sizes = [32, 128], strides = [1, 1]} : vector<32x640xbf16> to vector<32x128xbf16>
    %944 = vector.shape_cast %934 : vector<2x20x32xbf16> to vector<40x32xbf16>
    %cst_229 = arith.constant dense<0.000000e+00> : vector<40x128xf32>
    %945 = tpu.matmul %944, %943, %cst_229 {dimension_numbers = #tpu.dot_dimension_numbers<[1], [0], [0], [1], [0, 0, 1, 1], [], []>} : vector<40x32xbf16>, vector<32x128xbf16>, vector<40x128xf32> -> vector<40x128xf32>
    %946 = vector.shape_cast %945 : vector<40x128xf32> to vector<2x20x128xf32>
    %947 = vector.extract_strided_slice %946 {offsets = [0, 0, 0], sizes = [2, 20, 32], strides = [1, 1, 1]} : vector<2x20x128xf32> to vector<2x20x32xf32>
    %948 = vector.shape_cast %906 : vector<1x32xf32> to vector<1x1x32xf32>
    %949 = vector.broadcast %948 : vector<1x1x32xf32> to vector<2x20x32xf32>
    %950 = arith.addf %947, %949 : vector<2x20x32xf32>
    %951 = vector.extract_strided_slice %896 {offsets = [0, 256], sizes = [32, 128], strides = [1, 1]} : vector<32x640xbf16> to vector<32x128xbf16>
    %952 = vector.shape_cast %934 : vector<2x20x32xbf16> to vector<40x32xbf16>
    %cst_230 = arith.constant dense<0.000000e+00> : vector<40x128xf32>
    %953 = tpu.matmul %952, %951, %cst_230 {dimension_numbers = #tpu.dot_dimension_numbers<[1], [0], [0], [1], [0, 0, 1, 1], [], []>} : vector<40x32xbf16>, vector<32x128xbf16>, vector<40x128xf32> -> vector<40x128xf32>
    %954 = vector.shape_cast %953 : vector<40x128xf32> to vector<2x20x128xf32>
    %955 = vector.extract_strided_slice %954 {offsets = [0, 0, 0], sizes = [2, 20, 32], strides = [1, 1, 1]} : vector<2x20x128xf32> to vector<2x20x32xf32>
    %956 = vector.shape_cast %907 : vector<1x32xf32> to vector<1x1x32xf32>
    %957 = vector.broadcast %956 : vector<1x1x32xf32> to vector<2x20x32xf32>
    %958 = arith.addf %955, %957 : vector<2x20x32xf32>
    %959 = vector.extract_strided_slice %942 {offsets = [0, 16, 0], sizes = [2, 4, 32], strides = [1, 1, 1]} : vector<2x20x32xf32> to vector<2x4x32xf32>
    %960 = arith.truncf %959 : vector<2x4x32xf32> to vector<2x4x32xbf16>
    %961 = arith.truncf %950 : vector<2x20x32xf32> to vector<2x20x32xbf16>
    %962 = arith.truncf %958 : vector<2x20x32xf32> to vector<2x20x32xbf16>
    %963 = vector.extract_strided_slice %960 {offsets = [0, 0, 0], sizes = [2, 4, 8], strides = [1, 1, 1]} : vector<2x4x32xbf16> to vector<2x4x8xbf16>
    %964 = vector.extract_strided_slice %961 {offsets = [0, 0, 0], sizes = [2, 20, 8], strides = [1, 1, 1]} : vector<2x20x32xbf16> to vector<2x20x8xbf16>
    "tpu.trace_start"() <{level = 10 : i32, message = "bqd,bkd->bqk"}> : () -> ()
    %cst_231 = arith.constant dense<0.000000e+00> : vector<2x4x20xf32>
    %965 = tpu.matmul %963, %964, %cst_231 {dimension_numbers = #tpu.dot_dimension_numbers<[2], [2], [1], [1], [0, 0, 0, 1, 1, 1], [0], [0]>} : vector<2x4x8xbf16>, vector<2x20x8xbf16>, vector<2x4x20xf32> -> vector<2x4x20xf32>
    "tpu.trace_stop"() : () -> ()
    %cst_232 = arith.constant 0.353553385 : f32
    %966 = vector.broadcast %cst_232 : f32 to vector<2x4x20xf32>
    %967 = arith.mulf %965, %966 : vector<2x4x20xf32>
    %968 = vector.shape_cast %40 : vector<1x20xf32> to vector<1x1x20xf32>
    %969 = vector.broadcast %968 : vector<1x1x20xf32> to vector<2x4x20xf32>
    %970 = arith.addf %967, %969 : vector<2x4x20xf32>
    %cst_233 = arith.constant dense<0xFF800000> : vector<2x4xf32>
    %971 = vector.multi_reduction <maximumf>, %970, %cst_233 [2] : vector<2x4x20xf32> to vector<2x4xf32>
    %972 = vector.shape_cast %971 : vector<2x4xf32> to vector<2x4x1xf32>
    %973 = vector.broadcast %972 : vector<2x4x1xf32> to vector<2x4x20xf32>
    %974 = arith.subf %970, %973 : vector<2x4x20xf32>
    %975 = math.exp %974 : vector<2x4x20xf32>
    %cst_234 = arith.constant dense<0.000000e+00> : vector<2x4xf32>
    %976 = vector.multi_reduction <add>, %975, %cst_234 [2] : vector<2x4x20xf32> to vector<2x4xf32>
    %977 = vector.shape_cast %976 : vector<2x4xf32> to vector<2x4x1xf32>
    %978 = vector.broadcast %977 : vector<2x4x1xf32> to vector<2x4x20xf32>
    %979 = arith.divf %975, %978 : vector<2x4x20xf32>
    %980 = arith.truncf %979 : vector<2x4x20xf32> to vector<2x4x20xbf16>
    %981 = vector.extract_strided_slice %962 {offsets = [0, 0, 0], sizes = [2, 20, 8], strides = [1, 1, 1]} : vector<2x20x32xbf16> to vector<2x20x8xbf16>
    "tpu.trace_start"() <{level = 10 : i32, message = "bqk,bkd->bqd"}> : () -> ()
    %cst_235 = arith.constant dense<0.000000e+00> : vector<2x4x8xf32>
    %982 = tpu.matmul %980, %981, %cst_235 {dimension_numbers = #tpu.dot_dimension_numbers<[2], [1], [1], [2], [0, 0, 0, 1, 1, 2], [0], [0]>} : vector<2x4x20xbf16>, vector<2x20x8xbf16>, vector<2x4x8xf32> -> vector<2x4x8xf32>
    "tpu.trace_stop"() : () -> ()
    %983 = vector.extract_strided_slice %960 {offsets = [0, 0, 8], sizes = [2, 4, 8], strides = [1, 1, 1]} : vector<2x4x32xbf16> to vector<2x4x8xbf16>
    %984 = vector.extract_strided_slice %961 {offsets = [0, 0, 8], sizes = [2, 20, 8], strides = [1, 1, 1]} : vector<2x20x32xbf16> to vector<2x20x8xbf16>
    "tpu.trace_start"() <{level = 10 : i32, message = "bqd,bkd->bqk"}> : () -> ()
    %cst_236 = arith.constant dense<0.000000e+00> : vector<2x4x20xf32>
    %985 = tpu.matmul %983, %984, %cst_236 {dimension_numbers = #tpu.dot_dimension_numbers<[2], [2], [1], [1], [0, 0, 0, 1, 1, 1], [0], [0]>} : vector<2x4x8xbf16>, vector<2x20x8xbf16>, vector<2x4x20xf32> -> vector<2x4x20xf32>
    "tpu.trace_stop"() : () -> ()
    %cst_237 = arith.constant 0.353553385 : f32
    %986 = vector.broadcast %cst_237 : f32 to vector<2x4x20xf32>
    %987 = arith.mulf %985, %986 : vector<2x4x20xf32>
    %988 = vector.shape_cast %40 : vector<1x20xf32> to vector<1x1x20xf32>
    %989 = vector.broadcast %988 : vector<1x1x20xf32> to vector<2x4x20xf32>
    %990 = arith.addf %987, %989 : vector<2x4x20xf32>
    %cst_238 = arith.constant dense<0xFF800000> : vector<2x4xf32>
    %991 = vector.multi_reduction <maximumf>, %990, %cst_238 [2] : vector<2x4x20xf32> to vector<2x4xf32>
    %992 = vector.shape_cast %991 : vector<2x4xf32> to vector<2x4x1xf32>
    %993 = vector.broadcast %992 : vector<2x4x1xf32> to vector<2x4x20xf32>
    %994 = arith.subf %990, %993 : vector<2x4x20xf32>
    %995 = math.exp %994 : vector<2x4x20xf32>
    %cst_239 = arith.constant dense<0.000000e+00> : vector<2x4xf32>
    %996 = vector.multi_reduction <add>, %995, %cst_239 [2] : vector<2x4x20xf32> to vector<2x4xf32>
    %997 = vector.shape_cast %996 : vector<2x4xf32> to vector<2x4x1xf32>
    %998 = vector.broadcast %997 : vector<2x4x1xf32> to vector<2x4x20xf32>
    %999 = arith.divf %995, %998 : vector<2x4x20xf32>
    %1000 = arith.truncf %999 : vector<2x4x20xf32> to vector<2x4x20xbf16>
    %1001 = vector.extract_strided_slice %962 {offsets = [0, 0, 8], sizes = [2, 20, 8], strides = [1, 1, 1]} : vector<2x20x32xbf16> to vector<2x20x8xbf16>
    "tpu.trace_start"() <{level = 10 : i32, message = "bqk,bkd->bqd"}> : () -> ()
    %cst_240 = arith.constant dense<0.000000e+00> : vector<2x4x8xf32>
    %1002 = tpu.matmul %1000, %1001, %cst_240 {dimension_numbers = #tpu.dot_dimension_numbers<[2], [1], [1], [2], [0, 0, 0, 1, 1, 2], [0], [0]>} : vector<2x4x20xbf16>, vector<2x20x8xbf16>, vector<2x4x8xf32> -> vector<2x4x8xf32>
    "tpu.trace_stop"() : () -> ()
    %1003 = vector.extract_strided_slice %960 {offsets = [0, 0, 16], sizes = [2, 4, 8], strides = [1, 1, 1]} : vector<2x4x32xbf16> to vector<2x4x8xbf16>
    %1004 = vector.extract_strided_slice %961 {offsets = [0, 0, 16], sizes = [2, 20, 8], strides = [1, 1, 1]} : vector<2x20x32xbf16> to vector<2x20x8xbf16>
    "tpu.trace_start"() <{level = 10 : i32, message = "bqd,bkd->bqk"}> : () -> ()
    %cst_241 = arith.constant dense<0.000000e+00> : vector<2x4x20xf32>
    %1005 = tpu.matmul %1003, %1004, %cst_241 {dimension_numbers = #tpu.dot_dimension_numbers<[2], [2], [1], [1], [0, 0, 0, 1, 1, 1], [0], [0]>} : vector<2x4x8xbf16>, vector<2x20x8xbf16>, vector<2x4x20xf32> -> vector<2x4x20xf32>
    "tpu.trace_stop"() : () -> ()
    %cst_242 = arith.constant 0.353553385 : f32
    %1006 = vector.broadcast %cst_242 : f32 to vector<2x4x20xf32>
    %1007 = arith.mulf %1005, %1006 : vector<2x4x20xf32>
    %1008 = vector.shape_cast %40 : vector<1x20xf32> to vector<1x1x20xf32>
    %1009 = vector.broadcast %1008 : vector<1x1x20xf32> to vector<2x4x20xf32>
    %1010 = arith.addf %1007, %1009 : vector<2x4x20xf32>
    %cst_243 = arith.constant dense<0xFF800000> : vector<2x4xf32>
    %1011 = vector.multi_reduction <maximumf>, %1010, %cst_243 [2] : vector<2x4x20xf32> to vector<2x4xf32>
    %1012 = vector.shape_cast %1011 : vector<2x4xf32> to vector<2x4x1xf32>
    %1013 = vector.broadcast %1012 : vector<2x4x1xf32> to vector<2x4x20xf32>
    %1014 = arith.subf %1010, %1013 : vector<2x4x20xf32>
    %1015 = math.exp %1014 : vector<2x4x20xf32>
    %cst_244 = arith.constant dense<0.000000e+00> : vector<2x4xf32>
    %1016 = vector.multi_reduction <add>, %1015, %cst_244 [2] : vector<2x4x20xf32> to vector<2x4xf32>
    %1017 = vector.shape_cast %1016 : vector<2x4xf32> to vector<2x4x1xf32>
    %1018 = vector.broadcast %1017 : vector<2x4x1xf32> to vector<2x4x20xf32>
    %1019 = arith.divf %1015, %1018 : vector<2x4x20xf32>
    %1020 = arith.truncf %1019 : vector<2x4x20xf32> to vector<2x4x20xbf16>
    %1021 = vector.extract_strided_slice %962 {offsets = [0, 0, 16], sizes = [2, 20, 8], strides = [1, 1, 1]} : vector<2x20x32xbf16> to vector<2x20x8xbf16>
    "tpu.trace_start"() <{level = 10 : i32, message = "bqk,bkd->bqd"}> : () -> ()
    %cst_245 = arith.constant dense<0.000000e+00> : vector<2x4x8xf32>
    %1022 = tpu.matmul %1020, %1021, %cst_245 {dimension_numbers = #tpu.dot_dimension_numbers<[2], [1], [1], [2], [0, 0, 0, 1, 1, 2], [0], [0]>} : vector<2x4x20xbf16>, vector<2x20x8xbf16>, vector<2x4x8xf32> -> vector<2x4x8xf32>
    "tpu.trace_stop"() : () -> ()
    %1023 = vector.extract_strided_slice %960 {offsets = [0, 0, 24], sizes = [2, 4, 8], strides = [1, 1, 1]} : vector<2x4x32xbf16> to vector<2x4x8xbf16>
    %1024 = vector.extract_strided_slice %961 {offsets = [0, 0, 24], sizes = [2, 20, 8], strides = [1, 1, 1]} : vector<2x20x32xbf16> to vector<2x20x8xbf16>
    "tpu.trace_start"() <{level = 10 : i32, message = "bqd,bkd->bqk"}> : () -> ()
    %cst_246 = arith.constant dense<0.000000e+00> : vector<2x4x20xf32>
    %1025 = tpu.matmul %1023, %1024, %cst_246 {dimension_numbers = #tpu.dot_dimension_numbers<[2], [2], [1], [1], [0, 0, 0, 1, 1, 1], [0], [0]>} : vector<2x4x8xbf16>, vector<2x20x8xbf16>, vector<2x4x20xf32> -> vector<2x4x20xf32>
    "tpu.trace_stop"() : () -> ()
    %cst_247 = arith.constant 0.353553385 : f32
    %1026 = vector.broadcast %cst_247 : f32 to vector<2x4x20xf32>
    %1027 = arith.mulf %1025, %1026 : vector<2x4x20xf32>
    %1028 = vector.shape_cast %40 : vector<1x20xf32> to vector<1x1x20xf32>
    %1029 = vector.broadcast %1028 : vector<1x1x20xf32> to vector<2x4x20xf32>
    %1030 = arith.addf %1027, %1029 : vector<2x4x20xf32>
    %cst_248 = arith.constant dense<0xFF800000> : vector<2x4xf32>
    %1031 = vector.multi_reduction <maximumf>, %1030, %cst_248 [2] : vector<2x4x20xf32> to vector<2x4xf32>
    %1032 = vector.shape_cast %1031 : vector<2x4xf32> to vector<2x4x1xf32>
    %1033 = vector.broadcast %1032 : vector<2x4x1xf32> to vector<2x4x20xf32>
    %1034 = arith.subf %1030, %1033 : vector<2x4x20xf32>
    %1035 = math.exp %1034 : vector<2x4x20xf32>
    %cst_249 = arith.constant dense<0.000000e+00> : vector<2x4xf32>
    %1036 = vector.multi_reduction <add>, %1035, %cst_249 [2] : vector<2x4x20xf32> to vector<2x4xf32>
    %1037 = vector.shape_cast %1036 : vector<2x4xf32> to vector<2x4x1xf32>
    %1038 = vector.broadcast %1037 : vector<2x4x1xf32> to vector<2x4x20xf32>
    %1039 = arith.divf %1035, %1038 : vector<2x4x20xf32>
    %1040 = arith.truncf %1039 : vector<2x4x20xf32> to vector<2x4x20xbf16>
    %1041 = vector.extract_strided_slice %962 {offsets = [0, 0, 24], sizes = [2, 20, 8], strides = [1, 1, 1]} : vector<2x20x32xbf16> to vector<2x20x8xbf16>
    "tpu.trace_start"() <{level = 10 : i32, message = "bqk,bkd->bqd"}> : () -> ()
    %cst_250 = arith.constant dense<0.000000e+00> : vector<2x4x8xf32>
    %1042 = tpu.matmul %1040, %1041, %cst_250 {dimension_numbers = #tpu.dot_dimension_numbers<[2], [1], [1], [2], [0, 0, 0, 1, 1, 2], [0], [0]>} : vector<2x4x20xbf16>, vector<2x20x8xbf16>, vector<2x4x8xf32> -> vector<2x4x8xf32>
    "tpu.trace_stop"() : () -> ()
    %1043 = tpu.concatenate %982, %1002, %1022, %1042 in 2 : vector<2x4x8xf32>, vector<2x4x8xf32>, vector<2x4x8xf32>, vector<2x4x8xf32> -> vector<2x4x32xf32>
    %1044 = arith.truncf %1043 : vector<2x4x32xf32> to vector<2x4x32xbf16>
    %1045 = vector.extract_strided_slice %896 {offsets = [0, 384], sizes = [32, 128], strides = [1, 1]} : vector<32x640xbf16> to vector<32x128xbf16>
    %1046 = vector.shape_cast %1044 : vector<2x4x32xbf16> to vector<8x32xbf16>
    %cst_251 = arith.constant dense<0.000000e+00> : vector<8x128xf32>
    %1047 = tpu.matmul %1046, %1045, %cst_251 {dimension_numbers = #tpu.dot_dimension_numbers<[1], [0], [0], [1], [0, 0, 1, 1], [], []>} : vector<8x32xbf16>, vector<32x128xbf16>, vector<8x128xf32> -> vector<8x128xf32>
    %1048 = vector.shape_cast %1047 : vector<8x128xf32> to vector<2x4x128xf32>
    %1049 = vector.extract_strided_slice %1048 {offsets = [0, 0, 0], sizes = [2, 4, 32], strides = [1, 1, 1]} : vector<2x4x128xf32> to vector<2x4x32xf32>
    %1050 = arith.addf %488, %1049 : vector<2x4x32xf32>
    %1051 = vector.shape_cast %908 : vector<1x32xf32> to vector<1x1x32xf32>
    %1052 = vector.broadcast %1051 : vector<1x1x32xf32> to vector<2x4x32xf32>
    %1053 = arith.addf %1050, %1052 : vector<2x4x32xf32>
    %cst_252 = arith.constant dense<0.000000e+00> : vector<2x4xf32>
    %1054 = vector.multi_reduction <add>, %1053, %cst_252 [2] : vector<2x4x32xf32> to vector<2x4xf32>
    %1055 = vector.shape_cast %1054 : vector<2x4xf32> to vector<2x4x1xf32>
    %cst_253 = arith.constant 3.200000e+01 : f32
    %1056 = vector.broadcast %cst_253 : f32 to vector<2x4x1xf32>
    %1057 = arith.divf %1055, %1056 : vector<2x4x1xf32>
    %1058 = vector.broadcast %1057 : vector<2x4x1xf32> to vector<2x4x32xf32>
    %1059 = arith.subf %1053, %1058 : vector<2x4x32xf32>
    %1060 = arith.mulf %1059, %1059 : vector<2x4x32xf32>
    %cst_254 = arith.constant dense<0.000000e+00> : vector<2x4xf32>
    %1061 = vector.multi_reduction <add>, %1060, %cst_254 [2] : vector<2x4x32xf32> to vector<2x4xf32>
    %1062 = vector.shape_cast %1061 : vector<2x4xf32> to vector<2x4x1xf32>
    %cst_255 = arith.constant 3.200000e+01 : f32
    %1063 = vector.broadcast %cst_255 : f32 to vector<2x4x1xf32>
    %1064 = arith.divf %1062, %1063 : vector<2x4x1xf32>
    %cst_256 = arith.constant 9.99999974E-6 : f32
    %1065 = vector.broadcast %cst_256 : f32 to vector<2x4x1xf32>
    %1066 = arith.addf %1064, %1065 : vector<2x4x1xf32>
    %1067 = math.rsqrt %1066 : vector<2x4x1xf32>
    %1068 = vector.broadcast %1067 : vector<2x4x1xf32> to vector<2x4x32xf32>
    %1069 = arith.mulf %1059, %1068 : vector<2x4x32xf32>
    %1070 = vector.shape_cast %903 : vector<1x32xf32> to vector<1x1x32xf32>
    %1071 = vector.broadcast %1070 : vector<1x1x32xf32> to vector<2x4x32xf32>
    %1072 = arith.mulf %1069, %1071 : vector<2x4x32xf32>
    %1073 = vector.shape_cast %904 : vector<1x32xf32> to vector<1x1x32xf32>
    %1074 = vector.broadcast %1073 : vector<1x1x32xf32> to vector<2x4x32xf32>
    %1075 = arith.addf %1072, %1074 : vector<2x4x32xf32>
    %1076 = arith.truncf %1075 : vector<2x4x32xf32> to vector<2x4x32xbf16>
    %1077 = vector.extract_strided_slice %896 {offsets = [0, 512], sizes = [32, 128], strides = [1, 1]} : vector<32x640xbf16> to vector<32x128xbf16>
    %1078 = vector.shape_cast %1076 : vector<2x4x32xbf16> to vector<8x32xbf16>
    %cst_257 = arith.constant dense<0.000000e+00> : vector<8x128xf32>
    %1079 = tpu.matmul %1078, %1077, %cst_257 {dimension_numbers = #tpu.dot_dimension_numbers<[1], [0], [0], [1], [0, 0, 1, 1], [], []>} : vector<8x32xbf16>, vector<32x128xbf16>, vector<8x128xf32> -> vector<8x128xf32>
    %1080 = vector.shape_cast %1079 : vector<8x128xf32> to vector<2x4x128xf32>
    %1081 = vector.shape_cast %909 : vector<1x128xf32> to vector<1x1x128xf32>
    %1082 = vector.broadcast %1081 : vector<1x1x128xf32> to vector<2x4x128xf32>
    %1083 = arith.addf %1080, %1082 : vector<2x4x128xf32>
    %1084 = arith.mulf %1083, %1083 : vector<2x4x128xf32>
    %1085 = arith.mulf %1083, %1084 : vector<2x4x128xf32>
    %cst_258 = arith.constant 4.471500e-02 : f32
    %1086 = vector.broadcast %cst_258 : f32 to vector<2x4x128xf32>
    %1087 = arith.mulf %1086, %1085 : vector<2x4x128xf32>
    %1088 = arith.addf %1083, %1087 : vector<2x4x128xf32>
    %cst_259 = arith.constant 0.797884583 : f32
    %1089 = vector.broadcast %cst_259 : f32 to vector<2x4x128xf32>
    %1090 = arith.mulf %1089, %1088 : vector<2x4x128xf32>
    %1091 = math.tanh %1090 : vector<2x4x128xf32>
    %cst_260 = arith.constant 1.000000e+00 : f32
    %1092 = vector.broadcast %cst_260 : f32 to vector<2x4x128xf32>
    %1093 = arith.addf %1092, %1091 : vector<2x4x128xf32>
    %cst_261 = arith.constant 5.000000e-01 : f32
    %1094 = vector.broadcast %cst_261 : f32 to vector<2x4x128xf32>
    %1095 = arith.mulf %1094, %1093 : vector<2x4x128xf32>
    %1096 = arith.mulf %1083, %1095 : vector<2x4x128xf32>
    %1097 = arith.truncf %1096 : vector<2x4x128xf32> to vector<2x4x128xbf16>
    %1098 = vector.shape_cast %1097 : vector<2x4x128xbf16> to vector<8x128xbf16>
    %cst_262 = arith.constant dense<0.000000e+00> : vector<8x32xf32>
    %1099 = tpu.matmul %1098, %898, %cst_262 {dimension_numbers = #tpu.dot_dimension_numbers<[1], [0], [0], [1], [0, 0, 1, 1], [], []>} : vector<8x128xbf16>, vector<128x32xbf16>, vector<8x32xf32> -> vector<8x32xf32>
    %1100 = vector.shape_cast %1099 : vector<8x32xf32> to vector<2x4x32xf32>
    %1101 = arith.addf %1053, %1100 : vector<2x4x32xf32>
    %1102 = vector.shape_cast %910 : vector<1x32xf32> to vector<1x1x32xf32>
    %1103 = vector.broadcast %1102 : vector<1x1x32xf32> to vector<2x4x32xf32>
    %1104 = arith.addf %1101, %1103 : vector<2x4x32xf32>
    %c1_263 = arith.constant 1 : index
    %c0_264 = arith.constant 0 : index
    %c0_265 = arith.constant 0 : index
    %1105 = vector.load %arg7[%c1_263, %c0_264, %c0_265] : memref<2x32x512xbf16, #tpu.memory_space<vmem>>, vector<1x32x512xbf16>
    %1106 = vector.shape_cast %1105 : vector<1x32x512xbf16> to vector<32x512xbf16>
    %c1_266 = arith.constant 1 : index
    %c0_267 = arith.constant 0 : index
    %c0_268 = arith.constant 0 : index
    %1107 = vector.load %arg8[%c1_266, %c0_267, %c0_268] : memref<2x8x32xbf16, #tpu.memory_space<vmem>>, vector<1x8x32xbf16>
    %1108 = vector.shape_cast %1107 : vector<1x8x32xbf16> to vector<8x32xbf16>
    %c1_269 = arith.constant 1 : index
    %c0_270 = arith.constant 0 : index
    %c0_271 = arith.constant 0 : index
    %1109 = vector.load %arg9[%c1_269, %c0_270, %c0_271] : memref<2x32x32xbf16, #tpu.memory_space<vmem>>, vector<1x32x32xbf16>
    %1110 = vector.shape_cast %1109 : vector<1x32x32xbf16> to vector<32x32xbf16>
    %c1_272 = arith.constant 1 : index
    %c0_273 = arith.constant 0 : index
    %c0_274 = arith.constant 0 : index
    %1111 = vector.load %arg10[%c1_272, %c0_273, %c0_274] : memref<2x12x128xf32, #tpu.memory_space<vmem>>, vector<1x12x128xf32>
    %1112 = vector.shape_cast %1111 : vector<1x12x128xf32> to vector<12x128xf32>
    %1113 = vector.extract_strided_slice %1112 {offsets = [0, 0], sizes = [1, 32], strides = [1, 1]} : vector<12x128xf32> to vector<1x32xf32>
    %1114 = vector.extract_strided_slice %1112 {offsets = [1, 0], sizes = [1, 32], strides = [1, 1]} : vector<12x128xf32> to vector<1x32xf32>
    %1115 = vector.extract_strided_slice %1112 {offsets = [2, 0], sizes = [1, 32], strides = [1, 1]} : vector<12x128xf32> to vector<1x32xf32>
    %1116 = vector.extract_strided_slice %1112 {offsets = [3, 0], sizes = [1, 32], strides = [1, 1]} : vector<12x128xf32> to vector<1x32xf32>
    %1117 = vector.extract_strided_slice %1112 {offsets = [4, 0], sizes = [1, 32], strides = [1, 1]} : vector<12x128xf32> to vector<1x32xf32>
    %1118 = vector.extract_strided_slice %1112 {offsets = [5, 0], sizes = [1, 32], strides = [1, 1]} : vector<12x128xf32> to vector<1x32xf32>
    %1119 = vector.extract_strided_slice %1112 {offsets = [6, 0], sizes = [1, 8], strides = [1, 1]} : vector<12x128xf32> to vector<1x8xf32>
    %1120 = vector.extract_strided_slice %1112 {offsets = [7, 0], sizes = [1, 8], strides = [1, 1]} : vector<12x128xf32> to vector<1x8xf32>
    %1121 = vector.extract_strided_slice %1112 {offsets = [8, 0], sizes = [1, 8], strides = [1, 1]} : vector<12x128xf32> to vector<1x8xf32>
    %1122 = vector.extract_strided_slice %1112 {offsets = [9, 0], sizes = [1, 32], strides = [1, 1]} : vector<12x128xf32> to vector<1x32xf32>
    %1123 = vector.extract_strided_slice %1112 {offsets = [10, 0], sizes = [1, 32], strides = [1, 1]} : vector<12x128xf32> to vector<1x32xf32>
    %1124 = vector.extract_strided_slice %1112 {offsets = [11, 0], sizes = [1, 32], strides = [1, 1]} : vector<12x128xf32> to vector<1x32xf32>
    %cst_275 = arith.constant dense<0.000000e+00> : vector<2x16xf32>
    %1125 = vector.multi_reduction <add>, %684, %cst_275 [2] : vector<2x16x32xf32> to vector<2x16xf32>
    %1126 = vector.shape_cast %1125 : vector<2x16xf32> to vector<2x16x1xf32>
    %cst_276 = arith.constant 3.200000e+01 : f32
    %1127 = vector.broadcast %cst_276 : f32 to vector<2x16x1xf32>
    %1128 = arith.divf %1126, %1127 : vector<2x16x1xf32>
    %1129 = vector.broadcast %1128 : vector<2x16x1xf32> to vector<2x16x32xf32>
    %1130 = arith.subf %684, %1129 : vector<2x16x32xf32>
    %1131 = arith.mulf %1130, %1130 : vector<2x16x32xf32>
    %cst_277 = arith.constant dense<0.000000e+00> : vector<2x16xf32>
    %1132 = vector.multi_reduction <add>, %1131, %cst_277 [2] : vector<2x16x32xf32> to vector<2x16xf32>
    %1133 = vector.shape_cast %1132 : vector<2x16xf32> to vector<2x16x1xf32>
    %cst_278 = arith.constant 3.200000e+01 : f32
    %1134 = vector.broadcast %cst_278 : f32 to vector<2x16x1xf32>
    %1135 = arith.divf %1133, %1134 : vector<2x16x1xf32>
    %cst_279 = arith.constant 9.99999974E-6 : f32
    %1136 = vector.broadcast %cst_279 : f32 to vector<2x16x1xf32>
    %1137 = arith.addf %1135, %1136 : vector<2x16x1xf32>
    %1138 = math.rsqrt %1137 : vector<2x16x1xf32>
    %1139 = vector.broadcast %1138 : vector<2x16x1xf32> to vector<2x16x32xf32>
    %1140 = arith.mulf %1130, %1139 : vector<2x16x32xf32>
    %1141 = vector.shape_cast %1113 : vector<1x32xf32> to vector<1x1x32xf32>
    %1142 = vector.broadcast %1141 : vector<1x1x32xf32> to vector<2x16x32xf32>
    %1143 = arith.mulf %1140, %1142 : vector<2x16x32xf32>
    %1144 = vector.shape_cast %1114 : vector<1x32xf32> to vector<1x1x32xf32>
    %1145 = vector.broadcast %1144 : vector<1x1x32xf32> to vector<2x16x32xf32>
    %1146 = arith.addf %1143, %1145 : vector<2x16x32xf32>
    %1147 = arith.truncf %1146 : vector<2x16x32xf32> to vector<2x16x32xbf16>
    %1148 = tpu.concatenate %278, %488 in 1 : vector<2x8x32xf32>, vector<2x4x32xf32> -> vector<2x12x32xf32>
    %cst_280 = arith.constant dense<0.000000e+00> : vector<2x12xf32>
    %1149 = vector.multi_reduction <add>, %1148, %cst_280 [2] : vector<2x12x32xf32> to vector<2x12xf32>
    %1150 = vector.shape_cast %1149 : vector<2x12xf32> to vector<2x12x1xf32>
    %cst_281 = arith.constant 3.200000e+01 : f32
    %1151 = vector.broadcast %cst_281 : f32 to vector<2x12x1xf32>
    %1152 = arith.divf %1150, %1151 : vector<2x12x1xf32>
    %1153 = vector.broadcast %1152 : vector<2x12x1xf32> to vector<2x12x32xf32>
    %1154 = arith.subf %1148, %1153 : vector<2x12x32xf32>
    %1155 = arith.mulf %1154, %1154 : vector<2x12x32xf32>
    %cst_282 = arith.constant dense<0.000000e+00> : vector<2x12xf32>
    %1156 = vector.multi_reduction <add>, %1155, %cst_282 [2] : vector<2x12x32xf32> to vector<2x12xf32>
    %1157 = vector.shape_cast %1156 : vector<2x12xf32> to vector<2x12x1xf32>
    %cst_283 = arith.constant 3.200000e+01 : f32
    %1158 = vector.broadcast %cst_283 : f32 to vector<2x12x1xf32>
    %1159 = arith.divf %1157, %1158 : vector<2x12x1xf32>
    %cst_284 = arith.constant 9.99999974E-6 : f32
    %1160 = vector.broadcast %cst_284 : f32 to vector<2x12x1xf32>
    %1161 = arith.addf %1159, %1160 : vector<2x12x1xf32>
    %1162 = math.rsqrt %1161 : vector<2x12x1xf32>
    %1163 = vector.broadcast %1162 : vector<2x12x1xf32> to vector<2x12x32xf32>
    %1164 = arith.mulf %1154, %1163 : vector<2x12x32xf32>
    %1165 = vector.shape_cast %1115 : vector<1x32xf32> to vector<1x1x32xf32>
    %1166 = vector.broadcast %1165 : vector<1x1x32xf32> to vector<2x12x32xf32>
    %1167 = arith.mulf %1164, %1166 : vector<2x12x32xf32>
    %1168 = vector.shape_cast %1116 : vector<1x32xf32> to vector<1x1x32xf32>
    %1169 = vector.broadcast %1168 : vector<1x1x32xf32> to vector<2x12x32xf32>
    %1170 = arith.addf %1167, %1169 : vector<2x12x32xf32>
    %1171 = arith.truncf %1170 : vector<2x12x32xf32> to vector<2x12x32xbf16>
    %1172 = vector.extract_strided_slice %1106 {offsets = [0, 0], sizes = [32, 128], strides = [1, 1]} : vector<32x512xbf16> to vector<32x128xbf16>
    %1173 = vector.shape_cast %1147 : vector<2x16x32xbf16> to vector<32x32xbf16>
    %cst_285 = arith.constant dense<0.000000e+00> : vector<32x128xf32>
    %1174 = tpu.matmul %1173, %1172, %cst_285 {dimension_numbers = #tpu.dot_dimension_numbers<[1], [0], [0], [1], [0, 0, 1, 1], [], []>} : vector<32x32xbf16>, vector<32x128xbf16>, vector<32x128xf32> -> vector<32x128xf32>
    %1175 = vector.shape_cast %1174 : vector<32x128xf32> to vector<2x16x128xf32>
    %1176 = vector.extract_strided_slice %1175 {offsets = [0, 0, 0], sizes = [2, 16, 8], strides = [1, 1, 1]} : vector<2x16x128xf32> to vector<2x16x8xf32>
    %1177 = vector.shape_cast %1119 : vector<1x8xf32> to vector<1x1x8xf32>
    %1178 = vector.broadcast %1177 : vector<1x1x8xf32> to vector<2x16x8xf32>
    %1179 = arith.addf %1176, %1178 : vector<2x16x8xf32>
    %1180 = vector.extract_strided_slice %1106 {offsets = [0, 128], sizes = [32, 128], strides = [1, 1]} : vector<32x512xbf16> to vector<32x128xbf16>
    %1181 = vector.shape_cast %1171 : vector<2x12x32xbf16> to vector<24x32xbf16>
    %cst_286 = arith.constant dense<0.000000e+00> : vector<24x128xf32>
    %1182 = tpu.matmul %1181, %1180, %cst_286 {dimension_numbers = #tpu.dot_dimension_numbers<[1], [0], [0], [1], [0, 0, 1, 1], [], []>} : vector<24x32xbf16>, vector<32x128xbf16>, vector<24x128xf32> -> vector<24x128xf32>
    %1183 = vector.shape_cast %1182 : vector<24x128xf32> to vector<2x12x128xf32>
    %1184 = vector.extract_strided_slice %1183 {offsets = [0, 0, 0], sizes = [2, 12, 8], strides = [1, 1, 1]} : vector<2x12x128xf32> to vector<2x12x8xf32>
    %1185 = vector.shape_cast %1120 : vector<1x8xf32> to vector<1x1x8xf32>
    %1186 = vector.broadcast %1185 : vector<1x1x8xf32> to vector<2x12x8xf32>
    %1187 = arith.addf %1184, %1186 : vector<2x12x8xf32>
    %1188 = vector.extract_strided_slice %1106 {offsets = [0, 256], sizes = [32, 128], strides = [1, 1]} : vector<32x512xbf16> to vector<32x128xbf16>
    %1189 = vector.shape_cast %1171 : vector<2x12x32xbf16> to vector<24x32xbf16>
    %cst_287 = arith.constant dense<0.000000e+00> : vector<24x128xf32>
    %1190 = tpu.matmul %1189, %1188, %cst_287 {dimension_numbers = #tpu.dot_dimension_numbers<[1], [0], [0], [1], [0, 0, 1, 1], [], []>} : vector<24x32xbf16>, vector<32x128xbf16>, vector<24x128xf32> -> vector<24x128xf32>
    %1191 = vector.shape_cast %1190 : vector<24x128xf32> to vector<2x12x128xf32>
    %1192 = vector.extract_strided_slice %1191 {offsets = [0, 0, 0], sizes = [2, 12, 8], strides = [1, 1, 1]} : vector<2x12x128xf32> to vector<2x12x8xf32>
    %1193 = vector.shape_cast %1121 : vector<1x8xf32> to vector<1x1x8xf32>
    %1194 = vector.broadcast %1193 : vector<1x1x8xf32> to vector<2x12x8xf32>
    %1195 = arith.addf %1192, %1194 : vector<2x12x8xf32>
    %1196 = arith.truncf %1179 : vector<2x16x8xf32> to vector<2x16x8xbf16>
    %1197 = arith.truncf %1187 : vector<2x12x8xf32> to vector<2x12x8xbf16>
    %1198 = arith.truncf %1195 : vector<2x12x8xf32> to vector<2x12x8xbf16>
    %1199 = vector.extract_strided_slice %1196 {offsets = [0, 0, 0], sizes = [2, 16, 4], strides = [1, 1, 1]} : vector<2x16x8xbf16> to vector<2x16x4xbf16>
    %1200 = vector.extract_strided_slice %1197 {offsets = [0, 0, 0], sizes = [2, 12, 4], strides = [1, 1, 1]} : vector<2x12x8xbf16> to vector<2x12x4xbf16>
    "tpu.trace_start"() <{level = 10 : i32, message = "bqd,bkd->bqk"}> : () -> ()
    %cst_288 = arith.constant dense<0.000000e+00> : vector<2x16x12xf32>
    %1201 = tpu.matmul %1199, %1200, %cst_288 {dimension_numbers = #tpu.dot_dimension_numbers<[2], [2], [1], [1], [0, 0, 0, 1, 1, 1], [0], [0]>} : vector<2x16x4xbf16>, vector<2x12x4xbf16>, vector<2x16x12xf32> -> vector<2x16x12xf32>
    "tpu.trace_stop"() : () -> ()
    %cst_289 = arith.constant 5.000000e-01 : f32
    %1202 = vector.broadcast %cst_289 : f32 to vector<2x16x12xf32>
    %1203 = arith.mulf %1201, %1202 : vector<2x16x12xf32>
    %1204 = vector.shape_cast %62 : vector<16x12xf32> to vector<1x16x12xf32>
    %1205 = vector.broadcast %1204 : vector<1x16x12xf32> to vector<2x16x12xf32>
    %1206 = arith.addf %1203, %1205 : vector<2x16x12xf32>
    %cst_290 = arith.constant dense<0xFF800000> : vector<2x16xf32>
    %1207 = vector.multi_reduction <maximumf>, %1206, %cst_290 [2] : vector<2x16x12xf32> to vector<2x16xf32>
    %1208 = vector.shape_cast %1207 : vector<2x16xf32> to vector<2x16x1xf32>
    %1209 = vector.broadcast %1208 : vector<2x16x1xf32> to vector<2x16x12xf32>
    %1210 = arith.subf %1206, %1209 : vector<2x16x12xf32>
    %1211 = math.exp %1210 : vector<2x16x12xf32>
    %cst_291 = arith.constant dense<0.000000e+00> : vector<2x16xf32>
    %1212 = vector.multi_reduction <add>, %1211, %cst_291 [2] : vector<2x16x12xf32> to vector<2x16xf32>
    %1213 = vector.shape_cast %1212 : vector<2x16xf32> to vector<2x16x1xf32>
    %1214 = vector.broadcast %1213 : vector<2x16x1xf32> to vector<2x16x12xf32>
    %1215 = arith.divf %1211, %1214 : vector<2x16x12xf32>
    %1216 = arith.truncf %1215 : vector<2x16x12xf32> to vector<2x16x12xbf16>
    %1217 = vector.extract_strided_slice %1198 {offsets = [0, 0, 0], sizes = [2, 12, 4], strides = [1, 1, 1]} : vector<2x12x8xbf16> to vector<2x12x4xbf16>
    "tpu.trace_start"() <{level = 10 : i32, message = "bqk,bkd->bqd"}> : () -> ()
    %cst_292 = arith.constant dense<0.000000e+00> : vector<2x16x4xf32>
    %1218 = tpu.matmul %1216, %1217, %cst_292 {dimension_numbers = #tpu.dot_dimension_numbers<[2], [1], [1], [2], [0, 0, 0, 1, 1, 2], [0], [0]>} : vector<2x16x12xbf16>, vector<2x12x4xbf16>, vector<2x16x4xf32> -> vector<2x16x4xf32>
    "tpu.trace_stop"() : () -> ()
    %1219 = vector.extract_strided_slice %1196 {offsets = [0, 0, 4], sizes = [2, 16, 4], strides = [1, 1, 1]} : vector<2x16x8xbf16> to vector<2x16x4xbf16>
    %1220 = vector.extract_strided_slice %1197 {offsets = [0, 0, 4], sizes = [2, 12, 4], strides = [1, 1, 1]} : vector<2x12x8xbf16> to vector<2x12x4xbf16>
    "tpu.trace_start"() <{level = 10 : i32, message = "bqd,bkd->bqk"}> : () -> ()
    %cst_293 = arith.constant dense<0.000000e+00> : vector<2x16x12xf32>
    %1221 = tpu.matmul %1219, %1220, %cst_293 {dimension_numbers = #tpu.dot_dimension_numbers<[2], [2], [1], [1], [0, 0, 0, 1, 1, 1], [0], [0]>} : vector<2x16x4xbf16>, vector<2x12x4xbf16>, vector<2x16x12xf32> -> vector<2x16x12xf32>
    "tpu.trace_stop"() : () -> ()
    %cst_294 = arith.constant 5.000000e-01 : f32
    %1222 = vector.broadcast %cst_294 : f32 to vector<2x16x12xf32>
    %1223 = arith.mulf %1221, %1222 : vector<2x16x12xf32>
    %1224 = vector.shape_cast %62 : vector<16x12xf32> to vector<1x16x12xf32>
    %1225 = vector.broadcast %1224 : vector<1x16x12xf32> to vector<2x16x12xf32>
    %1226 = arith.addf %1223, %1225 : vector<2x16x12xf32>
    %cst_295 = arith.constant dense<0xFF800000> : vector<2x16xf32>
    %1227 = vector.multi_reduction <maximumf>, %1226, %cst_295 [2] : vector<2x16x12xf32> to vector<2x16xf32>
    %1228 = vector.shape_cast %1227 : vector<2x16xf32> to vector<2x16x1xf32>
    %1229 = vector.broadcast %1228 : vector<2x16x1xf32> to vector<2x16x12xf32>
    %1230 = arith.subf %1226, %1229 : vector<2x16x12xf32>
    %1231 = math.exp %1230 : vector<2x16x12xf32>
    %cst_296 = arith.constant dense<0.000000e+00> : vector<2x16xf32>
    %1232 = vector.multi_reduction <add>, %1231, %cst_296 [2] : vector<2x16x12xf32> to vector<2x16xf32>
    %1233 = vector.shape_cast %1232 : vector<2x16xf32> to vector<2x16x1xf32>
    %1234 = vector.broadcast %1233 : vector<2x16x1xf32> to vector<2x16x12xf32>
    %1235 = arith.divf %1231, %1234 : vector<2x16x12xf32>
    %1236 = arith.truncf %1235 : vector<2x16x12xf32> to vector<2x16x12xbf16>
    %1237 = vector.extract_strided_slice %1198 {offsets = [0, 0, 4], sizes = [2, 12, 4], strides = [1, 1, 1]} : vector<2x12x8xbf16> to vector<2x12x4xbf16>
    "tpu.trace_start"() <{level = 10 : i32, message = "bqk,bkd->bqd"}> : () -> ()
    %cst_297 = arith.constant dense<0.000000e+00> : vector<2x16x4xf32>
    %1238 = tpu.matmul %1236, %1237, %cst_297 {dimension_numbers = #tpu.dot_dimension_numbers<[2], [1], [1], [2], [0, 0, 0, 1, 1, 2], [0], [0]>} : vector<2x16x12xbf16>, vector<2x12x4xbf16>, vector<2x16x4xf32> -> vector<2x16x4xf32>
    "tpu.trace_stop"() : () -> ()
    %1239 = tpu.concatenate %1218, %1238 in 2 : vector<2x16x4xf32>, vector<2x16x4xf32> -> vector<2x16x8xf32>
    %1240 = arith.truncf %1239 : vector<2x16x8xf32> to vector<2x16x8xbf16>
    %1241 = vector.shape_cast %1240 : vector<2x16x8xbf16> to vector<32x8xbf16>
    %cst_298 = arith.constant dense<0.000000e+00> : vector<32x32xf32>
    %1242 = tpu.matmul %1241, %1108, %cst_298 {dimension_numbers = #tpu.dot_dimension_numbers<[1], [0], [0], [1], [0, 0, 1, 1], [], []>} : vector<32x8xbf16>, vector<8x32xbf16>, vector<32x32xf32> -> vector<32x32xf32>
    %1243 = vector.shape_cast %1242 : vector<32x32xf32> to vector<2x16x32xf32>
    %1244 = arith.addf %684, %1243 : vector<2x16x32xf32>
    %1245 = vector.shape_cast %1122 : vector<1x32xf32> to vector<1x1x32xf32>
    %1246 = vector.broadcast %1245 : vector<1x1x32xf32> to vector<2x16x32xf32>
    %1247 = arith.addf %1244, %1246 : vector<2x16x32xf32>
    %cst_299 = arith.constant dense<0.000000e+00> : vector<2x16xf32>
    %1248 = vector.multi_reduction <add>, %1247, %cst_299 [2] : vector<2x16x32xf32> to vector<2x16xf32>
    %1249 = vector.shape_cast %1248 : vector<2x16xf32> to vector<2x16x1xf32>
    %cst_300 = arith.constant 3.200000e+01 : f32
    %1250 = vector.broadcast %cst_300 : f32 to vector<2x16x1xf32>
    %1251 = arith.divf %1249, %1250 : vector<2x16x1xf32>
    %1252 = vector.broadcast %1251 : vector<2x16x1xf32> to vector<2x16x32xf32>
    %1253 = arith.subf %1247, %1252 : vector<2x16x32xf32>
    %1254 = arith.mulf %1253, %1253 : vector<2x16x32xf32>
    %cst_301 = arith.constant dense<0.000000e+00> : vector<2x16xf32>
    %1255 = vector.multi_reduction <add>, %1254, %cst_301 [2] : vector<2x16x32xf32> to vector<2x16xf32>
    %1256 = vector.shape_cast %1255 : vector<2x16xf32> to vector<2x16x1xf32>
    %cst_302 = arith.constant 3.200000e+01 : f32
    %1257 = vector.broadcast %cst_302 : f32 to vector<2x16x1xf32>
    %1258 = arith.divf %1256, %1257 : vector<2x16x1xf32>
    %cst_303 = arith.constant 9.99999974E-6 : f32
    %1259 = vector.broadcast %cst_303 : f32 to vector<2x16x1xf32>
    %1260 = arith.addf %1258, %1259 : vector<2x16x1xf32>
    %1261 = math.rsqrt %1260 : vector<2x16x1xf32>
    %1262 = vector.broadcast %1261 : vector<2x16x1xf32> to vector<2x16x32xf32>
    %1263 = arith.mulf %1253, %1262 : vector<2x16x32xf32>
    %1264 = vector.shape_cast %1117 : vector<1x32xf32> to vector<1x1x32xf32>
    %1265 = vector.broadcast %1264 : vector<1x1x32xf32> to vector<2x16x32xf32>
    %1266 = arith.mulf %1263, %1265 : vector<2x16x32xf32>
    %1267 = vector.shape_cast %1118 : vector<1x32xf32> to vector<1x1x32xf32>
    %1268 = vector.broadcast %1267 : vector<1x1x32xf32> to vector<2x16x32xf32>
    %1269 = arith.addf %1266, %1268 : vector<2x16x32xf32>
    %1270 = arith.truncf %1269 : vector<2x16x32xf32> to vector<2x16x32xbf16>
    %1271 = vector.extract_strided_slice %1106 {offsets = [0, 384], sizes = [32, 32], strides = [1, 1]} : vector<32x512xbf16> to vector<32x32xbf16>
    %1272 = vector.shape_cast %1270 : vector<2x16x32xbf16> to vector<32x32xbf16>
    %cst_304 = arith.constant dense<0.000000e+00> : vector<32x32xf32>
    %1273 = tpu.matmul %1272, %1271, %cst_304 {dimension_numbers = #tpu.dot_dimension_numbers<[1], [0], [0], [1], [0, 0, 1, 1], [], []>} : vector<32x32xbf16>, vector<32x32xbf16>, vector<32x32xf32> -> vector<32x32xf32>
    %1274 = vector.shape_cast %1273 : vector<32x32xf32> to vector<2x16x32xf32>
    %1275 = vector.shape_cast %1123 : vector<1x32xf32> to vector<1x1x32xf32>
    %1276 = vector.broadcast %1275 : vector<1x1x32xf32> to vector<2x16x32xf32>
    %1277 = arith.addf %1274, %1276 : vector<2x16x32xf32>
    %1278 = arith.mulf %1277, %1277 : vector<2x16x32xf32>
    %1279 = arith.mulf %1277, %1278 : vector<2x16x32xf32>
    %cst_305 = arith.constant 4.471500e-02 : f32
    %1280 = vector.broadcast %cst_305 : f32 to vector<2x16x32xf32>
    %1281 = arith.mulf %1280, %1279 : vector<2x16x32xf32>
    %1282 = arith.addf %1277, %1281 : vector<2x16x32xf32>
    %cst_306 = arith.constant 0.797884583 : f32
    %1283 = vector.broadcast %cst_306 : f32 to vector<2x16x32xf32>
    %1284 = arith.mulf %1283, %1282 : vector<2x16x32xf32>
    %1285 = math.tanh %1284 : vector<2x16x32xf32>
    %cst_307 = arith.constant 1.000000e+00 : f32
    %1286 = vector.broadcast %cst_307 : f32 to vector<2x16x32xf32>
    %1287 = arith.addf %1286, %1285 : vector<2x16x32xf32>
    %cst_308 = arith.constant 5.000000e-01 : f32
    %1288 = vector.broadcast %cst_308 : f32 to vector<2x16x32xf32>
    %1289 = arith.mulf %1288, %1287 : vector<2x16x32xf32>
    %1290 = arith.mulf %1277, %1289 : vector<2x16x32xf32>
    %1291 = arith.truncf %1290 : vector<2x16x32xf32> to vector<2x16x32xbf16>
    %1292 = vector.shape_cast %1291 : vector<2x16x32xbf16> to vector<32x32xbf16>
    %cst_309 = arith.constant dense<0.000000e+00> : vector<32x32xf32>
    %1293 = tpu.matmul %1292, %1110, %cst_309 {dimension_numbers = #tpu.dot_dimension_numbers<[1], [0], [0], [1], [0, 0, 1, 1], [], []>} : vector<32x32xbf16>, vector<32x32xbf16>, vector<32x32xf32> -> vector<32x32xf32>
    %1294 = vector.shape_cast %1293 : vector<32x32xf32> to vector<2x16x32xf32>
    %1295 = arith.addf %1247, %1294 : vector<2x16x32xf32>
    %1296 = vector.shape_cast %1124 : vector<1x32xf32> to vector<1x1x32xf32>
    %1297 = vector.broadcast %1296 : vector<1x1x32xf32> to vector<2x16x32xf32>
    %1298 = arith.addf %1295, %1297 : vector<2x16x32xf32>
    %1299 = vector.broadcast %68 : vector<1x16x32xf32> to vector<2x16x32xf32>
    %1300 = arith.mulf %1298, %1299 : vector<2x16x32xf32>
    %c0_310 = arith.constant 0 : index
    %c0_311 = arith.constant 0 : index
    %1301 = vector.load %arg11[%c0_310, %c0_311] : memref<6x128xf32, #tpu.memory_space<vmem>>, vector<6x128xf32>
    %1302 = vector.extract_strided_slice %1301 {offsets = [0, 0], sizes = [1, 32], strides = [1, 1]} : vector<6x128xf32> to vector<1x32xf32>
    %1303 = vector.extract_strided_slice %1301 {offsets = [1, 0], sizes = [1, 32], strides = [1, 1]} : vector<6x128xf32> to vector<1x32xf32>
    %cst_312 = arith.constant dense<0.000000e+00> : vector<2x8xf32>
    %1304 = vector.multi_reduction <add>, %894, %cst_312 [2] : vector<2x8x32xf32> to vector<2x8xf32>
    %1305 = vector.shape_cast %1304 : vector<2x8xf32> to vector<2x8x1xf32>
    %cst_313 = arith.constant 3.200000e+01 : f32
    %1306 = vector.broadcast %cst_313 : f32 to vector<2x8x1xf32>
    %1307 = arith.divf %1305, %1306 : vector<2x8x1xf32>
    %1308 = vector.broadcast %1307 : vector<2x8x1xf32> to vector<2x8x32xf32>
    %1309 = arith.subf %894, %1308 : vector<2x8x32xf32>
    %1310 = arith.mulf %1309, %1309 : vector<2x8x32xf32>
    %cst_314 = arith.constant dense<0.000000e+00> : vector<2x8xf32>
    %1311 = vector.multi_reduction <add>, %1310, %cst_314 [2] : vector<2x8x32xf32> to vector<2x8xf32>
    %1312 = vector.shape_cast %1311 : vector<2x8xf32> to vector<2x8x1xf32>
    %cst_315 = arith.constant 3.200000e+01 : f32
    %1313 = vector.broadcast %cst_315 : f32 to vector<2x8x1xf32>
    %1314 = arith.divf %1312, %1313 : vector<2x8x1xf32>
    %cst_316 = arith.constant 9.99999974E-6 : f32
    %1315 = vector.broadcast %cst_316 : f32 to vector<2x8x1xf32>
    %1316 = arith.addf %1314, %1315 : vector<2x8x1xf32>
    %1317 = math.rsqrt %1316 : vector<2x8x1xf32>
    %1318 = vector.broadcast %1317 : vector<2x8x1xf32> to vector<2x8x32xf32>
    %1319 = arith.mulf %1309, %1318 : vector<2x8x32xf32>
    %1320 = vector.shape_cast %1302 : vector<1x32xf32> to vector<1x1x32xf32>
    %1321 = vector.broadcast %1320 : vector<1x1x32xf32> to vector<2x8x32xf32>
    %1322 = arith.mulf %1319, %1321 : vector<2x8x32xf32>
    %1323 = vector.shape_cast %1303 : vector<1x32xf32> to vector<1x1x32xf32>
    %1324 = vector.broadcast %1323 : vector<1x1x32xf32> to vector<2x8x32xf32>
    %1325 = arith.addf %1322, %1324 : vector<2x8x32xf32>
    %1326 = vector.extract_strided_slice %1301 {offsets = [2, 0], sizes = [1, 32], strides = [1, 1]} : vector<6x128xf32> to vector<1x32xf32>
    %1327 = vector.extract_strided_slice %1301 {offsets = [3, 0], sizes = [1, 32], strides = [1, 1]} : vector<6x128xf32> to vector<1x32xf32>
    %cst_317 = arith.constant dense<0.000000e+00> : vector<2x4xf32>
    %1328 = vector.multi_reduction <add>, %1104, %cst_317 [2] : vector<2x4x32xf32> to vector<2x4xf32>
    %1329 = vector.shape_cast %1328 : vector<2x4xf32> to vector<2x4x1xf32>
    %cst_318 = arith.constant 3.200000e+01 : f32
    %1330 = vector.broadcast %cst_318 : f32 to vector<2x4x1xf32>
    %1331 = arith.divf %1329, %1330 : vector<2x4x1xf32>
    %1332 = vector.broadcast %1331 : vector<2x4x1xf32> to vector<2x4x32xf32>
    %1333 = arith.subf %1104, %1332 : vector<2x4x32xf32>
    %1334 = arith.mulf %1333, %1333 : vector<2x4x32xf32>
    %cst_319 = arith.constant dense<0.000000e+00> : vector<2x4xf32>
    %1335 = vector.multi_reduction <add>, %1334, %cst_319 [2] : vector<2x4x32xf32> to vector<2x4xf32>
    %1336 = vector.shape_cast %1335 : vector<2x4xf32> to vector<2x4x1xf32>
    %cst_320 = arith.constant 3.200000e+01 : f32
    %1337 = vector.broadcast %cst_320 : f32 to vector<2x4x1xf32>
    %1338 = arith.divf %1336, %1337 : vector<2x4x1xf32>
    %cst_321 = arith.constant 9.99999974E-6 : f32
    %1339 = vector.broadcast %cst_321 : f32 to vector<2x4x1xf32>
    %1340 = arith.addf %1338, %1339 : vector<2x4x1xf32>
    %1341 = math.rsqrt %1340 : vector<2x4x1xf32>
    %1342 = vector.broadcast %1341 : vector<2x4x1xf32> to vector<2x4x32xf32>
    %1343 = arith.mulf %1333, %1342 : vector<2x4x32xf32>
    %1344 = vector.shape_cast %1326 : vector<1x32xf32> to vector<1x1x32xf32>
    %1345 = vector.broadcast %1344 : vector<1x1x32xf32> to vector<2x4x32xf32>
    %1346 = arith.mulf %1343, %1345 : vector<2x4x32xf32>
    %1347 = vector.shape_cast %1327 : vector<1x32xf32> to vector<1x1x32xf32>
    %1348 = vector.broadcast %1347 : vector<1x1x32xf32> to vector<2x4x32xf32>
    %1349 = arith.addf %1346, %1348 : vector<2x4x32xf32>
    %1350 = vector.extract_strided_slice %1301 {offsets = [4, 0], sizes = [1, 32], strides = [1, 1]} : vector<6x128xf32> to vector<1x32xf32>
    %1351 = vector.extract_strided_slice %1301 {offsets = [5, 0], sizes = [1, 32], strides = [1, 1]} : vector<6x128xf32> to vector<1x32xf32>
    %cst_322 = arith.constant dense<0.000000e+00> : vector<2x16xf32>
    %1352 = vector.multi_reduction <add>, %1300, %cst_322 [2] : vector<2x16x32xf32> to vector<2x16xf32>
    %1353 = vector.shape_cast %1352 : vector<2x16xf32> to vector<2x16x1xf32>
    %cst_323 = arith.constant 3.200000e+01 : f32
    %1354 = vector.broadcast %cst_323 : f32 to vector<2x16x1xf32>
    %1355 = arith.divf %1353, %1354 : vector<2x16x1xf32>
    %1356 = vector.broadcast %1355 : vector<2x16x1xf32> to vector<2x16x32xf32>
    %1357 = arith.subf %1300, %1356 : vector<2x16x32xf32>
    %1358 = arith.mulf %1357, %1357 : vector<2x16x32xf32>
    %cst_324 = arith.constant dense<0.000000e+00> : vector<2x16xf32>
    %1359 = vector.multi_reduction <add>, %1358, %cst_324 [2] : vector<2x16x32xf32> to vector<2x16xf32>
    %1360 = vector.shape_cast %1359 : vector<2x16xf32> to vector<2x16x1xf32>
    %cst_325 = arith.constant 3.200000e+01 : f32
    %1361 = vector.broadcast %cst_325 : f32 to vector<2x16x1xf32>
    %1362 = arith.divf %1360, %1361 : vector<2x16x1xf32>
    %cst_326 = arith.constant 9.99999974E-6 : f32
    %1363 = vector.broadcast %cst_326 : f32 to vector<2x16x1xf32>
    %1364 = arith.addf %1362, %1363 : vector<2x16x1xf32>
    %1365 = math.rsqrt %1364 : vector<2x16x1xf32>
    %1366 = vector.broadcast %1365 : vector<2x16x1xf32> to vector<2x16x32xf32>
    %1367 = arith.mulf %1357, %1366 : vector<2x16x32xf32>
    %1368 = vector.shape_cast %1350 : vector<1x32xf32> to vector<1x1x32xf32>
    %1369 = vector.broadcast %1368 : vector<1x1x32xf32> to vector<2x16x32xf32>
    %1370 = arith.mulf %1367, %1369 : vector<2x16x32xf32>
    %1371 = vector.shape_cast %1351 : vector<1x32xf32> to vector<1x1x32xf32>
    %1372 = vector.broadcast %1371 : vector<1x1x32xf32> to vector<2x16x32xf32>
    %1373 = arith.addf %1370, %1372 : vector<2x16x32xf32>
    %1374 = tpu.concatenate %1325, %1373, %1349 in 1 : vector<2x8x32xf32>, vector<2x16x32xf32>, vector<2x4x32xf32> -> vector<2x28x32xf32>
    %c0_327 = arith.constant 0 : index
    %c0_328 = arith.constant 0 : index
    %c0_329 = arith.constant 0 : index
    %1375 = vector.load %arg12[%c0_327, %c0_328, %c0_329] : memref<2x28x32xf32, #tpu.memory_space<vmem>>, vector<2x28x32xf32>
    tpu.vector_store %arg12[%c0_327, %c0_328, %c0_329], %1374 {strides = array<i32>} : memref<2x28x32xf32, #tpu.memory_space<vmem>>, vector<2x28x32xf32>,
    return
  }
}

</mosaic_0001>

<llo_original>
// kernel: video_earlyfusion_forward.1
$region0: #{video_earlyfusion_forward.1}
  #allocation0 [shape = 'u32[]', space=smem, size = 0x4, offset = 0x4, fixed_abs, tag = 'smem constant byte address 0x4 - core index']
  #allocation1 [shape = 'u32[144,128]{1,0:T(1,128)}', space=vmem, size = 0x12000, scoped, tag = 'internal scratch']
  %s0 = inlined_call_operand.vmem [shape: f32[2,8,384], index: 0, kind: input, shape index: {}]
  %s1 = inlined_call_operand.vmem [shape: f32[2,4,64], index: 1, kind: input, shape index: {}]
  %s2 = inlined_call_operand.vmem [shape: bf16[448,32], index: 2, kind: input, shape index: {}]
  %s3 = inlined_call_operand.vmem [shape: f32[1,28,32], index: 3, kind: input, shape index: {}]
  %s4 = inlined_call_operand.vmem [shape: bf16[4,32,640], index: 4, kind: input, shape index: {}]
  %s5 = inlined_call_operand.vmem [shape: bf16[4,128,32], index: 5, kind: input, shape index: {}]
  %s6 = inlined_call_operand.vmem [shape: f32[4,10,128], index: 6, kind: input, shape index: {}]
  %s7 = inlined_call_operand.vmem [shape: bf16[2,32,512], index: 7, kind: input, shape index: {}]
  %s8 = inlined_call_operand.vmem [shape: bf16[2,8,32], index: 8, kind: input, shape index: {}]
  %s9 = inlined_call_operand.vmem [shape: bf16[2,32,32], index: 9, kind: input, shape index: {}]
  %s10 = inlined_call_operand.vmem [shape: f32[2,12,128], index: 10, kind: input, shape index: {}]
  %s11 = inlined_call_operand.vmem [shape: f32[6,128], index: 11, kind: input, shape index: {}]
  %s12 = inlined_call_operand.vmem [shape: f32[2,28,32], index: 12, kind: output, shape index: {}]
  %s13 = sld [smem:[#allocation0]]
  $region58: #{video_earlyfusion_forward.1} parent=0
    _
  %s15 = ssub.s32 1, %s13
  %s16 = scalar_select 0, %s15, %s13
  // Predicated region
  $region2: #{video_earlyfusion_forward.1} parent=0 // pred_check
    _
  $region3: #{video_earlyfusion_forward.1} parent=0 // pred_check_branch
    %18 = sbr.rel (0) target = $region5
  $region4: #{video_earlyfusion_forward.1} parent=0 // pred_region
    _
  $region5: #{video_earlyfusion_forward.1} parent=0 // pred_fallthru
    _
  // Predicated region
  $region6: #{video_earlyfusion_forward.1} parent=0 // pred_check
    _
  $region7: #{video_earlyfusion_forward.1} parent=0 // pred_check_branch
    %20 = sbr.rel (0) target = $region9
  $region8: #{video_earlyfusion_forward.1} parent=0 // pred_region
    _
  $region9: #{video_earlyfusion_forward.1} parent=0 // pred_fallthru
    _
  // Predicated region
  $region10: #{video_earlyfusion_forward.1} parent=0 // pred_check
    _
  $region11: #{video_earlyfusion_forward.1} parent=0 // pred_check_branch
    %22 = sbr.rel (0) target = $region13
  $region12: #{video_earlyfusion_forward.1} parent=0 // pred_region
    _
  $region13: #{video_earlyfusion_forward.1} parent=0 // pred_fallthru
    _
  // Predicated region
  $region14: #{video_earlyfusion_forward.1} parent=0 // pred_check
    _
  $region15: #{video_earlyfusion_forward.1} parent=0 // pred_check_branch
    %24 = sbr.rel (0) target = $region17
  $region16: #{video_earlyfusion_forward.1} parent=0 // pred_region
    _
  $region17: #{video_earlyfusion_forward.1} parent=0 // pred_fallthru
    _
  // Predicated region
  $region18: #{video_earlyfusion_forward.1} parent=0 // pred_check
    _
  $region19: #{video_earlyfusion_forward.1} parent=0 // pred_check_branch
    %26 = sbr.rel (0) target = $region21
  $region20: #{video_earlyfusion_forward.1} parent=0 // pred_region
    _
  $region21: #{video_earlyfusion_forward.1} parent=0 // pred_fallthru
    _
  // Predicated region
  $region22: #{video_earlyfusion_forward.1} parent=0 // pred_check
    _
  $region23: #{video_earlyfusion_forward.1} parent=0 // pred_check_branch
    %28 = sbr.rel (0) target = $region25
  $region24: #{video_earlyfusion_forward.1} parent=0 // pred_region
    _
  $region25: #{video_earlyfusion_forward.1} parent=0 // pred_fallthru
    _
  // Predicated region
  $region26: #{video_earlyfusion_forward.1} parent=0 // pred_check
    _
  $region27: #{video_earlyfusion_forward.1} parent=0 // pred_check_branch
    %30 = sbr.rel (0) target = $region29
  $region28: #{video_earlyfusion_forward.1} parent=0 // pred_region
    _
  $region29: #{video_earlyfusion_forward.1} parent=0 // pred_fallthru
    _
  // Predicated region
  $region30: #{video_earlyfusion_forward.1} parent=0 // pred_check
    _
  $region31: #{video_earlyfusion_forward.1} parent=0 // pred_check_branch
    %32 = sbr.rel (0) target = $region33
  $region32: #{video_earlyfusion_forward.1} parent=0 // pred_region
    _
  $region33: #{video_earlyfusion_forward.1} parent=0 // pred_fallthru
    _
  // Predicated region
  $region34: #{video_earlyfusion_forward.1} parent=0 // pred_check
    _
  $region35: #{video_earlyfusion_forward.1} parent=0 // pred_check_branch
    %34 = sbr.rel (0) target = $region37
  $region36: #{video_earlyfusion_forward.1} parent=0 // pred_region
    _
  $region37: #{video_earlyfusion_forward.1} parent=0 // pred_fallthru
    _
  // Predicated region
  $region38: #{video_earlyfusion_forward.1} parent=0 // pred_check
    _
  $region39: #{video_earlyfusion_forward.1} parent=0 // pred_check_branch
    %36 = sbr.rel (0) target = $region41
  $region40: #{video_earlyfusion_forward.1} parent=0 // pred_region
    _
  $region41: #{video_earlyfusion_forward.1} parent=0 // pred_fallthru
    _
  // Predicated region
  $region42: #{video_earlyfusion_forward.1} parent=0 // pred_check
    _
  $region43: #{video_earlyfusion_forward.1} parent=0 // pred_check_branch
    %38 = sbr.rel (0) target = $region45
  $region44: #{video_earlyfusion_forward.1} parent=0 // pred_region
    _
  $region45: #{video_earlyfusion_forward.1} parent=0 // pred_fallthru
    _
  // Predicated region
  $region46: #{video_earlyfusion_forward.1} parent=0 // pred_check
    _
  $region47: #{video_earlyfusion_forward.1} parent=0 // pred_check_branch
    %40 = sbr.rel (0) target = $region49
  $region48: #{video_earlyfusion_forward.1} parent=0 // pred_region
    _
  $region49: #{video_earlyfusion_forward.1} parent=0 // pred_fallthru
    _
  %v42 = vld [vmem:[%s2] sm:$0xf]
  %v43 = vld [vmem:[%s2 + $0x4] sm:$0xf]
  %v44 = vld [vmem:[%s2 + $0x8] sm:$0xf]
  %v45 = vld [vmem:[%s2 + $0xc] sm:$0xf]
  %v46 = vld [vmem:[%s2 + $0x10] sm:$0xf]
  %v47 = vld [vmem:[%s2 + $0x14] sm:$0xf]
  %v48 = vld [vmem:[%s2 + $0x18] sm:$0xf]
  %v49 = vld [vmem:[%s2 + $0x1c] sm:$0xf]
  %v50 = vld [vmem:[%s2 + $0x20] sm:$0xf]
  %v51 = vld [vmem:[%s2 + $0x24] sm:$0xf]
  %v52 = vld [vmem:[%s2 + $0x28] sm:$0xf]
  %v53 = vld [vmem:[%s2 + $0x2c] sm:$0xf]
  %v54 = vld [vmem:[%s2 + $0x30] sm:$0xf]
  %v55 = vld [vmem:[%s2 + $0x34] sm:$0xf]
  %v56 = vld [vmem:[%s2 + $0x38] sm:$0xf]
  %v57 = vld [vmem:[%s2 + $0x3c] sm:$0xf]
  %v58 = vld [vmem:[%s2 + $0x40] sm:$0xf]
  %v59 = vld [vmem:[%s2 + $0x44] sm:$0xf]
  %v60 = vld [vmem:[%s2 + $0x48] sm:$0xf]
  %v61 = vld [vmem:[%s2 + $0x4c] sm:$0xf]
  %v62 = vld [vmem:[%s2 + $0x50] sm:$0xf]
  %v63 = vld [vmem:[%s2 + $0x54] sm:$0xf]
  %v64 = vld [vmem:[%s2 + $0x58] sm:$0xf]
  %v65 = vld [vmem:[%s2 + $0x5c] sm:$0xf]
  %v66 = vld [vmem:[%s2 + $0x60] sm:$0xf]
  %v67 = vld [vmem:[%s2 + $0x64] sm:$0xf]
  %v68 = vld [vmem:[%s2 + $0x68] sm:$0xf]
  %v69 = vld [vmem:[%s2 + $0x6c] sm:$0xf]
  %v70 = vld [vmem:[%s2 + $0x70] sm:$0xf]
  %v71 = vld [vmem:[%s2 + $0x74] sm:$0xf]
  %v72 = vld [vmem:[%s2 + $0x78] sm:$0xf]
  %v73 = vld [vmem:[%s2 + $0x7c] sm:$0xf]
  %v74 = vld [vmem:[%s2 + $0x80] sm:$0xf]
  %v75 = vld [vmem:[%s2 + $0x84] sm:$0xf]
  %v76 = vld [vmem:[%s2 + $0x88] sm:$0xf]
  %v77 = vld [vmem:[%s2 + $0x8c] sm:$0xf]
  %v78 = vld [vmem:[%s2 + $0x90] sm:$0xf]
  %v79 = vld [vmem:[%s2 + $0x94] sm:$0xf]
  %v80 = vld [vmem:[%s2 + $0x98] sm:$0xf]
  %v81 = vld [vmem:[%s2 + $0x9c] sm:$0xf]
  %v82 = vld [vmem:[%s2 + $0xa0] sm:$0xf]
  %v83 = vld [vmem:[%s2 + $0xa4] sm:$0xf]
  %v84 = vld [vmem:[%s2 + $0xa8] sm:$0xf]
  %v85 = vld [vmem:[%s2 + $0xac] sm:$0xf]
  %v86 = vld [vmem:[%s2 + $0xb0] sm:$0xf]
  %v87 = vld [vmem:[%s2 + $0xb4] sm:$0xf]
  %v88 = vld [vmem:[%s2 + $0xb8] sm:$0xf]
  %v89 = vld [vmem:[%s2 + $0xbc] sm:$0xf]
  %v90 = vld [vmem:[%s2 + $0xc0] sm:$0xf]
  %v91 = vld [vmem:[%s2 + $0xc4] sm:$0xf]
  %v92 = vld [vmem:[%s2 + $0xc8] sm:$0xf]
  %v93 = vld [vmem:[%s2 + $0xcc] sm:$0xf]
  %v94 = vld [vmem:[%s2 + $0xd0] sm:$0xf]
  %v95 = vld [vmem:[%s2 + $0xd4] sm:$0xf]
  %v96 = vld [vmem:[%s2 + $0xd8] sm:$0xf]
  %v97 = vld [vmem:[%s2 + $0xdc] sm:$0xf]
  %v98 = vld [vmem:[%s3] sm:$0xff]
  %v99 = vld [vmem:[%s3 + $0x8] sm:$0xff]
  %v100 = vld [vmem:[%s3 + $0x10] sm:$0xff]
  %v101 = vld [vmem:[%s3 + $0x18] sm:$0xf]
  %v102 = vld [vmem:[%s0] sm:$0xff]
  %v103 = vld [vmem:[%s0 + $0x8] sm:$0xff]
  %v104 = vld [vmem:[%s0 + $0x10] sm:$0xff]
  %v105 = vld [vmem:[%s0 + $0x18] sm:$0xff]
  %v106 = vld [vmem:[%s0 + $0x20] sm:$0xff]
  %v107 = vld [vmem:[%s0 + $0x28] sm:$0xff]
  %v108 = vpack.c.bf16 %v102, %v102
  %v109 = vpack.c.bf16 %v103, %v103
  %v110 = vpack.c.bf16 %v104, %v104
  %v111 = vpack.c.bf16 %v105, %v105
  %v112 = vpack.c.bf16 %v106, %v106
  %v113 = vpack.c.bf16 %v107, %v107
  %v120 = vunpack.c.l.b16 %v108
  %v121 = vunpack.c.l.b16 %v109
  %v122 = vunpack.c.l.b16 %v110
  %v123 = vunpack.c.l.b16 %v111
  %v124 = vunpack.c.l.b16 %v112
  %v125 = vunpack.c.l.b16 %v113
  %v126 = vpack.c.b16 %v123, %v120
  %v127 = vpack.c.b16 %v124, %v121
  %v128 = vpack.c.b16 %v125, %v122
  %v180 = vunpack.c.l.b16 %v42
  %v181 = vunpack.c.l.b16 %v43
  %v182 = vunpack.c.l.b16 %v44
  %v183 = vunpack.c.l.b16 %v45
  %v184 = vunpack.c.l.b16 %v46
  %v185 = vunpack.c.l.b16 %v47
  %v186 = vunpack.c.l.b16 %v48
  %v187 = vunpack.c.l.b16 %v49
  %v188 = vunpack.c.l.b16 %v50
  %v189 = vunpack.c.l.b16 %v51
  %v190 = vunpack.c.l.b16 %v52
  %v191 = vunpack.c.l.b16 %v53
  %v192 = vunpack.c.l.b16 %v54
  %v193 = vunpack.c.l.b16 %v55
  %v194 = vunpack.c.l.b16 %v56
  %v195 = vunpack.c.l.b16 %v57
  %v196 = vunpack.c.l.b16 %v58
  %v197 = vunpack.c.l.b16 %v59
  %v198 = vunpack.c.l.b16 %v60
  %v199 = vunpack.c.l.b16 %v61
  %v200 = vunpack.c.l.b16 %v62
  %v201 = vunpack.c.l.b16 %v63
  %v202 = vunpack.c.l.b16 %v64
  %v203 = vunpack.c.l.b16 %v65
  %v204 = vunpack.c.l.b16 %v66
  %v205 = vunpack.c.l.b16 %v67
  %v206 = vunpack.c.l.b16 %v68
  %v207 = vunpack.c.l.b16 %v69
  %v208 = vunpack.c.l.b16 %v70
  %v209 = vunpack.c.l.b16 %v71
  %v210 = vunpack.c.l.b16 %v72
  %v211 = vunpack.c.l.b16 %v73
  %v212 = vunpack.c.l.b16 %v74
  %v213 = vunpack.c.l.b16 %v75
  %v214 = vunpack.c.l.b16 %v76
  %v215 = vunpack.c.l.b16 %v77
  %v216 = vunpack.c.l.b16 %v78
  %v217 = vunpack.c.l.b16 %v79
  %v218 = vunpack.c.l.b16 %v80
  %v219 = vunpack.c.l.b16 %v81
  %v220 = vunpack.c.l.b16 %v82
  %v221 = vunpack.c.l.b16 %v83
  %v222 = vunpack.c.l.b16 %v84
  %v223 = vunpack.c.l.b16 %v85
  %v224 = vunpack.c.l.b16 %v86
  %v225 = vunpack.c.l.b16 %v87
  %v226 = vunpack.c.l.b16 %v88
  %v227 = vunpack.c.l.b16 %v89
  %v228 = vpack.c.b16 %v181, %v180
  %v229 = vpack.c.b16 %v183, %v182
  %v230 = vpack.c.b16 %v185, %v184
  %v231 = vpack.c.b16 %v187, %v186
  %v232 = vpack.c.b16 %v189, %v188
  %v233 = vpack.c.b16 %v191, %v190
  %v234 = vpack.c.b16 %v193, %v192
  %v235 = vpack.c.b16 %v195, %v194
  %v236 = vpack.c.b16 %v197, %v196
  %v237 = vpack.c.b16 %v199, %v198
  %v238 = vpack.c.b16 %v201, %v200
  %v239 = vpack.c.b16 %v203, %v202
  %v240 = vpack.c.b16 %v205, %v204
  %v241 = vpack.c.b16 %v207, %v206
  %v242 = vpack.c.b16 %v209, %v208
  %v243 = vpack.c.b16 %v211, %v210
  %v244 = vpack.c.b16 %v213, %v212
  %v245 = vpack.c.b16 %v215, %v214
  %v246 = vpack.c.b16 %v217, %v216
  %v247 = vpack.c.b16 %v219, %v218
  %v248 = vpack.c.b16 %v221, %v220
  %v249 = vpack.c.b16 %v223, %v222
  %v250 = vpack.c.b16 %v225, %v224
  %v251 = vpack.c.b16 %v227, %v226
  %276 = vmatprep.subr.bf16.mxu0 0
  %277 = vmatpush1.bf16.msra.mxu0 %v228
  %278 = vmatprep.subr.bf16.mxu0 0
  %279 = vmatpush1.bf16.msra.mxu0 %v229
  %280 = vmatprep.subr.bf16.mxu0 0
  %281 = vmatpush1.bf16.msra.mxu0 %v230
  %282 = vmatprep.subr.bf16.mxu0 0
  %283 = vmatpush1.bf16.msra.mxu0 %v231
  %284 = vmatprep.subr.bf16.mxu0 0
  %285 = vmatpush1.bf16.msra.mxu0 %v232
  %286 = vmatprep.subr.bf16.mxu0 0
  %287 = vmatpush1.bf16.msra.mxu0 %v233
  %288 = vmatprep.subr.bf16.mxu0 0
  %289 = vmatpush1.bf16.msra.mxu0 %v234
  %290 = vmatprep.subr.bf16.mxu0 0
  %291 = vmatpush1.bf16.msra.mxu0 %v235
  %292 = vmatprep.subr.bf16.mxu0 0
  %293 = vmatpush1.bf16.msra.mxu0 %v236
  %294 = vmatprep.subr.bf16.mxu0 0
  %295 = vmatpush1.bf16.msra.mxu0 %v237
  %296 = vmatprep.subr.bf16.mxu0 0
  %297 = vmatpush1.bf16.msra.mxu0 %v238
  %298 = vmatprep.subr.bf16.mxu0 0
  %299 = vmatpush1.bf16.msra.mxu0 %v239
  %300 = vmatprep.subr.bf16.mxu0 0
  %301 = vmatpush1.bf16.msra.mxu0 %v240
  %302 = vmatprep.subr.bf16.mxu0 0
  %303 = vmatpush1.bf16.msra.mxu0 %v241
  %304 = vmatprep.subr.bf16.mxu0 0
  %305 = vmatpush1.bf16.msra.mxu0 %v242
  %306 = vmatprep.subr.bf16.mxu0 0
  %307 = vmatpush1.bf16.msra.mxu0 %v243
  %308 = vmatprep.mubr.bf16.mxu0 %v127
  %309 = vmatmul.mubr.bf16.gmra.mrb[0].mxu0 %v126
  %v310 = vpop.f32.mrb[0].mxu0
  %v311 = vadd.f32 0.0, %v310
  %v312 = vpop.f32.mrb[0].mxu0
  %v313 = vpop.f32.mrb[0].mxu0
  %v314 = vadd.f32 0.0, %v313
  %v315 = vpop.f32.mrb[0].mxu0
  %316 = vdwg.mxu0
  %317 = vmatprep.subr.bf16.mxu0 0
  %318 = vmatpush1.bf16.msra.mxu0 %v244
  %319 = vmatprep.subr.bf16.mxu0 0
  %320 = vmatpush1.bf16.msra.mxu0 %v245
  %321 = vmatprep.subr.bf16.mxu0 0
  %322 = vmatpush1.bf16.msra.mxu0 %v246
  %323 = vmatprep.subr.bf16.mxu0 0
  %324 = vmatpush1.bf16.msra.mxu0 %v247
  %325 = vmatprep.subr.bf16.mxu0 0
  %326 = vmatpush1.bf16.msra.mxu0 %v248
  %327 = vmatprep.subr.bf16.mxu0 0
  %328 = vmatpush1.bf16.msra.mxu0 %v249
  %329 = vmatprep.subr.bf16.mxu0 0
  %330 = vmatpush1.bf16.msra.mxu0 %v250
  %331 = vmatprep.subr.bf16.mxu0 0
  %332 = vmatpush1.bf16.msra.mxu0 %v251
  %333 = vmatprep.subr.bf16.mxu0 0
  %334 = vmatpush1.bf16.msra.mxu0 0
  %335 = vmatprep.subr.bf16.mxu0 0
  %336 = vmatpush1.bf16.msra.mxu0 0
  %337 = vmatprep.subr.bf16.mxu0 0
  %338 = vmatpush1.bf16.msra.mxu0 0
  %339 = vmatprep.subr.bf16.mxu0 0
  %340 = vmatpush1.bf16.msra.mxu0 0
  %341 = vmatprep.subr.bf16.mxu0 0
  %342 = vmatpush1.bf16.msra.mxu0 0
  %343 = vmatprep.subr.bf16.mxu0 0
  %344 = vmatpush1.bf16.msra.mxu0 0
  %345 = vmatprep.subr.bf16.mxu0 0
  %346 = vmatpush1.bf16.msra.mxu0 0
  %347 = vmatprep.subr.bf16.mxu0 0
  %348 = vmatpush1.bf16.msra.mxu0 0
  %349 = vmatprep.mubr.bf16.mxu0 0
  %350 = vmatmul.mubr.bf16.gmra.mrb[0].mxu0 %v128
  %v351 = vpop.f32.mrb[0].mxu0
  %v352 = vadd.f32 %v311, %v351
  %v353 = vpop.f32.mrb[0].mxu0
  %v354 = vpop.f32.mrb[0].mxu0
  %v355 = vadd.f32 %v314, %v354
  %v356 = vpop.f32.mrb[0].mxu0
  %357 = vdwg.mxu0
  %v358 = vadd.f32 %v352, %v100
  %v359 = vadd.f32 %v355, %v100
  %v360 = vld [vmem:[%s1] sm:$0xf]
  %v361 = vld [vmem:[%s1 + $0x4] sm:$0xf]
  %v362 = vpack.c.bf16 %v360, %v360
  %v363 = vpack.c.bf16 %v361, %v361
  %v366 = vcombine.low %v362, %v363
  %v368 = vunpack.c.l.s4 1983009808
  %v369 = vunpack.c.0.s8 %v368
  %v370 = vlaneseq
  %v371 = vshrl.u32 %v370, 7
  %v372 = vsub.s32 %v369, %v371
  %v373 = vrot.slane %v366, %v372
  %v382 = vunpack.c.l.b16 %v90
  %v383 = vunpack.c.l.b16 %v91
  %v384 = vunpack.c.l.b16 %v92
  %v385 = vunpack.c.l.b16 %v93
  %v386 = vunpack.c.l.b16 %v94
  %v387 = vunpack.c.l.b16 %v95
  %v388 = vunpack.c.l.b16 %v96
  %v389 = vunpack.c.l.b16 %v97
  %v390 = vpack.c.b16 %v383, %v382
  %v391 = vpack.c.b16 %v385, %v384
  %v392 = vpack.c.b16 %v387, %v386
  %v393 = vpack.c.b16 %v389, %v388
  %vm398 = vcmask 523264
  %v400 = vsel %vm398, %v373, 0
  %402 = vmatprep.subr.bf16.mxu0 0
  %403 = vmatpush1.bf16.msra.mxu0 %v390
  %404 = vmatprep.subr.bf16.mxu0 0
  %405 = vmatpush1.bf16.msra.mxu0 %v391
  %406 = vmatprep.subr.bf16.mxu0 0
  %407 = vmatpush1.bf16.msra.mxu0 %v392
  %408 = vmatprep.subr.bf16.mxu0 0
  %409 = vmatpush1.bf16.msra.mxu0 %v393
  %410 = vmatprep.subr.bf16.mxu0 0
  %411 = vmatpush1.bf16.msra.mxu0 0
  %412 = vmatprep.subr.bf16.mxu0 0
  %413 = vmatpush1.bf16.msra.mxu0 0
  %414 = vmatprep.subr.bf16.mxu0 0
  %415 = vmatpush1.bf16.msra.mxu0 0
  %416 = vmatprep.subr.bf16.mxu0 0
  %417 = vmatpush1.bf16.msra.mxu0 0
  %418 = vmatprep.subr.bf16.mxu0 0
  %419 = vmatpush1.bf16.msra.mxu0 0
  %420 = vmatprep.subr.bf16.mxu0 0
  %421 = vmatpush1.bf16.msra.mxu0 0
  %422 = vmatprep.subr.bf16.mxu0 0
  %423 = vmatpush1.bf16.msra.mxu0 0
  %424 = vmatprep.subr.bf16.mxu0 0
  %425 = vmatpush1.bf16.msra.mxu0 0
  %426 = vmatprep.subr.bf16.mxu0 0
  %427 = vmatpush1.bf16.msra.mxu0 0
  %428 = vmatprep.subr.bf16.mxu0 0
  %429 = vmatpush1.bf16.msra.mxu0 0
  %430 = vmatprep.subr.bf16.mxu0 0
  %431 = vmatpush1.bf16.msra.mxu0 0
  %432 = vmatprep.subr.bf16.mxu0 0
  %433 = vmatpush1.bf16.msra.mxu0 0
  %434 = vmatprep.mubr.bf16.mxu0 0
  %435 = vmatmul.mubr.bf16.gmra.mrb[0].mxu0 %v400
  %v436 = vpop.f32.mrb[0].mxu0
  %v437 = vadd.f32 0.0, %v436
  %v438 = vpop.f32.mrb[0].mxu0
  %v439 = vpop.f32.mrb[0].mxu0
  %v440 = vpop.f32.mrb[0].mxu0
  %441 = vdwg.mxu0
  %v443 = vcombine.high %v437, %v437
  %v445 = vadd.f32 %v437, %v101
  %v446 = vadd.f32 %v443, %v101
  %v447 = vlaneseq
  %v448 = vand.u32 %v447, 127
  %vm449 = vcmp.ge.s32.totalorder %v448, 10
  %vm450 = vcmp.lt.s32.totalorder %v448, 16
  %vm451 = vmand %vm449, %vm450
  %v452 = vsel %vm451, -1e+30, 0.0
  %v453 = vlaneseq
  %v454 = vshrl.u32 %v453, 7
  %v455 = vadd.s32 %v454, 8
  %vm456 = vcmp.lt.s32.totalorder %v454, 2
  %vm457 = vcmp.lt.s32.totalorder %v455, 2
  %vm458 = vcmp.lt.s32.totalorder %v448, 8
  %vm459 = vmand %vm456, %vm458
  %vm460 = vmand %vm457, %vm458
  %vm461 = vcmp.ge.s32.totalorder %v454, 2
  %vm462 = vcmp.ge.s32.totalorder %v455, 2
  %vm463 = vcmp.lt.s32.totalorder %v454, 6
  %vm464 = vcmp.lt.s32.totalorder %v455, 6
  %vm465 = vmand %vm461, %vm463
  %vm466 = vmand %vm462, %vm464
  %vm467 = vcmp.ge.s32.totalorder %v448, 8
  %vm468 = vmand %vm465, %vm467
  %vm469 = vmand %vm466, %vm467
  %vm470 = vmor %vm459, %vm468
  %vm471 = vmor %vm460, %vm469
  %vm472 = vcmp.ge.s32.totalorder %v454, 6
  %vm473 = vcmp.ge.s32.totalorder %v455, 6
  %vm474 = vmor %vm470, %vm472
  %vm475 = vmor %vm471, %vm473
  %v476 = vsel %vm474, 0.0, -1e+30
  %v477 = vsel %vm475, 0.0, -1e+30
  %vm478 = vcmp.lt.s32.totalorder %v454, 10
  %vm479 = vcmp.lt.s32.totalorder %v455, 10
  %v480 = vsel %vm478, 1, 0
  %v481 = vsel %vm479, 1, 0
  %v482 = vcvt.s32.f32 %v480
  %v483 = vcvt.s32.f32 %v481
  %v484 = vld [vmem:[%s4] sm:$0xff]
  %v485 = vld [vmem:[%s4 + $0x8] sm:$0xff]
  %v486 = vld [vmem:[%s4 + $0x10] sm:$0xf]
  %v487 = vld [vmem:[%s4 + $0x14] sm:$0xff]
  %v488 = vld [vmem:[%s4 + $0x1c] sm:$0xff]
  %v489 = vld [vmem:[%s4 + $0x24] sm:$0xf]
  %v490 = vld [vmem:[%s4 + $0x28] sm:$0xff]
  %v491 = vld [vmem:[%s4 + $0x30] sm:$0xff]
  %v492 = vld [vmem:[%s4 + $0x38] sm:$0xf]
  %v493 = vld [vmem:[%s4 + $0x3c] sm:$0xff]
  %v494 = vld [vmem:[%s4 + $0x44] sm:$0xff]
  %v495 = vld [vmem:[%s4 + $0x4c] sm:$0xf]
  %v496 = vld [vmem:[%s5] sm:$0xf]
  %v497 = vld [vmem:[%s5 + $0x4] sm:$0xf]
  %v498 = vld [vmem:[%s5 + $0x8] sm:$0xf]
  %v499 = vld [vmem:[%s5 + $0xc] sm:$0xf]
  %v500 = vld [vmem:[%s5 + $0x10] sm:$0xf]
  %v501 = vld [vmem:[%s5 + $0x14] sm:$0xf]
  %v502 = vld [vmem:[%s5 + $0x18] sm:$0xf]
  %v503 = vld [vmem:[%s5 + $0x1c] sm:$0xf]
  %v504 = vld [vmem:[%s5 + $0x20] sm:$0xf]
  %v505 = vld [vmem:[%s5 + $0x24] sm:$0xf]
  %v506 = vld [vmem:[%s5 + $0x28] sm:$0xf]
  %v507 = vld [vmem:[%s5 + $0x2c] sm:$0xf]
  %v508 = vld [vmem:[%s5 + $0x30] sm:$0xf]
  %v509 = vld [vmem:[%s5 + $0x34] sm:$0xf]
  %v510 = vld [vmem:[%s5 + $0x38] sm:$0xf]
  %v511 = vld [vmem:[%s5 + $0x3c] sm:$0xf]
  %v512 = vld [vmem:[%s6] sm:$0xff]
  %v513 = vld [vmem:[%s6 + $0x8] sm:$0x3]
  %vm514 = vcmask 261120
  %v515 = vsel %vm514, %v98, 0.0
  %516 = vadd.xlane.f32.xlu0 %v515
  %v517 = vpop.xlane.xlu0 %516
  %v518 = vsel %vm514, %v99, 0.0
  %519 = vadd.xlane.f32.xlu0 %v518
  %v520 = vpop.xlane.xlu0 %519
  %v521 = vsel %vm514, %v358, 0.0
  %522 = vadd.xlane.f32.xlu0 %v521
  %v523 = vpop.xlane.xlu0 %522
  %v524 = vsel %vm514, %v359, 0.0
  %525 = vadd.xlane.f32.xlu0 %v524
  %v526 = vpop.xlane.xlu0 %525
  %v527 = vrcp.pop 32.0
  %v528 = vmul.f32 %v517, %v527
  %v529 = vmul.f32 %v520, %v527
  %v530 = vmul.f32 %v523, %v527
  %v531 = vmul.f32 %v526, %v527
  %v532 = vsub.f32 %v98, %v528
  %v533 = vsub.f32 %v99, %v529
  %v534 = vsub.f32 %v358, %v530
  %v535 = vsub.f32 %v359, %v531
  %v536 = vmul.f32 %v532, %v532
  %v537 = vmul.f32 %v533, %v533
  %v538 = vmul.f32 %v534, %v534
  %v539 = vmul.f32 %v535, %v535
  %v540 = vsel %vm514, %v536, 0.0
  %541 = vadd.xlane.f32.xlu0 %v540
  %v542 = vpop.xlane.xlu0 %541
  %v543 = vsel %vm514, %v537, 0.0
  %544 = vadd.xlane.f32.xlu0 %v543
  %v545 = vpop.xlane.xlu0 %544
  %v546 = vsel %vm514, %v538, 0.0
  %547 = vadd.xlane.f32.xlu0 %v546
  %v548 = vpop.xlane.xlu0 %547
  %v549 = vsel %vm514, %v539, 0.0
  %550 = vadd.xlane.f32.xlu0 %v549
  %v551 = vpop.xlane.xlu0 %550
  %v552 = vmul.f32 %v542, %v527
  %v553 = vmul.f32 %v545, %v527
  %v554 = vmul.f32 %v548, %v527
  %v555 = vmul.f32 %v551, %v527
  %v556 = vadd.f32 %v552, 1e-05
  %v557 = vadd.f32 %v553, 1e-05
  %v558 = vadd.f32 %v554, 1e-05
  %v559 = vadd.f32 %v555, 1e-05
  %v560 = vrsqrt.pop %v556
  %v561 = vrsqrt.pop %v557
  %v562 = vrsqrt.pop %v558
  %v563 = vrsqrt.pop %v559
  %v564 = vmul.f32 %v532, %v560
  %v565 = vmul.f32 %v533, %v561
  %v566 = vmul.f32 %v534, %v562
  %v567 = vmul.f32 %v535, %v563
  %v568 = vlaneseq
  %v569 = vshrl.u32 %v568, 7
  %v570 = vsub.s32 0, %v569
  %v571 = vrot.slane %v512, %v570
  %v572 = vmul.f32 %v564, %v571
  %v573 = vmul.f32 %v565, %v571
  %v574 = vmul.f32 %v566, %v571
  %v575 = vmul.f32 %v567, %v571
  %v576 = vlaneseq
  %v577 = vshrl.u32 %v576, 7
  %v578 = vsub.s32 1, %v577
  %v579 = vrot.slane %v512, %v578
  %v580 = vadd.f32 %v572, %v579
  %v581 = vadd.f32 %v573, %v579
  %v582 = vadd.f32 %v574, %v579
  %v583 = vadd.f32 %v575, %v579
  %v584 = vpack.c.bf16 %v581, %v580
  %v585 = vpack.c.bf16 %v582, %v582
  %v586 = vpack.c.bf16 %v583, %v583
  %v590 = vunpack.c.l.b16 %v584
  %v591 = vunpack.c.h.b16 %v584
  %v592 = vunpack.c.l.b16 %v585
  %v593 = vunpack.c.l.b16 %v586
  %v594 = vpack.c.b16 %v591, %v590
  %v595 = vpack.c.b16 %v590, %v592
  %v596 = vpack.c.b16 %v593, %v591
  %v601 = vunpack.c.l.b16 %v484
  %v602 = vunpack.c.l.b16 %v487
  %v603 = vunpack.c.l.b16 %v490
  %v604 = vunpack.c.l.b16 %v493
  %v605 = vpack.c.b16 %v602, %v601
  %v606 = vpack.c.b16 %v604, %v603
  %v610 = vsel %vm514, %v594, 0
  %v613 = vsel %vm514, %v595, 0
  %v616 = vsel %vm514, %v596, 0
  %618 = vmatprep.subr.bf16.mxu0 0
  %619 = vmatpush1.bf16.msra.mxu0 %v605
  %620 = vmatprep.subr.bf16.mxu0 0
  %621 = vmatpush1.bf16.msra.mxu0 %v606
  %622 = vmatprep.subr.bf16.mxu0 0
  %623 = vmatpush1.bf16.msra.mxu0 0
  %624 = vmatprep.subr.bf16.mxu0 0
  %625 = vmatpush1.bf16.msra.mxu0 0
  %626 = vmatprep.subr.bf16.mxu0 0
  %627 = vmatpush1.bf16.msra.mxu0 0
  %628 = vmatprep.subr.bf16.mxu0 0
  %629 = vmatpush1.bf16.msra.mxu0 0
  %630 = vmatprep.subr.bf16.mxu0 0
  %631 = vmatpush1.bf16.msra.mxu0 0
  %632 = vmatprep.subr.bf16.mxu0 0
  %633 = vmatpush1.bf16.msra.mxu0 0
  %634 = vmatprep.subr.bf16.mxu0 0
  %635 = vmatpush1.bf16.msra.mxu0 0
  %636 = vmatprep.subr.bf16.mxu0 0
  %637 = vmatpush1.bf16.msra.mxu0 0
  %638 = vmatprep.subr.bf16.mxu0 0
  %639 = vmatpush1.bf16.msra.mxu0 0
  %640 = vmatprep.subr.bf16.mxu0 0
  %641 = vmatpush1.bf16.msra.mxu0 0
  %642 = vmatprep.subr.bf16.mxu0 0
  %643 = vmatpush1.bf16.msra.mxu0 0
  %644 = vmatprep.subr.bf16.mxu0 0
  %645 = vmatpush1.bf16.msra.mxu0 0
  %646 = vmatprep.subr.bf16.mxu0 0
  %647 = vmatpush1.bf16.msra.mxu0 0
  %648 = vmatprep.subr.bf16.mxu0 0
  %649 = vmatpush1.bf16.msra.mxu0 0
  %650 = vmatprep.mubr.bf16.mxu0 0
  %651 = vmatmul.mubr.bf16.gmra.mrb[0].mxu0 %v610
  %v652 = vpop.f32.mrb[0].mxu0
  %v653 = vpop.f32.mrb[0].mxu0
  %v654 = vpop.f32.mrb[0].mxu0
  %v655 = vpop.f32.mrb[0].mxu0
  %656 = vmatprep.mubr.bf16.mxu0 0
  %657 = vmatmul.mubr.bf16.gmra.mrb[0].mxu0 %v613
  %v658 = vpop.f32.mrb[0].mxu0
  %v659 = vadd.f32 0.0, %v658
  %v660 = vpop.f32.mrb[0].mxu0
  %v661 = vpop.f32.mrb[0].mxu0
  %v662 = vpop.f32.mrb[0].mxu0
  %663 = vmatprep.mubr.bf16.mxu0 0
  %664 = vmatmul.mubr.bf16.gmra.mrb[0].mxu0 %v616
  %v665 = vpop.f32.mrb[0].mxu0
  %v666 = vpop.f32.mrb[0].mxu0
  %v667 = vpop.f32.mrb[0].mxu0
  %v668 = vadd.f32 0.0, %v667
  %v669 = vpop.f32.mrb[0].mxu0
  %670 = vdwg.mxu0
  %v671 = vlaneseq
  %v672 = vshrl.u32 %v671, 7
  %v673 = vsub.s32 4, %v672
  %v674 = vrot.slane %v512, %v673
  %v675 = vadd.f32 %v659, %v674
  %v676 = vadd.f32 %v668, %v674
  %v677 = vunpack.c.h.b16 %v484
  %v678 = vunpack.c.h.b16 %v487
  %v679 = vunpack.c.h.b16 %v490
  %v680 = vunpack.c.h.b16 %v493
  %v681 = vpack.c.b16 %v678, %v677
  %v682 = vpack.c.b16 %v680, %v679
  %685 = vmatprep.subr.bf16.mxu0 0
  %686 = vmatpush1.bf16.msra.mxu0 %v681
  %687 = vmatprep.subr.bf16.mxu0 0
  %688 = vmatpush1.bf16.msra.mxu0 %v682
  %689 = vmatprep.subr.bf16.mxu0 0
  %690 = vmatpush1.bf16.msra.mxu0 0
  %691 = vmatprep.subr.bf16.mxu0 0
  %692 = vmatpush1.bf16.msra.mxu0 0
  %693 = vmatprep.subr.bf16.mxu0 0
  %694 = vmatpush1.bf16.msra.mxu0 0
  %695 = vmatprep.subr.bf16.mxu0 0
  %696 = vmatpush1.bf16.msra.mxu0 0
  %697 = vmatprep.subr.bf16.mxu0 0
  %698 = vmatpush1.bf16.msra.mxu0 0
  %699 = vmatprep.subr.bf16.mxu0 0
  %700 = vmatpush1.bf16.msra.mxu0 0
  %701 = vmatprep.subr.bf16.mxu0 0
  %702 = vmatpush1.bf16.msra.mxu0 0
  %703 = vmatprep.subr.bf16.mxu0 0
  %704 = vmatpush1.bf16.msra.mxu0 0
  %705 = vmatprep.subr.bf16.mxu0 0
  %706 = vmatpush1.bf16.msra.mxu0 0
  %707 = vmatprep.subr.bf16.mxu0 0
  %708 = vmatpush1.bf16.msra.mxu0 0
  %709 = vmatprep.subr.bf16.mxu0 0
  %710 = vmatpush1.bf16.msra.mxu0 0
  %711 = vmatprep.subr.bf16.mxu0 0
  %712 = vmatpush1.bf16.msra.mxu0 0
  %713 = vmatprep.subr.bf16.mxu0 0
  %714 = vmatpush1.bf16.msra.mxu0 0
  %715 = vmatprep.subr.bf16.mxu0 0
  %716 = vmatpush1.bf16.msra.mxu0 0
  %717 = vmatprep.mubr.bf16.mxu0 0
  %718 = vmatmul.mubr.bf16.gmra.mrb[0].mxu0 %v610
  %v719 = vpop.f32.mrb[0].mxu0
  %v720 = vadd.f32 0.0, %v719
  %v721 = vpop.f32.mrb[0].mxu0
  %v722 = vpop.f32.mrb[0].mxu0
  %v723 = vadd.f32 0.0, %v722
  %v724 = vpop.f32.mrb[0].mxu0
  %725 = vmatprep.mubr.bf16.mxu0 0
  %726 = vmatmul.mubr.bf16.gmra.mrb[0].mxu0 %v613
  %v727 = vpop.f32.mrb[0].mxu0
  %v728 = vadd.f32 0.0, %v727
  %v729 = vpop.f32.mrb[0].mxu0
  %v730 = vpop.f32.mrb[0].mxu0
  %v731 = vadd.f32 0.0, %v730
  %v732 = vpop.f32.mrb[0].mxu0
  %733 = vmatprep.mubr.bf16.mxu0 0
  %734 = vmatmul.mubr.bf16.gmra.mrb[0].mxu0 %v616
  %v735 = vpop.f32.mrb[0].mxu0
  %v736 = vadd.f32 0.0, %v735
  %v737 = vpop.f32.mrb[0].mxu0
  %v738 = vpop.f32.mrb[0].mxu0
  %v739 = vadd.f32 0.0, %v738
  %v740 = vpop.f32.mrb[0].mxu0
  %741 = vdwg.mxu0
  %v742 = vlaneseq
  %v743 = vshrl.u32 %v742, 7
  %v744 = vsub.s32 5, %v743
  %v745 = vrot.slane %v512, %v744
  %v746 = vadd.f32 %v720, %v745
  %v747 = vadd.f32 %v723, %v745
  %v748 = vadd.f32 %v728, %v745
  %v749 = vadd.f32 %v731, %v745
  %v750 = vadd.f32 %v736, %v745
  %v751 = vadd.f32 %v739, %v745
  %v756 = vunpack.c.l.b16 %v485
  %v757 = vunpack.c.l.b16 %v488
  %v758 = vunpack.c.l.b16 %v491
  %v759 = vunpack.c.l.b16 %v494
  %v760 = vpack.c.b16 %v757, %v756
  %v761 = vpack.c.b16 %v759, %v758
  %764 = vmatprep.subr.bf16.mxu0 0
  %765 = vmatpush1.bf16.msra.mxu0 %v760
  %766 = vmatprep.subr.bf16.mxu0 0
  %767 = vmatpush1.bf16.msra.mxu0 %v761
  %768 = vmatprep.subr.bf16.mxu0 0
  %769 = vmatpush1.bf16.msra.mxu0 0
  %770 = vmatprep.subr.bf16.mxu0 0
  %771 = vmatpush1.bf16.msra.mxu0 0
  %772 = vmatprep.subr.bf16.mxu0 0
  %773 = vmatpush1.bf16.msra.mxu0 0
  %774 = vmatprep.subr.bf16.mxu0 0
  %775 = vmatpush1.bf16.msra.mxu0 0
  %776 = vmatprep.subr.bf16.mxu0 0
  %777 = vmatpush1.bf16.msra.mxu0 0
  %778 = vmatprep.subr.bf16.mxu0 0
  %779 = vmatpush1.bf16.msra.mxu0 0
  %780 = vmatprep.subr.bf16.mxu0 0
  %781 = vmatpush1.bf16.msra.mxu0 0
  %782 = vmatprep.subr.bf16.mxu0 0
  %783 = vmatpush1.bf16.msra.mxu0 0
  %784 = vmatprep.subr.bf16.mxu0 0
  %785 = vmatpush1.bf16.msra.mxu0 0
  %786 = vmatprep.subr.bf16.mxu0 0
  %787 = vmatpush1.bf16.msra.mxu0 0
  %788 = vmatprep.subr.bf16.mxu0 0
  %789 = vmatpush1.bf16.msra.mxu0 0
  %790 = vmatprep.subr.bf16.mxu0 0
  %791 = vmatpush1.bf16.msra.mxu0 0
  %792 = vmatprep.subr.bf16.mxu0 0
  %793 = vmatpush1.bf16.msra.mxu0 0
  %794 = vmatprep.subr.bf16.mxu0 0
  %795 = vmatpush1.bf16.msra.mxu0 0
  %796 = vmatprep.mubr.bf16.mxu0 0
  %797 = vmatmul.mubr.bf16.gmra.mrb[0].mxu0 %v610
  %v798 = vpop.f32.mrb[0].mxu0
  %v799 = vadd.f32 0.0, %v798
  %v800 = vpop.f32.mrb[0].mxu0
  %v801 = vpop.f32.mrb[0].mxu0
  %v802 = vadd.f32 0.0, %v801
  %v803 = vpop.f32.mrb[0].mxu0
  %804 = vmatprep.mubr.bf16.mxu0 0
  %805 = vmatmul.mubr.bf16.gmra.mrb[0].mxu0 %v613
  %v806 = vpop.f32.mrb[0].mxu0
  %v807 = vadd.f32 0.0, %v806
  %v808 = vpop.f32.mrb[0].mxu0
  %v809 = vpop.f32.mrb[0].mxu0
  %v810 = vadd.f32 0.0, %v809
  %v811 = vpop.f32.mrb[0].mxu0
  %812 = vmatprep.mubr.bf16.mxu0 0
  %813 = vmatmul.mubr.bf16.gmra.mrb[0].mxu0 %v616
  %v814 = vpop.f32.mrb[0].mxu0
  %v815 = vadd.f32 0.0, %v814
  %v816 = vpop.f32.mrb[0].mxu0
  %v817 = vpop.f32.mrb[0].mxu0
  %v818 = vadd.f32 0.0, %v817
  %v819 = vpop.f32.mrb[0].mxu0
  %820 = vdwg.mxu0
  %v821 = vlaneseq
  %v822 = vshrl.u32 %v821, 7
  %v823 = vsub.s32 6, %v822
  %v824 = vrot.slane %v512, %v823
  %v825 = vadd.f32 %v799, %v824
  %v826 = vadd.f32 %v802, %v824
  %v827 = vadd.f32 %v807, %v824
  %v828 = vadd.f32 %v810, %v824
  %v829 = vadd.f32 %v815, %v824
  %v830 = vadd.f32 %v818, %v824
  %v831 = vpack.c.bf16 %v675, %v675
  %v832 = vpack.c.bf16 %v676, %v676
  %v833 = vpack.c.bf16 %v747, %v746
  %v834 = vpack.c.bf16 %v748, %v748
  %v835 = vpack.c.bf16 %v750, %v749
  %v836 = vpack.c.bf16 %v751, %v751
  %v837 = vpack.c.bf16 %v826, %v825
  %v838 = vpack.c.bf16 %v827, %v827
  %v839 = vpack.c.bf16 %v829, %v828
  %v840 = vpack.c.bf16 %v830, %v830
  %vm841 = vcmask 64512
  %v843 = vsel %vm841, %v831, 0
  %v846 = vsel %vm841, %v833, 0
  %v849 = vsel %vm841, %v834, 0
  %851 = vmatprep.subr.bf16.mxu0 0
  %852 = vmatpush1.bf16.xpose.msra.mxu0 %v846
  %853 = vmatprep.subr.bf16.mxu0 0
  %854 = vmatpush1.bf16.xpose.msra.mxu0 %v849
  %855 = vmatprep.subr.bf16.mxu0 0
  %856 = vmatpush1.bf16.xpose.msra.mxu0 0
  %857 = vmatprep.subr.bf16.mxu0 0
  %858 = vmatpush1.bf16.xpose.msra.mxu0 0
  %859 = vmatprep.subr.bf16.mxu0 0
  %860 = vmatpush1.bf16.xpose.msra.mxu0 0
  %861 = vmatprep.subr.bf16.mxu0 0
  %862 = vmatpush1.bf16.xpose.msra.mxu0 0
  %863 = vmatprep.subr.bf16.mxu0 0
  %864 = vmatpush1.bf16.xpose.msra.mxu0 0
  %865 = vmatprep.subr.bf16.mxu0 0
  %866 = vmatpush1.bf16.xpose.msra.mxu0 0
  %867 = vmatprep.subr.bf16.mxu0 0
  %868 = vmatpush1.bf16.xpose.msra.mxu0 0
  %869 = vmatprep.subr.bf16.mxu0 0
  %870 = vmatpush1.bf16.xpose.msra.mxu0 0
  %871 = vmatprep.subr.bf16.mxu0 0
  %872 = vmatpush1.bf16.xpose.msra.mxu0 0
  %873 = vmatprep.subr.bf16.mxu0 0
  %874 = vmatpush1.bf16.xpose.msra.mxu0 0
  %875 = vmatprep.subr.bf16.mxu0 0
  %876 = vmatpush1.bf16.xpose.msra.mxu0 0
  %877 = vmatprep.subr.bf16.mxu0 0
  %878 = vmatpush1.bf16.xpose.msra.mxu0 0
  %879 = vmatprep.subr.bf16.mxu0 0
  %880 = vmatpush1.bf16.xpose.msra.mxu0 0
  %881 = vmatprep.subr.bf16.mxu0 0
  %882 = vmatpush1.bf16.xpose.msra.mxu0 0
  %883 = vmatprep.mubr.bf16.mxu0 0
  %884 = vmatmul.mubr.bf16.gmra.mrb[0].mxu0 %v843
  %v885 = vpop.f32.mrb[0].mxu0
  %v886 = vadd.f32 0.0, %v885
  %v887 = vpop.f32.mrb[0].mxu0
  %v888 = vpop.f32.mrb[0].mxu0
  %v889 = vpop.f32.mrb[0].mxu0
  %890 = vdwg.mxu0
  %v892 = vsel %vm841, %v832, 0
  %v895 = vsel %vm841, %v835, 0
  %v898 = vsel %vm841, %v836, 0
  %900 = vmatprep.subr.bf16.mxu0 0
  %901 = vmatpush1.bf16.xpose.msra.mxu0 %v895
  %902 = vmatprep.subr.bf16.mxu0 0
  %903 = vmatpush1.bf16.xpose.msra.mxu0 %v898
  %904 = vmatprep.subr.bf16.mxu0 0
  %905 = vmatpush1.bf16.xpose.msra.mxu0 0
  %906 = vmatprep.subr.bf16.mxu0 0
  %907 = vmatpush1.bf16.xpose.msra.mxu0 0
  %908 = vmatprep.subr.bf16.mxu0 0
  %909 = vmatpush1.bf16.xpose.msra.mxu0 0
  %910 = vmatprep.subr.bf16.mxu0 0
  %911 = vmatpush1.bf16.xpose.msra.mxu0 0
  %912 = vmatprep.subr.bf16.mxu0 0
  %913 = vmatpush1.bf16.xpose.msra.mxu0 0
  %914 = vmatprep.subr.bf16.mxu0 0
  %915 = vmatpush1.bf16.xpose.msra.mxu0 0
  %916 = vmatprep.subr.bf16.mxu0 0
  %917 = vmatpush1.bf16.xpose.msra.mxu0 0
  %918 = vmatprep.subr.bf16.mxu0 0
  %919 = vmatpush1.bf16.xpose.msra.mxu0 0
  %920 = vmatprep.subr.bf16.mxu0 0
  %921 = vmatpush1.bf16.xpose.msra.mxu0 0
  %922 = vmatprep.subr.bf16.mxu0 0
  %923 = vmatpush1.bf16.xpose.msra.mxu0 0
  %924 = vmatprep.subr.bf16.mxu0 0
  %925 = vmatpush1.bf16.xpose.msra.mxu0 0
  %926 = vmatprep.subr.bf16.mxu0 0
  %927 = vmatpush1.bf16.xpose.msra.mxu0 0
  %928 = vmatprep.subr.bf16.mxu0 0
  %929 = vmatpush1.bf16.xpose.msra.mxu0 0
  %930 = vmatprep.subr.bf16.mxu0 0
  %931 = vmatpush1.bf16.xpose.msra.mxu0 0
  %932 = vmatprep.mubr.bf16.mxu0 0
  %933 = vmatmul.mubr.bf16.gmra.mrb[0].mxu0 %v892
  %v934 = vpop.f32.mrb[0].mxu0
  %v935 = vadd.f32 0.0, %v934
  %v936 = vpop.f32.mrb[0].mxu0
  %v937 = vpop.f32.mrb[0].mxu0
  %v938 = vpop.f32.mrb[0].mxu0
  %939 = vdwg.mxu0
  %v940 = vmul.f32 %v886, 0.35355338
  %v941 = vmul.f32 %v935, 0.35355338
  %v942 = vadd.f32 %v940, %v452
  %v943 = vadd.f32 %v941, %v452
  %vm944 = vcmask 195584
  %v945 = vsel %vm944, %v942, -inf
  %946 = vmax.xlane.f32.xlu0 %v945
  %v947 = vpop.xlane.xlu0 %946
  %v948 = vsel %vm944, %v943, -inf
  %949 = vmax.xlane.f32.xlu0 %v948
  %v950 = vpop.xlane.xlu0 %949
  %v951 = vsub.f32 %v942, %v947
  %v952 = vsub.f32 %v943, %v950
  %v953 = vmul.f32 %v951, 1.442695
  %v954 = vpow.pop %v953
  %v955 = vmul.f32 %v952, 1.442695
  %v956 = vpow.pop %v955
  %v957 = vsel %vm944, %v954, 0.0
  %958 = vadd.xlane.f32.xlu0 %v957
  %v959 = vpop.xlane.xlu0 %958
  %v960 = vsel %vm944, %v956, 0.0
  %961 = vadd.xlane.f32.xlu0 %v960
  %v962 = vpop.xlane.xlu0 %961
  %v963 = vrcp.pop %v959
  %v964 = vmul.f32 %v954, %v963
  %v965 = vrcp.pop %v962
  %v966 = vmul.f32 %v956, %v965
  %v967 = vpack.c.bf16 %v964, %v964
  %v968 = vpack.c.bf16 %v966, %v966
  %v970 = vsel %vm944, %v967, 0
  %vm972 = vcmask 1043456
  %v974 = vsel %vm972, %v838, 0
  %976 = vmatprep.subr.bf16.mxu0 0
  %977 = vmatpush1.bf16.msra.mxu0 %v837
  %978 = vmatprep.subr.bf16.mxu0 0
  %979 = vmatpush1.bf16.msra.mxu0 %v974
  %980 = vmatprep.subr.bf16.mxu0 0
  %981 = vmatpush1.bf16.msra.mxu0 0
  %982 = vmatprep.subr.bf16.mxu0 0
  %983 = vmatpush1.bf16.msra.mxu0 0
  %984 = vmatprep.subr.bf16.mxu0 0
  %985 = vmatpush1.bf16.msra.mxu0 0
  %986 = vmatprep.subr.bf16.mxu0 0
  %987 = vmatpush1.bf16.msra.mxu0 0
  %988 = vmatprep.subr.bf16.mxu0 0
  %989 = vmatpush1.bf16.msra.mxu0 0
  %990 = vmatprep.subr.bf16.mxu0 0
  %991 = vmatpush1.bf16.msra.mxu0 0
  %992 = vmatprep.subr.bf16.mxu0 0
  %993 = vmatpush1.bf16.msra.mxu0 0
  %994 = vmatprep.subr.bf16.mxu0 0
  %995 = vmatpush1.bf16.msra.mxu0 0
  %996 = vmatprep.subr.bf16.mxu0 0
  %997 = vmatpush1.bf16.msra.mxu0 0
  %998 = vmatprep.subr.bf16.mxu0 0
  %999 = vmatpush1.bf16.msra.mxu0 0
  %1000 = vmatprep.subr.bf16.mxu0 0
  %1001 = vmatpush1.bf16.msra.mxu0 0
  %1002 = vmatprep.subr.bf16.mxu0 0
  %1003 = vmatpush1.bf16.msra.mxu0 0
  %1004 = vmatprep.subr.bf16.mxu0 0
  %1005 = vmatpush1.bf16.msra.mxu0 0
  %1006 = vmatprep.subr.bf16.mxu0 0
  %1007 = vmatpush1.bf16.msra.mxu0 0
  %1008 = vmatprep.mubr.bf16.mxu0 0
  %1009 = vmatmul.mubr.bf16.gmra.mrb[0].mxu0 %v970
  %v1010 = vpop.f32.mrb[0].mxu0
  %v1011 = vadd.f32 0.0, %v1010
  %v1012 = vpop.f32.mrb[0].mxu0
  %v1013 = vpop.f32.mrb[0].mxu0
  %v1014 = vpop.f32.mrb[0].mxu0
  %1015 = vdwg.mxu0
  %v1017 = vsel %vm944, %v968, 0
  %v1020 = vsel %vm972, %v840, 0
  %1022 = vmatprep.subr.bf16.mxu0 0
  %1023 = vmatpush1.bf16.msra.mxu0 %v839
  %1024 = vmatprep.subr.bf16.mxu0 0
  %1025 = vmatpush1.bf16.msra.mxu0 %v1020
  %1026 = vmatprep.subr.bf16.mxu0 0
  %1027 = vmatpush1.bf16.msra.mxu0 0
  %1028 = vmatprep.subr.bf16.mxu0 0
  %1029 = vmatpush1.bf16.msra.mxu0 0
  %1030 = vmatprep.subr.bf16.mxu0 0
  %1031 = vmatpush1.bf16.msra.mxu0 0
  %1032 = vmatprep.subr.bf16.mxu0 0
  %1033 = vmatpush1.bf16.msra.mxu0 0
  %1034 = vmatprep.subr.bf16.mxu0 0
  %1035 = vmatpush1.bf16.msra.mxu0 0
  %1036 = vmatprep.subr.bf16.mxu0 0
  %1037 = vmatpush1.bf16.msra.mxu0 0
  %1038 = vmatprep.subr.bf16.mxu0 0
  %1039 = vmatpush1.bf16.msra.mxu0 0
  %1040 = vmatprep.subr.bf16.mxu0 0
  %1041 = vmatpush1.bf16.msra.mxu0 0
  %1042 = vmatprep.subr.bf16.mxu0 0
  %1043 = vmatpush1.bf16.msra.mxu0 0
  %1044 = vmatprep.subr.bf16.mxu0 0
  %1045 = vmatpush1.bf16.msra.mxu0 0
  %1046 = vmatprep.subr.bf16.mxu0 0
  %1047 = vmatpush1.bf16.msra.mxu0 0
  %1048 = vmatprep.subr.bf16.mxu0 0
  %1049 = vmatpush1.bf16.msra.mxu0 0
  %1050 = vmatprep.subr.bf16.mxu0 0
  %1051 = vmatpush1.bf16.msra.mxu0 0
  %1052 = vmatprep.subr.bf16.mxu0 0
  %1053 = vmatpush1.bf16.msra.mxu0 0
  %1054 = vmatprep.mubr.bf16.mxu0 0
  %1055 = vmatmul.mubr.bf16.gmra.mrb[0].mxu0 %v1017
  %v1056 = vpop.f32.mrb[0].mxu0
  %v1057 = vadd.f32 0.0, %v1056
  %v1058 = vpop.f32.mrb[0].mxu0
  %v1059 = vpop.f32.mrb[0].mxu0
  %v1060 = vpop.f32.mrb[0].mxu0
  %1061 = vdwg.mxu0
  %1063 = vrot.lane.b32.xlu0 %v831, 120
  %v1064 = vpop.permute.xlu0 %1063
  %1067 = vrot.lane.b32.xlu0 %v833, 120
  %v1068 = vpop.permute.xlu0 %1067
  %1069 = vrot.lane.b32.xlu0 %v834, 120
  %v1070 = vpop.permute.xlu0 %1069
  %v1072 = vsel %vm841, %v1064, 0
  %v1075 = vsel %vm841, %v1068, 0
  %v1078 = vsel %vm841, %v1070, 0
  %1080 = vmatprep.subr.bf16.mxu0 0
  %1081 = vmatpush1.bf16.xpose.msra.mxu0 %v1075
  %1082 = vmatprep.subr.bf16.mxu0 0
  %1083 = vmatpush1.bf16.xpose.msra.mxu0 %v1078
  %1084 = vmatprep.subr.bf16.mxu0 0
  %1085 = vmatpush1.bf16.xpose.msra.mxu0 0
  %1086 = vmatprep.subr.bf16.mxu0 0
  %1087 = vmatpush1.bf16.xpose.msra.mxu0 0
  %1088 = vmatprep.subr.bf16.mxu0 0
  %1089 = vmatpush1.bf16.xpose.msra.mxu0 0
  %1090 = vmatprep.subr.bf16.mxu0 0
  %1091 = vmatpush1.bf16.xpose.msra.mxu0 0
  %1092 = vmatprep.subr.bf16.mxu0 0
  %1093 = vmatpush1.bf16.xpose.msra.mxu0 0
  %1094 = vmatprep.subr.bf16.mxu0 0
  %1095 = vmatpush1.bf16.xpose.msra.mxu0 0
  %1096 = vmatprep.subr.bf16.mxu0 0
  %1097 = vmatpush1.bf16.xpose.msra.mxu0 0
  %1098 = vmatprep.subr.bf16.mxu0 0
  %1099 = vmatpush1.bf16.xpose.msra.mxu0 0
  %1100 = vmatprep.subr.bf16.mxu0 0
  %1101 = vmatpush1.bf16.xpose.msra.mxu0 0
  %1102 = vmatprep.subr.bf16.mxu0 0
  %1103 = vmatpush1.bf16.xpose.msra.mxu0 0
  %1104 = vmatprep.subr.bf16.mxu0 0
  %1105 = vmatpush1.bf16.xpose.msra.mxu0 0
  %1106 = vmatprep.subr.bf16.mxu0 0
  %1107 = vmatpush1.bf16.xpose.msra.mxu0 0
  %1108 = vmatprep.subr.bf16.mxu0 0
  %1109 = vmatpush1.bf16.xpose.msra.mxu0 0
  %1110 = vmatprep.subr.bf16.mxu0 0
  %1111 = vmatpush1.bf16.xpose.msra.mxu0 0
  %1112 = vmatprep.mubr.bf16.mxu0 0
  %1113 = vmatmul.mubr.bf16.gmra.mrb[0].mxu0 %v1072
  %v1114 = vpop.f32.mrb[0].mxu0
  %v1115 = vadd.f32 0.0, %v1114
  %v1116 = vpop.f32.mrb[0].mxu0
  %v1117 = vpop.f32.mrb[0].mxu0
  %v1118 = vpop.f32.mrb[0].mxu0
  %1119 = vdwg.mxu0
  %1121 = vrot.lane.b32.xlu0 %v832, 120
  %v1122 = vpop.permute.xlu0 %1121
  %1125 = vrot.lane.b32.xlu0 %v835, 120
  %v1126 = vpop.permute.xlu0 %1125
  %1127 = vrot.lane.b32.xlu0 %v836, 120
  %v1128 = vpop.permute.xlu0 %1127
  %v1130 = vsel %vm841, %v1122, 0
  %v1133 = vsel %vm841, %v1126, 0
  %v1136 = vsel %vm841, %v1128, 0
  %1138 = vmatprep.subr.bf16.mxu0 0
  %1139 = vmatpush1.bf16.xpose.msra.mxu0 %v1133
  %1140 = vmatprep.subr.bf16.mxu0 0
  %1141 = vmatpush1.bf16.xpose.msra.mxu0 %v1136
  %1142 = vmatprep.subr.bf16.mxu0 0
  %1143 = vmatpush1.bf16.xpose.msra.mxu0 0
  %1144 = vmatprep.subr.bf16.mxu0 0
  %1145 = vmatpush1.bf16.xpose.msra.mxu0 0
  %1146 = vmatprep.subr.bf16.mxu0 0
  %1147 = vmatpush1.bf16.xpose.msra.mxu0 0
  %1148 = vmatprep.subr.bf16.mxu0 0
  %1149 = vmatpush1.bf16.xpose.msra.mxu0 0
  %1150 = vmatprep.subr.bf16.mxu0 0
  %1151 = vmatpush1.bf16.xpose.msra.mxu0 0
  %1152 = vmatprep.subr.bf16.mxu0 0
  %1153 = vmatpush1.bf16.xpose.msra.mxu0 0
  %1154 = vmatprep.subr.bf16.mxu0 0
  %1155 = vmatpush1.bf16.xpose.msra.mxu0 0
  %1156 = vmatprep.subr.bf16.mxu0 0
  %1157 = vmatpush1.bf16.xpose.msra.mxu0 0
  %1158 = vmatprep.subr.bf16.mxu0 0
  %1159 = vmatpush1.bf16.xpose.msra.mxu0 0
  %1160 = vmatprep.subr.bf16.mxu0 0
  %1161 = vmatpush1.bf16.xpose.msra.mxu0 0
  %1162 = vmatprep.subr.bf16.mxu0 0
  %1163 = vmatpush1.bf16.xpose.msra.mxu0 0
  %1164 = vmatprep.subr.bf16.mxu0 0
  %1165 = vmatpush1.bf16.xpose.msra.mxu0 0
  %1166 = vmatprep.subr.bf16.mxu0 0
  %1167 = vmatpush1.bf16.xpose.msra.mxu0 0
  %1168 = vmatprep.subr.bf16.mxu0 0
  %1169 = vmatpush1.bf16.xpose.msra.mxu0 0
  %1170 = vmatprep.mubr.bf16.mxu0 0
  %1171 = vmatmul.mubr.bf16.gmra.mrb[0].mxu0 %v1130
  %v1172 = vpop.f32.mrb[0].mxu0
  %v1173 = vadd.f32 0.0, %v1172
  %v1174 = vpop.f32.mrb[0].mxu0
  %v1175 = vpop.f32.mrb[0].mxu0
  %v1176 = vpop.f32.mrb[0].mxu0
  %1177 = vdwg.mxu0
  %v1178 = vmul.f32 %v1115, 0.35355338
  %v1179 = vmul.f32 %v1173, 0.35355338
  %v1180 = vadd.f32 %v1178, %v452
  %v1181 = vadd.f32 %v1179, %v452
  %v1182 = vsel %vm944, %v1180, -inf
  %1183 = vmax.xlane.f32.xlu0 %v1182
  %v1184 = vpop.xlane.xlu0 %1183
  %v1185 = vsel %vm944, %v1181, -inf
  %1186 = vmax.xlane.f32.xlu0 %v1185
  %v1187 = vpop.xlane.xlu0 %1186
  %v1188 = vsub.f32 %v1180, %v1184
  %v1189 = vsub.f32 %v1181, %v1187
  %v1190 = vmul.f32 %v1188, 1.442695
  %v1191 = vpow.pop %v1190
  %v1192 = vmul.f32 %v1189, 1.442695
  %v1193 = vpow.pop %v1192
  %v1194 = vsel %vm944, %v1191, 0.0
  %1195 = vadd.xlane.f32.xlu0 %v1194
  %v1196 = vpop.xlane.xlu0 %1195
  %v1197 = vsel %vm944, %v1193, 0.0
  %1198 = vadd.xlane.f32.xlu0 %v1197
  %v1199 = vpop.xlane.xlu0 %1198
  %v1200 = vrcp.pop %v1196
  %v1201 = vmul.f32 %v1191, %v1200
  %v1202 = vrcp.pop %v1199
  %v1203 = vmul.f32 %v1193, %v1202
  %v1204 = vpack.c.bf16 %v1201, %v1201
  %v1205 = vpack.c.bf16 %v1203, %v1203
  %1208 = vrot.lane.b32.xlu0 %v837, 120
  %v1209 = vpop.permute.xlu0 %1208
  %1210 = vrot.lane.b32.xlu0 %v838, 120
  %v1211 = vpop.permute.xlu0 %1210
  %v1214 = vsel %vm944, %v1204, 0
  %v1217 = vsel %vm972, %v1211, 0
  %1219 = vmatprep.subr.bf16.mxu0 0
  %1220 = vmatpush1.bf16.msra.mxu0 %v1209
  %1221 = vmatprep.subr.bf16.mxu0 0
  %1222 = vmatpush1.bf16.msra.mxu0 %v1217
  %1223 = vmatprep.subr.bf16.mxu0 0
  %1224 = vmatpush1.bf16.msra.mxu0 0
  %1225 = vmatprep.subr.bf16.mxu0 0
  %1226 = vmatpush1.bf16.msra.mxu0 0
  %1227 = vmatprep.subr.bf16.mxu0 0
  %1228 = vmatpush1.bf16.msra.mxu0 0
  %1229 = vmatprep.subr.bf16.mxu0 0
  %1230 = vmatpush1.bf16.msra.mxu0 0
  %1231 = vmatprep.subr.bf16.mxu0 0
  %1232 = vmatpush1.bf16.msra.mxu0 0
  %1233 = vmatprep.subr.bf16.mxu0 0
  %1234 = vmatpush1.bf16.msra.mxu0 0
  %1235 = vmatprep.subr.bf16.mxu0 0
  %1236 = vmatpush1.bf16.msra.mxu0 0
  %1237 = vmatprep.subr.bf16.mxu0 0
  %1238 = vmatpush1.bf16.msra.mxu0 0
  %1239 = vmatprep.subr.bf16.mxu0 0
  %1240 = vmatpush1.bf16.msra.mxu0 0
  %1241 = vmatprep.subr.bf16.mxu0 0
  %1242 = vmatpush1.bf16.msra.mxu0 0
  %1243 = vmatprep.subr.bf16.mxu0 0
  %1244 = vmatpush1.bf16.msra.mxu0 0
  %1245 = vmatprep.subr.bf16.mxu0 0
  %1246 = vmatpush1.bf16.msra.mxu0 0
  %1247 = vmatprep.subr.bf16.mxu0 0
  %1248 = vmatpush1.bf16.msra.mxu0 0
  %1249 = vmatprep.subr.bf16.mxu0 0
  %1250 = vmatpush1.bf16.msra.mxu0 0
  %1251 = vmatprep.mubr.bf16.mxu0 0
  %1252 = vmatmul.mubr.bf16.gmra.mrb[0].mxu0 %v1214
  %v1253 = vpop.f32.mrb[0].mxu0
  %v1254 = vadd.f32 0.0, %v1253
  %v1255 = vpop.f32.mrb[0].mxu0
  %v1256 = vpop.f32.mrb[0].mxu0
  %v1257 = vpop.f32.mrb[0].mxu0
  %1258 = vdwg.mxu0
  %1261 = vrot.lane.b32.xlu0 %v839, 120
  %v1262 = vpop.permute.xlu0 %1261
  %1263 = vrot.lane.b32.xlu0 %v840, 120
  %v1264 = vpop.permute.xlu0 %1263
  %v1267 = vsel %vm944, %v1205, 0
  %v1270 = vsel %vm972, %v1264, 0
  %1272 = vmatprep.subr.bf16.mxu0 0
  %1273 = vmatpush1.bf16.msra.mxu0 %v1262
  %1274 = vmatprep.subr.bf16.mxu0 0
  %1275 = vmatpush1.bf16.msra.mxu0 %v1270
  %1276 = vmatprep.subr.bf16.mxu0 0
  %1277 = vmatpush1.bf16.msra.mxu0 0
  %1278 = vmatprep.subr.bf16.mxu0 0
  %1279 = vmatpush1.bf16.msra.mxu0 0
  %1280 = vmatprep.subr.bf16.mxu0 0
  %1281 = vmatpush1.bf16.msra.mxu0 0
  %1282 = vmatprep.subr.bf16.mxu0 0
  %1283 = vmatpush1.bf16.msra.mxu0 0
  %1284 = vmatprep.subr.bf16.mxu0 0
  %1285 = vmatpush1.bf16.msra.mxu0 0
  %1286 = vmatprep.subr.bf16.mxu0 0
  %1287 = vmatpush1.bf16.msra.mxu0 0
  %1288 = vmatprep.subr.bf16.mxu0 0
  %1289 = vmatpush1.bf16.msra.mxu0 0
  %1290 = vmatprep.subr.bf16.mxu0 0
  %1291 = vmatpush1.bf16.msra.mxu0 0
  %1292 = vmatprep.subr.bf16.mxu0 0
  %1293 = vmatpush1.bf16.msra.mxu0 0
  %1294 = vmatprep.subr.bf16.mxu0 0
  %1295 = vmatpush1.bf16.msra.mxu0 0
  %1296 = vmatprep.subr.bf16.mxu0 0
  %1297 = vmatpush1.bf16.msra.mxu0 0
  %1298 = vmatprep.subr.bf16.mxu0 0
  %1299 = vmatpush1.bf16.msra.mxu0 0
  %1300 = vmatprep.subr.bf16.mxu0 0
  %1301 = vmatpush1.bf16.msra.mxu0 0
  %1302 = vmatprep.subr.bf16.mxu0 0
  %1303 = vmatpush1.bf16.msra.mxu0 0
  %1304 = vmatprep.mubr.bf16.mxu0 0
  %1305 = vmatmul.mubr.bf16.gmra.mrb[0].mxu0 %v1267
  %v1306 = vpop.f32.mrb[0].mxu0
  %v1307 = vadd.f32 0.0, %v1306
  %v1308 = vpop.f32.mrb[0].mxu0
  %v1309 = vpop.f32.mrb[0].mxu0
  %v1310 = vpop.f32.mrb[0].mxu0
  %1311 = vdwg.mxu0
  %1312 = vrot.lane.b32.xlu0 %v831, 112
  %v1313 = vpop.permute.xlu0 %1312
  %1314 = vrot.lane.b32.xlu0 %v833, 112
  %v1315 = vpop.permute.xlu0 %1314
  %1316 = vrot.lane.b32.xlu0 %v834, 112
  %v1317 = vpop.permute.xlu0 %1316
  %v1319 = vsel %vm841, %v1313, 0
  %v1322 = vsel %vm841, %v1315, 0
  %v1325 = vsel %vm841, %v1317, 0
  %1327 = vmatprep.subr.bf16.mxu0 0
  %1328 = vmatpush1.bf16.xpose.msra.mxu0 %v1322
  %1329 = vmatprep.subr.bf16.mxu0 0
  %1330 = vmatpush1.bf16.xpose.msra.mxu0 %v1325
  %1331 = vmatprep.subr.bf16.mxu0 0
  %1332 = vmatpush1.bf16.xpose.msra.mxu0 0
  %1333 = vmatprep.subr.bf16.mxu0 0
  %1334 = vmatpush1.bf16.xpose.msra.mxu0 0
  %1335 = vmatprep.subr.bf16.mxu0 0
  %1336 = vmatpush1.bf16.xpose.msra.mxu0 0
  %1337 = vmatprep.subr.bf16.mxu0 0
  %1338 = vmatpush1.bf16.xpose.msra.mxu0 0
  %1339 = vmatprep.subr.bf16.mxu0 0
  %1340 = vmatpush1.bf16.xpose.msra.mxu0 0
  %1341 = vmatprep.subr.bf16.mxu0 0
  %1342 = vmatpush1.bf16.xpose.msra.mxu0 0
  %1343 = vmatprep.subr.bf16.mxu0 0
  %1344 = vmatpush1.bf16.xpose.msra.mxu0 0
  %1345 = vmatprep.subr.bf16.mxu0 0
  %1346 = vmatpush1.bf16.xpose.msra.mxu0 0
  %1347 = vmatprep.subr.bf16.mxu0 0
  %1348 = vmatpush1.bf16.xpose.msra.mxu0 0
  %1349 = vmatprep.subr.bf16.mxu0 0
  %1350 = vmatpush1.bf16.xpose.msra.mxu0 0
  %1351 = vmatprep.subr.bf16.mxu0 0
  %1352 = vmatpush1.bf16.xpose.msra.mxu0 0
  %1353 = vmatprep.subr.bf16.mxu0 0
  %1354 = vmatpush1.bf16.xpose.msra.mxu0 0
  %1355 = vmatprep.subr.bf16.mxu0 0
  %1356 = vmatpush1.bf16.xpose.msra.mxu0 0
  %1357 = vmatprep.subr.bf16.mxu0 0
  %1358 = vmatpush1.bf16.xpose.msra.mxu0 0
  %1359 = vmatprep.mubr.bf16.mxu0 0
  %1360 = vmatmul.mubr.bf16.gmra.mrb[0].mxu0 %v1319
  %v1361 = vpop.f32.mrb[0].mxu0
  %v1362 = vadd.f32 0.0, %v1361
  %v1363 = vpop.f32.mrb[0].mxu0
  %v1364 = vpop.f32.mrb[0].mxu0
  %v1365 = vpop.f32.mrb[0].mxu0
  %1366 = vdwg.mxu0
  %1367 = vrot.lane.b32.xlu0 %v832, 112
  %v1368 = vpop.permute.xlu0 %1367
  %1369 = vrot.lane.b32.xlu0 %v835, 112
  %v1370 = vpop.permute.xlu0 %1369
  %1371 = vrot.lane.b32.xlu0 %v836, 112
  %v1372 = vpop.permute.xlu0 %1371
  %v1374 = vsel %vm841, %v1368, 0
  %v1377 = vsel %vm841, %v1370, 0
  %v1380 = vsel %vm841, %v1372, 0
  %1382 = vmatprep.subr.bf16.mxu0 0
  %1383 = vmatpush1.bf16.xpose.msra.mxu0 %v1377
  %1384 = vmatprep.subr.bf16.mxu0 0
  %1385 = vmatpush1.bf16.xpose.msra.mxu0 %v1380
  %1386 = vmatprep.subr.bf16.mxu0 0
  %1387 = vmatpush1.bf16.xpose.msra.mxu0 0
  %1388 = vmatprep.subr.bf16.mxu0 0
  %1389 = vmatpush1.bf16.xpose.msra.mxu0 0
  %1390 = vmatprep.subr.bf16.mxu0 0
  %1391 = vmatpush1.bf16.xpose.msra.mxu0 0
  %1392 = vmatprep.subr.bf16.mxu0 0
  %1393 = vmatpush1.bf16.xpose.msra.mxu0 0
  %1394 = vmatprep.subr.bf16.mxu0 0
  %1395 = vmatpush1.bf16.xpose.msra.mxu0 0
  %1396 = vmatprep.subr.bf16.mxu0 0
  %1397 = vmatpush1.bf16.xpose.msra.mxu0 0
  %1398 = vmatprep.subr.bf16.mxu0 0
  %1399 = vmatpush1.bf16.xpose.msra.mxu0 0
  %1400 = vmatprep.subr.bf16.mxu0 0
  %1401 = vmatpush1.bf16.xpose.msra.mxu0 0
  %1402 = vmatprep.subr.bf16.mxu0 0
  %1403 = vmatpush1.bf16.xpose.msra.mxu0 0
  %1404 = vmatprep.subr.bf16.mxu0 0
  %1405 = vmatpush1.bf16.xpose.msra.mxu0 0
  %1406 = vmatprep.subr.bf16.mxu0 0
  %1407 = vmatpush1.bf16.xpose.msra.mxu0 0
  %1408 = vmatprep.subr.bf16.mxu0 0
  %1409 = vmatpush1.bf16.xpose.msra.mxu0 0
  %1410 = vmatprep.subr.bf16.mxu0 0
  %1411 = vmatpush1.bf16.xpose.msra.mxu0 0
  %1412 = vmatprep.subr.bf16.mxu0 0
  %1413 = vmatpush1.bf16.xpose.msra.mxu0 0
  %1414 = vmatprep.mubr.bf16.mxu0 0
  %1415 = vmatmul.mubr.bf16.gmra.mrb[0].mxu0 %v1374
  %v1416 = vpop.f32.mrb[0].mxu0
  %v1417 = vadd.f32 0.0, %v1416
  %v1418 = vpop.f32.mrb[0].mxu0
  %v1419 = vpop.f32.mrb[0].mxu0
  %v1420 = vpop.f32.mrb[0].mxu0
  %1421 = vdwg.mxu0
  %v1422 = vmul.f32 %v1362, 0.35355338
  %v1423 = vmul.f32 %v1417, 0.35355338
  %v1424 = vadd.f32 %v1422, %v452
  %v1425 = vadd.f32 %v1423, %v452
  %v1426 = vsel %vm944, %v1424, -inf
  %1427 = vmax.xlane.f32.xlu0 %v1426
  %v1428 = vpop.xlane.xlu0 %1427
  %v1429 = vsel %vm944, %v1425, -inf
  %1430 = vmax.xlane.f32.xlu0 %v1429
  %v1431 = vpop.xlane.xlu0 %1430
  %v1432 = vsub.f32 %v1424, %v1428
  %v1433 = vsub.f32 %v1425, %v1431
  %v1434 = vmul.f32 %v1432, 1.442695
  %v1435 = vpow.pop %v1434
  %v1436 = vmul.f32 %v1433, 1.442695
  %v1437 = vpow.pop %v1436
  %v1438 = vsel %vm944, %v1435, 0.0
  %1439 = vadd.xlane.f32.xlu0 %v1438
  %v1440 = vpop.xlane.xlu0 %1439
  %v1441 = vsel %vm944, %v1437, 0.0
  %1442 = vadd.xlane.f32.xlu0 %v1441
  %v1443 = vpop.xlane.xlu0 %1442
  %v1444 = vrcp.pop %v1440
  %v1445 = vmul.f32 %v1435, %v1444
  %v1446 = vrcp.pop %v1443
  %v1447 = vmul.f32 %v1437, %v1446
  %v1448 = vpack.c.bf16 %v1445, %v1445
  %v1449 = vpack.c.bf16 %v1447, %v1447
  %1450 = vrot.lane.b32.xlu0 %v837, 112
  %v1451 = vpop.permute.xlu0 %1450
  %1452 = vrot.lane.b32.xlu0 %v838, 112
  %v1453 = vpop.permute.xlu0 %1452
  %v1456 = vsel %vm944, %v1448, 0
  %v1459 = vsel %vm972, %v1453, 0
  %1461 = vmatprep.subr.bf16.mxu0 0
  %1462 = vmatpush1.bf16.msra.mxu0 %v1451
  %1463 = vmatprep.subr.bf16.mxu0 0
  %1464 = vmatpush1.bf16.msra.mxu0 %v1459
  %1465 = vmatprep.subr.bf16.mxu0 0
  %1466 = vmatpush1.bf16.msra.mxu0 0
  %1467 = vmatprep.subr.bf16.mxu0 0
  %1468 = vmatpush1.bf16.msra.mxu0 0
  %1469 = vmatprep.subr.bf16.mxu0 0
  %1470 = vmatpush1.bf16.msra.mxu0 0
  %1471 = vmatprep.subr.bf16.mxu0 0
  %1472 = vmatpush1.bf16.msra.mxu0 0
  %1473 = vmatprep.subr.bf16.mxu0 0
  %1474 = vmatpush1.bf16.msra.mxu0 0
  %1475 = vmatprep.subr.bf16.mxu0 0
  %1476 = vmatpush1.bf16.msra.mxu0 0
  %1477 = vmatprep.subr.bf16.mxu0 0
  %1478 = vmatpush1.bf16.msra.mxu0 0
  %1479 = vmatprep.subr.bf16.mxu0 0
  %1480 = vmatpush1.bf16.msra.mxu0 0
  %1481 = vmatprep.subr.bf16.mxu0 0
  %1482 = vmatpush1.bf16.msra.mxu0 0
  %1483 = vmatprep.subr.bf16.mxu0 0
  %1484 = vmatpush1.bf16.msra.mxu0 0
  %1485 = vmatprep.subr.bf16.mxu0 0
  %1486 = vmatpush1.bf16.msra.mxu0 0
  %1487 = vmatprep.subr.bf16.mxu0 0
  %1488 = vmatpush1.bf16.msra.mxu0 0
  %1489 = vmatprep.subr.bf16.mxu0 0
  %1490 = vmatpush1.bf16.msra.mxu0 0
  %1491 = vmatprep.subr.bf16.mxu0 0
  %1492 = vmatpush1.bf16.msra.mxu0 0
  %1493 = vmatprep.mubr.bf16.mxu0 0
  %1494 = vmatmul.mubr.bf16.gmra.mrb[0].mxu0 %v1456
  %v1495 = vpop.f32.mrb[0].mxu0
  %v1496 = vadd.f32 0.0, %v1495
  %v1497 = vpop.f32.mrb[0].mxu0
  %v1498 = vpop.f32.mrb[0].mxu0
  %v1499 = vpop.f32.mrb[0].mxu0
  %1500 = vdwg.mxu0
  %1501 = vrot.lane.b32.xlu0 %v839, 112
  %v1502 = vpop.permute.xlu0 %1501
  %1503 = vrot.lane.b32.xlu0 %v840, 112
  %v1504 = vpop.permute.xlu0 %1503
  %v1507 = vsel %vm944, %v1449, 0
  %v1510 = vsel %vm972, %v1504, 0
  %1512 = vmatprep.subr.bf16.mxu0 0
  %1513 = vmatpush1.bf16.msra.mxu0 %v1502
  %1514 = vmatprep.subr.bf16.mxu0 0
  %1515 = vmatpush1.bf16.msra.mxu0 %v1510
  %1516 = vmatprep.subr.bf16.mxu0 0
  %1517 = vmatpush1.bf16.msra.mxu0 0
  %1518 = vmatprep.subr.bf16.mxu0 0
  %1519 = vmatpush1.bf16.msra.mxu0 0
  %1520 = vmatprep.subr.bf16.mxu0 0
  %1521 = vmatpush1.bf16.msra.mxu0 0
  %1522 = vmatprep.subr.bf16.mxu0 0
  %1523 = vmatpush1.bf16.msra.mxu0 0
  %1524 = vmatprep.subr.bf16.mxu0 0
  %1525 = vmatpush1.bf16.msra.mxu0 0
  %1526 = vmatprep.subr.bf16.mxu0 0
  %1527 = vmatpush1.bf16.msra.mxu0 0
  %1528 = vmatprep.subr.bf16.mxu0 0
  %1529 = vmatpush1.bf16.msra.mxu0 0
  %1530 = vmatprep.subr.bf16.mxu0 0
  %1531 = vmatpush1.bf16.msra.mxu0 0
  %1532 = vmatprep.subr.bf16.mxu0 0
  %1533 = vmatpush1.bf16.msra.mxu0 0
  %1534 = vmatprep.subr.bf16.mxu0 0
  %1535 = vmatpush1.bf16.msra.mxu0 0
  %1536 = vmatprep.subr.bf16.mxu0 0
  %1537 = vmatpush1.bf16.msra.mxu0 0
  %1538 = vmatprep.subr.bf16.mxu0 0
  %1539 = vmatpush1.bf16.msra.mxu0 0
  %1540 = vmatprep.subr.bf16.mxu0 0
  %1541 = vmatpush1.bf16.msra.mxu0 0
  %1542 = vmatprep.subr.bf16.mxu0 0
  %1543 = vmatpush1.bf16.msra.mxu0 0
  %1544 = vmatprep.mubr.bf16.mxu0 0
  %1545 = vmatmul.mubr.bf16.gmra.mrb[0].mxu0 %v1507
  %v1546 = vpop.f32.mrb[0].mxu0
  %v1547 = vadd.f32 0.0, %v1546
  %v1548 = vpop.f32.mrb[0].mxu0
  %v1549 = vpop.f32.mrb[0].mxu0
  %v1550 = vpop.f32.mrb[0].mxu0
  %1551 = vdwg.mxu0
  %1552 = vrot.lane.b32.xlu0 %v831, 104
  %v1553 = vpop.permute.xlu0 %1552
  %1554 = vrot.lane.b32.xlu0 %v833, 104
  %v1555 = vpop.permute.xlu0 %1554
  %1556 = vrot.lane.b32.xlu0 %v834, 104
  %v1557 = vpop.permute.xlu0 %1556
  %v1559 = vsel %vm841, %v1553, 0
  %v1562 = vsel %vm841, %v1555, 0
  %v1565 = vsel %vm841, %v1557, 0
  %1567 = vmatprep.subr.bf16.mxu0 0
  %1568 = vmatpush1.bf16.xpose.msra.mxu0 %v1562
  %1569 = vmatprep.subr.bf16.mxu0 0
  %1570 = vmatpush1.bf16.xpose.msra.mxu0 %v1565
  %1571 = vmatprep.subr.bf16.mxu0 0
  %1572 = vmatpush1.bf16.xpose.msra.mxu0 0
  %1573 = vmatprep.subr.bf16.mxu0 0
  %1574 = vmatpush1.bf16.xpose.msra.mxu0 0
  %1575 = vmatprep.subr.bf16.mxu0 0
  %1576 = vmatpush1.bf16.xpose.msra.mxu0 0
  %1577 = vmatprep.subr.bf16.mxu0 0
  %1578 = vmatpush1.bf16.xpose.msra.mxu0 0
  %1579 = vmatprep.subr.bf16.mxu0 0
  %1580 = vmatpush1.bf16.xpose.msra.mxu0 0
  %1581 = vmatprep.subr.bf16.mxu0 0
  %1582 = vmatpush1.bf16.xpose.msra.mxu0 0
  %1583 = vmatprep.subr.bf16.mxu0 0
  %1584 = vmatpush1.bf16.xpose.msra.mxu0 0
  %1585 = vmatprep.subr.bf16.mxu0 0
  %1586 = vmatpush1.bf16.xpose.msra.mxu0 0
  %1587 = vmatprep.subr.bf16.mxu0 0
  %1588 = vmatpush1.bf16.xpose.msra.mxu0 0
  %1589 = vmatprep.subr.bf16.mxu0 0
  %1590 = vmatpush1.bf16.xpose.msra.mxu0 0
  %1591 = vmatprep.subr.bf16.mxu0 0
  %1592 = vmatpush1.bf16.xpose.msra.mxu0 0
  %1593 = vmatprep.subr.bf16.mxu0 0
  %1594 = vmatpush1.bf16.xpose.msra.mxu0 0
  %1595 = vmatprep.subr.bf16.mxu0 0
  %1596 = vmatpush1.bf16.xpose.msra.mxu0 0
  %1597 = vmatprep.subr.bf16.mxu0 0
  %1598 = vmatpush1.bf16.xpose.msra.mxu0 0
  %1599 = vmatprep.mubr.bf16.mxu0 0
  %1600 = vmatmul.mubr.bf16.gmra.mrb[0].mxu0 %v1559
  %v1601 = vpop.f32.mrb[0].mxu0
  %v1602 = vadd.f32 0.0, %v1601
  %v1603 = vpop.f32.mrb[0].mxu0
  %v1604 = vpop.f32.mrb[0].mxu0
  %v1605 = vpop.f32.mrb[0].mxu0
  %1606 = vdwg.mxu0
  %1607 = vrot.lane.b32.xlu0 %v832, 104
  %v1608 = vpop.permute.xlu0 %1607
  %1609 = vrot.lane.b32.xlu0 %v835, 104
  %v1610 = vpop.permute.xlu0 %1609
  %1611 = vrot.lane.b32.xlu0 %v836, 104
  %v1612 = vpop.permute.xlu0 %1611
  %v1614 = vsel %vm841, %v1608, 0
  %v1617 = vsel %vm841, %v1610, 0
  %v1620 = vsel %vm841, %v1612, 0
  %1622 = vmatprep.subr.bf16.mxu0 0
  %1623 = vmatpush1.bf16.xpose.msra.mxu0 %v1617
  %1624 = vmatprep.subr.bf16.mxu0 0
  %1625 = vmatpush1.bf16.xpose.msra.mxu0 %v1620
  %1626 = vmatprep.subr.bf16.mxu0 0
  %1627 = vmatpush1.bf16.xpose.msra.mxu0 0
  %1628 = vmatprep.subr.bf16.mxu0 0
  %1629 = vmatpush1.bf16.xpose.msra.mxu0 0
  %1630 = vmatprep.subr.bf16.mxu0 0
  %1631 = vmatpush1.bf16.xpose.msra.mxu0 0
  %1632 = vmatprep.subr.bf16.mxu0 0
  %1633 = vmatpush1.bf16.xpose.msra.mxu0 0
  %1634 = vmatprep.subr.bf16.mxu0 0
  %1635 = vmatpush1.bf16.xpose.msra.mxu0 0
  %1636 = vmatprep.subr.bf16.mxu0 0
  %1637 = vmatpush1.bf16.xpose.msra.mxu0 0
  %1638 = vmatprep.subr.bf16.mxu0 0
  %1639 = vmatpush1.bf16.xpose.msra.mxu0 0
  %1640 = vmatprep.subr.bf16.mxu0 0
  %1641 = vmatpush1.bf16.xpose.msra.mxu0 0
  %1642 = vmatprep.subr.bf16.mxu0 0
  %1643 = vmatpush1.bf16.xpose.msra.mxu0 0
  %1644 = vmatprep.subr.bf16.mxu0 0
  %1645 = vmatpush1.bf16.xpose.msra.mxu0 0
  %1646 = vmatprep.subr.bf16.mxu0 0
  %1647 = vmatpush1.bf16.xpose.msra.mxu0 0
  %1648 = vmatprep.subr.bf16.mxu0 0
  %1649 = vmatpush1.bf16.xpose.msra.mxu0 0
  %1650 = vmatprep.subr.bf16.mxu0 0
  %1651 = vmatpush1.bf16.xpose.msra.mxu0 0
  %1652 = vmatprep.subr.bf16.mxu0 0
  %1653 = vmatpush1.bf16.xpose.msra.mxu0 0
  %1654 = vmatprep.mubr.bf16.mxu0 0
  %1655 = vmatmul.mubr.bf16.gmra.mrb[0].mxu0 %v1614
  %v1656 = vpop.f32.mrb[0].mxu0
  %v1657 = vadd.f32 0.0, %v1656
  %v1658 = vpop.f32.mrb[0].mxu0
  %v1659 = vpop.f32.mrb[0].mxu0
  %v1660 = vpop.f32.mrb[0].mxu0
  %1661 = vdwg.mxu0
  %v1662 = vmul.f32 %v1602, 0.35355338
  %v1663 = vmul.f32 %v1657, 0.35355338
  %v1664 = vadd.f32 %v1662, %v452
  %v1665 = vadd.f32 %v1663, %v452
  %v1666 = vsel %vm944, %v1664, -inf
  %1667 = vmax.xlane.f32.xlu0 %v1666
  %v1668 = vpop.xlane.xlu0 %1667
  %v1669 = vsel %vm944, %v1665, -inf
  %1670 = vmax.xlane.f32.xlu0 %v1669
  %v1671 = vpop.xlane.xlu0 %1670
  %v1672 = vsub.f32 %v1664, %v1668
  %v1673 = vsub.f32 %v1665, %v1671
  %v1674 = vmul.f32 %v1672, 1.442695
  %v1675 = vpow.pop %v1674
  %v1676 = vmul.f32 %v1673, 1.442695
  %v1677 = vpow.pop %v1676
  %v1678 = vsel %vm944, %v1675, 0.0
  %1679 = vadd.xlane.f32.xlu0 %v1678
  %v1680 = vpop.xlane.xlu0 %1679
  %v1681 = vsel %vm944, %v1677, 0.0
  %1682 = vadd.xlane.f32.xlu0 %v1681
  %v1683 = vpop.xlane.xlu0 %1682
  %v1684 = vrcp.pop %v1680
  %v1685 = vmul.f32 %v1675, %v1684
  %v1686 = vrcp.pop %v1683
  %v1687 = vmul.f32 %v1677, %v1686
  %v1688 = vpack.c.bf16 %v1685, %v1685
  %v1689 = vpack.c.bf16 %v1687, %v1687
  %1690 = vrot.lane.b32.xlu0 %v837, 104
  %v1691 = vpop.permute.xlu0 %1690
  %1692 = vrot.lane.b32.xlu0 %v838, 104
  %v1693 = vpop.permute.xlu0 %1692
  %v1696 = vsel %vm944, %v1688, 0
  %v1699 = vsel %vm972, %v1693, 0
  %1701 = vmatprep.subr.bf16.mxu0 0
  %1702 = vmatpush1.bf16.msra.mxu0 %v1691
  %1703 = vmatprep.subr.bf16.mxu0 0
  %1704 = vmatpush1.bf16.msra.mxu0 %v1699
  %1705 = vmatprep.subr.bf16.mxu0 0
  %1706 = vmatpush1.bf16.msra.mxu0 0
  %1707 = vmatprep.subr.bf16.mxu0 0
  %1708 = vmatpush1.bf16.msra.mxu0 0
  %1709 = vmatprep.subr.bf16.mxu0 0
  %1710 = vmatpush1.bf16.msra.mxu0 0
  %1711 = vmatprep.subr.bf16.mxu0 0
  %1712 = vmatpush1.bf16.msra.mxu0 0
  %1713 = vmatprep.subr.bf16.mxu0 0
  %1714 = vmatpush1.bf16.msra.mxu0 0
  %1715 = vmatprep.subr.bf16.mxu0 0
  %1716 = vmatpush1.bf16.msra.mxu0 0
  %1717 = vmatprep.subr.bf16.mxu0 0
  %1718 = vmatpush1.bf16.msra.mxu0 0
  %1719 = vmatprep.subr.bf16.mxu0 0
  %1720 = vmatpush1.bf16.msra.mxu0 0
  %1721 = vmatprep.subr.bf16.mxu0 0
  %1722 = vmatpush1.bf16.msra.mxu0 0
  %1723 = vmatprep.subr.bf16.mxu0 0
  %1724 = vmatpush1.bf16.msra.mxu0 0
  %1725 = vmatprep.subr.bf16.mxu0 0
  %1726 = vmatpush1.bf16.msra.mxu0 0
  %1727 = vmatprep.subr.bf16.mxu0 0
  %1728 = vmatpush1.bf16.msra.mxu0 0
  %1729 = vmatprep.subr.bf16.mxu0 0
  %1730 = vmatpush1.bf16.msra.mxu0 0
  %1731 = vmatprep.subr.bf16.mxu0 0
  %1732 = vmatpush1.bf16.msra.mxu0 0
  %1733 = vmatprep.mubr.bf16.mxu0 0
  %1734 = vmatmul.mubr.bf16.gmra.mrb[0].mxu0 %v1696
  %v1735 = vpop.f32.mrb[0].mxu0
  %v1736 = vadd.f32 0.0, %v1735
  %v1737 = vpop.f32.mrb[0].mxu0
  %v1738 = vpop.f32.mrb[0].mxu0
  %v1739 = vpop.f32.mrb[0].mxu0
  %1740 = vdwg.mxu0
  %1741 = vrot.lane.b32.xlu0 %v839, 104
  %v1742 = vpop.permute.xlu0 %1741
  %1743 = vrot.lane.b32.xlu0 %v840, 104
  %v1744 = vpop.permute.xlu0 %1743
  %v1747 = vsel %vm944, %v1689, 0
  %v1750 = vsel %vm972, %v1744, 0
  %1752 = vmatprep.subr.bf16.mxu0 0
  %1753 = vmatpush1.bf16.msra.mxu0 %v1742
  %1754 = vmatprep.subr.bf16.mxu0 0
  %1755 = vmatpush1.bf16.msra.mxu0 %v1750
  %1756 = vmatprep.subr.bf16.mxu0 0
  %1757 = vmatpush1.bf16.msra.mxu0 0
  %1758 = vmatprep.subr.bf16.mxu0 0
  %1759 = vmatpush1.bf16.msra.mxu0 0
  %1760 = vmatprep.subr.bf16.mxu0 0
  %1761 = vmatpush1.bf16.msra.mxu0 0
  %1762 = vmatprep.subr.bf16.mxu0 0
  %1763 = vmatpush1.bf16.msra.mxu0 0
  %1764 = vmatprep.subr.bf16.mxu0 0
  %1765 = vmatpush1.bf16.msra.mxu0 0
  %1766 = vmatprep.subr.bf16.mxu0 0
  %1767 = vmatpush1.bf16.msra.mxu0 0
  %1768 = vmatprep.subr.bf16.mxu0 0
  %1769 = vmatpush1.bf16.msra.mxu0 0
  %1770 = vmatprep.subr.bf16.mxu0 0
  %1771 = vmatpush1.bf16.msra.mxu0 0
  %1772 = vmatprep.subr.bf16.mxu0 0
  %1773 = vmatpush1.bf16.msra.mxu0 0
  %1774 = vmatprep.subr.bf16.mxu0 0
  %1775 = vmatpush1.bf16.msra.mxu0 0
  %1776 = vmatprep.subr.bf16.mxu0 0
  %1777 = vmatpush1.bf16.msra.mxu0 0
  %1778 = vmatprep.subr.bf16.mxu0 0
  %1779 = vmatpush1.bf16.msra.mxu0 0
  %1780 = vmatprep.subr.bf16.mxu0 0
  %1781 = vmatpush1.bf16.msra.mxu0 0
  %1782 = vmatprep.subr.bf16.mxu0 0
  %1783 = vmatpush1.bf16.msra.mxu0 0
  %1784 = vmatprep.mubr.bf16.mxu0 0
  %1785 = vmatmul.mubr.bf16.gmra.mrb[0].mxu0 %v1747
  %v1786 = vpop.f32.mrb[0].mxu0
  %v1787 = vadd.f32 0.0, %v1786
  %v1788 = vpop.f32.mrb[0].mxu0
  %v1789 = vpop.f32.mrb[0].mxu0
  %v1790 = vpop.f32.mrb[0].mxu0
  %1791 = vdwg.mxu0
  %1794 = vrot.lane.b32.xlu0 %v1254, 8
  %v1795 = vpop.permute.xlu0 %1794
  %1796 = vrot.lane.b32.xlu0 %v1307, 8
  %v1797 = vpop.permute.xlu0 %1796
  %1802 = vrot.lane.b32.xlu0 %v1496, 16
  %v1803 = vpop.permute.xlu0 %1802
  %1804 = vrot.lane.b32.xlu0 %v1547, 16
  %v1805 = vpop.permute.xlu0 %1804
  %1810 = vrot.lane.b32.xlu0 %v1736, 24
  %v1811 = vpop.permute.xlu0 %1810
  %1812 = vrot.lane.b32.xlu0 %v1787, 24
  %v1813 = vpop.permute.xlu0 %1812
  %v1816 = vsel %vm841, %v1011, %v1795
  %v1817 = vsel %vm841, %v1057, %v1797
  %vm1818 = vcmask 130048
  %v1819 = vsel %vm1818, %v1816, %v1803
  %v1820 = vsel %vm1818, %v1817, %v1805
  %v1821 = vsel %vm944, %v1819, %v1811
  %v1822 = vsel %vm944, %v1820, %v1813
  %v1823 = vpack.c.bf16 %v1821, %v1821
  %v1824 = vpack.c.bf16 %v1822, %v1822
  %v1827 = vunpack.c.l.b16 %v1823
  %v1828 = vunpack.c.l.b16 %v1824
  %v1829 = vpack.c.b16 %v1828, %v1827
  %v1830 = vunpack.c.h.b16 %v485
  %v1831 = vunpack.c.h.b16 %v488
  %v1832 = vunpack.c.h.b16 %v491
  %v1833 = vunpack.c.h.b16 %v494
  %v1834 = vpack.c.b16 %v1831, %v1830
  %v1835 = vpack.c.b16 %v1833, %v1832
  %v1839 = vsel %vm514, %v1829, 0
  %1841 = vmatprep.subr.bf16.mxu0 0
  %1842 = vmatpush1.bf16.msra.mxu0 %v1834
  %1843 = vmatprep.subr.bf16.mxu0 0
  %1844 = vmatpush1.bf16.msra.mxu0 %v1835
  %1845 = vmatprep.subr.bf16.mxu0 0
  %1846 = vmatpush1.bf16.msra.mxu0 0
  %1847 = vmatprep.subr.bf16.mxu0 0
  %1848 = vmatpush1.bf16.msra.mxu0 0
  %1849 = vmatprep.subr.bf16.mxu0 0
  %1850 = vmatpush1.bf16.msra.mxu0 0
  %1851 = vmatprep.subr.bf16.mxu0 0
  %1852 = vmatpush1.bf16.msra.mxu0 0
  %1853 = vmatprep.subr.bf16.mxu0 0
  %1854 = vmatpush1.bf16.msra.mxu0 0
  %1855 = vmatprep.subr.bf16.mxu0 0
  %1856 = vmatpush1.bf16.msra.mxu0 0
  %1857 = vmatprep.subr.bf16.mxu0 0
  %1858 = vmatpush1.bf16.msra.mxu0 0
  %1859 = vmatprep.subr.bf16.mxu0 0
  %1860 = vmatpush1.bf16.msra.mxu0 0
  %1861 = vmatprep.subr.bf16.mxu0 0
  %1862 = vmatpush1.bf16.msra.mxu0 0
  %1863 = vmatprep.subr.bf16.mxu0 0
  %1864 = vmatpush1.bf16.msra.mxu0 0
  %1865 = vmatprep.subr.bf16.mxu0 0
  %1866 = vmatpush1.bf16.msra.mxu0 0
  %1867 = vmatprep.subr.bf16.mxu0 0
  %1868 = vmatpush1.bf16.msra.mxu0 0
  %1869 = vmatprep.subr.bf16.mxu0 0
  %1870 = vmatpush1.bf16.msra.mxu0 0
  %1871 = vmatprep.subr.bf16.mxu0 0
  %1872 = vmatpush1.bf16.msra.mxu0 0
  %1873 = vmatprep.mubr.bf16.mxu0 0
  %1874 = vmatmul.mubr.bf16.gmra.mrb[0].mxu0 %v1839
  %v1875 = vpop.f32.mrb[0].mxu0
  %v1876 = vadd.f32 0.0, %v1875
  %v1877 = vpop.f32.mrb[0].mxu0
  %v1878 = vpop.f32.mrb[0].mxu0
  %v1879 = vadd.f32 0.0, %v1878
  %v1880 = vpop.f32.mrb[0].mxu0
  %1881 = vdwg.mxu0
  %v1882 = vadd.f32 %v358, %v1876
  %v1883 = vadd.f32 %v359, %v1879
  %v1884 = vlaneseq
  %v1885 = vshrl.u32 %v1884, 7
  %v1886 = vsub.s32 7, %v1885
  %v1887 = vrot.slane %v512, %v1886
  %v1888 = vadd.f32 %v1882, %v1887
  %v1889 = vadd.f32 %v1883, %v1887
  %v1890 = vsel %vm514, %v1888, 0.0
  %1891 = vadd.xlane.f32.xlu0 %v1890
  %v1892 = vpop.xlane.xlu0 %1891
  %v1893 = vsel %vm514, %v1889, 0.0
  %1894 = vadd.xlane.f32.xlu0 %v1893
  %v1895 = vpop.xlane.xlu0 %1894
  %v1896 = vmul.f32 %v1892, %v527
  %v1897 = vmul.f32 %v1895, %v527
  %v1898 = vsub.f32 %v1888, %v1896
  %v1899 = vsub.f32 %v1889, %v1897
  %v1900 = vmul.f32 %v1898, %v1898
  %v1901 = vmul.f32 %v1899, %v1899
  %v1902 = vsel %vm514, %v1900, 0.0
  %1903 = vadd.xlane.f32.xlu0 %v1902
  %v1904 = vpop.xlane.xlu0 %1903
  %v1905 = vsel %vm514, %v1901, 0.0
  %1906 = vadd.xlane.f32.xlu0 %v1905
  %v1907 = vpop.xlane.xlu0 %1906
  %v1908 = vmul.f32 %v1904, %v527
  %v1909 = vmul.f32 %v1907, %v527
  %v1910 = vadd.f32 %v1908, 1e-05
  %v1911 = vadd.f32 %v1909, 1e-05
  %v1912 = vrsqrt.pop %v1910
  %v1913 = vrsqrt.pop %v1911
  %v1914 = vmul.f32 %v1898, %v1912
  %v1915 = vmul.f32 %v1899, %v1913
  %v1916 = vlaneseq
  %v1917 = vshrl.u32 %v1916, 7
  %v1918 = vsub.s32 2, %v1917
  %v1919 = vrot.slane %v512, %v1918
  %v1920 = vmul.f32 %v1914, %v1919
  %v1921 = vmul.f32 %v1915, %v1919
  %v1922 = vlaneseq
  %v1923 = vshrl.u32 %v1922, 7
  %v1924 = vsub.s32 3, %v1923
  %v1925 = vrot.slane %v512, %v1924
  %v1926 = vadd.f32 %v1920, %v1925
  %v1927 = vadd.f32 %v1921, %v1925
  %v1928 = vpack.c.bf16 %v1926, %v1926
  %v1929 = vpack.c.bf16 %v1927, %v1927
  %v1932 = vunpack.c.l.b16 %v1928
  %v1933 = vunpack.c.l.b16 %v1929
  %v1934 = vpack.c.b16 %v1933, %v1932
  %v1939 = vunpack.c.l.b16 %v486
  %v1940 = vunpack.c.l.b16 %v489
  %v1941 = vunpack.c.l.b16 %v492
  %v1942 = vunpack.c.l.b16 %v495
  %v1943 = vpack.c.b16 %v1940, %v1939
  %v1944 = vpack.c.b16 %v1942, %v1941
  %v1948 = vsel %vm514, %v1934, 0
  %1950 = vmatprep.subr.bf16.mxu0 0
  %1951 = vmatpush1.bf16.msra.mxu0 %v1943
  %1952 = vmatprep.subr.bf16.mxu0 0
  %1953 = vmatpush1.bf16.msra.mxu0 %v1944
  %1954 = vmatprep.subr.bf16.mxu0 0
  %1955 = vmatpush1.bf16.msra.mxu0 0
  %1956 = vmatprep.subr.bf16.mxu0 0
  %1957 = vmatpush1.bf16.msra.mxu0 0
  %1958 = vmatprep.subr.bf16.mxu0 0
  %1959 = vmatpush1.bf16.msra.mxu0 0
  %1960 = vmatprep.subr.bf16.mxu0 0
  %1961 = vmatpush1.bf16.msra.mxu0 0
  %1962 = vmatprep.subr.bf16.mxu0 0
  %1963 = vmatpush1.bf16.msra.mxu0 0
  %1964 = vmatprep.subr.bf16.mxu0 0
  %1965 = vmatpush1.bf16.msra.mxu0 0
  %1966 = vmatprep.subr.bf16.mxu0 0
  %1967 = vmatpush1.bf16.msra.mxu0 0
  %1968 = vmatprep.subr.bf16.mxu0 0
  %1969 = vmatpush1.bf16.msra.mxu0 0
  %1970 = vmatprep.subr.bf16.mxu0 0
  %1971 = vmatpush1.bf16.msra.mxu0 0
  %1972 = vmatprep.subr.bf16.mxu0 0
  %1973 = vmatpush1.bf16.msra.mxu0 0
  %1974 = vmatprep.subr.bf16.mxu0 0
  %1975 = vmatpush1.bf16.msra.mxu0 0
  %1976 = vmatprep.subr.bf16.mxu0 0
  %1977 = vmatpush1.bf16.msra.mxu0 0
  %1978 = vmatprep.subr.bf16.mxu0 0
  %1979 = vmatpush1.bf16.msra.mxu0 0
  %1980 = vmatprep.subr.bf16.mxu0 0
  %1981 = vmatpush1.bf16.msra.mxu0 0
  %1982 = vmatprep.mubr.bf16.mxu0 0
  %1983 = vmatmul.mubr.bf16.gmra.mrb[0].mxu0 %v1948
  %v1984 = vpop.f32.mrb[0].mxu0
  %v1985 = vadd.f32 0.0, %v1984
  %v1986 = vpop.f32.mrb[0].mxu0
  %v1987 = vpop.f32.mrb[0].mxu0
  %v1988 = vadd.f32 0.0, %v1987
  %v1989 = vpop.f32.mrb[0].mxu0
  %1990 = vdwg.mxu0
  %v1991 = vlaneseq
  %v1992 = vshrl.u32 %v1991, 7
  %v1993 = vsub.s32 0, %v1992
  %v1994 = vrot.slane %v513, %v1993
  %v1995 = vadd.f32 %v1985, %v1994
  %v1996 = vadd.f32 %v1988, %v1994
  %v1997 = vmul.f32 %v1995, %v1995
  %v1998 = vmul.f32 %v1996, %v1996
  %v1999 = vmul.f32 %v1995, %v1997
  %v2000 = vmul.f32 %v1996, %v1998
  %v2001 = vmul.f32 %v1999, 0.044715
  %v2002 = vmul.f32 %v2000, 0.044715
  %v2003 = vadd.f32 %v1995, %v2001
  %v2004 = vadd.f32 %v1996, %v2002
  %v2005 = vmul.f32 %v2003, 0.7978846
  %v2006 = vmul.f32 %v2004, 0.7978846
  %v2007 = vtanh.pop %v2005
  %v2008 = vtanh.pop %v2006
  %v2009 = vadd.f32 %v2007, 1.0
  %v2010 = vadd.f32 %v2008, 1.0
  %v2011 = vmul.f32 %v2009, 0.5
  %v2012 = vmul.f32 %v2010, 0.5
  %v2013 = vmul.f32 %v1995, %v2011
  %v2014 = vmul.f32 %v1996, %v2012
  %v2015 = vpack.c.bf16 %v2013, %v2013
  %v2016 = vpack.c.bf16 %v2014, %v2014
  %v2019 = vunpack.c.l.b16 %v2015
  %v2020 = vunpack.c.l.b16 %v2016
  %v2021 = vpack.c.b16 %v2020, %v2019
  %v2039 = vunpack.c.l.b16 %v496
  %v2040 = vunpack.c.l.b16 %v497
  %v2041 = vunpack.c.l.b16 %v498
  %v2042 = vunpack.c.l.b16 %v499
  %v2043 = vunpack.c.l.b16 %v500
  %v2044 = vunpack.c.l.b16 %v501
  %v2045 = vunpack.c.l.b16 %v502
  %v2046 = vunpack.c.l.b16 %v503
  %v2047 = vunpack.c.l.b16 %v504
  %v2048 = vunpack.c.l.b16 %v505
  %v2049 = vunpack.c.l.b16 %v506
  %v2050 = vunpack.c.l.b16 %v507
  %v2051 = vunpack.c.l.b16 %v508
  %v2052 = vunpack.c.l.b16 %v509
  %v2053 = vunpack.c.l.b16 %v510
  %v2054 = vunpack.c.l.b16 %v511
  %v2055 = vpack.c.b16 %v2040, %v2039
  %v2056 = vpack.c.b16 %v2042, %v2041
  %v2057 = vpack.c.b16 %v2044, %v2043
  %v2058 = vpack.c.b16 %v2046, %v2045
  %v2059 = vpack.c.b16 %v2048, %v2047
  %v2060 = vpack.c.b16 %v2050, %v2049
  %v2061 = vpack.c.b16 %v2052, %v2051
  %v2062 = vpack.c.b16 %v2054, %v2053
  %2071 = vmatprep.subr.bf16.mxu0 0
  %2072 = vmatpush1.bf16.msra.mxu0 %v2055
  %2073 = vmatprep.subr.bf16.mxu0 0
  %2074 = vmatpush1.bf16.msra.mxu0 %v2056
  %2075 = vmatprep.subr.bf16.mxu0 0
  %2076 = vmatpush1.bf16.msra.mxu0 %v2057
  %2077 = vmatprep.subr.bf16.mxu0 0
  %2078 = vmatpush1.bf16.msra.mxu0 %v2058
  %2079 = vmatprep.subr.bf16.mxu0 0
  %2080 = vmatpush1.bf16.msra.mxu0 %v2059
  %2081 = vmatprep.subr.bf16.mxu0 0
  %2082 = vmatpush1.bf16.msra.mxu0 %v2060
  %2083 = vmatprep.subr.bf16.mxu0 0
  %2084 = vmatpush1.bf16.msra.mxu0 %v2061
  %2085 = vmatprep.subr.bf16.mxu0 0
  %2086 = vmatpush1.bf16.msra.mxu0 %v2062
  %2087 = vmatprep.subr.bf16.mxu0 0
  %2088 = vmatpush1.bf16.msra.mxu0 0
  %2089 = vmatprep.subr.bf16.mxu0 0
  %2090 = vmatpush1.bf16.msra.mxu0 0
  %2091 = vmatprep.subr.bf16.mxu0 0
  %2092 = vmatpush1.bf16.msra.mxu0 0
  %2093 = vmatprep.subr.bf16.mxu0 0
  %2094 = vmatpush1.bf16.msra.mxu0 0
  %2095 = vmatprep.subr.bf16.mxu0 0
  %2096 = vmatpush1.bf16.msra.mxu0 0
  %2097 = vmatprep.subr.bf16.mxu0 0
  %2098 = vmatpush1.bf16.msra.mxu0 0
  %2099 = vmatprep.subr.bf16.mxu0 0
  %2100 = vmatpush1.bf16.msra.mxu0 0
  %2101 = vmatprep.subr.bf16.mxu0 0
  %2102 = vmatpush1.bf16.msra.mxu0 0
  %2103 = vmatprep.mubr.bf16.mxu0 0
  %2104 = vmatmul.mubr.bf16.gmra.mrb[0].mxu0 %v2021
  %v2105 = vpop.f32.mrb[0].mxu0
  %v2106 = vadd.f32 0.0, %v2105
  %v2107 = vpop.f32.mrb[0].mxu0
  %v2108 = vpop.f32.mrb[0].mxu0
  %v2109 = vadd.f32 0.0, %v2108
  %v2110 = vpop.f32.mrb[0].mxu0
  %2111 = vdwg.mxu0
  %v2112 = vadd.f32 %v1888, %v2106
  %v2113 = vadd.f32 %v1889, %v2109
  %v2114 = vlaneseq
  %v2115 = vshrl.u32 %v2114, 7
  %v2116 = vsub.s32 1, %v2115
  %v2117 = vrot.slane %v513, %v2116
  %v2118 = vadd.f32 %v2112, %v2117
  %v2119 = vadd.f32 %v2113, %v2117
  %s2120 = scalar_lea.vmem %s4, 80
  %v2121 = vld [vmem:[%s2120] sm:$0xff]
  %v2122 = vld [vmem:[%s2120 + $0x8] sm:$0xff]
  %v2123 = vld [vmem:[%s2120 + $0x10] sm:$0xf]
  %v2124 = vld [vmem:[%s2120 + $0x14] sm:$0xff]
  %v2125 = vld [vmem:[%s2120 + $0x1c] sm:$0xff]
  %v2126 = vld [vmem:[%s2120 + $0x24] sm:$0xf]
  %v2127 = vld [vmem:[%s2120 + $0x28] sm:$0xff]
  %v2128 = vld [vmem:[%s2120 + $0x30] sm:$0xff]
  %v2129 = vld [vmem:[%s2120 + $0x38] sm:$0xf]
  %v2130 = vld [vmem:[%s2120 + $0x3c] sm:$0xff]
  %v2131 = vld [vmem:[%s2120 + $0x44] sm:$0xff]
  %v2132 = vld [vmem:[%s2120 + $0x4c] sm:$0xf]
  %s2133 = scalar_lea.vmem %s5, 64
  %v2134 = vld [vmem:[%s2133] sm:$0xf]
  %v2135 = vld [vmem:[%s2133 + $0x4] sm:$0xf]
  %v2136 = vld [vmem:[%s2133 + $0x8] sm:$0xf]
  %v2137 = vld [vmem:[%s2133 + $0xc] sm:$0xf]
  %v2138 = vld [vmem:[%s2133 + $0x10] sm:$0xf]
  %v2139 = vld [vmem:[%s2133 + $0x14] sm:$0xf]
  %v2140 = vld [vmem:[%s2133 + $0x18] sm:$0xf]
  %v2141 = vld [vmem:[%s2133 + $0x1c] sm:$0xf]
  %v2142 = vld [vmem:[%s2133 + $0x20] sm:$0xf]
  %v2143 = vld [vmem:[%s2133 + $0x24] sm:$0xf]
  %v2144 = vld [vmem:[%s2133 + $0x28] sm:$0xf]
  %v2145 = vld [vmem:[%s2133 + $0x2c] sm:$0xf]
  %v2146 = vld [vmem:[%s2133 + $0x30] sm:$0xf]
  %v2147 = vld [vmem:[%s2133 + $0x34] sm:$0xf]
  %v2148 = vld [vmem:[%s2133 + $0x38] sm:$0xf]
  %v2149 = vld [vmem:[%s2133 + $0x3c] sm:$0xf]
  %s2150 = scalar_lea.vmem %s6, 16
  %v2151 = vld [vmem:[%s2150] sm:$0xff]
  %v2152 = vld [vmem:[%s2150 + $0x8] sm:$0x3]
  %vm2153 = vcmask 257024
  %v2154 = vsel %vm2153, %v445, 0.0
  %2155 = vadd.xlane.f32.xlu0 %v2154
  %v2156 = vpop.xlane.xlu0 %2155
  %v2157 = vsel %vm2153, %v446, 0.0
  %2158 = vadd.xlane.f32.xlu0 %v2157
  %v2159 = vpop.xlane.xlu0 %2158
  %v2160 = vmul.f32 %v2156, %v527
  %v2161 = vmul.f32 %v2159, %v527
  %v2162 = vsub.f32 %v445, %v2160
  %v2163 = vsub.f32 %v446, %v2161
  %v2164 = vmul.f32 %v2162, %v2162
  %v2165 = vmul.f32 %v2163, %v2163
  %v2166 = vsel %vm2153, %v2164, 0.0
  %2167 = vadd.xlane.f32.xlu0 %v2166
  %v2168 = vpop.xlane.xlu0 %2167
  %v2169 = vsel %vm2153, %v2165, 0.0
  %2170 = vadd.xlane.f32.xlu0 %v2169
  %v2171 = vpop.xlane.xlu0 %2170
  %v2172 = vmul.f32 %v2168, %v527
  %v2173 = vmul.f32 %v2171, %v527
  %v2174 = vadd.f32 %v2172, 1e-05
  %v2175 = vadd.f32 %v2173, 1e-05
  %v2176 = vrsqrt.pop %v2174
  %v2177 = vrsqrt.pop %v2175
  %v2178 = vmul.f32 %v2162, %v2176
  %v2179 = vmul.f32 %v2163, %v2177
  %v2180 = vlaneseq
  %v2181 = vshrl.u32 %v2180, 7
  %v2182 = vsub.s32 0, %v2181
  %v2183 = vrot.slane %v2151, %v2182
  %v2184 = vmul.f32 %v564, %v2183
  %v2185 = vmul.f32 %v565, %v2183
  %v2186 = vmul.f32 %v2178, %v2183
  %v2187 = vmul.f32 %v2179, %v2183
  %v2188 = vlaneseq
  %v2189 = vshrl.u32 %v2188, 7
  %v2190 = vsub.s32 1, %v2189
  %v2191 = vrot.slane %v2151, %v2190
  %v2192 = vadd.f32 %v2184, %v2191
  %v2193 = vadd.f32 %v2185, %v2191
  %v2194 = vadd.f32 %v2186, %v2191
  %v2195 = vadd.f32 %v2187, %v2191
  %v2196 = vpack.c.bf16 %v2193, %v2192
  %v2197 = vpack.c.bf16 %v2194, %v2194
  %v2198 = vpack.c.bf16 %v2195, %v2195
  %v2202 = vcombine.high %v2196, %v2196
  %v2204 = vunpack.c.l.s4 1983009808
  %v2205 = vunpack.c.0.s8 %v2204
  %v2206 = vlaneseq
  %v2207 = vshrl.u32 %v2206, 7
  %v2208 = vsub.s32 %v2205, %v2207
  %v2209 = vrot.slane %v2196, %v2208
  %v2211 = vunpack.c.l.s4 1983009808
  %v2212 = vunpack.c.0.s8 %v2211
  %v2213 = vlaneseq
  %v2214 = vshrl.u32 %v2213, 7
  %v2215 = vsub.s32 %v2212, %v2214
  %v2216 = vrot.slane %v2202, %v2215
  %v2217 = vcombine.high %v2209, %v2209
  %v2218 = vcombine.high %v2216, %v2216
  %v2220 = vunpack.c.l.s4 1983009808
  %v2221 = vunpack.c.0.s8 %v2220
  %v2222 = vlaneseq
  %v2223 = vshrl.u32 %v2222, 7
  %v2224 = vsub.s32 %v2221, %v2223
  %v2225 = vrot.slane %v2197, %v2224
  %v2227 = vunpack.c.l.s4 1983009808
  %v2228 = vunpack.c.0.s8 %v2227
  %v2229 = vlaneseq
  %v2230 = vshrl.u32 %v2229, 7
  %v2231 = vsub.s32 %v2228, %v2230
  %v2232 = vrot.slane %v2198, %v2231
  %v2233 = vcombine.low %v2209, %v2217
  %v2234 = vcombine.low %v2216, %v2218
  %v2236 = vunpack.c.l.s4 1983009808
  %v2237 = vunpack.c.0.s8 %v2236
  %v2238 = vlaneseq
  %v2239 = vshrl.u32 %v2238, 7
  %v2240 = vsub.s32 %v2237, %v2239
  %v2241 = vrot.slane %v2233, %v2240
  %v2243 = vunpack.c.l.s4 1983009808
  %v2244 = vunpack.c.0.s8 %v2243
  %v2245 = vlaneseq
  %v2246 = vshrl.u32 %v2245, 7
  %v2247 = vsub.s32 %v2244, %v2246
  %v2248 = vrot.slane %v2234, %v2247
  %v2249 = vcombine.low %v2241, %v2248
  %v2250 = vcombine.low %v2225, %v2209
  %v2251 = vcombine.low %v2217, %v2216
  %v2253 = vunpack.c.l.s4 1983009808
  %v2254 = vunpack.c.0.s8 %v2253
  %v2255 = vlaneseq
  %v2256 = vshrl.u32 %v2255, 7
  %v2257 = vsub.s32 %v2254, %v2256
  %v2258 = vrot.slane %v2250, %v2257
  %v2260 = vunpack.c.l.s4 1983009808
  %v2261 = vunpack.c.0.s8 %v2260
  %v2262 = vlaneseq
  %v2263 = vshrl.u32 %v2262, 7
  %v2264 = vsub.s32 %v2261, %v2263
  %v2265 = vrot.slane %v2251, %v2264
  %v2266 = vcombine.low %v2258, %v2265
  %v2267 = vcombine.low %v2218, %v2232
  %v2269 = vunpack.c.l.s4 1983009808
  %v2270 = vunpack.c.0.s8 %v2269
  %v2271 = vlaneseq
  %v2272 = vshrl.u32 %v2271, 7
  %v2273 = vsub.s32 %v2270, %v2272
  %v2274 = vrot.slane %v2267, %v2273
  %v2279 = vunpack.c.l.b16 %v2121
  %v2280 = vunpack.c.l.b16 %v2124
  %v2281 = vunpack.c.l.b16 %v2127
  %v2282 = vunpack.c.l.b16 %v2130
  %v2283 = vpack.c.b16 %v2280, %v2279
  %v2284 = vpack.c.b16 %v2282, %v2281
  %v2288 = vsel %vm514, %v2249, 0
  %v2291 = vsel %vm514, %v2266, 0
  %v2294 = vsel %vm514, %v2274, 0
  %2296 = vmatprep.subr.bf16.mxu0 0
  %2297 = vmatpush1.bf16.msra.mxu0 %v2283
  %2298 = vmatprep.subr.bf16.mxu0 0
  %2299 = vmatpush1.bf16.msra.mxu0 %v2284
  %2300 = vmatprep.subr.bf16.mxu0 0
  %2301 = vmatpush1.bf16.msra.mxu0 0
  %2302 = vmatprep.subr.bf16.mxu0 0
  %2303 = vmatpush1.bf16.msra.mxu0 0
  %2304 = vmatprep.subr.bf16.mxu0 0
  %2305 = vmatpush1.bf16.msra.mxu0 0
  %2306 = vmatprep.subr.bf16.mxu0 0
  %2307 = vmatpush1.bf16.msra.mxu0 0
  %2308 = vmatprep.subr.bf16.mxu0 0
  %2309 = vmatpush1.bf16.msra.mxu0 0
  %2310 = vmatprep.subr.bf16.mxu0 0
  %2311 = vmatpush1.bf16.msra.mxu0 0
  %2312 = vmatprep.subr.bf16.mxu0 0
  %2313 = vmatpush1.bf16.msra.mxu0 0
  %2314 = vmatprep.subr.bf16.mxu0 0
  %2315 = vmatpush1.bf16.msra.mxu0 0
  %2316 = vmatprep.subr.bf16.mxu0 0
  %2317 = vmatpush1.bf16.msra.mxu0 0
  %2318 = vmatprep.subr.bf16.mxu0 0
  %2319 = vmatpush1.bf16.msra.mxu0 0
  %2320 = vmatprep.subr.bf16.mxu0 0
  %2321 = vmatpush1.bf16.msra.mxu0 0
  %2322 = vmatprep.subr.bf16.mxu0 0
  %2323 = vmatpush1.bf16.msra.mxu0 0
  %2324 = vmatprep.subr.bf16.mxu0 0
  %2325 = vmatpush1.bf16.msra.mxu0 0
  %2326 = vmatprep.subr.bf16.mxu0 0
  %2327 = vmatpush1.bf16.msra.mxu0 0
  %2328 = vmatprep.mubr.bf16.mxu0 0
  %2329 = vmatmul.mubr.bf16.gmra.mrb[0].mxu0 %v2288
  %v2330 = vpop.f32.mrb[0].mxu0
  %v2331 = vpop.f32.mrb[0].mxu0
  %v2332 = vpop.f32.mrb[0].mxu0
  %v2333 = vpop.f32.mrb[0].mxu0
  %2334 = vmatprep.mubr.bf16.mxu0 0
  %2335 = vmatmul.mubr.bf16.gmra.mrb[0].mxu0 %v2291
  %v2336 = vpop.f32.mrb[0].mxu0
  %v2337 = vadd.f32 0.0, %v2336
  %v2338 = vpop.f32.mrb[0].mxu0
  %v2339 = vpop.f32.mrb[0].mxu0
  %v2340 = vpop.f32.mrb[0].mxu0
  %2341 = vmatprep.mubr.bf16.mxu0 0
  %2342 = vmatmul.mubr.bf16.gmra.mrb[0].mxu0 %v2294
  %v2343 = vpop.f32.mrb[0].mxu0
  %v2344 = vadd.f32 0.0, %v2343
  %v2345 = vpop.f32.mrb[0].mxu0
  %v2346 = vpop.f32.mrb[0].mxu0
  %v2347 = vpop.f32.mrb[0].mxu0
  %2348 = vdwg.mxu0
  %v2350 = vcombine.high %v2344, %v2344
  %v2352 = vlaneseq
  %v2353 = vshrl.u32 %v2352, 7
  %v2354 = vsub.s32 4, %v2353
  %v2355 = vrot.slane %v2151, %v2354
  %v2356 = vadd.f32 %v2337, %v2355
  %v2357 = vadd.f32 %v2350, %v2355
  %v2358 = vunpack.c.h.b16 %v2121
  %v2359 = vunpack.c.h.b16 %v2124
  %v2360 = vunpack.c.h.b16 %v2127
  %v2361 = vunpack.c.h.b16 %v2130
  %v2362 = vpack.c.b16 %v2359, %v2358
  %v2363 = vpack.c.b16 %v2361, %v2360
  %2366 = vmatprep.subr.bf16.mxu0 0
  %2367 = vmatpush1.bf16.msra.mxu0 %v2362
  %2368 = vmatprep.subr.bf16.mxu0 0
  %2369 = vmatpush1.bf16.msra.mxu0 %v2363
  %2370 = vmatprep.subr.bf16.mxu0 0
  %2371 = vmatpush1.bf16.msra.mxu0 0
  %2372 = vmatprep.subr.bf16.mxu0 0
  %2373 = vmatpush1.bf16.msra.mxu0 0
  %2374 = vmatprep.subr.bf16.mxu0 0
  %2375 = vmatpush1.bf16.msra.mxu0 0
  %2376 = vmatprep.subr.bf16.mxu0 0
  %2377 = vmatpush1.bf16.msra.mxu0 0
  %2378 = vmatprep.subr.bf16.mxu0 0
  %2379 = vmatpush1.bf16.msra.mxu0 0
  %2380 = vmatprep.subr.bf16.mxu0 0
  %2381 = vmatpush1.bf16.msra.mxu0 0
  %2382 = vmatprep.subr.bf16.mxu0 0
  %2383 = vmatpush1.bf16.msra.mxu0 0
  %2384 = vmatprep.subr.bf16.mxu0 0
  %2385 = vmatpush1.bf16.msra.mxu0 0
  %2386 = vmatprep.subr.bf16.mxu0 0
  %2387 = vmatpush1.bf16.msra.mxu0 0
  %2388 = vmatprep.subr.bf16.mxu0 0
  %2389 = vmatpush1.bf16.msra.mxu0 0
  %2390 = vmatprep.subr.bf16.mxu0 0
  %2391 = vmatpush1.bf16.msra.mxu0 0
  %2392 = vmatprep.subr.bf16.mxu0 0
  %2393 = vmatpush1.bf16.msra.mxu0 0
  %2394 = vmatprep.subr.bf16.mxu0 0
  %2395 = vmatpush1.bf16.msra.mxu0 0
  %2396 = vmatprep.subr.bf16.mxu0 0
  %2397 = vmatpush1.bf16.msra.mxu0 0
  %2398 = vmatprep.mubr.bf16.mxu0 0
  %2399 = vmatmul.mubr.bf16.gmra.mrb[0].mxu0 %v2288
  %v2400 = vpop.f32.mrb[0].mxu0
  %v2401 = vadd.f32 0.0, %v2400
  %v2402 = vpop.f32.mrb[0].mxu0
  %v2403 = vpop.f32.mrb[0].mxu0
  %v2404 = vadd.f32 0.0, %v2403
  %v2405 = vpop.f32.mrb[0].mxu0
  %2406 = vmatprep.mubr.bf16.mxu0 0
  %2407 = vmatmul.mubr.bf16.gmra.mrb[0].mxu0 %v2291
  %v2408 = vpop.f32.mrb[0].mxu0
  %v2409 = vadd.f32 0.0, %v2408
  %v2410 = vpop.f32.mrb[0].mxu0
  %v2411 = vpop.f32.mrb[0].mxu0
  %v2412 = vadd.f32 0.0, %v2411
  %v2413 = vpop.f32.mrb[0].mxu0
  %2414 = vmatprep.mubr.bf16.mxu0 0
  %2415 = vmatmul.mubr.bf16.gmra.mrb[0].mxu0 %v2294
  %v2416 = vpop.f32.mrb[0].mxu0
  %v2417 = vadd.f32 0.0, %v2416
  %v2418 = vpop.f32.mrb[0].mxu0
  %v2419 = vpop.f32.mrb[0].mxu0
  %v2420 = vpop.f32.mrb[0].mxu0
  %2421 = vdwg.mxu0
  %v2427 = vcombine.high %v2401, %v2401
  %v2428 = vcombine.high %v2404, %v2404
  %v2429 = vcombine.high %v2409, %v2409
  %v2430 = vcombine.high %v2412, %v2412
  %v2431 = vcombine.high %v2417, %v2417
  %v2437 = vlaneseq
  %v2438 = vshrl.u32 %v2437, 7
  %v2439 = vsub.s32 5, %v2438
  %v2440 = vrot.slane %v2151, %v2439
  %v2442 = vcombine.high %v2440, %v2440
  %v2444 = vadd.f32 %v2401, %v2440
  %v2445 = vadd.f32 %v2427, %v2442
  %v2446 = vadd.f32 %v2404, %v2440
  %v2447 = vadd.f32 %v2428, %v2442
  %v2448 = vadd.f32 %v2409, %v2440
  %v2449 = vadd.f32 %v2429, %v2440
  %v2450 = vadd.f32 %v2412, %v2442
  %v2451 = vadd.f32 %v2430, %v2440
  %v2452 = vadd.f32 %v2417, %v2442
  %v2453 = vadd.f32 %v2431, %v2440
  %v2458 = vunpack.c.l.b16 %v2122
  %v2459 = vunpack.c.l.b16 %v2125
  %v2460 = vunpack.c.l.b16 %v2128
  %v2461 = vunpack.c.l.b16 %v2131
  %v2462 = vpack.c.b16 %v2459, %v2458
  %v2463 = vpack.c.b16 %v2461, %v2460
  %2466 = vmatprep.subr.bf16.mxu0 0
  %2467 = vmatpush1.bf16.msra.mxu0 %v2462
  %2468 = vmatprep.subr.bf16.mxu0 0
  %2469 = vmatpush1.bf16.msra.mxu0 %v2463
  %2470 = vmatprep.subr.bf16.mxu0 0
  %2471 = vmatpush1.bf16.msra.mxu0 0
  %2472 = vmatprep.subr.bf16.mxu0 0
  %2473 = vmatpush1.bf16.msra.mxu0 0
  %2474 = vmatprep.subr.bf16.mxu0 0
  %2475 = vmatpush1.bf16.msra.mxu0 0
  %2476 = vmatprep.subr.bf16.mxu0 0
  %2477 = vmatpush1.bf16.msra.mxu0 0
  %2478 = vmatprep.subr.bf16.mxu0 0
  %2479 = vmatpush1.bf16.msra.mxu0 0
  %2480 = vmatprep.subr.bf16.mxu0 0
  %2481 = vmatpush1.bf16.msra.mxu0 0
  %2482 = vmatprep.subr.bf16.mxu0 0
  %2483 = vmatpush1.bf16.msra.mxu0 0
  %2484 = vmatprep.subr.bf16.mxu0 0
  %2485 = vmatpush1.bf16.msra.mxu0 0
  %2486 = vmatprep.subr.bf16.mxu0 0
  %2487 = vmatpush1.bf16.msra.mxu0 0
  %2488 = vmatprep.subr.bf16.mxu0 0
  %2489 = vmatpush1.bf16.msra.mxu0 0
  %2490 = vmatprep.subr.bf16.mxu0 0
  %2491 = vmatpush1.bf16.msra.mxu0 0
  %2492 = vmatprep.subr.bf16.mxu0 0
  %2493 = vmatpush1.bf16.msra.mxu0 0
  %2494 = vmatprep.subr.bf16.mxu0 0
  %2495 = vmatpush1.bf16.msra.mxu0 0
  %2496 = vmatprep.subr.bf16.mxu0 0
  %2497 = vmatpush1.bf16.msra.mxu0 0
  %2498 = vmatprep.mubr.bf16.mxu0 0
  %2499 = vmatmul.mubr.bf16.gmra.mrb[0].mxu0 %v2288
  %v2500 = vpop.f32.mrb[0].mxu0
  %v2501 = vadd.f32 0.0, %v2500
  %v2502 = vpop.f32.mrb[0].mxu0
  %v2503 = vpop.f32.mrb[0].mxu0
  %v2504 = vadd.f32 0.0, %v2503
  %v2505 = vpop.f32.mrb[0].mxu0
  %2506 = vmatprep.mubr.bf16.mxu0 0
  %2507 = vmatmul.mubr.bf16.gmra.mrb[0].mxu0 %v2291
  %v2508 = vpop.f32.mrb[0].mxu0
  %v2509 = vadd.f32 0.0, %v2508
  %v2510 = vpop.f32.mrb[0].mxu0
  %v2511 = vpop.f32.mrb[0].mxu0
  %v2512 = vadd.f32 0.0, %v2511
  %v2513 = vpop.f32.mrb[0].mxu0
  %2514 = vmatprep.mubr.bf16.mxu0 0
  %2515 = vmatmul.mubr.bf16.gmra.mrb[0].mxu0 %v2294
  %v2516 = vpop.f32.mrb[0].mxu0
  %v2517 = vadd.f32 0.0, %v2516
  %v2518 = vpop.f32.mrb[0].mxu0
  %v2519 = vpop.f32.mrb[0].mxu0
  %v2520 = vpop.f32.mrb[0].mxu0
  %2521 = vdwg.mxu0
  %v2527 = vcombine.high %v2501, %v2501
  %v2528 = vcombine.high %v2504, %v2504
  %v2529 = vcombine.high %v2509, %v2509
  %v2530 = vcombine.high %v2512, %v2512
  %v2531 = vcombine.high %v2517, %v2517
  %v2537 = vlaneseq
  %v2538 = vshrl.u32 %v2537, 7
  %v2539 = vsub.s32 6, %v2538
  %v2540 = vrot.slane %v2151, %v2539
  %v2542 = vcombine.high %v2540, %v2540
  %v2544 = vadd.f32 %v2501, %v2540
  %v2545 = vadd.f32 %v2527, %v2542
  %v2546 = vadd.f32 %v2504, %v2540
  %v2547 = vadd.f32 %v2528, %v2542
  %v2548 = vadd.f32 %v2509, %v2540
  %v2549 = vadd.f32 %v2529, %v2540
  %v2550 = vadd.f32 %v2512, %v2542
  %v2551 = vadd.f32 %v2530, %v2540
  %v2552 = vadd.f32 %v2517, %v2542
  %v2553 = vadd.f32 %v2531, %v2540
  %v2554 = vpack.c.bf16 %v2356, %v2356
  %v2555 = vpack.c.bf16 %v2357, %v2357
  %v2564 = vcombine.low %v2444, %v2445
  %v2565 = vcombine.low %v2446, %v2447
  %v2566 = vcombine.low %v2449, %v2450
  %v2567 = vcombine.low %v2451, %v2452
  %v2572 = vpack.c.bf16 %v2565, %v2564
  %v2573 = vpack.c.bf16 %v2448, %v2448
  %v2574 = vpack.c.bf16 %v2567, %v2566
  %v2575 = vpack.c.bf16 %v2453, %v2453
  %v2584 = vcombine.low %v2544, %v2545
  %v2585 = vcombine.low %v2546, %v2547
  %v2586 = vcombine.low %v2549, %v2550
  %v2587 = vcombine.low %v2551, %v2552
  %v2592 = vpack.c.bf16 %v2585, %v2584
  %v2593 = vpack.c.bf16 %v2548, %v2548
  %v2594 = vpack.c.bf16 %v2587, %v2586
  %v2595 = vpack.c.bf16 %v2553, %v2553
  %v2597 = vsel %vm841, %v2554, 0
  %v2600 = vsel %vm841, %v2572, 0
  %v2603 = vsel %vm841, %v2573, 0
  %2605 = vmatprep.subr.bf16.mxu0 0
  %2606 = vmatpush1.bf16.xpose.msra.mxu0 %v2600
  %2607 = vmatprep.subr.bf16.mxu0 0
  %2608 = vmatpush1.bf16.xpose.msra.mxu0 %v2603
  %2609 = vmatprep.subr.bf16.mxu0 0
  %2610 = vmatpush1.bf16.xpose.msra.mxu0 0
  %2611 = vmatprep.subr.bf16.mxu0 0
  %2612 = vmatpush1.bf16.xpose.msra.mxu0 0
  %2613 = vmatprep.subr.bf16.mxu0 0
  %2614 = vmatpush1.bf16.xpose.msra.mxu0 0
  %2615 = vmatprep.subr.bf16.mxu0 0
  %2616 = vmatpush1.bf16.xpose.msra.mxu0 0
  %2617 = vmatprep.subr.bf16.mxu0 0
  %2618 = vmatpush1.bf16.xpose.msra.mxu0 0
  %2619 = vmatprep.subr.bf16.mxu0 0
  %2620 = vmatpush1.bf16.xpose.msra.mxu0 0
  %2621 = vmatprep.subr.bf16.mxu0 0
  %2622 = vmatpush1.bf16.xpose.msra.mxu0 0
  %2623 = vmatprep.subr.bf16.mxu0 0
  %2624 = vmatpush1.bf16.xpose.msra.mxu0 0
  %2625 = vmatprep.subr.bf16.mxu0 0
  %2626 = vmatpush1.bf16.xpose.msra.mxu0 0
  %2627 = vmatprep.subr.bf16.mxu0 0
  %2628 = vmatpush1.bf16.xpose.msra.mxu0 0
  %2629 = vmatprep.subr.bf16.mxu0 0
  %2630 = vmatpush1.bf16.xpose.msra.mxu0 0
  %2631 = vmatprep.subr.bf16.mxu0 0
  %2632 = vmatpush1.bf16.xpose.msra.mxu0 0
  %2633 = vmatprep.subr.bf16.mxu0 0
  %2634 = vmatpush1.bf16.xpose.msra.mxu0 0
  %2635 = vmatprep.subr.bf16.mxu0 0
  %2636 = vmatpush1.bf16.xpose.msra.mxu0 0
  %2637 = vmatprep.mubr.bf16.mxu0 0
  %2638 = vmatmul.mubr.bf16.gmra.mrb[0].mxu0 %v2597
  %v2639 = vpop.f32.mrb[0].mxu0
  %v2640 = vadd.f32 0.0, %v2639
  %v2641 = vpop.f32.mrb[0].mxu0
  %v2642 = vpop.f32.mrb[0].mxu0
  %v2643 = vpop.f32.mrb[0].mxu0
  %2644 = vdwg.mxu0
  %v2646 = vsel %vm841, %v2555, 0
  %v2649 = vsel %vm841, %v2574, 0
  %v2652 = vsel %vm841, %v2575, 0
  %2654 = vmatprep.subr.bf16.mxu0 0
  %2655 = vmatpush1.bf16.xpose.msra.mxu0 %v2649
  %2656 = vmatprep.subr.bf16.mxu0 0
  %2657 = vmatpush1.bf16.xpose.msra.mxu0 %v2652
  %2658 = vmatprep.subr.bf16.mxu0 0
  %2659 = vmatpush1.bf16.xpose.msra.mxu0 0
  %2660 = vmatprep.subr.bf16.mxu0 0
  %2661 = vmatpush1.bf16.xpose.msra.mxu0 0
  %2662 = vmatprep.subr.bf16.mxu0 0
  %2663 = vmatpush1.bf16.xpose.msra.mxu0 0
  %2664 = vmatprep.subr.bf16.mxu0 0
  %2665 = vmatpush1.bf16.xpose.msra.mxu0 0
  %2666 = vmatprep.subr.bf16.mxu0 0
  %2667 = vmatpush1.bf16.xpose.msra.mxu0 0
  %2668 = vmatprep.subr.bf16.mxu0 0
  %2669 = vmatpush1.bf16.xpose.msra.mxu0 0
  %2670 = vmatprep.subr.bf16.mxu0 0
  %2671 = vmatpush1.bf16.xpose.msra.mxu0 0
  %2672 = vmatprep.subr.bf16.mxu0 0
  %2673 = vmatpush1.bf16.xpose.msra.mxu0 0
  %2674 = vmatprep.subr.bf16.mxu0 0
  %2675 = vmatpush1.bf16.xpose.msra.mxu0 0
  %2676 = vmatprep.subr.bf16.mxu0 0
  %2677 = vmatpush1.bf16.xpose.msra.mxu0 0
  %2678 = vmatprep.subr.bf16.mxu0 0
  %2679 = vmatpush1.bf16.xpose.msra.mxu0 0
  %2680 = vmatprep.subr.bf16.mxu0 0
  %2681 = vmatpush1.bf16.xpose.msra.mxu0 0
  %2682 = vmatprep.subr.bf16.mxu0 0
  %2683 = vmatpush1.bf16.xpose.msra.mxu0 0
  %2684 = vmatprep.subr.bf16.mxu0 0
  %2685 = vmatpush1.bf16.xpose.msra.mxu0 0
  %2686 = vmatprep.mubr.bf16.mxu0 0
  %2687 = vmatmul.mubr.bf16.gmra.mrb[0].mxu0 %v2646
  %v2688 = vpop.f32.mrb[0].mxu0
  %v2689 = vadd.f32 0.0, %v2688
  %v2690 = vpop.f32.mrb[0].mxu0
  %v2691 = vpop.f32.mrb[0].mxu0
  %v2692 = vpop.f32.mrb[0].mxu0
  %2693 = vdwg.mxu0
  %v2694 = vmul.f32 %v2640, 0.35355338
  %v2695 = vmul.f32 %v2689, 0.35355338
  %v2696 = vadd.f32 %v2694, %v452
  %v2697 = vadd.f32 %v2695, %v452
  %vm2698 = vcmask 158720
  %v2699 = vsel %vm2698, %v2696, -inf
  %2700 = vmax.xlane.f32.xlu0 %v2699
  %v2701 = vpop.xlane.xlu0 %2700
  %v2702 = vsel %vm2698, %v2697, -inf
  %2703 = vmax.xlane.f32.xlu0 %v2702
  %v2704 = vpop.xlane.xlu0 %2703
  %v2705 = vsub.f32 %v2696, %v2701
  %v2706 = vsub.f32 %v2697, %v2704
  %v2707 = vmul.f32 %v2705, 1.442695
  %v2708 = vpow.pop %v2707
  %v2709 = vmul.f32 %v2706, 1.442695
  %v2710 = vpow.pop %v2709
  %v2711 = vsel %vm2698, %v2708, 0.0
  %2712 = vadd.xlane.f32.xlu0 %v2711
  %v2713 = vpop.xlane.xlu0 %2712
  %v2714 = vsel %vm2698, %v2710, 0.0
  %2715 = vadd.xlane.f32.xlu0 %v2714
  %v2716 = vpop.xlane.xlu0 %2715
  %v2717 = vrcp.pop %v2713
  %v2718 = vmul.f32 %v2708, %v2717
  %v2719 = vrcp.pop %v2716
  %v2720 = vmul.f32 %v2710, %v2719
  %v2721 = vpack.c.bf16 %v2718, %v2718
  %v2722 = vpack.c.bf16 %v2720, %v2720
  %vm2723 = vcmask 162816
  %v2725 = vsel %vm2723, %v2721, 0
  %vm2727 = vcmask 1041408
  %v2729 = vsel %vm2727, %v2593, 0
  %2731 = vmatprep.subr.bf16.mxu0 0
  %2732 = vmatpush1.bf16.msra.mxu0 %v2592
  %2733 = vmatprep.subr.bf16.mxu0 0
  %2734 = vmatpush1.bf16.msra.mxu0 %v2729
  %2735 = vmatprep.subr.bf16.mxu0 0
  %2736 = vmatpush1.bf16.msra.mxu0 0
  %2737 = vmatprep.subr.bf16.mxu0 0
  %2738 = vmatpush1.bf16.msra.mxu0 0
  %2739 = vmatprep.subr.bf16.mxu0 0
  %2740 = vmatpush1.bf16.msra.mxu0 0
  %2741 = vmatprep.subr.bf16.mxu0 0
  %2742 = vmatpush1.bf16.msra.mxu0 0
  %2743 = vmatprep.subr.bf16.mxu0 0
  %2744 = vmatpush1.bf16.msra.mxu0 0
  %2745 = vmatprep.subr.bf16.mxu0 0
  %2746 = vmatpush1.bf16.msra.mxu0 0
  %2747 = vmatprep.subr.bf16.mxu0 0
  %2748 = vmatpush1.bf16.msra.mxu0 0
  %2749 = vmatprep.subr.bf16.mxu0 0
  %2750 = vmatpush1.bf16.msra.mxu0 0
  %2751 = vmatprep.subr.bf16.mxu0 0
  %2752 = vmatpush1.bf16.msra.mxu0 0
  %2753 = vmatprep.subr.bf16.mxu0 0
  %2754 = vmatpush1.bf16.msra.mxu0 0
  %2755 = vmatprep.subr.bf16.mxu0 0
  %2756 = vmatpush1.bf16.msra.mxu0 0
  %2757 = vmatprep.subr.bf16.mxu0 0
  %2758 = vmatpush1.bf16.msra.mxu0 0
  %2759 = vmatprep.subr.bf16.mxu0 0
  %2760 = vmatpush1.bf16.msra.mxu0 0
  %2761 = vmatprep.subr.bf16.mxu0 0
  %2762 = vmatpush1.bf16.msra.mxu0 0
  %2763 = vmatprep.mubr.bf16.mxu0 0
  %2764 = vmatmul.mubr.bf16.gmra.mrb[0].mxu0 %v2725
  %v2765 = vpop.f32.mrb[0].mxu0
  %v2766 = vadd.f32 0.0, %v2765
  %v2767 = vpop.f32.mrb[0].mxu0
  %v2768 = vpop.f32.mrb[0].mxu0
  %v2769 = vpop.f32.mrb[0].mxu0
  %2770 = vdwg.mxu0
  %v2772 = vsel %vm2723, %v2722, 0
  %v2775 = vsel %vm2727, %v2595, 0
  %2777 = vmatprep.subr.bf16.mxu0 0
  %2778 = vmatpush1.bf16.msra.mxu0 %v2594
  %2779 = vmatprep.subr.bf16.mxu0 0
  %2780 = vmatpush1.bf16.msra.mxu0 %v2775
  %2781 = vmatprep.subr.bf16.mxu0 0
  %2782 = vmatpush1.bf16.msra.mxu0 0
  %2783 = vmatprep.subr.bf16.mxu0 0
  %2784 = vmatpush1.bf16.msra.mxu0 0
  %2785 = vmatprep.subr.bf16.mxu0 0
  %2786 = vmatpush1.bf16.msra.mxu0 0
  %2787 = vmatprep.subr.bf16.mxu0 0
  %2788 = vmatpush1.bf16.msra.mxu0 0
  %2789 = vmatprep.subr.bf16.mxu0 0
  %2790 = vmatpush1.bf16.msra.mxu0 0
  %2791 = vmatprep.subr.bf16.mxu0 0
  %2792 = vmatpush1.bf16.msra.mxu0 0
  %2793 = vmatprep.subr.bf16.mxu0 0
  %2794 = vmatpush1.bf16.msra.mxu0 0
  %2795 = vmatprep.subr.bf16.mxu0 0
  %2796 = vmatpush1.bf16.msra.mxu0 0
  %2797 = vmatprep.subr.bf16.mxu0 0
  %2798 = vmatpush1.bf16.msra.mxu0 0
  %2799 = vmatprep.subr.bf16.mxu0 0
  %2800 = vmatpush1.bf16.msra.mxu0 0
  %2801 = vmatprep.subr.bf16.mxu0 0
  %2802 = vmatpush1.bf16.msra.mxu0 0
  %2803 = vmatprep.subr.bf16.mxu0 0
  %2804 = vmatpush1.bf16.msra.mxu0 0
  %2805 = vmatprep.subr.bf16.mxu0 0
  %2806 = vmatpush1.bf16.msra.mxu0 0
  %2807 = vmatprep.subr.bf16.mxu0 0
  %2808 = vmatpush1.bf16.msra.mxu0 0
  %2809 = vmatprep.mubr.bf16.mxu0 0
  %2810 = vmatmul.mubr.bf16.gmra.mrb[0].mxu0 %v2772
  %v2811 = vpop.f32.mrb[0].mxu0
  %v2812 = vadd.f32 0.0, %v2811
  %v2813 = vpop.f32.mrb[0].mxu0
  %v2814 = vpop.f32.mrb[0].mxu0
  %v2815 = vpop.f32.mrb[0].mxu0
  %2816 = vdwg.mxu0
  %2818 = vrot.lane.b32.xlu0 %v2554, 120
  %v2819 = vpop.permute.xlu0 %2818
  %2822 = vrot.lane.b32.xlu0 %v2572, 120
  %v2823 = vpop.permute.xlu0 %2822
  %2824 = vrot.lane.b32.xlu0 %v2573, 120
  %v2825 = vpop.permute.xlu0 %2824
  %v2827 = vsel %vm841, %v2819, 0
  %v2830 = vsel %vm841, %v2823, 0
  %v2833 = vsel %vm841, %v2825, 0
  %2835 = vmatprep.subr.bf16.mxu0 0
  %2836 = vmatpush1.bf16.xpose.msra.mxu0 %v2830
  %2837 = vmatprep.subr.bf16.mxu0 0
  %2838 = vmatpush1.bf16.xpose.msra.mxu0 %v2833
  %2839 = vmatprep.subr.bf16.mxu0 0
  %2840 = vmatpush1.bf16.xpose.msra.mxu0 0
  %2841 = vmatprep.subr.bf16.mxu0 0
  %2842 = vmatpush1.bf16.xpose.msra.mxu0 0
  %2843 = vmatprep.subr.bf16.mxu0 0
  %2844 = vmatpush1.bf16.xpose.msra.mxu0 0
  %2845 = vmatprep.subr.bf16.mxu0 0
  %2846 = vmatpush1.bf16.xpose.msra.mxu0 0
  %2847 = vmatprep.subr.bf16.mxu0 0
  %2848 = vmatpush1.bf16.xpose.msra.mxu0 0
  %2849 = vmatprep.subr.bf16.mxu0 0
  %2850 = vmatpush1.bf16.xpose.msra.mxu0 0
  %2851 = vmatprep.subr.bf16.mxu0 0
  %2852 = vmatpush1.bf16.xpose.msra.mxu0 0
  %2853 = vmatprep.subr.bf16.mxu0 0
  %2854 = vmatpush1.bf16.xpose.msra.mxu0 0
  %2855 = vmatprep.subr.bf16.mxu0 0
  %2856 = vmatpush1.bf16.xpose.msra.mxu0 0
  %2857 = vmatprep.subr.bf16.mxu0 0
  %2858 = vmatpush1.bf16.xpose.msra.mxu0 0
  %2859 = vmatprep.subr.bf16.mxu0 0
  %2860 = vmatpush1.bf16.xpose.msra.mxu0 0
  %2861 = vmatprep.subr.bf16.mxu0 0
  %2862 = vmatpush1.bf16.xpose.msra.mxu0 0
  %2863 = vmatprep.subr.bf16.mxu0 0
  %2864 = vmatpush1.bf16.xpose.msra.mxu0 0
  %2865 = vmatprep.subr.bf16.mxu0 0
  %2866 = vmatpush1.bf16.xpose.msra.mxu0 0
  %2867 = vmatprep.mubr.bf16.mxu0 0
  %2868 = vmatmul.mubr.bf16.gmra.mrb[0].mxu0 %v2827
  %v2869 = vpop.f32.mrb[0].mxu0
  %v2870 = vadd.f32 0.0, %v2869
  %v2871 = vpop.f32.mrb[0].mxu0
  %v2872 = vpop.f32.mrb[0].mxu0
  %v2873 = vpop.f32.mrb[0].mxu0
  %2874 = vdwg.mxu0
  %2876 = vrot.lane.b32.xlu0 %v2555, 120
  %v2877 = vpop.permute.xlu0 %2876
  %2880 = vrot.lane.b32.xlu0 %v2574, 120
  %v2881 = vpop.permute.xlu0 %2880
  %2882 = vrot.lane.b32.xlu0 %v2575, 120
  %v2883 = vpop.permute.xlu0 %2882
  %v2885 = vsel %vm841, %v2877, 0
  %v2888 = vsel %vm841, %v2881, 0
  %v2891 = vsel %vm841, %v2883, 0
  %2893 = vmatprep.subr.bf16.mxu0 0
  %2894 = vmatpush1.bf16.xpose.msra.mxu0 %v2888
  %2895 = vmatprep.subr.bf16.mxu0 0
  %2896 = vmatpush1.bf16.xpose.msra.mxu0 %v2891
  %2897 = vmatprep.subr.bf16.mxu0 0
  %2898 = vmatpush1.bf16.xpose.msra.mxu0 0
  %2899 = vmatprep.subr.bf16.mxu0 0
  %2900 = vmatpush1.bf16.xpose.msra.mxu0 0
  %2901 = vmatprep.subr.bf16.mxu0 0
  %2902 = vmatpush1.bf16.xpose.msra.mxu0 0
  %2903 = vmatprep.subr.bf16.mxu0 0
  %2904 = vmatpush1.bf16.xpose.msra.mxu0 0
  %2905 = vmatprep.subr.bf16.mxu0 0
  %2906 = vmatpush1.bf16.xpose.msra.mxu0 0
  %2907 = vmatprep.subr.bf16.mxu0 0
  %2908 = vmatpush1.bf16.xpose.msra.mxu0 0
  %2909 = vmatprep.subr.bf16.mxu0 0
  %2910 = vmatpush1.bf16.xpose.msra.mxu0 0
  %2911 = vmatprep.subr.bf16.mxu0 0
  %2912 = vmatpush1.bf16.xpose.msra.mxu0 0
  %2913 = vmatprep.subr.bf16.mxu0 0
  %2914 = vmatpush1.bf16.xpose.msra.mxu0 0
  %2915 = vmatprep.subr.bf16.mxu0 0
  %2916 = vmatpush1.bf16.xpose.msra.mxu0 0
  %2917 = vmatprep.subr.bf16.mxu0 0
  %2918 = vmatpush1.bf16.xpose.msra.mxu0 0
  %2919 = vmatprep.subr.bf16.mxu0 0
  %2920 = vmatpush1.bf16.xpose.msra.mxu0 0
  %2921 = vmatprep.subr.bf16.mxu0 0
  %2922 = vmatpush1.bf16.xpose.msra.mxu0 0
  %2923 = vmatprep.subr.bf16.mxu0 0
  %2924 = vmatpush1.bf16.xpose.msra.mxu0 0
  %2925 = vmatprep.mubr.bf16.mxu0 0
  %2926 = vmatmul.mubr.bf16.gmra.mrb[0].mxu0 %v2885
  %v2927 = vpop.f32.mrb[0].mxu0
  %v2928 = vadd.f32 0.0, %v2927
  %v2929 = vpop.f32.mrb[0].mxu0
  %v2930 = vpop.f32.mrb[0].mxu0
  %v2931 = vpop.f32.mrb[0].mxu0
  %2932 = vdwg.mxu0
  %v2933 = vmul.f32 %v2870, 0.35355338
  %v2934 = vmul.f32 %v2928, 0.35355338
  %v2935 = vadd.f32 %v2933, %v452
  %v2936 = vadd.f32 %v2934, %v452
  %v2937 = vsel %vm2698, %v2935, -inf
  %2938 = vmax.xlane.f32.xlu0 %v2937
  %v2939 = vpop.xlane.xlu0 %2938
  %v2940 = vsel %vm2698, %v2936, -inf
  %2941 = vmax.xlane.f32.xlu0 %v2940
  %v2942 = vpop.xlane.xlu0 %2941
  %v2943 = vsub.f32 %v2935, %v2939
  %v2944 = vsub.f32 %v2936, %v2942
  %v2945 = vmul.f32 %v2943, 1.442695
  %v2946 = vpow.pop %v2945
  %v2947 = vmul.f32 %v2944, 1.442695
  %v2948 = vpow.pop %v2947
  %v2949 = vsel %vm2698, %v2946, 0.0
  %2950 = vadd.xlane.f32.xlu0 %v2949
  %v2951 = vpop.xlane.xlu0 %2950
  %v2952 = vsel %vm2698, %v2948, 0.0
  %2953 = vadd.xlane.f32.xlu0 %v2952
  %v2954 = vpop.xlane.xlu0 %2953
  %v2955 = vrcp.pop %v2951
  %v2956 = vmul.f32 %v2946, %v2955
  %v2957 = vrcp.pop %v2954
  %v2958 = vmul.f32 %v2948, %v2957
  %v2959 = vpack.c.bf16 %v2956, %v2956
  %v2960 = vpack.c.bf16 %v2958, %v2958
  %2963 = vrot.lane.b32.xlu0 %v2592, 120
  %v2964 = vpop.permute.xlu0 %2963
  %2965 = vrot.lane.b32.xlu0 %v2593, 120
  %v2966 = vpop.permute.xlu0 %2965
  %v2969 = vsel %vm2723, %v2959, 0
  %v2972 = vsel %vm2727, %v2966, 0
  %2974 = vmatprep.subr.bf16.mxu0 0
  %2975 = vmatpush1.bf16.msra.mxu0 %v2964
  %2976 = vmatprep.subr.bf16.mxu0 0
  %2977 = vmatpush1.bf16.msra.mxu0 %v2972
  %2978 = vmatprep.subr.bf16.mxu0 0
  %2979 = vmatpush1.bf16.msra.mxu0 0
  %2980 = vmatprep.subr.bf16.mxu0 0
  %2981 = vmatpush1.bf16.msra.mxu0 0
  %2982 = vmatprep.subr.bf16.mxu0 0
  %2983 = vmatpush1.bf16.msra.mxu0 0
  %2984 = vmatprep.subr.bf16.mxu0 0
  %2985 = vmatpush1.bf16.msra.mxu0 0
  %2986 = vmatprep.subr.bf16.mxu0 0
  %2987 = vmatpush1.bf16.msra.mxu0 0
  %2988 = vmatprep.subr.bf16.mxu0 0
  %2989 = vmatpush1.bf16.msra.mxu0 0
  %2990 = vmatprep.subr.bf16.mxu0 0
  %2991 = vmatpush1.bf16.msra.mxu0 0
  %2992 = vmatprep.subr.bf16.mxu0 0
  %2993 = vmatpush1.bf16.msra.mxu0 0
  %2994 = vmatprep.subr.bf16.mxu0 0
  %2995 = vmatpush1.bf16.msra.mxu0 0
  %2996 = vmatprep.subr.bf16.mxu0 0
  %2997 = vmatpush1.bf16.msra.mxu0 0
  %2998 = vmatprep.subr.bf16.mxu0 0
  %2999 = vmatpush1.bf16.msra.mxu0 0
  %3000 = vmatprep.subr.bf16.mxu0 0
  %3001 = vmatpush1.bf16.msra.mxu0 0
  %3002 = vmatprep.subr.bf16.mxu0 0
  %3003 = vmatpush1.bf16.msra.mxu0 0
  %3004 = vmatprep.subr.bf16.mxu0 0
  %3005 = vmatpush1.bf16.msra.mxu0 0
  %3006 = vmatprep.mubr.bf16.mxu0 0
  %3007 = vmatmul.mubr.bf16.gmra.mrb[0].mxu0 %v2969
  %v3008 = vpop.f32.mrb[0].mxu0
  %v3009 = vadd.f32 0.0, %v3008
  %v3010 = vpop.f32.mrb[0].mxu0
  %v3011 = vpop.f32.mrb[0].mxu0
  %v3012 = vpop.f32.mrb[0].mxu0
  %3013 = vdwg.mxu0
  %3016 = vrot.lane.b32.xlu0 %v2594, 120
  %v3017 = vpop.permute.xlu0 %3016
  %3018 = vrot.lane.b32.xlu0 %v2595, 120
  %v3019 = vpop.permute.xlu0 %3018
  %v3022 = vsel %vm2723, %v2960, 0
  %v3025 = vsel %vm2727, %v3019, 0
  %3027 = vmatprep.subr.bf16.mxu0 0
  %3028 = vmatpush1.bf16.msra.mxu0 %v3017
  %3029 = vmatprep.subr.bf16.mxu0 0
  %3030 = vmatpush1.bf16.msra.mxu0 %v3025
  %3031 = vmatprep.subr.bf16.mxu0 0
  %3032 = vmatpush1.bf16.msra.mxu0 0
  %3033 = vmatprep.subr.bf16.mxu0 0
  %3034 = vmatpush1.bf16.msra.mxu0 0
  %3035 = vmatprep.subr.bf16.mxu0 0
  %3036 = vmatpush1.bf16.msra.mxu0 0
  %3037 = vmatprep.subr.bf16.mxu0 0
  %3038 = vmatpush1.bf16.msra.mxu0 0
  %3039 = vmatprep.subr.bf16.mxu0 0
  %3040 = vmatpush1.bf16.msra.mxu0 0
  %3041 = vmatprep.subr.bf16.mxu0 0
  %3042 = vmatpush1.bf16.msra.mxu0 0
  %3043 = vmatprep.subr.bf16.mxu0 0
  %3044 = vmatpush1.bf16.msra.mxu0 0
  %3045 = vmatprep.subr.bf16.mxu0 0
  %3046 = vmatpush1.bf16.msra.mxu0 0
  %3047 = vmatprep.subr.bf16.mxu0 0
  %3048 = vmatpush1.bf16.msra.mxu0 0
  %3049 = vmatprep.subr.bf16.mxu0 0
  %3050 = vmatpush1.bf16.msra.mxu0 0
  %3051 = vmatprep.subr.bf16.mxu0 0
  %3052 = vmatpush1.bf16.msra.mxu0 0
  %3053 = vmatprep.subr.bf16.mxu0 0
  %3054 = vmatpush1.bf16.msra.mxu0 0
  %3055 = vmatprep.subr.bf16.mxu0 0
  %3056 = vmatpush1.bf16.msra.mxu0 0
  %3057 = vmatprep.subr.bf16.mxu0 0
  %3058 = vmatpush1.bf16.msra.mxu0 0
  %3059 = vmatprep.mubr.bf16.mxu0 0
  %3060 = vmatmul.mubr.bf16.gmra.mrb[0].mxu0 %v3022
  %v3061 = vpop.f32.mrb[0].mxu0
  %v3062 = vadd.f32 0.0, %v3061
  %v3063 = vpop.f32.mrb[0].mxu0
  %v3064 = vpop.f32.mrb[0].mxu0
  %v3065 = vpop.f32.mrb[0].mxu0
  %3066 = vdwg.mxu0
  %3067 = vrot.lane.b32.xlu0 %v2554, 112
  %v3068 = vpop.permute.xlu0 %3067
  %3069 = vrot.lane.b32.xlu0 %v2572, 112
  %v3070 = vpop.permute.xlu0 %3069
  %3071 = vrot.lane.b32.xlu0 %v2573, 112
  %v3072 = vpop.permute.xlu0 %3071
  %v3074 = vsel %vm841, %v3068, 0
  %v3077 = vsel %vm841, %v3070, 0
  %v3080 = vsel %vm841, %v3072, 0
  %3082 = vmatprep.subr.bf16.mxu0 0
  %3083 = vmatpush1.bf16.xpose.msra.mxu0 %v3077
  %3084 = vmatprep.subr.bf16.mxu0 0
  %3085 = vmatpush1.bf16.xpose.msra.mxu0 %v3080
  %3086 = vmatprep.subr.bf16.mxu0 0
  %3087 = vmatpush1.bf16.xpose.msra.mxu0 0
  %3088 = vmatprep.subr.bf16.mxu0 0
  %3089 = vmatpush1.bf16.xpose.msra.mxu0 0
  %3090 = vmatprep.subr.bf16.mxu0 0
  %3091 = vmatpush1.bf16.xpose.msra.mxu0 0
  %3092 = vmatprep.subr.bf16.mxu0 0
  %3093 = vmatpush1.bf16.xpose.msra.mxu0 0
  %3094 = vmatprep.subr.bf16.mxu0 0
  %3095 = vmatpush1.bf16.xpose.msra.mxu0 0
  %3096 = vmatprep.subr.bf16.mxu0 0
  %3097 = vmatpush1.bf16.xpose.msra.mxu0 0
  %3098 = vmatprep.subr.bf16.mxu0 0
  %3099 = vmatpush1.bf16.xpose.msra.mxu0 0
  %3100 = vmatprep.subr.bf16.mxu0 0
  %3101 = vmatpush1.bf16.xpose.msra.mxu0 0
  %3102 = vmatprep.subr.bf16.mxu0 0
  %3103 = vmatpush1.bf16.xpose.msra.mxu0 0
  %3104 = vmatprep.subr.bf16.mxu0 0
  %3105 = vmatpush1.bf16.xpose.msra.mxu0 0
  %3106 = vmatprep.subr.bf16.mxu0 0
  %3107 = vmatpush1.bf16.xpose.msra.mxu0 0
  %3108 = vmatprep.subr.bf16.mxu0 0
  %3109 = vmatpush1.bf16.xpose.msra.mxu0 0
  %3110 = vmatprep.subr.bf16.mxu0 0
  %3111 = vmatpush1.bf16.xpose.msra.mxu0 0
  %3112 = vmatprep.subr.bf16.mxu0 0
  %3113 = vmatpush1.bf16.xpose.msra.mxu0 0
  %3114 = vmatprep.mubr.bf16.mxu0 0
  %3115 = vmatmul.mubr.bf16.gmra.mrb[0].mxu0 %v3074
  %v3116 = vpop.f32.mrb[0].mxu0
  %v3117 = vadd.f32 0.0, %v3116
  %v3118 = vpop.f32.mrb[0].mxu0
  %v3119 = vpop.f32.mrb[0].mxu0
  %v3120 = vpop.f32.mrb[0].mxu0
  %3121 = vdwg.mxu0
  %3122 = vrot.lane.b32.xlu0 %v2555, 112
  %v3123 = vpop.permute.xlu0 %3122
  %3124 = vrot.lane.b32.xlu0 %v2574, 112
  %v3125 = vpop.permute.xlu0 %3124
  %3126 = vrot.lane.b32.xlu0 %v2575, 112
  %v3127 = vpop.permute.xlu0 %3126
  %v3129 = vsel %vm841, %v3123, 0
  %v3132 = vsel %vm841, %v3125, 0
  %v3135 = vsel %vm841, %v3127, 0
  %3137 = vmatprep.subr.bf16.mxu0 0
  %3138 = vmatpush1.bf16.xpose.msra.mxu0 %v3132
  %3139 = vmatprep.subr.bf16.mxu0 0
  %3140 = vmatpush1.bf16.xpose.msra.mxu0 %v3135
  %3141 = vmatprep.subr.bf16.mxu0 0
  %3142 = vmatpush1.bf16.xpose.msra.mxu0 0
  %3143 = vmatprep.subr.bf16.mxu0 0
  %3144 = vmatpush1.bf16.xpose.msra.mxu0 0
  %3145 = vmatprep.subr.bf16.mxu0 0
  %3146 = vmatpush1.bf16.xpose.msra.mxu0 0
  %3147 = vmatprep.subr.bf16.mxu0 0
  %3148 = vmatpush1.bf16.xpose.msra.mxu0 0
  %3149 = vmatprep.subr.bf16.mxu0 0
  %3150 = vmatpush1.bf16.xpose.msra.mxu0 0
  %3151 = vmatprep.subr.bf16.mxu0 0
  %3152 = vmatpush1.bf16.xpose.msra.mxu0 0
  %3153 = vmatprep.subr.bf16.mxu0 0
  %3154 = vmatpush1.bf16.xpose.msra.mxu0 0
  %3155 = vmatprep.subr.bf16.mxu0 0
  %3156 = vmatpush1.bf16.xpose.msra.mxu0 0
  %3157 = vmatprep.subr.bf16.mxu0 0
  %3158 = vmatpush1.bf16.xpose.msra.mxu0 0
  %3159 = vmatprep.subr.bf16.mxu0 0
  %3160 = vmatpush1.bf16.xpose.msra.mxu0 0
  %3161 = vmatprep.subr.bf16.mxu0 0
  %3162 = vmatpush1.bf16.xpose.msra.mxu0 0
  %3163 = vmatprep.subr.bf16.mxu0 0
  %3164 = vmatpush1.bf16.xpose.msra.mxu0 0
  %3165 = vmatprep.subr.bf16.mxu0 0
  %3166 = vmatpush1.bf16.xpose.msra.mxu0 0
  %3167 = vmatprep.subr.bf16.mxu0 0
  %3168 = vmatpush1.bf16.xpose.msra.mxu0 0
  %3169 = vmatprep.mubr.bf16.mxu0 0
  %3170 = vmatmul.mubr.bf16.gmra.mrb[0].mxu0 %v3129
  %v3171 = vpop.f32.mrb[0].mxu0
  %v3172 = vadd.f32 0.0, %v3171
  %v3173 = vpop.f32.mrb[0].mxu0
  %v3174 = vpop.f32.mrb[0].mxu0
  %v3175 = vpop.f32.mrb[0].mxu0
  %3176 = vdwg.mxu0
  %v3177 = vmul.f32 %v3117, 0.35355338
  %v3178 = vmul.f32 %v3172, 0.35355338
  %v3179 = vadd.f32 %v3177, %v452
  %v3180 = vadd.f32 %v3178, %v452
  %v3181 = vsel %vm2698, %v3179, -inf
  %3182 = vmax.xlane.f32.xlu0 %v3181
  %v3183 = vpop.xlane.xlu0 %3182
  %v3184 = vsel %vm2698, %v3180, -inf
  %3185 = vmax.xlane.f32.xlu0 %v3184
  %v3186 = vpop.xlane.xlu0 %3185
  %v3187 = vsub.f32 %v3179, %v3183
  %v3188 = vsub.f32 %v3180, %v3186
  %v3189 = vmul.f32 %v3187, 1.442695
  %v3190 = vpow.pop %v3189
  %v3191 = vmul.f32 %v3188, 1.442695
  %v3192 = vpow.pop %v3191
  %v3193 = vsel %vm2698, %v3190, 0.0
  %3194 = vadd.xlane.f32.xlu0 %v3193
  %v3195 = vpop.xlane.xlu0 %3194
  %v3196 = vsel %vm2698, %v3192, 0.0
  %3197 = vadd.xlane.f32.xlu0 %v3196
  %v3198 = vpop.xlane.xlu0 %3197
  %v3199 = vrcp.pop %v3195
  %v3200 = vmul.f32 %v3190, %v3199
  %v3201 = vrcp.pop %v3198
  %v3202 = vmul.f32 %v3192, %v3201
  %v3203 = vpack.c.bf16 %v3200, %v3200
  %v3204 = vpack.c.bf16 %v3202, %v3202
  %3205 = vrot.lane.b32.xlu0 %v2592, 112
  %v3206 = vpop.permute.xlu0 %3205
  %3207 = vrot.lane.b32.xlu0 %v2593, 112
  %v3208 = vpop.permute.xlu0 %3207
  %v3211 = vsel %vm2723, %v3203, 0
  %v3214 = vsel %vm2727, %v3208, 0
  %3216 = vmatprep.subr.bf16.mxu0 0
  %3217 = vmatpush1.bf16.msra.mxu0 %v3206
  %3218 = vmatprep.subr.bf16.mxu0 0
  %3219 = vmatpush1.bf16.msra.mxu0 %v3214
  %3220 = vmatprep.subr.bf16.mxu0 0
  %3221 = vmatpush1.bf16.msra.mxu0 0
  %3222 = vmatprep.subr.bf16.mxu0 0
  %3223 = vmatpush1.bf16.msra.mxu0 0
  %3224 = vmatprep.subr.bf16.mxu0 0
  %3225 = vmatpush1.bf16.msra.mxu0 0
  %3226 = vmatprep.subr.bf16.mxu0 0
  %3227 = vmatpush1.bf16.msra.mxu0 0
  %3228 = vmatprep.subr.bf16.mxu0 0
  %3229 = vmatpush1.bf16.msra.mxu0 0
  %3230 = vmatprep.subr.bf16.mxu0 0
  %3231 = vmatpush1.bf16.msra.mxu0 0
  %3232 = vmatprep.subr.bf16.mxu0 0
  %3233 = vmatpush1.bf16.msra.mxu0 0
  %3234 = vmatprep.subr.bf16.mxu0 0
  %3235 = vmatpush1.bf16.msra.mxu0 0
  %3236 = vmatprep.subr.bf16.mxu0 0
  %3237 = vmatpush1.bf16.msra.mxu0 0
  %3238 = vmatprep.subr.bf16.mxu0 0
  %3239 = vmatpush1.bf16.msra.mxu0 0
  %3240 = vmatprep.subr.bf16.mxu0 0
  %3241 = vmatpush1.bf16.msra.mxu0 0
  %3242 = vmatprep.subr.bf16.mxu0 0
  %3243 = vmatpush1.bf16.msra.mxu0 0
  %3244 = vmatprep.subr.bf16.mxu0 0
  %3245 = vmatpush1.bf16.msra.mxu0 0
  %3246 = vmatprep.subr.bf16.mxu0 0
  %3247 = vmatpush1.bf16.msra.mxu0 0
  %3248 = vmatprep.mubr.bf16.mxu0 0
  %3249 = vmatmul.mubr.bf16.gmra.mrb[0].mxu0 %v3211
  %v3250 = vpop.f32.mrb[0].mxu0
  %v3251 = vadd.f32 0.0, %v3250
  %v3252 = vpop.f32.mrb[0].mxu0
  %v3253 = vpop.f32.mrb[0].mxu0
  %v3254 = vpop.f32.mrb[0].mxu0
  %3255 = vdwg.mxu0
  %3256 = vrot.lane.b32.xlu0 %v2594, 112
  %v3257 = vpop.permute.xlu0 %3256
  %3258 = vrot.lane.b32.xlu0 %v2595, 112
  %v3259 = vpop.permute.xlu0 %3258
  %v3262 = vsel %vm2723, %v3204, 0
  %v3265 = vsel %vm2727, %v3259, 0
  %3267 = vmatprep.subr.bf16.mxu0 0
  %3268 = vmatpush1.bf16.msra.mxu0 %v3257
  %3269 = vmatprep.subr.bf16.mxu0 0
  %3270 = vmatpush1.bf16.msra.mxu0 %v3265
  %3271 = vmatprep.subr.bf16.mxu0 0
  %3272 = vmatpush1.bf16.msra.mxu0 0
  %3273 = vmatprep.subr.bf16.mxu0 0
  %3274 = vmatpush1.bf16.msra.mxu0 0
  %3275 = vmatprep.subr.bf16.mxu0 0
  %3276 = vmatpush1.bf16.msra.mxu0 0
  %3277 = vmatprep.subr.bf16.mxu0 0
  %3278 = vmatpush1.bf16.msra.mxu0 0
  %3279 = vmatprep.subr.bf16.mxu0 0
  %3280 = vmatpush1.bf16.msra.mxu0 0
  %3281 = vmatprep.subr.bf16.mxu0 0
  %3282 = vmatpush1.bf16.msra.mxu0 0
  %3283 = vmatprep.subr.bf16.mxu0 0
  %3284 = vmatpush1.bf16.msra.mxu0 0
  %3285 = vmatprep.subr.bf16.mxu0 0
  %3286 = vmatpush1.bf16.msra.mxu0 0
  %3287 = vmatprep.subr.bf16.mxu0 0
  %3288 = vmatpush1.bf16.msra.mxu0 0
  %3289 = vmatprep.subr.bf16.mxu0 0
  %3290 = vmatpush1.bf16.msra.mxu0 0
  %3291 = vmatprep.subr.bf16.mxu0 0
  %3292 = vmatpush1.bf16.msra.mxu0 0
  %3293 = vmatprep.subr.bf16.mxu0 0
  %3294 = vmatpush1.bf16.msra.mxu0 0
  %3295 = vmatprep.subr.bf16.mxu0 0
  %3296 = vmatpush1.bf16.msra.mxu0 0
  %3297 = vmatprep.subr.bf16.mxu0 0
  %3298 = vmatpush1.bf16.msra.mxu0 0
  %3299 = vmatprep.mubr.bf16.mxu0 0
  %3300 = vmatmul.mubr.bf16.gmra.mrb[0].mxu0 %v3262
  %v3301 = vpop.f32.mrb[0].mxu0
  %v3302 = vadd.f32 0.0, %v3301
  %v3303 = vpop.f32.mrb[0].mxu0
  %v3304 = vpop.f32.mrb[0].mxu0
  %v3305 = vpop.f32.mrb[0].mxu0
  %3306 = vdwg.mxu0
  %3307 = vrot.lane.b32.xlu0 %v2554, 104
  %v3308 = vpop.permute.xlu0 %3307
  %3309 = vrot.lane.b32.xlu0 %v2572, 104
  %v3310 = vpop.permute.xlu0 %3309
  %3311 = vrot.lane.b32.xlu0 %v2573, 104
  %v3312 = vpop.permute.xlu0 %3311
  %v3314 = vsel %vm841, %v3308, 0
  %v3317 = vsel %vm841, %v3310, 0
  %v3320 = vsel %vm841, %v3312, 0
  %3322 = vmatprep.subr.bf16.mxu0 0
  %3323 = vmatpush1.bf16.xpose.msra.mxu0 %v3317
  %3324 = vmatprep.subr.bf16.mxu0 0
  %3325 = vmatpush1.bf16.xpose.msra.mxu0 %v3320
  %3326 = vmatprep.subr.bf16.mxu0 0
  %3327 = vmatpush1.bf16.xpose.msra.mxu0 0
  %3328 = vmatprep.subr.bf16.mxu0 0
  %3329 = vmatpush1.bf16.xpose.msra.mxu0 0
  %3330 = vmatprep.subr.bf16.mxu0 0
  %3331 = vmatpush1.bf16.xpose.msra.mxu0 0
  %3332 = vmatprep.subr.bf16.mxu0 0
  %3333 = vmatpush1.bf16.xpose.msra.mxu0 0
  %3334 = vmatprep.subr.bf16.mxu0 0
  %3335 = vmatpush1.bf16.xpose.msra.mxu0 0
  %3336 = vmatprep.subr.bf16.mxu0 0
  %3337 = vmatpush1.bf16.xpose.msra.mxu0 0
  %3338 = vmatprep.subr.bf16.mxu0 0
  %3339 = vmatpush1.bf16.xpose.msra.mxu0 0
  %3340 = vmatprep.subr.bf16.mxu0 0
  %3341 = vmatpush1.bf16.xpose.msra.mxu0 0
  %3342 = vmatprep.subr.bf16.mxu0 0
  %3343 = vmatpush1.bf16.xpose.msra.mxu0 0
  %3344 = vmatprep.subr.bf16.mxu0 0
  %3345 = vmatpush1.bf16.xpose.msra.mxu0 0
  %3346 = vmatprep.subr.bf16.mxu0 0
  %3347 = vmatpush1.bf16.xpose.msra.mxu0 0
  %3348 = vmatprep.subr.bf16.mxu0 0
  %3349 = vmatpush1.bf16.xpose.msra.mxu0 0
  %3350 = vmatprep.subr.bf16.mxu0 0
  %3351 = vmatpush1.bf16.xpose.msra.mxu0 0
  %3352 = vmatprep.subr.bf16.mxu0 0
  %3353 = vmatpush1.bf16.xpose.msra.mxu0 0
  %3354 = vmatprep.mubr.bf16.mxu0 0
  %3355 = vmatmul.mubr.bf16.gmra.mrb[0].mxu0 %v3314
  %v3356 = vpop.f32.mrb[0].mxu0
  %v3357 = vadd.f32 0.0, %v3356
  %v3358 = vpop.f32.mrb[0].mxu0
  %v3359 = vpop.f32.mrb[0].mxu0
  %v3360 = vpop.f32.mrb[0].mxu0
  %3361 = vdwg.mxu0
  %3362 = vrot.lane.b32.xlu0 %v2555, 104
  %v3363 = vpop.permute.xlu0 %3362
  %3364 = vrot.lane.b32.xlu0 %v2574, 104
  %v3365 = vpop.permute.xlu0 %3364
  %3366 = vrot.lane.b32.xlu0 %v2575, 104
  %v3367 = vpop.permute.xlu0 %3366
  %v3369 = vsel %vm841, %v3363, 0
  %v3372 = vsel %vm841, %v3365, 0
  %v3375 = vsel %vm841, %v3367, 0
  %3377 = vmatprep.subr.bf16.mxu0 0
  %3378 = vmatpush1.bf16.xpose.msra.mxu0 %v3372
  %3379 = vmatprep.subr.bf16.mxu0 0
  %3380 = vmatpush1.bf16.xpose.msra.mxu0 %v3375
  %3381 = vmatprep.subr.bf16.mxu0 0
  %3382 = vmatpush1.bf16.xpose.msra.mxu0 0
  %3383 = vmatprep.subr.bf16.mxu0 0
  %3384 = vmatpush1.bf16.xpose.msra.mxu0 0
  %3385 = vmatprep.subr.bf16.mxu0 0
  %3386 = vmatpush1.bf16.xpose.msra.mxu0 0
  %3387 = vmatprep.subr.bf16.mxu0 0
  %3388 = vmatpush1.bf16.xpose.msra.mxu0 0
  %3389 = vmatprep.subr.bf16.mxu0 0
  %3390 = vmatpush1.bf16.xpose.msra.mxu0 0
  %3391 = vmatprep.subr.bf16.mxu0 0
  %3392 = vmatpush1.bf16.xpose.msra.mxu0 0
  %3393 = vmatprep.subr.bf16.mxu0 0
  %3394 = vmatpush1.bf16.xpose.msra.mxu0 0
  %3395 = vmatprep.subr.bf16.mxu0 0
  %3396 = vmatpush1.bf16.xpose.msra.mxu0 0
  %3397 = vmatprep.subr.bf16.mxu0 0
  %3398 = vmatpush1.bf16.xpose.msra.mxu0 0
  %3399 = vmatprep.subr.bf16.mxu0 0
  %3400 = vmatpush1.bf16.xpose.msra.mxu0 0
  %3401 = vmatprep.subr.bf16.mxu0 0
  %3402 = vmatpush1.bf16.xpose.msra.mxu0 0
  %3403 = vmatprep.subr.bf16.mxu0 0
  %3404 = vmatpush1.bf16.xpose.msra.mxu0 0
  %3405 = vmatprep.subr.bf16.mxu0 0
  %3406 = vmatpush1.bf16.xpose.msra.mxu0 0
  %3407 = vmatprep.subr.bf16.mxu0 0
  %3408 = vmatpush1.bf16.xpose.msra.mxu0 0
  %3409 = vmatprep.mubr.bf16.mxu0 0
  %3410 = vmatmul.mubr.bf16.gmra.mrb[0].mxu0 %v3369
  %v3411 = vpop.f32.mrb[0].mxu0
  %v3412 = vadd.f32 0.0, %v3411
  %v3413 = vpop.f32.mrb[0].mxu0
  %v3414 = vpop.f32.mrb[0].mxu0
  %v3415 = vpop.f32.mrb[0].mxu0
  %3416 = vdwg.mxu0
  %v3417 = vmul.f32 %v3357, 0.35355338
  %v3418 = vmul.f32 %v3412, 0.35355338
  %v3419 = vadd.f32 %v3417, %v452
  %v3420 = vadd.f32 %v3418, %v452
  %v3421 = vsel %vm2698, %v3419, -inf
  %3422 = vmax.xlane.f32.xlu0 %v3421
  %v3423 = vpop.xlane.xlu0 %3422
  %v3424 = vsel %vm2698, %v3420, -inf
  %3425 = vmax.xlane.f32.xlu0 %v3424
  %v3426 = vpop.xlane.xlu0 %3425
  %v3427 = vsub.f32 %v3419, %v3423
  %v3428 = vsub.f32 %v3420, %v3426
  %v3429 = vmul.f32 %v3427, 1.442695
  %v3430 = vpow.pop %v3429
  %v3431 = vmul.f32 %v3428, 1.442695
  %v3432 = vpow.pop %v3431
  %v3433 = vsel %vm2698, %v3430, 0.0
  %3434 = vadd.xlane.f32.xlu0 %v3433
  %v3435 = vpop.xlane.xlu0 %3434
  %v3436 = vsel %vm2698, %v3432, 0.0
  %3437 = vadd.xlane.f32.xlu0 %v3436
  %v3438 = vpop.xlane.xlu0 %3437
  %v3439 = vrcp.pop %v3435
  %v3440 = vmul.f32 %v3430, %v3439
  %v3441 = vrcp.pop %v3438
  %v3442 = vmul.f32 %v3432, %v3441
  %v3443 = vpack.c.bf16 %v3440, %v3440
  %v3444 = vpack.c.bf16 %v3442, %v3442
  %3445 = vrot.lane.b32.xlu0 %v2592, 104
  %v3446 = vpop.permute.xlu0 %3445
  %3447 = vrot.lane.b32.xlu0 %v2593, 104
  %v3448 = vpop.permute.xlu0 %3447
  %v3451 = vsel %vm2723, %v3443, 0
  %v3454 = vsel %vm2727, %v3448, 0
  %3456 = vmatprep.subr.bf16.mxu0 0
  %3457 = vmatpush1.bf16.msra.mxu0 %v3446
  %3458 = vmatprep.subr.bf16.mxu0 0
  %3459 = vmatpush1.bf16.msra.mxu0 %v3454
  %3460 = vmatprep.subr.bf16.mxu0 0
  %3461 = vmatpush1.bf16.msra.mxu0 0
  %3462 = vmatprep.subr.bf16.mxu0 0
  %3463 = vmatpush1.bf16.msra.mxu0 0
  %3464 = vmatprep.subr.bf16.mxu0 0
  %3465 = vmatpush1.bf16.msra.mxu0 0
  %3466 = vmatprep.subr.bf16.mxu0 0
  %3467 = vmatpush1.bf16.msra.mxu0 0
  %3468 = vmatprep.subr.bf16.mxu0 0
  %3469 = vmatpush1.bf16.msra.mxu0 0
  %3470 = vmatprep.subr.bf16.mxu0 0
  %3471 = vmatpush1.bf16.msra.mxu0 0
  %3472 = vmatprep.subr.bf16.mxu0 0
  %3473 = vmatpush1.bf16.msra.mxu0 0
  %3474 = vmatprep.subr.bf16.mxu0 0
  %3475 = vmatpush1.bf16.msra.mxu0 0
  %3476 = vmatprep.subr.bf16.mxu0 0
  %3477 = vmatpush1.bf16.msra.mxu0 0
  %3478 = vmatprep.subr.bf16.mxu0 0
  %3479 = vmatpush1.bf16.msra.mxu0 0
  %3480 = vmatprep.subr.bf16.mxu0 0
  %3481 = vmatpush1.bf16.msra.mxu0 0
  %3482 = vmatprep.subr.bf16.mxu0 0
  %3483 = vmatpush1.bf16.msra.mxu0 0
  %3484 = vmatprep.subr.bf16.mxu0 0
  %3485 = vmatpush1.bf16.msra.mxu0 0
  %3486 = vmatprep.subr.bf16.mxu0 0
  %3487 = vmatpush1.bf16.msra.mxu0 0
  %3488 = vmatprep.mubr.bf16.mxu0 0
  %3489 = vmatmul.mubr.bf16.gmra.mrb[0].mxu0 %v3451
  %v3490 = vpop.f32.mrb[0].mxu0
  %v3491 = vadd.f32 0.0, %v3490
  %v3492 = vpop.f32.mrb[0].mxu0
  %v3493 = vpop.f32.mrb[0].mxu0
  %v3494 = vpop.f32.mrb[0].mxu0
  %3495 = vdwg.mxu0
  %3496 = vrot.lane.b32.xlu0 %v2594, 104
  %v3497 = vpop.permute.xlu0 %3496
  %3498 = vrot.lane.b32.xlu0 %v2595, 104
  %v3499 = vpop.permute.xlu0 %3498
  %v3502 = vsel %vm2723, %v3444, 0
  %v3505 = vsel %vm2727, %v3499, 0
  %3507 = vmatprep.subr.bf16.mxu0 0
  %3508 = vmatpush1.bf16.msra.mxu0 %v3497
  %3509 = vmatprep.subr.bf16.mxu0 0
  %3510 = vmatpush1.bf16.msra.mxu0 %v3505
  %3511 = vmatprep.subr.bf16.mxu0 0
  %3512 = vmatpush1.bf16.msra.mxu0 0
  %3513 = vmatprep.subr.bf16.mxu0 0
  %3514 = vmatpush1.bf16.msra.mxu0 0
  %3515 = vmatprep.subr.bf16.mxu0 0
  %3516 = vmatpush1.bf16.msra.mxu0 0
  %3517 = vmatprep.subr.bf16.mxu0 0
  %3518 = vmatpush1.bf16.msra.mxu0 0
  %3519 = vmatprep.subr.bf16.mxu0 0
  %3520 = vmatpush1.bf16.msra.mxu0 0
  %3521 = vmatprep.subr.bf16.mxu0 0
  %3522 = vmatpush1.bf16.msra.mxu0 0
  %3523 = vmatprep.subr.bf16.mxu0 0
  %3524 = vmatpush1.bf16.msra.mxu0 0
  %3525 = vmatprep.subr.bf16.mxu0 0
  %3526 = vmatpush1.bf16.msra.mxu0 0
  %3527 = vmatprep.subr.bf16.mxu0 0
  %3528 = vmatpush1.bf16.msra.mxu0 0
  %3529 = vmatprep.subr.bf16.mxu0 0
  %3530 = vmatpush1.bf16.msra.mxu0 0
  %3531 = vmatprep.subr.bf16.mxu0 0
  %3532 = vmatpush1.bf16.msra.mxu0 0
  %3533 = vmatprep.subr.bf16.mxu0 0
  %3534 = vmatpush1.bf16.msra.mxu0 0
  %3535 = vmatprep.subr.bf16.mxu0 0
  %3536 = vmatpush1.bf16.msra.mxu0 0
  %3537 = vmatprep.subr.bf16.mxu0 0
  %3538 = vmatpush1.bf16.msra.mxu0 0
  %3539 = vmatprep.mubr.bf16.mxu0 0
  %3540 = vmatmul.mubr.bf16.gmra.mrb[0].mxu0 %v3502
  %v3541 = vpop.f32.mrb[0].mxu0
  %v3542 = vadd.f32 0.0, %v3541
  %v3543 = vpop.f32.mrb[0].mxu0
  %v3544 = vpop.f32.mrb[0].mxu0
  %v3545 = vpop.f32.mrb[0].mxu0
  %3546 = vdwg.mxu0
  %3549 = vrot.lane.b32.xlu0 %v3009, 8
  %v3550 = vpop.permute.xlu0 %3549
  %3551 = vrot.lane.b32.xlu0 %v3062, 8
  %v3552 = vpop.permute.xlu0 %3551
  %3557 = vrot.lane.b32.xlu0 %v3251, 16
  %v3558 = vpop.permute.xlu0 %3557
  %3559 = vrot.lane.b32.xlu0 %v3302, 16
  %v3560 = vpop.permute.xlu0 %3559
  %3565 = vrot.lane.b32.xlu0 %v3491, 24
  %v3566 = vpop.permute.xlu0 %3565
  %3567 = vrot.lane.b32.xlu0 %v3542, 24
  %v3568 = vpop.permute.xlu0 %3567
  %v3571 = vsel %vm841, %v2766, %v3550
  %v3572 = vsel %vm841, %v2812, %v3552
  %v3573 = vsel %vm1818, %v3571, %v3558
  %v3574 = vsel %vm1818, %v3572, %v3560
  %v3575 = vsel %vm944, %v3573, %v3566
  %v3576 = vsel %vm944, %v3574, %v3568
  %v3577 = vpack.c.bf16 %v3575, %v3575
  %v3578 = vpack.c.bf16 %v3576, %v3576
  %v3581 = vcombine.low %v3577, %v3578
  %v3583 = vunpack.c.l.s4 1983009808
  %v3584 = vunpack.c.0.s8 %v3583
  %v3585 = vlaneseq
  %v3586 = vshrl.u32 %v3585, 7
  %v3587 = vsub.s32 %v3584, %v3586
  %v3588 = vrot.slane %v3581, %v3587
  %v3589 = vunpack.c.h.b16 %v2122
  %v3590 = vunpack.c.h.b16 %v2125
  %v3591 = vunpack.c.h.b16 %v2128
  %v3592 = vunpack.c.h.b16 %v2131
  %v3593 = vpack.c.b16 %v3590, %v3589
  %v3594 = vpack.c.b16 %v3592, %v3591
  %v3598 = vsel %vm514, %v3588, 0
  %3600 = vmatprep.subr.bf16.mxu0 0
  %3601 = vmatpush1.bf16.msra.mxu0 %v3593
  %3602 = vmatprep.subr.bf16.mxu0 0
  %3603 = vmatpush1.bf16.msra.mxu0 %v3594
  %3604 = vmatprep.subr.bf16.mxu0 0
  %3605 = vmatpush1.bf16.msra.mxu0 0
  %3606 = vmatprep.subr.bf16.mxu0 0
  %3607 = vmatpush1.bf16.msra.mxu0 0
  %3608 = vmatprep.subr.bf16.mxu0 0
  %3609 = vmatpush1.bf16.msra.mxu0 0
  %3610 = vmatprep.subr.bf16.mxu0 0
  %3611 = vmatpush1.bf16.msra.mxu0 0
  %3612 = vmatprep.subr.bf16.mxu0 0
  %3613 = vmatpush1.bf16.msra.mxu0 0
  %3614 = vmatprep.subr.bf16.mxu0 0
  %3615 = vmatpush1.bf16.msra.mxu0 0
  %3616 = vmatprep.subr.bf16.mxu0 0
  %3617 = vmatpush1.bf16.msra.mxu0 0
  %3618 = vmatprep.subr.bf16.mxu0 0
  %3619 = vmatpush1.bf16.msra.mxu0 0
  %3620 = vmatprep.subr.bf16.mxu0 0
  %3621 = vmatpush1.bf16.msra.mxu0 0
  %3622 = vmatprep.subr.bf16.mxu0 0
  %3623 = vmatpush1.bf16.msra.mxu0 0
  %3624 = vmatprep.subr.bf16.mxu0 0
  %3625 = vmatpush1.bf16.msra.mxu0 0
  %3626 = vmatprep.subr.bf16.mxu0 0
  %3627 = vmatpush1.bf16.msra.mxu0 0
  %3628 = vmatprep.subr.bf16.mxu0 0
  %3629 = vmatpush1.bf16.msra.mxu0 0
  %3630 = vmatprep.subr.bf16.mxu0 0
  %3631 = vmatpush1.bf16.msra.mxu0 0
  %3632 = vmatprep.mubr.bf16.mxu0 0
  %3633 = vmatmul.mubr.bf16.gmra.mrb[0].mxu0 %v3598
  %v3634 = vpop.f32.mrb[0].mxu0
  %v3635 = vadd.f32 0.0, %v3634
  %v3636 = vpop.f32.mrb[0].mxu0
  %v3637 = vpop.f32.mrb[0].mxu0
  %v3638 = vpop.f32.mrb[0].mxu0
  %3639 = vdwg.mxu0
  %v3641 = vcombine.high %v3635, %v3635
  %v3643 = vadd.f32 %v445, %v3635
  %v3644 = vadd.f32 %v446, %v3641
  %v3645 = vlaneseq
  %v3646 = vshrl.u32 %v3645, 7
  %v3647 = vsub.s32 7, %v3646
  %v3648 = vrot.slane %v2151, %v3647
  %v3649 = vadd.f32 %v3643, %v3648
  %v3650 = vadd.f32 %v3644, %v3648
  %v3651 = vsel %vm2153, %v3649, 0.0
  %3652 = vadd.xlane.f32.xlu0 %v3651
  %v3653 = vpop.xlane.xlu0 %3652
  %v3654 = vsel %vm2153, %v3650, 0.0
  %3655 = vadd.xlane.f32.xlu0 %v3654
  %v3656 = vpop.xlane.xlu0 %3655
  %v3657 = vmul.f32 %v3653, %v527
  %v3658 = vmul.f32 %v3656, %v527
  %v3659 = vsub.f32 %v3649, %v3657
  %v3660 = vsub.f32 %v3650, %v3658
  %v3661 = vmul.f32 %v3659, %v3659
  %v3662 = vmul.f32 %v3660, %v3660
  %v3663 = vsel %vm2153, %v3661, 0.0
  %3664 = vadd.xlane.f32.xlu0 %v3663
  %v3665 = vpop.xlane.xlu0 %3664
  %v3666 = vsel %vm2153, %v3662, 0.0
  %3667 = vadd.xlane.f32.xlu0 %v3666
  %v3668 = vpop.xlane.xlu0 %3667
  %v3669 = vmul.f32 %v3665, %v527
  %v3670 = vmul.f32 %v3668, %v527
  %v3671 = vadd.f32 %v3669, 1e-05
  %v3672 = vadd.f32 %v3670, 1e-05
  %v3673 = vrsqrt.pop %v3671
  %v3674 = vrsqrt.pop %v3672
  %v3675 = vmul.f32 %v3659, %v3673
  %v3676 = vmul.f32 %v3660, %v3674
  %v3677 = vlaneseq
  %v3678 = vshrl.u32 %v3677, 7
  %v3679 = vsub.s32 2, %v3678
  %v3680 = vrot.slane %v2151, %v3679
  %v3681 = vmul.f32 %v3675, %v3680
  %v3682 = vmul.f32 %v3676, %v3680
  %v3683 = vlaneseq
  %v3684 = vshrl.u32 %v3683, 7
  %v3685 = vsub.s32 3, %v3684
  %v3686 = vrot.slane %v2151, %v3685
  %v3687 = vadd.f32 %v3681, %v3686
  %v3688 = vadd.f32 %v3682, %v3686
  %v3689 = vpack.c.bf16 %v3687, %v3687
  %v3690 = vpack.c.bf16 %v3688, %v3688
  %v3693 = vcombine.low %v3689, %v3690
  %v3695 = vunpack.c.l.s4 1983009808
  %v3696 = vunpack.c.0.s8 %v3695
  %v3697 = vlaneseq
  %v3698 = vshrl.u32 %v3697, 7
  %v3699 = vsub.s32 %v3696, %v3698
  %v3700 = vrot.slane %v3693, %v3699
  %v3705 = vunpack.c.l.b16 %v2123
  %v3706 = vunpack.c.l.b16 %v2126
  %v3707 = vunpack.c.l.b16 %v2129
  %v3708 = vunpack.c.l.b16 %v2132
  %v3709 = vpack.c.b16 %v3706, %v3705
  %v3710 = vpack.c.b16 %v3708, %v3707
  %v3714 = vsel %vm514, %v3700, 0
  %3716 = vmatprep.subr.bf16.mxu0 0
  %3717 = vmatpush1.bf16.msra.mxu0 %v3709
  %3718 = vmatprep.subr.bf16.mxu0 0
  %3719 = vmatpush1.bf16.msra.mxu0 %v3710
  %3720 = vmatprep.subr.bf16.mxu0 0
  %3721 = vmatpush1.bf16.msra.mxu0 0
  %3722 = vmatprep.subr.bf16.mxu0 0
  %3723 = vmatpush1.bf16.msra.mxu0 0
  %3724 = vmatprep.subr.bf16.mxu0 0
  %3725 = vmatpush1.bf16.msra.mxu0 0
  %3726 = vmatprep.subr.bf16.mxu0 0
  %3727 = vmatpush1.bf16.msra.mxu0 0
  %3728 = vmatprep.subr.bf16.mxu0 0
  %3729 = vmatpush1.bf16.msra.mxu0 0
  %3730 = vmatprep.subr.bf16.mxu0 0
  %3731 = vmatpush1.bf16.msra.mxu0 0
  %3732 = vmatprep.subr.bf16.mxu0 0
  %3733 = vmatpush1.bf16.msra.mxu0 0
  %3734 = vmatprep.subr.bf16.mxu0 0
  %3735 = vmatpush1.bf16.msra.mxu0 0
  %3736 = vmatprep.subr.bf16.mxu0 0
  %3737 = vmatpush1.bf16.msra.mxu0 0
  %3738 = vmatprep.subr.bf16.mxu0 0
  %3739 = vmatpush1.bf16.msra.mxu0 0
  %3740 = vmatprep.subr.bf16.mxu0 0
  %3741 = vmatpush1.bf16.msra.mxu0 0
  %3742 = vmatprep.subr.bf16.mxu0 0
  %3743 = vmatpush1.bf16.msra.mxu0 0
  %3744 = vmatprep.subr.bf16.mxu0 0
  %3745 = vmatpush1.bf16.msra.mxu0 0
  %3746 = vmatprep.subr.bf16.mxu0 0
  %3747 = vmatpush1.bf16.msra.mxu0 0
  %3748 = vmatprep.mubr.bf16.mxu0 0
  %3749 = vmatmul.mubr.bf16.gmra.mrb[0].mxu0 %v3714
  %v3750 = vpop.f32.mrb[0].mxu0
  %v3751 = vadd.f32 0.0, %v3750
  %v3752 = vpop.f32.mrb[0].mxu0
  %v3753 = vpop.f32.mrb[0].mxu0
  %v3754 = vpop.f32.mrb[0].mxu0
  %3755 = vdwg.mxu0
  %v3757 = vcombine.high %v3751, %v3751
  %v3759 = vlaneseq
  %v3760 = vshrl.u32 %v3759, 7
  %v3761 = vsub.s32 0, %v3760
  %v3762 = vrot.slane %v2152, %v3761
  %v3763 = vadd.f32 %v3751, %v3762
  %v3764 = vadd.f32 %v3757, %v3762
  %v3765 = vmul.f32 %v3763, %v3763
  %v3766 = vmul.f32 %v3764, %v3764
  %v3767 = vmul.f32 %v3763, %v3765
  %v3768 = vmul.f32 %v3764, %v3766
  %v3769 = vmul.f32 %v3767, 0.044715
  %v3770 = vmul.f32 %v3768, 0.044715
  %v3771 = vadd.f32 %v3763, %v3769
  %v3772 = vadd.f32 %v3764, %v3770
  %v3773 = vmul.f32 %v3771, 0.7978846
  %v3774 = vmul.f32 %v3772, 0.7978846
  %v3775 = vtanh.pop %v3773
  %v3776 = vtanh.pop %v3774
  %v3777 = vadd.f32 %v3775, 1.0
  %v3778 = vadd.f32 %v3776, 1.0
  %v3779 = vmul.f32 %v3777, 0.5
  %v3780 = vmul.f32 %v3778, 0.5
  %v3781 = vmul.f32 %v3763, %v3779
  %v3782 = vmul.f32 %v3764, %v3780
  %v3783 = vpack.c.bf16 %v3781, %v3781
  %v3784 = vpack.c.bf16 %v3782, %v3782
  %v3787 = vcombine.low %v3783, %v3784
  %v3789 = vunpack.c.l.s4 1983009808
  %v3790 = vunpack.c.0.s8 %v3789
  %v3791 = vlaneseq
  %v3792 = vshrl.u32 %v3791, 7
  %v3793 = vsub.s32 %v3790, %v3792
  %v3794 = vrot.slane %v3787, %v3793
  %v3812 = vunpack.c.l.b16 %v2134
  %v3813 = vunpack.c.l.b16 %v2135
  %v3814 = vunpack.c.l.b16 %v2136
  %v3815 = vunpack.c.l.b16 %v2137
  %v3816 = vunpack.c.l.b16 %v2138
  %v3817 = vunpack.c.l.b16 %v2139
  %v3818 = vunpack.c.l.b16 %v2140
  %v3819 = vunpack.c.l.b16 %v2141
  %v3820 = vunpack.c.l.b16 %v2142
  %v3821 = vunpack.c.l.b16 %v2143
  %v3822 = vunpack.c.l.b16 %v2144
  %v3823 = vunpack.c.l.b16 %v2145
  %v3824 = vunpack.c.l.b16 %v2146
  %v3825 = vunpack.c.l.b16 %v2147
  %v3826 = vunpack.c.l.b16 %v2148
  %v3827 = vunpack.c.l.b16 %v2149
  %v3828 = vpack.c.b16 %v3813, %v3812
  %v3829 = vpack.c.b16 %v3815, %v3814
  %v3830 = vpack.c.b16 %v3817, %v3816
  %v3831 = vpack.c.b16 %v3819, %v3818
  %v3832 = vpack.c.b16 %v3821, %v3820
  %v3833 = vpack.c.b16 %v3823, %v3822
  %v3834 = vpack.c.b16 %v3825, %v3824
  %v3835 = vpack.c.b16 %v3827, %v3826
  %3844 = vmatprep.subr.bf16.mxu0 0
  %3845 = vmatpush1.bf16.msra.mxu0 %v3828
  %3846 = vmatprep.subr.bf16.mxu0 0
  %3847 = vmatpush1.bf16.msra.mxu0 %v3829
  %3848 = vmatprep.subr.bf16.mxu0 0
  %3849 = vmatpush1.bf16.msra.mxu0 %v3830
  %3850 = vmatprep.subr.bf16.mxu0 0
  %3851 = vmatpush1.bf16.msra.mxu0 %v3831
  %3852 = vmatprep.subr.bf16.mxu0 0
  %3853 = vmatpush1.bf16.msra.mxu0 %v3832
  %3854 = vmatprep.subr.bf16.mxu0 0
  %3855 = vmatpush1.bf16.msra.mxu0 %v3833
  %3856 = vmatprep.subr.bf16.mxu0 0
  %3857 = vmatpush1.bf16.msra.mxu0 %v3834
  %3858 = vmatprep.subr.bf16.mxu0 0
  %3859 = vmatpush1.bf16.msra.mxu0 %v3835
  %3860 = vmatprep.subr.bf16.mxu0 0
  %3861 = vmatpush1.bf16.msra.mxu0 0
  %3862 = vmatprep.subr.bf16.mxu0 0
  %3863 = vmatpush1.bf16.msra.mxu0 0
  %3864 = vmatprep.subr.bf16.mxu0 0
  %3865 = vmatpush1.bf16.msra.mxu0 0
  %3866 = vmatprep.subr.bf16.mxu0 0
  %3867 = vmatpush1.bf16.msra.mxu0 0
  %3868 = vmatprep.subr.bf16.mxu0 0
  %3869 = vmatpush1.bf16.msra.mxu0 0
  %3870 = vmatprep.subr.bf16.mxu0 0
  %3871 = vmatpush1.bf16.msra.mxu0 0
  %3872 = vmatprep.subr.bf16.mxu0 0
  %3873 = vmatpush1.bf16.msra.mxu0 0
  %3874 = vmatprep.subr.bf16.mxu0 0
  %3875 = vmatpush1.bf16.msra.mxu0 0
  %3876 = vmatprep.mubr.bf16.mxu0 0
  %3877 = vmatmul.mubr.bf16.gmra.mrb[0].mxu0 %v3794
  %v3878 = vpop.f32.mrb[0].mxu0
  %v3879 = vadd.f32 0.0, %v3878
  %v3880 = vpop.f32.mrb[0].mxu0
  %v3881 = vpop.f32.mrb[0].mxu0
  %v3882 = vpop.f32.mrb[0].mxu0
  %3883 = vdwg.mxu0
  %v3885 = vcombine.high %v3879, %v3879
  %v3887 = vadd.f32 %v3649, %v3879
  %v3888 = vadd.f32 %v3650, %v3885
  %v3889 = vlaneseq
  %v3890 = vshrl.u32 %v3889, 7
  %v3891 = vsub.s32 1, %v3890
  %v3892 = vrot.slane %v2152, %v3891
  %v3893 = vadd.f32 %v3887, %v3892
  %v3894 = vadd.f32 %v3888, %v3892
  %v3895 = vld [vmem:[%s7] sm:$0xff]
  %v3896 = vld [vmem:[%s7 + $0x8] sm:$0xff]
  %v3897 = vld [vmem:[%s7 + $0x10] sm:$0xff]
  %v3898 = vld [vmem:[%s7 + $0x18] sm:$0xff]
  %v3899 = vld [vmem:[%s7 + $0x20] sm:$0xff]
  %v3900 = vld [vmem:[%s7 + $0x28] sm:$0xff]
  %v3901 = vld [vmem:[%s7 + $0x30] sm:$0xff]
  %v3902 = vld [vmem:[%s7 + $0x38] sm:$0xff]
  %v3903 = vld [vmem:[%s8] sm:$0xf]
  %v3904 = vld [vmem:[%s9] sm:$0xf]
  %v3905 = vld [vmem:[%s9 + $0x4] sm:$0xf]
  %v3906 = vld [vmem:[%s9 + $0x8] sm:$0xf]
  %v3907 = vld [vmem:[%s9 + $0xc] sm:$0xf]
  %v3908 = vld [vmem:[%s10] sm:$0xff]
  %v3909 = vld [vmem:[%s10 + $0x8] sm:$0xf]
  %v3910 = vlaneseq
  %v3911 = vshrl.u32 %v3910, 7
  %v3912 = vsub.s32 0, %v3911
  %v3913 = vrot.slane %v3908, %v3912
  %v3914 = vmul.f32 %v564, %v3913
  %v3915 = vmul.f32 %v565, %v3913
  %v3916 = vlaneseq
  %v3917 = vshrl.u32 %v3916, 7
  %v3918 = vsub.s32 1, %v3917
  %v3919 = vrot.slane %v3908, %v3918
  %v3920 = vadd.f32 %v3914, %v3919
  %v3921 = vadd.f32 %v3915, %v3919
  %v3922 = vpack.c.bf16 %v3921, %v3920
  %v3923 = vlaneseq
  %v3924 = vshrl.u32 %v3923, 7
  %v3925 = vsub.s32 2, %v3924
  %v3926 = vrot.slane %v3908, %v3925
  %v3927 = vmul.f32 %v566, %v3926
  %v3928 = vmul.f32 %v2178, %v3926
  %v3929 = vmul.f32 %v567, %v3926
  %v3930 = vmul.f32 %v2179, %v3926
  %v3931 = vlaneseq
  %v3932 = vshrl.u32 %v3931, 7
  %v3933 = vsub.s32 3, %v3932
  %v3934 = vrot.slane %v3908, %v3933
  %v3935 = vadd.f32 %v3927, %v3934
  %v3936 = vadd.f32 %v3928, %v3934
  %v3937 = vadd.f32 %v3929, %v3934
  %v3938 = vadd.f32 %v3930, %v3934
  %v3939 = vpack.c.bf16 %v3936, %v3935
  %v3940 = vpack.c.bf16 %v3938, %v3937
  %v3945 = vunpack.c.l.b16 %v3895
  %v3946 = vunpack.c.l.b16 %v3897
  %v3947 = vunpack.c.l.b16 %v3899
  %v3948 = vunpack.c.l.b16 %v3901
  %v3949 = vpack.c.b16 %v3946, %v3945
  %v3950 = vpack.c.b16 %v3948, %v3947
  %v3954 = vsel %vm514, %v3922, 0
  %3956 = vmatprep.subr.bf16.mxu0 0
  %3957 = vmatpush1.bf16.msra.mxu0 %v3949
  %3958 = vmatprep.subr.bf16.mxu0 0
  %3959 = vmatpush1.bf16.msra.mxu0 %v3950
  %3960 = vmatprep.subr.bf16.mxu0 0
  %3961 = vmatpush1.bf16.msra.mxu0 0
  %3962 = vmatprep.subr.bf16.mxu0 0
  %3963 = vmatpush1.bf16.msra.mxu0 0
  %3964 = vmatprep.subr.bf16.mxu0 0
  %3965 = vmatpush1.bf16.msra.mxu0 0
  %3966 = vmatprep.subr.bf16.mxu0 0
  %3967 = vmatpush1.bf16.msra.mxu0 0
  %3968 = vmatprep.subr.bf16.mxu0 0
  %3969 = vmatpush1.bf16.msra.mxu0 0
  %3970 = vmatprep.subr.bf16.mxu0 0
  %3971 = vmatpush1.bf16.msra.mxu0 0
  %3972 = vmatprep.subr.bf16.mxu0 0
  %3973 = vmatpush1.bf16.msra.mxu0 0
  %3974 = vmatprep.subr.bf16.mxu0 0
  %3975 = vmatpush1.bf16.msra.mxu0 0
  %3976 = vmatprep.subr.bf16.mxu0 0
  %3977 = vmatpush1.bf16.msra.mxu0 0
  %3978 = vmatprep.subr.bf16.mxu0 0
  %3979 = vmatpush1.bf16.msra.mxu0 0
  %3980 = vmatprep.subr.bf16.mxu0 0
  %3981 = vmatpush1.bf16.msra.mxu0 0
  %3982 = vmatprep.subr.bf16.mxu0 0
  %3983 = vmatpush1.bf16.msra.mxu0 0
  %3984 = vmatprep.subr.bf16.mxu0 0
  %3985 = vmatpush1.bf16.msra.mxu0 0
  %3986 = vmatprep.subr.bf16.mxu0 0
  %3987 = vmatpush1.bf16.msra.mxu0 0
  %3988 = vmatprep.mubr.bf16.mxu0 0
  %3989 = vmatmul.mubr.bf16.gmra.mrb[0].mxu0 %v3954
  %v3990 = vpop.f32.mrb[0].mxu0
  %v3991 = vadd.f32 0.0, %v3990
  %v3992 = vpop.f32.mrb[0].mxu0
  %v3993 = vpop.f32.mrb[0].mxu0
  %v3994 = vadd.f32 0.0, %v3993
  %v3995 = vpop.f32.mrb[0].mxu0
  %3996 = vmatprep.mubr.bf16.mxu0 0
  %3997 = vmatmul.mubr.bf16.gmra.mrb[0].mxu0 %v3954
  %v3998 = vpop.f32.mrb[0].mxu0
  %v3999 = vadd.f32 0.0, %v3998
  %v4000 = vpop.f32.mrb[0].mxu0
  %v4001 = vpop.f32.mrb[0].mxu0
  %v4002 = vadd.f32 0.0, %v4001
  %v4003 = vpop.f32.mrb[0].mxu0
  %4004 = vdwg.mxu0
  %v4005 = vlaneseq
  %v4006 = vshrl.u32 %v4005, 7
  %v4007 = vsub.s32 6, %v4006
  %v4008 = vrot.slane %v3908, %v4007
  %v4009 = vadd.f32 %v3991, %v4008
  %v4010 = vadd.f32 %v3994, %v4008
  %v4011 = vadd.f32 %v3999, %v4008
  %v4012 = vadd.f32 %v4002, %v4008
  %v4015 = vcombine.high %v3939, %v3939
  %v4017 = vunpack.c.l.s4 1983009808
  %v4018 = vunpack.c.0.s8 %v4017
  %v4019 = vlaneseq
  %v4020 = vshrl.u32 %v4019, 7
  %v4021 = vsub.s32 %v4018, %v4020
  %v4022 = vrot.slane %v3939, %v4021
  %v4024 = vunpack.c.l.s4 1983009808
  %v4025 = vunpack.c.0.s8 %v4024
  %v4026 = vlaneseq
  %v4027 = vshrl.u32 %v4026, 7
  %v4028 = vsub.s32 %v4025, %v4027
  %v4029 = vrot.slane %v4015, %v4028
  %v4030 = vcombine.high %v4022, %v4022
  %v4031 = vcombine.high %v3940, %v3940
  %v4033 = vunpack.c.l.s4 1983009808
  %v4034 = vunpack.c.0.s8 %v4033
  %v4035 = vlaneseq
  %v4036 = vshrl.u32 %v4035, 7
  %v4037 = vsub.s32 %v4034, %v4036
  %v4038 = vrot.slane %v3940, %v4037
  %v4040 = vunpack.c.l.s4 1983009808
  %v4041 = vunpack.c.0.s8 %v4040
  %v4042 = vlaneseq
  %v4043 = vshrl.u32 %v4042, 7
  %v4044 = vsub.s32 %v4041, %v4043
  %v4045 = vrot.slane %v4031, %v4044
  %v4046 = vcombine.high %v4038, %v4038
  %v4047 = vcombine.low %v4022, %v4030
  %v4048 = vcombine.low %v4029, %v4038
  %v4050 = vunpack.c.l.s4 1983009808
  %v4051 = vunpack.c.0.s8 %v4050
  %v4052 = vlaneseq
  %v4053 = vshrl.u32 %v4052, 7
  %v4054 = vsub.s32 %v4051, %v4053
  %v4055 = vrot.slane %v4047, %v4054
  %v4057 = vunpack.c.l.s4 1983009808
  %v4058 = vunpack.c.0.s8 %v4057
  %v4059 = vlaneseq
  %v4060 = vshrl.u32 %v4059, 7
  %v4061 = vsub.s32 %v4058, %v4060
  %v4062 = vrot.slane %v4048, %v4061
  %v4063 = vcombine.low %v4055, %v4062
  %v4064 = vcombine.low %v4046, %v4045
  %v4066 = vunpack.c.l.s4 1983009808
  %v4067 = vunpack.c.0.s8 %v4066
  %v4068 = vlaneseq
  %v4069 = vshrl.u32 %v4068, 7
  %v4070 = vsub.s32 %v4067, %v4069
  %v4071 = vrot.slane %v4064, %v4070
  %v4072 = vunpack.c.h.b16 %v3895
  %v4073 = vunpack.c.h.b16 %v3897
  %v4074 = vunpack.c.h.b16 %v3899
  %v4075 = vunpack.c.h.b16 %v3901
  %v4076 = vpack.c.b16 %v4073, %v4072
  %v4077 = vpack.c.b16 %v4075, %v4074
  %v4081 = vsel %vm514, %v4063, 0
  %v4084 = vsel %vm514, %v4071, 0
  %4086 = vmatprep.subr.bf16.mxu0 0
  %4087 = vmatpush1.bf16.msra.mxu0 %v4076
  %4088 = vmatprep.subr.bf16.mxu0 0
  %4089 = vmatpush1.bf16.msra.mxu0 %v4077
  %4090 = vmatprep.subr.bf16.mxu0 0
  %4091 = vmatpush1.bf16.msra.mxu0 0
  %4092 = vmatprep.subr.bf16.mxu0 0
  %4093 = vmatpush1.bf16.msra.mxu0 0
  %4094 = vmatprep.subr.bf16.mxu0 0
  %4095 = vmatpush1.bf16.msra.mxu0 0
  %4096 = vmatprep.subr.bf16.mxu0 0
  %4097 = vmatpush1.bf16.msra.mxu0 0
  %4098 = vmatprep.subr.bf16.mxu0 0
  %4099 = vmatpush1.bf16.msra.mxu0 0
  %4100 = vmatprep.subr.bf16.mxu0 0
  %4101 = vmatpush1.bf16.msra.mxu0 0
  %4102 = vmatprep.subr.bf16.mxu0 0
  %4103 = vmatpush1.bf16.msra.mxu0 0
  %4104 = vmatprep.subr.bf16.mxu0 0
  %4105 = vmatpush1.bf16.msra.mxu0 0
  %4106 = vmatprep.subr.bf16.mxu0 0
  %4107 = vmatpush1.bf16.msra.mxu0 0
  %4108 = vmatprep.subr.bf16.mxu0 0
  %4109 = vmatpush1.bf16.msra.mxu0 0
  %4110 = vmatprep.subr.bf16.mxu0 0
  %4111 = vmatpush1.bf16.msra.mxu0 0
  %4112 = vmatprep.subr.bf16.mxu0 0
  %4113 = vmatpush1.bf16.msra.mxu0 0
  %4114 = vmatprep.subr.bf16.mxu0 0
  %4115 = vmatpush1.bf16.msra.mxu0 0
  %4116 = vmatprep.subr.bf16.mxu0 0
  %4117 = vmatpush1.bf16.msra.mxu0 0
  %4118 = vmatprep.mubr.bf16.mxu0 0
  %4119 = vmatmul.mubr.bf16.gmra.mrb[0].mxu0 %v4081
  %v4120 = vpop.f32.mrb[0].mxu0
  %v4121 = vadd.f32 0.0, %v4120
  %v4122 = vpop.f32.mrb[0].mxu0
  %v4123 = vpop.f32.mrb[0].mxu0
  %v4124 = vadd.f32 0.0, %v4123
  %v4125 = vpop.f32.mrb[0].mxu0
  %4126 = vmatprep.mubr.bf16.mxu0 0
  %4127 = vmatmul.mubr.bf16.gmra.mrb[0].mxu0 %v4084
  %v4128 = vpop.f32.mrb[0].mxu0
  %v4129 = vadd.f32 0.0, %v4128
  %v4130 = vpop.f32.mrb[0].mxu0
  %v4131 = vpop.f32.mrb[0].mxu0
  %v4132 = vpop.f32.mrb[0].mxu0
  %4133 = vdwg.mxu0
  %v4137 = vcombine.high %v4121, %v4121
  %v4138 = vcombine.high %v4124, %v4124
  %v4139 = vcombine.high %v4129, %v4129
  %v4143 = vlaneseq
  %v4144 = vshrl.u32 %v4143, 7
  %v4145 = vsub.s32 7, %v4144
  %v4146 = vrot.slane %v3908, %v4145
  %v4148 = vcombine.high %v4146, %v4146
  %v4150 = vadd.f32 %v4121, %v4146
  %v4151 = vadd.f32 %v4137, %v4148
  %v4152 = vadd.f32 %v4124, %v4146
  %v4153 = vadd.f32 %v4138, %v4146
  %v4154 = vadd.f32 %v4129, %v4148
  %v4155 = vadd.f32 %v4139, %v4146
  %v4160 = vunpack.c.l.b16 %v3896
  %v4161 = vunpack.c.l.b16 %v3898
  %v4162 = vunpack.c.l.b16 %v3900
  %v4163 = vunpack.c.l.b16 %v3902
  %v4164 = vpack.c.b16 %v4161, %v4160
  %v4165 = vpack.c.b16 %v4163, %v4162
  %4168 = vmatprep.subr.bf16.mxu0 0
  %4169 = vmatpush1.bf16.msra.mxu0 %v4164
  %4170 = vmatprep.subr.bf16.mxu0 0
  %4171 = vmatpush1.bf16.msra.mxu0 %v4165
  %4172 = vmatprep.subr.bf16.mxu0 0
  %4173 = vmatpush1.bf16.msra.mxu0 0
  %4174 = vmatprep.subr.bf16.mxu0 0
  %4175 = vmatpush1.bf16.msra.mxu0 0
  %4176 = vmatprep.subr.bf16.mxu0 0
  %4177 = vmatpush1.bf16.msra.mxu0 0
  %4178 = vmatprep.subr.bf16.mxu0 0
  %4179 = vmatpush1.bf16.msra.mxu0 0
  %4180 = vmatprep.subr.bf16.mxu0 0
  %4181 = vmatpush1.bf16.msra.mxu0 0
  %4182 = vmatprep.subr.bf16.mxu0 0
  %4183 = vmatpush1.bf16.msra.mxu0 0
  %4184 = vmatprep.subr.bf16.mxu0 0
  %4185 = vmatpush1.bf16.msra.mxu0 0
  %4186 = vmatprep.subr.bf16.mxu0 0
  %4187 = vmatpush1.bf16.msra.mxu0 0
  %4188 = vmatprep.subr.bf16.mxu0 0
  %4189 = vmatpush1.bf16.msra.mxu0 0
  %4190 = vmatprep.subr.bf16.mxu0 0
  %4191 = vmatpush1.bf16.msra.mxu0 0
  %4192 = vmatprep.subr.bf16.mxu0 0
  %4193 = vmatpush1.bf16.msra.mxu0 0
  %4194 = vmatprep.subr.bf16.mxu0 0
  %4195 = vmatpush1.bf16.msra.mxu0 0
  %4196 = vmatprep.subr.bf16.mxu0 0
  %4197 = vmatpush1.bf16.msra.mxu0 0
  %4198 = vmatprep.subr.bf16.mxu0 0
  %4199 = vmatpush1.bf16.msra.mxu0 0
  %4200 = vmatprep.mubr.bf16.mxu0 0
  %4201 = vmatmul.mubr.bf16.gmra.mrb[0].mxu0 %v4081
  %v4202 = vpop.f32.mrb[0].mxu0
  %v4203 = vadd.f32 0.0, %v4202
  %v4204 = vpop.f32.mrb[0].mxu0
  %v4205 = vpop.f32.mrb[0].mxu0
  %v4206 = vadd.f32 0.0, %v4205
  %v4207 = vpop.f32.mrb[0].mxu0
  %4208 = vmatprep.mubr.bf16.mxu0 0
  %4209 = vmatmul.mubr.bf16.gmra.mrb[0].mxu0 %v4084
  %v4210 = vpop.f32.mrb[0].mxu0
  %v4211 = vadd.f32 0.0, %v4210
  %v4212 = vpop.f32.mrb[0].mxu0
  %v4213 = vpop.f32.mrb[0].mxu0
  %v4214 = vpop.f32.mrb[0].mxu0
  %4215 = vdwg.mxu0
  %v4219 = vcombine.high %v4203, %v4203
  %v4220 = vcombine.high %v4206, %v4206
  %v4221 = vcombine.high %v4211, %v4211
  %v4225 = vlaneseq
  %v4226 = vshrl.u32 %v4225, 7
  %v4227 = vsub.s32 0, %v4226
  %v4228 = vrot.slane %v3909, %v4227
  %v4230 = vcombine.high %v4228, %v4228
  %v4232 = vadd.f32 %v4203, %v4228
  %v4233 = vadd.f32 %v4219, %v4230
  %v4234 = vadd.f32 %v4206, %v4228
  %v4235 = vadd.f32 %v4220, %v4228
  %v4236 = vadd.f32 %v4211, %v4230
  %v4237 = vadd.f32 %v4221, %v4228
  %v4238 = vpack.c.bf16 %v4010, %v4009
  %v4239 = vpack.c.bf16 %v4012, %v4011
  %v4244 = vcombine.low %v4150, %v4151
  %v4245 = vcombine.low %v4153, %v4154
  %v4248 = vpack.c.bf16 %v4152, %v4244
  %v4249 = vpack.c.bf16 %v4155, %v4245
  %v4254 = vcombine.low %v4232, %v4233
  %v4255 = vcombine.low %v4235, %v4236
  %v4258 = vpack.c.bf16 %v4234, %v4254
  %v4259 = vpack.c.bf16 %v4237, %v4255
  %vm4260 = vcmask 31744
  %v4262 = vsel %vm4260, %v4238, 0
  %v4265 = vsel %vm4260, %v4248, 0
  %4267 = vmatprep.subr.bf16.mxu0 0
  %4268 = vmatpush1.bf16.xpose.msra.mxu0 %v4265
  %4269 = vmatprep.subr.bf16.mxu0 0
  %4270 = vmatpush1.bf16.xpose.msra.mxu0 0
  %4271 = vmatprep.subr.bf16.mxu0 0
  %4272 = vmatpush1.bf16.xpose.msra.mxu0 0
  %4273 = vmatprep.subr.bf16.mxu0 0
  %4274 = vmatpush1.bf16.xpose.msra.mxu0 0
  %4275 = vmatprep.subr.bf16.mxu0 0
  %4276 = vmatpush1.bf16.xpose.msra.mxu0 0
  %4277 = vmatprep.subr.bf16.mxu0 0
  %4278 = vmatpush1.bf16.xpose.msra.mxu0 0
  %4279 = vmatprep.subr.bf16.mxu0 0
  %4280 = vmatpush1.bf16.xpose.msra.mxu0 0
  %4281 = vmatprep.subr.bf16.mxu0 0
  %4282 = vmatpush1.bf16.xpose.msra.mxu0 0
  %4283 = vmatprep.subr.bf16.mxu0 0
  %4284 = vmatpush1.bf16.xpose.msra.mxu0 0
  %4285 = vmatprep.subr.bf16.mxu0 0
  %4286 = vmatpush1.bf16.xpose.msra.mxu0 0
  %4287 = vmatprep.subr.bf16.mxu0 0
  %4288 = vmatpush1.bf16.xpose.msra.mxu0 0
  %4289 = vmatprep.subr.bf16.mxu0 0
  %4290 = vmatpush1.bf16.xpose.msra.mxu0 0
  %4291 = vmatprep.subr.bf16.mxu0 0
  %4292 = vmatpush1.bf16.xpose.msra.mxu0 0
  %4293 = vmatprep.subr.bf16.mxu0 0
  %4294 = vmatpush1.bf16.xpose.msra.mxu0 0
  %4295 = vmatprep.subr.bf16.mxu0 0
  %4296 = vmatpush1.bf16.xpose.msra.mxu0 0
  %4297 = vmatprep.subr.bf16.mxu0 0
  %4298 = vmatpush1.bf16.xpose.msra.mxu0 0
  %4299 = vmatprep.mubr.bf16.mxu0 0
  %4300 = vmatmul.mubr.bf16.gmra.mrb[0].mxu0 %v4262
  %v4301 = vpop.f32.mrb[0].mxu0
  %v4302 = vadd.f32 0.0, %v4301
  %v4303 = vpop.f32.mrb[0].mxu0
  %v4304 = vpop.f32.mrb[0].mxu0
  %v4305 = vadd.f32 0.0, %v4304
  %v4306 = vpop.f32.mrb[0].mxu0
  %4307 = vdwg.mxu0
  %v4309 = vsel %vm4260, %v4239, 0
  %v4312 = vsel %vm4260, %v4249, 0
  %4314 = vmatprep.subr.bf16.mxu0 0
  %4315 = vmatpush1.bf16.xpose.msra.mxu0 %v4312
  %4316 = vmatprep.subr.bf16.mxu0 0
  %4317 = vmatpush1.bf16.xpose.msra.mxu0 0
  %4318 = vmatprep.subr.bf16.mxu0 0
  %4319 = vmatpush1.bf16.xpose.msra.mxu0 0
  %4320 = vmatprep.subr.bf16.mxu0 0
  %4321 = vmatpush1.bf16.xpose.msra.mxu0 0
  %4322 = vmatprep.subr.bf16.mxu0 0
  %4323 = vmatpush1.bf16.xpose.msra.mxu0 0
  %4324 = vmatprep.subr.bf16.mxu0 0
  %4325 = vmatpush1.bf16.xpose.msra.mxu0 0
  %4326 = vmatprep.subr.bf16.mxu0 0
  %4327 = vmatpush1.bf16.xpose.msra.mxu0 0
  %4328 = vmatprep.subr.bf16.mxu0 0
  %4329 = vmatpush1.bf16.xpose.msra.mxu0 0
  %4330 = vmatprep.subr.bf16.mxu0 0
  %4331 = vmatpush1.bf16.xpose.msra.mxu0 0
  %4332 = vmatprep.subr.bf16.mxu0 0
  %4333 = vmatpush1.bf16.xpose.msra.mxu0 0
  %4334 = vmatprep.subr.bf16.mxu0 0
  %4335 = vmatpush1.bf16.xpose.msra.mxu0 0
  %4336 = vmatprep.subr.bf16.mxu0 0
  %4337 = vmatpush1.bf16.xpose.msra.mxu0 0
  %4338 = vmatprep.subr.bf16.mxu0 0
  %4339 = vmatpush1.bf16.xpose.msra.mxu0 0
  %4340 = vmatprep.subr.bf16.mxu0 0
  %4341 = vmatpush1.bf16.xpose.msra.mxu0 0
  %4342 = vmatprep.subr.bf16.mxu0 0
  %4343 = vmatpush1.bf16.xpose.msra.mxu0 0
  %4344 = vmatprep.subr.bf16.mxu0 0
  %4345 = vmatpush1.bf16.xpose.msra.mxu0 0
  %4346 = vmatprep.mubr.bf16.mxu0 0
  %4347 = vmatmul.mubr.bf16.gmra.mrb[0].mxu0 %v4309
  %v4348 = vpop.f32.mrb[0].mxu0
  %v4349 = vadd.f32 0.0, %v4348
  %v4350 = vpop.f32.mrb[0].mxu0
  %v4351 = vpop.f32.mrb[0].mxu0
  %v4352 = vadd.f32 0.0, %v4351
  %v4353 = vpop.f32.mrb[0].mxu0
  %4354 = vdwg.mxu0
  %v4355 = vmul.f32 %v4302, 0.5
  %v4356 = vmul.f32 %v4305, 0.5
  %v4357 = vmul.f32 %v4349, 0.5
  %v4358 = vmul.f32 %v4352, 0.5
  %v4359 = vadd.f32 %v4355, %v476
  %v4360 = vadd.f32 %v4356, %v477
  %v4361 = vadd.f32 %v4357, %v476
  %v4362 = vadd.f32 %v4358, %v477
  %vm4363 = vcmask 97280
  %v4364 = vsel %vm4363, %v4359, -inf
  %4365 = vmax.xlane.f32.xlu0 %v4364
  %v4366 = vpop.xlane.xlu0 %4365
  %v4367 = vsel %vm4363, %v4360, -inf
  %4368 = vmax.xlane.f32.xlu0 %v4367
  %v4369 = vpop.xlane.xlu0 %4368
  %v4370 = vsel %vm4363, %v4361, -inf
  %4371 = vmax.xlane.f32.xlu0 %v4370
  %v4372 = vpop.xlane.xlu0 %4371
  %v4373 = vsel %vm4363, %v4362, -inf
  %4374 = vmax.xlane.f32.xlu0 %v4373
  %v4375 = vpop.xlane.xlu0 %4374
  %v4376 = vsub.f32 %v4359, %v4366
  %v4377 = vsub.f32 %v4360, %v4369
  %v4378 = vsub.f32 %v4361, %v4372
  %v4379 = vsub.f32 %v4362, %v4375
  %v4380 = vmul.f32 %v4376, 1.442695
  %v4381 = vpow.pop %v4380
  %v4382 = vmul.f32 %v4377, 1.442695
  %v4383 = vpow.pop %v4382
  %v4384 = vmul.f32 %v4378, 1.442695
  %v4385 = vpow.pop %v4384
  %v4386 = vmul.f32 %v4379, 1.442695
  %v4387 = vpow.pop %v4386
  %v4388 = vsel %vm4363, %v4381, 0.0
  %4389 = vadd.xlane.f32.xlu0 %v4388
  %v4390 = vpop.xlane.xlu0 %4389
  %v4391 = vsel %vm4363, %v4383, 0.0
  %4392 = vadd.xlane.f32.xlu0 %v4391
  %v4393 = vpop.xlane.xlu0 %4392
  %v4394 = vsel %vm4363, %v4385, 0.0
  %4395 = vadd.xlane.f32.xlu0 %v4394
  %v4396 = vpop.xlane.xlu0 %4395
  %v4397 = vsel %vm4363, %v4387, 0.0
  %4398 = vadd.xlane.f32.xlu0 %v4397
  %v4399 = vpop.xlane.xlu0 %4398
  %v4400 = vrcp.pop %v4390
  %v4401 = vmul.f32 %v4381, %v4400
  %v4402 = vrcp.pop %v4393
  %v4403 = vmul.f32 %v4383, %v4402
  %v4404 = vrcp.pop %v4396
  %v4405 = vmul.f32 %v4385, %v4404
  %v4406 = vrcp.pop %v4399
  %v4407 = vmul.f32 %v4387, %v4406
  %v4408 = vpack.c.bf16 %v4403, %v4401
  %v4409 = vpack.c.bf16 %v4407, %v4405
  %v4411 = vsel %vm4363, %v4408, 0
  %vm4413 = vcmask 1045504
  %v4415 = vsel %vm4413, %v4258, 0
  %4417 = vmatprep.subr.bf16.mxu0 0
  %4418 = vmatpush1.bf16.msra.mxu0 %v4415
  %4419 = vmatprep.subr.bf16.mxu0 0
  %4420 = vmatpush1.bf16.msra.mxu0 0
  %4421 = vmatprep.subr.bf16.mxu0 0
  %4422 = vmatpush1.bf16.msra.mxu0 0
  %4423 = vmatprep.subr.bf16.mxu0 0
  %4424 = vmatpush1.bf16.msra.mxu0 0
  %4425 = vmatprep.subr.bf16.mxu0 0
  %4426 = vmatpush1.bf16.msra.mxu0 0
  %4427 = vmatprep.subr.bf16.mxu0 0
  %4428 = vmatpush1.bf16.msra.mxu0 0
  %4429 = vmatprep.subr.bf16.mxu0 0
  %4430 = vmatpush1.bf16.msra.mxu0 0
  %4431 = vmatprep.subr.bf16.mxu0 0
  %4432 = vmatpush1.bf16.msra.mxu0 0
  %4433 = vmatprep.subr.bf16.mxu0 0
  %4434 = vmatpush1.bf16.msra.mxu0 0
  %4435 = vmatprep.subr.bf16.mxu0 0
  %4436 = vmatpush1.bf16.msra.mxu0 0
  %4437 = vmatprep.subr.bf16.mxu0 0
  %4438 = vmatpush1.bf16.msra.mxu0 0
  %4439 = vmatprep.subr.bf16.mxu0 0
  %4440 = vmatpush1.bf16.msra.mxu0 0
  %4441 = vmatprep.subr.bf16.mxu0 0
  %4442 = vmatpush1.bf16.msra.mxu0 0
  %4443 = vmatprep.subr.bf16.mxu0 0
  %4444 = vmatpush1.bf16.msra.mxu0 0
  %4445 = vmatprep.subr.bf16.mxu0 0
  %4446 = vmatpush1.bf16.msra.mxu0 0
  %4447 = vmatprep.subr.bf16.mxu0 0
  %4448 = vmatpush1.bf16.msra.mxu0 0
  %4449 = vmatprep.mubr.bf16.mxu0 0
  %4450 = vmatmul.mubr.bf16.gmra.mrb[0].mxu0 %v4411
  %v4451 = vpop.f32.mrb[0].mxu0
  %v4452 = vadd.f32 0.0, %v4451
  %v4453 = vpop.f32.mrb[0].mxu0
  %v4454 = vpop.f32.mrb[0].mxu0
  %v4455 = vadd.f32 0.0, %v4454
  %v4456 = vpop.f32.mrb[0].mxu0
  %4457 = vdwg.mxu0
  %v4459 = vsel %vm4363, %v4409, 0
  %v4462 = vsel %vm4413, %v4259, 0
  %4464 = vmatprep.subr.bf16.mxu0 0
  %4465 = vmatpush1.bf16.msra.mxu0 %v4462
  %4466 = vmatprep.subr.bf16.mxu0 0
  %4467 = vmatpush1.bf16.msra.mxu0 0
  %4468 = vmatprep.subr.bf16.mxu0 0
  %4469 = vmatpush1.bf16.msra.mxu0 0
  %4470 = vmatprep.subr.bf16.mxu0 0
  %4471 = vmatpush1.bf16.msra.mxu0 0
  %4472 = vmatprep.subr.bf16.mxu0 0
  %4473 = vmatpush1.bf16.msra.mxu0 0
  %4474 = vmatprep.subr.bf16.mxu0 0
  %4475 = vmatpush1.bf16.msra.mxu0 0
  %4476 = vmatprep.subr.bf16.mxu0 0
  %4477 = vmatpush1.bf16.msra.mxu0 0
  %4478 = vmatprep.subr.bf16.mxu0 0
  %4479 = vmatpush1.bf16.msra.mxu0 0
  %4480 = vmatprep.subr.bf16.mxu0 0
  %4481 = vmatpush1.bf16.msra.mxu0 0
  %4482 = vmatprep.subr.bf16.mxu0 0
  %4483 = vmatpush1.bf16.msra.mxu0 0
  %4484 = vmatprep.subr.bf16.mxu0 0
  %4485 = vmatpush1.bf16.msra.mxu0 0
  %4486 = vmatprep.subr.bf16.mxu0 0
  %4487 = vmatpush1.bf16.msra.mxu0 0
  %4488 = vmatprep.subr.bf16.mxu0 0
  %4489 = vmatpush1.bf16.msra.mxu0 0
  %4490 = vmatprep.subr.bf16.mxu0 0
  %4491 = vmatpush1.bf16.msra.mxu0 0
  %4492 = vmatprep.subr.bf16.mxu0 0
  %4493 = vmatpush1.bf16.msra.mxu0 0
  %4494 = vmatprep.subr.bf16.mxu0 0
  %4495 = vmatpush1.bf16.msra.mxu0 0
  %4496 = vmatprep.mubr.bf16.mxu0 0
  %4497 = vmatmul.mubr.bf16.gmra.mrb[0].mxu0 %v4459
  %v4498 = vpop.f32.mrb[0].mxu0
  %v4499 = vadd.f32 0.0, %v4498
  %v4500 = vpop.f32.mrb[0].mxu0
  %v4501 = vpop.f32.mrb[0].mxu0
  %v4502 = vadd.f32 0.0, %v4501
  %v4503 = vpop.f32.mrb[0].mxu0
  %4504 = vdwg.mxu0
  %4506 = vrot.lane.b32.xlu0 %v4238, 124
  %v4507 = vpop.permute.xlu0 %4506
  %4509 = vrot.lane.b32.xlu0 %v4248, 124
  %v4510 = vpop.permute.xlu0 %4509
  %v4512 = vsel %vm4260, %v4507, 0
  %v4515 = vsel %vm4260, %v4510, 0
  %4517 = vmatprep.subr.bf16.mxu0 0
  %4518 = vmatpush1.bf16.xpose.msra.mxu0 %v4515
  %4519 = vmatprep.subr.bf16.mxu0 0
  %4520 = vmatpush1.bf16.xpose.msra.mxu0 0
  %4521 = vmatprep.subr.bf16.mxu0 0
  %4522 = vmatpush1.bf16.xpose.msra.mxu0 0
  %4523 = vmatprep.subr.bf16.mxu0 0
  %4524 = vmatpush1.bf16.xpose.msra.mxu0 0
  %4525 = vmatprep.subr.bf16.mxu0 0
  %4526 = vmatpush1.bf16.xpose.msra.mxu0 0
  %4527 = vmatprep.subr.bf16.mxu0 0
  %4528 = vmatpush1.bf16.xpose.msra.mxu0 0
  %4529 = vmatprep.subr.bf16.mxu0 0
  %4530 = vmatpush1.bf16.xpose.msra.mxu0 0
  %4531 = vmatprep.subr.bf16.mxu0 0
  %4532 = vmatpush1.bf16.xpose.msra.mxu0 0
  %4533 = vmatprep.subr.bf16.mxu0 0
  %4534 = vmatpush1.bf16.xpose.msra.mxu0 0
  %4535 = vmatprep.subr.bf16.mxu0 0
  %4536 = vmatpush1.bf16.xpose.msra.mxu0 0
  %4537 = vmatprep.subr.bf16.mxu0 0
  %4538 = vmatpush1.bf16.xpose.msra.mxu0 0
  %4539 = vmatprep.subr.bf16.mxu0 0
  %4540 = vmatpush1.bf16.xpose.msra.mxu0 0
  %4541 = vmatprep.subr.bf16.mxu0 0
  %4542 = vmatpush1.bf16.xpose.msra.mxu0 0
  %4543 = vmatprep.subr.bf16.mxu0 0
  %4544 = vmatpush1.bf16.xpose.msra.mxu0 0
  %4545 = vmatprep.subr.bf16.mxu0 0
  %4546 = vmatpush1.bf16.xpose.msra.mxu0 0
  %4547 = vmatprep.subr.bf16.mxu0 0
  %4548 = vmatpush1.bf16.xpose.msra.mxu0 0
  %4549 = vmatprep.mubr.bf16.mxu0 0
  %4550 = vmatmul.mubr.bf16.gmra.mrb[0].mxu0 %v4512
  %v4551 = vpop.f32.mrb[0].mxu0
  %v4552 = vadd.f32 0.0, %v4551
  %v4553 = vpop.f32.mrb[0].mxu0
  %v4554 = vpop.f32.mrb[0].mxu0
  %v4555 = vadd.f32 0.0, %v4554
  %v4556 = vpop.f32.mrb[0].mxu0
  %4557 = vdwg.mxu0
  %4559 = vrot.lane.b32.xlu0 %v4239, 124
  %v4560 = vpop.permute.xlu0 %4559
  %4562 = vrot.lane.b32.xlu0 %v4249, 124
  %v4563 = vpop.permute.xlu0 %4562
  %v4565 = vsel %vm4260, %v4560, 0
  %v4568 = vsel %vm4260, %v4563, 0
  %4570 = vmatprep.subr.bf16.mxu0 0
  %4571 = vmatpush1.bf16.xpose.msra.mxu0 %v4568
  %4572 = vmatprep.subr.bf16.mxu0 0
  %4573 = vmatpush1.bf16.xpose.msra.mxu0 0
  %4574 = vmatprep.subr.bf16.mxu0 0
  %4575 = vmatpush1.bf16.xpose.msra.mxu0 0
  %4576 = vmatprep.subr.bf16.mxu0 0
  %4577 = vmatpush1.bf16.xpose.msra.mxu0 0
  %4578 = vmatprep.subr.bf16.mxu0 0
  %4579 = vmatpush1.bf16.xpose.msra.mxu0 0
  %4580 = vmatprep.subr.bf16.mxu0 0
  %4581 = vmatpush1.bf16.xpose.msra.mxu0 0
  %4582 = vmatprep.subr.bf16.mxu0 0
  %4583 = vmatpush1.bf16.xpose.msra.mxu0 0
  %4584 = vmatprep.subr.bf16.mxu0 0
  %4585 = vmatpush1.bf16.xpose.msra.mxu0 0
  %4586 = vmatprep.subr.bf16.mxu0 0
  %4587 = vmatpush1.bf16.xpose.msra.mxu0 0
  %4588 = vmatprep.subr.bf16.mxu0 0
  %4589 = vmatpush1.bf16.xpose.msra.mxu0 0
  %4590 = vmatprep.subr.bf16.mxu0 0
  %4591 = vmatpush1.bf16.xpose.msra.mxu0 0
  %4592 = vmatprep.subr.bf16.mxu0 0
  %4593 = vmatpush1.bf16.xpose.msra.mxu0 0
  %4594 = vmatprep.subr.bf16.mxu0 0
  %4595 = vmatpush1.bf16.xpose.msra.mxu0 0
  %4596 = vmatprep.subr.bf16.mxu0 0
  %4597 = vmatpush1.bf16.xpose.msra.mxu0 0
  %4598 = vmatprep.subr.bf16.mxu0 0
  %4599 = vmatpush1.bf16.xpose.msra.mxu0 0
  %4600 = vmatprep.subr.bf16.mxu0 0
  %4601 = vmatpush1.bf16.xpose.msra.mxu0 0
  %4602 = vmatprep.mubr.bf16.mxu0 0
  %4603 = vmatmul.mubr.bf16.gmra.mrb[0].mxu0 %v4565
  %v4604 = vpop.f32.mrb[0].mxu0
  %v4605 = vadd.f32 0.0, %v4604
  %v4606 = vpop.f32.mrb[0].mxu0
  %v4607 = vpop.f32.mrb[0].mxu0
  %v4608 = vadd.f32 0.0, %v4607
  %v4609 = vpop.f32.mrb[0].mxu0
  %4610 = vdwg.mxu0
  %v4611 = vmul.f32 %v4552, 0.5
  %v4612 = vmul.f32 %v4555, 0.5
  %v4613 = vmul.f32 %v4605, 0.5
  %v4614 = vmul.f32 %v4608, 0.5
  %v4615 = vadd.f32 %v4611, %v476
  %v4616 = vadd.f32 %v4612, %v477
  %v4617 = vadd.f32 %v4613, %v476
  %v4618 = vadd.f32 %v4614, %v477
  %v4619 = vsel %vm4363, %v4615, -inf
  %4620 = vmax.xlane.f32.xlu0 %v4619
  %v4621 = vpop.xlane.xlu0 %4620
  %v4622 = vsel %vm4363, %v4616, -inf
  %4623 = vmax.xlane.f32.xlu0 %v4622
  %v4624 = vpop.xlane.xlu0 %4623
  %v4625 = vsel %vm4363, %v4617, -inf
  %4626 = vmax.xlane.f32.xlu0 %v4625
  %v4627 = vpop.xlane.xlu0 %4626
  %v4628 = vsel %vm4363, %v4618, -inf
  %4629 = vmax.xlane.f32.xlu0 %v4628
  %v4630 = vpop.xlane.xlu0 %4629
  %v4631 = vsub.f32 %v4615, %v4621
  %v4632 = vsub.f32 %v4616, %v4624
  %v4633 = vsub.f32 %v4617, %v4627
  %v4634 = vsub.f32 %v4618, %v4630
  %v4635 = vmul.f32 %v4631, 1.442695
  %v4636 = vpow.pop %v4635
  %v4637 = vmul.f32 %v4632, 1.442695
  %v4638 = vpow.pop %v4637
  %v4639 = vmul.f32 %v4633, 1.442695
  %v4640 = vpow.pop %v4639
  %v4641 = vmul.f32 %v4634, 1.442695
  %v4642 = vpow.pop %v4641
  %v4643 = vsel %vm4363, %v4636, 0.0
  %4644 = vadd.xlane.f32.xlu0 %v4643
  %v4645 = vpop.xlane.xlu0 %4644
  %v4646 = vsel %vm4363, %v4638, 0.0
  %4647 = vadd.xlane.f32.xlu0 %v4646
  %v4648 = vpop.xlane.xlu0 %4647
  %v4649 = vsel %vm4363, %v4640, 0.0
  %4650 = vadd.xlane.f32.xlu0 %v4649
  %v4651 = vpop.xlane.xlu0 %4650
  %v4652 = vsel %vm4363, %v4642, 0.0
  %4653 = vadd.xlane.f32.xlu0 %v4652
  %v4654 = vpop.xlane.xlu0 %4653
  %v4655 = vrcp.pop %v4645
  %v4656 = vmul.f32 %v4636, %v4655
  %v4657 = vrcp.pop %v4648
  %v4658 = vmul.f32 %v4638, %v4657
  %v4659 = vrcp.pop %v4651
  %v4660 = vmul.f32 %v4640, %v4659
  %v4661 = vrcp.pop %v4654
  %v4662 = vmul.f32 %v4642, %v4661
  %v4663 = vpack.c.bf16 %v4658, %v4656
  %v4664 = vpack.c.bf16 %v4662, %v4660
  %4666 = vrot.lane.b32.xlu0 %v4258, 124
  %v4667 = vpop.permute.xlu0 %4666
  %v4669 = vsel %vm4363, %v4663, 0
  %v4672 = vsel %vm4413, %v4667, 0
  %4674 = vmatprep.subr.bf16.mxu0 0
  %4675 = vmatpush1.bf16.msra.mxu0 %v4672
  %4676 = vmatprep.subr.bf16.mxu0 0
  %4677 = vmatpush1.bf16.msra.mxu0 0
  %4678 = vmatprep.subr.bf16.mxu0 0
  %4679 = vmatpush1.bf16.msra.mxu0 0
  %4680 = vmatprep.subr.bf16.mxu0 0
  %4681 = vmatpush1.bf16.msra.mxu0 0
  %4682 = vmatprep.subr.bf16.mxu0 0
  %4683 = vmatpush1.bf16.msra.mxu0 0
  %4684 = vmatprep.subr.bf16.mxu0 0
  %4685 = vmatpush1.bf16.msra.mxu0 0
  %4686 = vmatprep.subr.bf16.mxu0 0
  %4687 = vmatpush1.bf16.msra.mxu0 0
  %4688 = vmatprep.subr.bf16.mxu0 0
  %4689 = vmatpush1.bf16.msra.mxu0 0
  %4690 = vmatprep.subr.bf16.mxu0 0
  %4691 = vmatpush1.bf16.msra.mxu0 0
  %4692 = vmatprep.subr.bf16.mxu0 0
  %4693 = vmatpush1.bf16.msra.mxu0 0
  %4694 = vmatprep.subr.bf16.mxu0 0
  %4695 = vmatpush1.bf16.msra.mxu0 0
  %4696 = vmatprep.subr.bf16.mxu0 0
  %4697 = vmatpush1.bf16.msra.mxu0 0
  %4698 = vmatprep.subr.bf16.mxu0 0
  %4699 = vmatpush1.bf16.msra.mxu0 0
  %4700 = vmatprep.subr.bf16.mxu0 0
  %4701 = vmatpush1.bf16.msra.mxu0 0
  %4702 = vmatprep.subr.bf16.mxu0 0
  %4703 = vmatpush1.bf16.msra.mxu0 0
  %4704 = vmatprep.subr.bf16.mxu0 0
  %4705 = vmatpush1.bf16.msra.mxu0 0
  %4706 = vmatprep.mubr.bf16.mxu0 0
  %4707 = vmatmul.mubr.bf16.gmra.mrb[0].mxu0 %v4669
  %v4708 = vpop.f32.mrb[0].mxu0
  %v4709 = vadd.f32 0.0, %v4708
  %v4710 = vpop.f32.mrb[0].mxu0
  %v4711 = vpop.f32.mrb[0].mxu0
  %v4712 = vadd.f32 0.0, %v4711
  %v4713 = vpop.f32.mrb[0].mxu0
  %4714 = vdwg.mxu0
  %4716 = vrot.lane.b32.xlu0 %v4259, 124
  %v4717 = vpop.permute.xlu0 %4716
  %v4719 = vsel %vm4363, %v4664, 0
  %v4722 = vsel %vm4413, %v4717, 0
  %4724 = vmatprep.subr.bf16.mxu0 0
  %4725 = vmatpush1.bf16.msra.mxu0 %v4722
  %4726 = vmatprep.subr.bf16.mxu0 0
  %4727 = vmatpush1.bf16.msra.mxu0 0
  %4728 = vmatprep.subr.bf16.mxu0 0
  %4729 = vmatpush1.bf16.msra.mxu0 0
  %4730 = vmatprep.subr.bf16.mxu0 0
  %4731 = vmatpush1.bf16.msra.mxu0 0
  %4732 = vmatprep.subr.bf16.mxu0 0
  %4733 = vmatpush1.bf16.msra.mxu0 0
  %4734 = vmatprep.subr.bf16.mxu0 0
  %4735 = vmatpush1.bf16.msra.mxu0 0
  %4736 = vmatprep.subr.bf16.mxu0 0
  %4737 = vmatpush1.bf16.msra.mxu0 0
  %4738 = vmatprep.subr.bf16.mxu0 0
  %4739 = vmatpush1.bf16.msra.mxu0 0
  %4740 = vmatprep.subr.bf16.mxu0 0
  %4741 = vmatpush1.bf16.msra.mxu0 0
  %4742 = vmatprep.subr.bf16.mxu0 0
  %4743 = vmatpush1.bf16.msra.mxu0 0
  %4744 = vmatprep.subr.bf16.mxu0 0
  %4745 = vmatpush1.bf16.msra.mxu0 0
  %4746 = vmatprep.subr.bf16.mxu0 0
  %4747 = vmatpush1.bf16.msra.mxu0 0
  %4748 = vmatprep.subr.bf16.mxu0 0
  %4749 = vmatpush1.bf16.msra.mxu0 0
  %4750 = vmatprep.subr.bf16.mxu0 0
  %4751 = vmatpush1.bf16.msra.mxu0 0
  %4752 = vmatprep.subr.bf16.mxu0 0
  %4753 = vmatpush1.bf16.msra.mxu0 0
  %4754 = vmatprep.subr.bf16.mxu0 0
  %4755 = vmatpush1.bf16.msra.mxu0 0
  %4756 = vmatprep.mubr.bf16.mxu0 0
  %4757 = vmatmul.mubr.bf16.gmra.mrb[0].mxu0 %v4719
  %v4758 = vpop.f32.mrb[0].mxu0
  %v4759 = vadd.f32 0.0, %v4758
  %v4760 = vpop.f32.mrb[0].mxu0
  %v4761 = vpop.f32.mrb[0].mxu0
  %v4762 = vadd.f32 0.0, %v4761
  %v4763 = vpop.f32.mrb[0].mxu0
  %4764 = vdwg.mxu0
  %4769 = vrot.lane.b32.xlu0 %v4709, 4
  %v4770 = vpop.permute.xlu0 %4769
  %4771 = vrot.lane.b32.xlu0 %v4712, 4
  %v4772 = vpop.permute.xlu0 %4771
  %4773 = vrot.lane.b32.xlu0 %v4759, 4
  %v4774 = vpop.permute.xlu0 %4773
  %4775 = vrot.lane.b32.xlu0 %v4762, 4
  %v4776 = vpop.permute.xlu0 %4775
  %v4781 = vsel %vm4260, %v4452, %v4770
  %v4782 = vsel %vm4260, %v4455, %v4772
  %v4783 = vsel %vm4260, %v4499, %v4774
  %v4784 = vsel %vm4260, %v4502, %v4776
  %v4785 = vpack.c.bf16 %v4782, %v4781
  %v4786 = vpack.c.bf16 %v4784, %v4783
  %v4788 = vsel %vm841, %v4785, 0
  %v4791 = vsel %vm841, %v4786, 0
  %v4794 = vsel %vm972, %v3903, 0
  %4796 = vmatprep.subr.bf16.mxu0 0
  %4797 = vmatpush1.bf16.msra.mxu0 %v4794
  %4798 = vmatprep.subr.bf16.mxu0 0
  %4799 = vmatpush1.bf16.msra.mxu0 0
  %4800 = vmatprep.subr.bf16.mxu0 0
  %4801 = vmatpush1.bf16.msra.mxu0 0
  %4802 = vmatprep.subr.bf16.mxu0 0
  %4803 = vmatpush1.bf16.msra.mxu0 0
  %4804 = vmatprep.subr.bf16.mxu0 0
  %4805 = vmatpush1.bf16.msra.mxu0 0
  %4806 = vmatprep.subr.bf16.mxu0 0
  %4807 = vmatpush1.bf16.msra.mxu0 0
  %4808 = vmatprep.subr.bf16.mxu0 0
  %4809 = vmatpush1.bf16.msra.mxu0 0
  %4810 = vmatprep.subr.bf16.mxu0 0
  %4811 = vmatpush1.bf16.msra.mxu0 0
  %4812 = vmatprep.subr.bf16.mxu0 0
  %4813 = vmatpush1.bf16.msra.mxu0 0
  %4814 = vmatprep.subr.bf16.mxu0 0
  %4815 = vmatpush1.bf16.msra.mxu0 0
  %4816 = vmatprep.subr.bf16.mxu0 0
  %4817 = vmatpush1.bf16.msra.mxu0 0
  %4818 = vmatprep.subr.bf16.mxu0 0
  %4819 = vmatpush1.bf16.msra.mxu0 0
  %4820 = vmatprep.subr.bf16.mxu0 0
  %4821 = vmatpush1.bf16.msra.mxu0 0
  %4822 = vmatprep.subr.bf16.mxu0 0
  %4823 = vmatpush1.bf16.msra.mxu0 0
  %4824 = vmatprep.subr.bf16.mxu0 0
  %4825 = vmatpush1.bf16.msra.mxu0 0
  %4826 = vmatprep.subr.bf16.mxu0 0
  %4827 = vmatpush1.bf16.msra.mxu0 0
  %4828 = vmatprep.mubr.bf16.mxu0 0
  %4829 = vmatmul.mubr.bf16.gmra.mrb[0].mxu0 %v4788
  %v4830 = vpop.f32.mrb[0].mxu0
  %v4831 = vadd.f32 0.0, %v4830
  %v4832 = vpop.f32.mrb[0].mxu0
  %v4833 = vpop.f32.mrb[0].mxu0
  %v4834 = vadd.f32 0.0, %v4833
  %v4835 = vpop.f32.mrb[0].mxu0
  %4836 = vmatprep.mubr.bf16.mxu0 0
  %4837 = vmatmul.mubr.bf16.gmra.mrb[0].mxu0 %v4791
  %v4838 = vpop.f32.mrb[0].mxu0
  %v4839 = vadd.f32 0.0, %v4838
  %v4840 = vpop.f32.mrb[0].mxu0
  %v4841 = vpop.f32.mrb[0].mxu0
  %v4842 = vadd.f32 0.0, %v4841
  %v4843 = vpop.f32.mrb[0].mxu0
  %4844 = vdwg.mxu0
  %v4845 = vadd.f32 %v98, %v4831
  %v4846 = vadd.f32 %v99, %v4834
  %v4847 = vadd.f32 %v98, %v4839
  %v4848 = vadd.f32 %v99, %v4842
  %v4849 = vlaneseq
  %v4850 = vshrl.u32 %v4849, 7
  %v4851 = vsub.s32 1, %v4850
  %v4852 = vrot.slane %v3909, %v4851
  %v4853 = vadd.f32 %v4845, %v4852
  %v4854 = vadd.f32 %v4846, %v4852
  %v4855 = vadd.f32 %v4847, %v4852
  %v4856 = vadd.f32 %v4848, %v4852
  %v4857 = vsel %vm514, %v4853, 0.0
  %4858 = vadd.xlane.f32.xlu0 %v4857
  %v4859 = vpop.xlane.xlu0 %4858
  %v4860 = vsel %vm514, %v4854, 0.0
  %4861 = vadd.xlane.f32.xlu0 %v4860
  %v4862 = vpop.xlane.xlu0 %4861
  %v4863 = vsel %vm514, %v4855, 0.0
  %4864 = vadd.xlane.f32.xlu0 %v4863
  %v4865 = vpop.xlane.xlu0 %4864
  %v4866 = vsel %vm514, %v4856, 0.0
  %4867 = vadd.xlane.f32.xlu0 %v4866
  %v4868 = vpop.xlane.xlu0 %4867
  %v4869 = vmul.f32 %v4859, %v527
  %v4870 = vmul.f32 %v4862, %v527
  %v4871 = vmul.f32 %v4865, %v527
  %v4872 = vmul.f32 %v4868, %v527
  %v4873 = vsub.f32 %v4853, %v4869
  %v4874 = vsub.f32 %v4854, %v4870
  %v4875 = vsub.f32 %v4855, %v4871
  %v4876 = vsub.f32 %v4856, %v4872
  %v4877 = vmul.f32 %v4873, %v4873
  %v4878 = vmul.f32 %v4874, %v4874
  %v4879 = vmul.f32 %v4875, %v4875
  %v4880 = vmul.f32 %v4876, %v4876
  %v4881 = vsel %vm514, %v4877, 0.0
  %4882 = vadd.xlane.f32.xlu0 %v4881
  %v4883 = vpop.xlane.xlu0 %4882
  %v4884 = vsel %vm514, %v4878, 0.0
  %4885 = vadd.xlane.f32.xlu0 %v4884
  %v4886 = vpop.xlane.xlu0 %4885
  %v4887 = vsel %vm514, %v4879, 0.0
  %4888 = vadd.xlane.f32.xlu0 %v4887
  %v4889 = vpop.xlane.xlu0 %4888
  %v4890 = vsel %vm514, %v4880, 0.0
  %4891 = vadd.xlane.f32.xlu0 %v4890
  %v4892 = vpop.xlane.xlu0 %4891
  %v4893 = vmul.f32 %v4883, %v527
  %v4894 = vmul.f32 %v4886, %v527
  %v4895 = vmul.f32 %v4889, %v527
  %v4896 = vmul.f32 %v4892, %v527
  %v4897 = vadd.f32 %v4893, 1e-05
  %v4898 = vadd.f32 %v4894, 1e-05
  %v4899 = vadd.f32 %v4895, 1e-05
  %v4900 = vadd.f32 %v4896, 1e-05
  %v4901 = vrsqrt.pop %v4897
  %v4902 = vrsqrt.pop %v4898
  %v4903 = vrsqrt.pop %v4899
  %v4904 = vrsqrt.pop %v4900
  %v4905 = vmul.f32 %v4873, %v4901
  %v4906 = vmul.f32 %v4874, %v4902
  %v4907 = vmul.f32 %v4875, %v4903
  %v4908 = vmul.f32 %v4876, %v4904
  %v4909 = vlaneseq
  %v4910 = vshrl.u32 %v4909, 7
  %v4911 = vsub.s32 4, %v4910
  %v4912 = vrot.slane %v3908, %v4911
  %v4913 = vmul.f32 %v4905, %v4912
  %v4914 = vmul.f32 %v4906, %v4912
  %v4915 = vmul.f32 %v4907, %v4912
  %v4916 = vmul.f32 %v4908, %v4912
  %v4917 = vlaneseq
  %v4918 = vshrl.u32 %v4917, 7
  %v4919 = vsub.s32 5, %v4918
  %v4920 = vrot.slane %v3908, %v4919
  %v4921 = vadd.f32 %v4913, %v4920
  %v4922 = vadd.f32 %v4914, %v4920
  %v4923 = vadd.f32 %v4915, %v4920
  %v4924 = vadd.f32 %v4916, %v4920
  %v4925 = vpack.c.bf16 %v4922, %v4921
  %v4926 = vpack.c.bf16 %v4924, %v4923
  %v4927 = vunpack.c.h.b16 %v3896
  %v4928 = vunpack.c.h.b16 %v3898
  %v4929 = vunpack.c.h.b16 %v3900
  %v4930 = vunpack.c.h.b16 %v3902
  %v4931 = vpack.c.b16 %v4928, %v4927
  %v4932 = vpack.c.b16 %v4930, %v4929
  %v4936 = vsel %vm514, %v4925, 0
  %v4939 = vsel %vm514, %v4926, 0
  %4941 = vmatprep.subr.bf16.mxu0 0
  %4942 = vmatpush1.bf16.msra.mxu0 %v4931
  %4943 = vmatprep.subr.bf16.mxu0 0
  %4944 = vmatpush1.bf16.msra.mxu0 %v4932
  %4945 = vmatprep.subr.bf16.mxu0 0
  %4946 = vmatpush1.bf16.msra.mxu0 0
  %4947 = vmatprep.subr.bf16.mxu0 0
  %4948 = vmatpush1.bf16.msra.mxu0 0
  %4949 = vmatprep.subr.bf16.mxu0 0
  %4950 = vmatpush1.bf16.msra.mxu0 0
  %4951 = vmatprep.subr.bf16.mxu0 0
  %4952 = vmatpush1.bf16.msra.mxu0 0
  %4953 = vmatprep.subr.bf16.mxu0 0
  %4954 = vmatpush1.bf16.msra.mxu0 0
  %4955 = vmatprep.subr.bf16.mxu0 0
  %4956 = vmatpush1.bf16.msra.mxu0 0
  %4957 = vmatprep.subr.bf16.mxu0 0
  %4958 = vmatpush1.bf16.msra.mxu0 0
  %4959 = vmatprep.subr.bf16.mxu0 0
  %4960 = vmatpush1.bf16.msra.mxu0 0
  %4961 = vmatprep.subr.bf16.mxu0 0
  %4962 = vmatpush1.bf16.msra.mxu0 0
  %4963 = vmatprep.subr.bf16.mxu0 0
  %4964 = vmatpush1.bf16.msra.mxu0 0
  %4965 = vmatprep.subr.bf16.mxu0 0
  %4966 = vmatpush1.bf16.msra.mxu0 0
  %4967 = vmatprep.subr.bf16.mxu0 0
  %4968 = vmatpush1.bf16.msra.mxu0 0
  %4969 = vmatprep.subr.bf16.mxu0 0
  %4970 = vmatpush1.bf16.msra.mxu0 0
  %4971 = vmatprep.subr.bf16.mxu0 0
  %4972 = vmatpush1.bf16.msra.mxu0 0
  %4973 = vmatprep.mubr.bf16.mxu0 0
  %4974 = vmatmul.mubr.bf16.gmra.mrb[0].mxu0 %v4936
  %v4975 = vpop.f32.mrb[0].mxu0
  %v4976 = vadd.f32 0.0, %v4975
  %v4977 = vpop.f32.mrb[0].mxu0
  %v4978 = vpop.f32.mrb[0].mxu0
  %v4979 = vadd.f32 0.0, %v4978
  %v4980 = vpop.f32.mrb[0].mxu0
  %4981 = vmatprep.mubr.bf16.mxu0 0
  %4982 = vmatmul.mubr.bf16.gmra.mrb[0].mxu0 %v4939
  %v4983 = vpop.f32.mrb[0].mxu0
  %v4984 = vadd.f32 0.0, %v4983
  %v4985 = vpop.f32.mrb[0].mxu0
  %v4986 = vpop.f32.mrb[0].mxu0
  %v4987 = vadd.f32 0.0, %v4986
  %v4988 = vpop.f32.mrb[0].mxu0
  %4989 = vdwg.mxu0
  %v4990 = vlaneseq
  %v4991 = vshrl.u32 %v4990, 7
  %v4992 = vsub.s32 2, %v4991
  %v4993 = vrot.slane %v3909, %v4992
  %v4994 = vadd.f32 %v4976, %v4993
  %v4995 = vadd.f32 %v4979, %v4993
  %v4996 = vadd.f32 %v4984, %v4993
  %v4997 = vadd.f32 %v4987, %v4993
  %v4998 = vmul.f32 %v4994, %v4994
  %v4999 = vmul.f32 %v4995, %v4995
  %v5000 = vmul.f32 %v4996, %v4996
  %v5001 = vmul.f32 %v4997, %v4997
  %v5002 = vmul.f32 %v4994, %v4998
  %v5003 = vmul.f32 %v4995, %v4999
  %v5004 = vmul.f32 %v4996, %v5000
  %v5005 = vmul.f32 %v4997, %v5001
  %v5006 = vmul.f32 %v5002, 0.044715
  %v5007 = vmul.f32 %v5003, 0.044715
  %v5008 = vmul.f32 %v5004, 0.044715
  %v5009 = vmul.f32 %v5005, 0.044715
  %v5010 = vadd.f32 %v4994, %v5006
  %v5011 = vadd.f32 %v4995, %v5007
  %v5012 = vadd.f32 %v4996, %v5008
  %v5013 = vadd.f32 %v4997, %v5009
  %v5014 = vmul.f32 %v5010, 0.7978846
  %v5015 = vmul.f32 %v5011, 0.7978846
  %v5016 = vmul.f32 %v5012, 0.7978846
  %v5017 = vmul.f32 %v5013, 0.7978846
  %v5018 = vtanh.pop %v5014
  %v5019 = vtanh.pop %v5015
  %v5020 = vtanh.pop %v5016
  %v5021 = vtanh.pop %v5017
  %v5022 = vadd.f32 %v5018, 1.0
  %v5023 = vadd.f32 %v5019, 1.0
  %v5024 = vadd.f32 %v5020, 1.0
  %v5025 = vadd.f32 %v5021, 1.0
  %v5026 = vmul.f32 %v5022, 0.5
  %v5027 = vmul.f32 %v5023, 0.5
  %v5028 = vmul.f32 %v5024, 0.5
  %v5029 = vmul.f32 %v5025, 0.5
  %v5030 = vmul.f32 %v4994, %v5026
  %v5031 = vmul.f32 %v4995, %v5027
  %v5032 = vmul.f32 %v4996, %v5028
  %v5033 = vmul.f32 %v4997, %v5029
  %v5034 = vpack.c.bf16 %v5031, %v5030
  %v5035 = vpack.c.bf16 %v5033, %v5032
  %v5040 = vunpack.c.l.b16 %v3904
  %v5041 = vunpack.c.l.b16 %v3905
  %v5042 = vunpack.c.l.b16 %v3906
  %v5043 = vunpack.c.l.b16 %v3907
  %v5044 = vpack.c.b16 %v5041, %v5040
  %v5045 = vpack.c.b16 %v5043, %v5042
  %v5049 = vsel %vm514, %v5034, 0
  %v5052 = vsel %vm514, %v5035, 0
  %5054 = vmatprep.subr.bf16.mxu0 0
  %5055 = vmatpush1.bf16.msra.mxu0 %v5044
  %5056 = vmatprep.subr.bf16.mxu0 0
  %5057 = vmatpush1.bf16.msra.mxu0 %v5045
  %5058 = vmatprep.subr.bf16.mxu0 0
  %5059 = vmatpush1.bf16.msra.mxu0 0
  %5060 = vmatprep.subr.bf16.mxu0 0
  %5061 = vmatpush1.bf16.msra.mxu0 0
  %5062 = vmatprep.subr.bf16.mxu0 0
  %5063 = vmatpush1.bf16.msra.mxu0 0
  %5064 = vmatprep.subr.bf16.mxu0 0
  %5065 = vmatpush1.bf16.msra.mxu0 0
  %5066 = vmatprep.subr.bf16.mxu0 0
  %5067 = vmatpush1.bf16.msra.mxu0 0
  %5068 = vmatprep.subr.bf16.mxu0 0
  %5069 = vmatpush1.bf16.msra.mxu0 0
  %5070 = vmatprep.subr.bf16.mxu0 0
  %5071 = vmatpush1.bf16.msra.mxu0 0
  %5072 = vmatprep.subr.bf16.mxu0 0
  %5073 = vmatpush1.bf16.msra.mxu0 0
  %5074 = vmatprep.subr.bf16.mxu0 0
  %5075 = vmatpush1.bf16.msra.mxu0 0
  %5076 = vmatprep.subr.bf16.mxu0 0
  %5077 = vmatpush1.bf16.msra.mxu0 0
  %5078 = vmatprep.subr.bf16.mxu0 0
  %5079 = vmatpush1.bf16.msra.mxu0 0
  %5080 = vmatprep.subr.bf16.mxu0 0
  %5081 = vmatpush1.bf16.msra.mxu0 0
  %5082 = vmatprep.subr.bf16.mxu0 0
  %5083 = vmatpush1.bf16.msra.mxu0 0
  %5084 = vmatprep.subr.bf16.mxu0 0
  %5085 = vmatpush1.bf16.msra.mxu0 0
  %5086 = vmatprep.mubr.bf16.mxu0 0
  %5087 = vmatmul.mubr.bf16.gmra.mrb[0].mxu0 %v5049
  %v5088 = vpop.f32.mrb[0].mxu0
  %v5089 = vadd.f32 0.0, %v5088
  %v5090 = vpop.f32.mrb[0].mxu0
  %v5091 = vpop.f32.mrb[0].mxu0
  %v5092 = vadd.f32 0.0, %v5091
  %v5093 = vpop.f32.mrb[0].mxu0
  %5094 = vmatprep.mubr.bf16.mxu0 0
  %5095 = vmatmul.mubr.bf16.gmra.mrb[0].mxu0 %v5052
  %v5096 = vpop.f32.mrb[0].mxu0
  %v5097 = vadd.f32 0.0, %v5096
  %v5098 = vpop.f32.mrb[0].mxu0
  %v5099 = vpop.f32.mrb[0].mxu0
  %v5100 = vadd.f32 0.0, %v5099
  %v5101 = vpop.f32.mrb[0].mxu0
  %5102 = vdwg.mxu0
  %v5103 = vadd.f32 %v4853, %v5089
  %v5104 = vadd.f32 %v4854, %v5092
  %v5105 = vadd.f32 %v4855, %v5097
  %v5106 = vadd.f32 %v4856, %v5100
  %v5107 = vlaneseq
  %v5108 = vshrl.u32 %v5107, 7
  %v5109 = vsub.s32 3, %v5108
  %v5110 = vrot.slane %v3909, %v5109
  %v5111 = vadd.f32 %v5103, %v5110
  %v5112 = vadd.f32 %v5104, %v5110
  %v5113 = vadd.f32 %v5105, %v5110
  %v5114 = vadd.f32 %v5106, %v5110
  %v5115 = vmul.f32 %v5111, %v482
  %v5116 = vmul.f32 %v5112, %v483
  %v5117 = vmul.f32 %v5113, %v482
  %v5118 = vmul.f32 %v5114, %v483
  %s5119 = scalar_lea.vmem %s4, 160
  %v5120 = vld [vmem:[%s5119] sm:$0xff]
  %v5121 = vld [vmem:[%s5119 + $0x8] sm:$0xff]
  %v5122 = vld [vmem:[%s5119 + $0x10] sm:$0xf]
  %v5123 = vld [vmem:[%s5119 + $0x14] sm:$0xff]
  %v5124 = vld [vmem:[%s5119 + $0x1c] sm:$0xff]
  %v5125 = vld [vmem:[%s5119 + $0x24] sm:$0xf]
  %v5126 = vld [vmem:[%s5119 + $0x28] sm:$0xff]
  %v5127 = vld [vmem:[%s5119 + $0x30] sm:$0xff]
  %v5128 = vld [vmem:[%s5119 + $0x38] sm:$0xf]
  %v5129 = vld [vmem:[%s5119 + $0x3c] sm:$0xff]
  %v5130 = vld [vmem:[%s5119 + $0x44] sm:$0xff]
  %v5131 = vld [vmem:[%s5119 + $0x4c] sm:$0xf]
  %s5132 = scalar_lea.vmem %s5, 128
  %v5133 = vld [vmem:[%s5132] sm:$0xf]
  %v5134 = vld [vmem:[%s5132 + $0x4] sm:$0xf]
  %v5135 = vld [vmem:[%s5132 + $0x8] sm:$0xf]
  %v5136 = vld [vmem:[%s5132 + $0xc] sm:$0xf]
  %v5137 = vld [vmem:[%s5132 + $0x10] sm:$0xf]
  %v5138 = vld [vmem:[%s5132 + $0x14] sm:$0xf]
  %v5139 = vld [vmem:[%s5132 + $0x18] sm:$0xf]
  %v5140 = vld [vmem:[%s5132 + $0x1c] sm:$0xf]
  %v5141 = vld [vmem:[%s5132 + $0x20] sm:$0xf]
  %v5142 = vld [vmem:[%s5132 + $0x24] sm:$0xf]
  %v5143 = vld [vmem:[%s5132 + $0x28] sm:$0xf]
  %v5144 = vld [vmem:[%s5132 + $0x2c] sm:$0xf]
  %v5145 = vld [vmem:[%s5132 + $0x30] sm:$0xf]
  %v5146 = vld [vmem:[%s5132 + $0x34] sm:$0xf]
  %v5147 = vld [vmem:[%s5132 + $0x38] sm:$0xf]
  %v5148 = vld [vmem:[%s5132 + $0x3c] sm:$0xf]
  %s5149 = scalar_lea.vmem %s6, 32
  %v5150 = vld [vmem:[%s5149] sm:$0xff]
  %v5151 = vld [vmem:[%s5149 + $0x8] sm:$0x3]
  %v5152 = vsel %vm514, %v5115, 0.0
  %5153 = vadd.xlane.f32.xlu0 %v5152
  %v5154 = vpop.xlane.xlu0 %5153
  %v5155 = vsel %vm514, %v5116, 0.0
  %5156 = vadd.xlane.f32.xlu0 %v5155
  %v5157 = vpop.xlane.xlu0 %5156
  %v5158 = vsel %vm514, %v2118, 0.0
  %5159 = vadd.xlane.f32.xlu0 %v5158
  %v5160 = vpop.xlane.xlu0 %5159
  %v5161 = vsel %vm514, %v5117, 0.0
  %5162 = vadd.xlane.f32.xlu0 %v5161
  %v5163 = vpop.xlane.xlu0 %5162
  %v5164 = vsel %vm514, %v5118, 0.0
  %5165 = vadd.xlane.f32.xlu0 %v5164
  %v5166 = vpop.xlane.xlu0 %5165
  %v5167 = vsel %vm514, %v2119, 0.0
  %5168 = vadd.xlane.f32.xlu0 %v5167
  %v5169 = vpop.xlane.xlu0 %5168
  %v5170 = vmul.f32 %v5154, %v527
  %v5171 = vmul.f32 %v5157, %v527
  %v5172 = vmul.f32 %v5160, %v527
  %v5173 = vmul.f32 %v5163, %v527
  %v5174 = vmul.f32 %v5166, %v527
  %v5175 = vmul.f32 %v5169, %v527
  %v5176 = vsub.f32 %v5115, %v5170
  %v5177 = vsub.f32 %v5116, %v5171
  %v5178 = vsub.f32 %v2118, %v5172
  %v5179 = vsub.f32 %v5117, %v5173
  %v5180 = vsub.f32 %v5118, %v5174
  %v5181 = vsub.f32 %v2119, %v5175
  %v5182 = vmul.f32 %v5176, %v5176
  %v5183 = vmul.f32 %v5177, %v5177
  %v5184 = vmul.f32 %v5178, %v5178
  %v5185 = vmul.f32 %v5179, %v5179
  %v5186 = vmul.f32 %v5180, %v5180
  %v5187 = vmul.f32 %v5181, %v5181
  %v5188 = vsel %vm514, %v5182, 0.0
  %5189 = vadd.xlane.f32.xlu0 %v5188
  %v5190 = vpop.xlane.xlu0 %5189
  %v5191 = vsel %vm514, %v5183, 0.0
  %5192 = vadd.xlane.f32.xlu0 %v5191
  %v5193 = vpop.xlane.xlu0 %5192
  %v5194 = vsel %vm514, %v5184, 0.0
  %5195 = vadd.xlane.f32.xlu0 %v5194
  %v5196 = vpop.xlane.xlu0 %5195
  %v5197 = vsel %vm514, %v5185, 0.0
  %5198 = vadd.xlane.f32.xlu0 %v5197
  %v5199 = vpop.xlane.xlu0 %5198
  %v5200 = vsel %vm514, %v5186, 0.0
  %5201 = vadd.xlane.f32.xlu0 %v5200
  %v5202 = vpop.xlane.xlu0 %5201
  %v5203 = vsel %vm514, %v5187, 0.0
  %5204 = vadd.xlane.f32.xlu0 %v5203
  %v5205 = vpop.xlane.xlu0 %5204
  %v5206 = vmul.f32 %v5190, %v527
  %v5207 = vmul.f32 %v5193, %v527
  %v5208 = vmul.f32 %v5196, %v527
  %v5209 = vmul.f32 %v5199, %v527
  %v5210 = vmul.f32 %v5202, %v527
  %v5211 = vmul.f32 %v5205, %v527
  %v5212 = vadd.f32 %v5206, 1e-05
  %v5213 = vadd.f32 %v5207, 1e-05
  %v5214 = vadd.f32 %v5208, 1e-05
  %v5215 = vadd.f32 %v5209, 1e-05
  %v5216 = vadd.f32 %v5210, 1e-05
  %v5217 = vadd.f32 %v5211, 1e-05
  %v5218 = vrsqrt.pop %v5212
  %v5219 = vrsqrt.pop %v5213
  %v5220 = vrsqrt.pop %v5214
  %v5221 = vrsqrt.pop %v5215
  %v5222 = vrsqrt.pop %v5216
  %v5223 = vrsqrt.pop %v5217
  %v5224 = vmul.f32 %v5176, %v5218
  %v5225 = vmul.f32 %v5177, %v5219
  %v5226 = vmul.f32 %v5178, %v5220
  %v5227 = vmul.f32 %v5179, %v5221
  %v5228 = vmul.f32 %v5180, %v5222
  %v5229 = vmul.f32 %v5181, %v5223
  %v5230 = vlaneseq
  %v5231 = vshrl.u32 %v5230, 7
  %v5232 = vsub.s32 0, %v5231
  %v5233 = vrot.slane %v5150, %v5232
  %v5234 = vmul.f32 %v5224, %v5233
  %v5235 = vmul.f32 %v5225, %v5233
  %v5236 = vmul.f32 %v5226, %v5233
  %v5237 = vmul.f32 %v5227, %v5233
  %v5238 = vmul.f32 %v5228, %v5233
  %v5239 = vmul.f32 %v5229, %v5233
  %v5240 = vlaneseq
  %v5241 = vshrl.u32 %v5240, 7
  %v5242 = vsub.s32 1, %v5241
  %v5243 = vrot.slane %v5150, %v5242
  %v5244 = vadd.f32 %v5234, %v5243
  %v5245 = vadd.f32 %v5235, %v5243
  %v5246 = vadd.f32 %v5236, %v5243
  %v5247 = vadd.f32 %v5237, %v5243
  %v5248 = vadd.f32 %v5238, %v5243
  %v5249 = vadd.f32 %v5239, %v5243
  %v5250 = vpack.c.bf16 %v5245, %v5244
  %v5251 = vpack.c.bf16 %v5246, %v5246
  %v5252 = vpack.c.bf16 %v5248, %v5247
  %v5253 = vpack.c.bf16 %v5249, %v5249
  %v5258 = vunpack.c.l.b16 %v5250
  %v5259 = vunpack.c.h.b16 %v5250
  %v5260 = vunpack.c.l.b16 %v5251
  %v5261 = vunpack.c.l.b16 %v5252
  %v5262 = vunpack.c.h.b16 %v5252
  %v5263 = vunpack.c.l.b16 %v5253
  %v5264 = vpack.c.b16 %v5259, %v5258
  %v5265 = vpack.c.b16 %v5261, %v5260
  %v5266 = vpack.c.b16 %v5263, %v5262
  %v5271 = vunpack.c.l.b16 %v5120
  %v5272 = vunpack.c.l.b16 %v5123
  %v5273 = vunpack.c.l.b16 %v5126
  %v5274 = vunpack.c.l.b16 %v5129
  %v5275 = vpack.c.b16 %v5272, %v5271
  %v5276 = vpack.c.b16 %v5274, %v5273
  %v5280 = vsel %vm514, %v5264, 0
  %v5283 = vsel %vm514, %v5265, 0
  %v5286 = vsel %vm514, %v5266, 0
  %5288 = vmatprep.subr.bf16.mxu0 0
  %5289 = vmatpush1.bf16.msra.mxu0 %v5275
  %5290 = vmatprep.subr.bf16.mxu0 0
  %5291 = vmatpush1.bf16.msra.mxu0 %v5276
  %5292 = vmatprep.subr.bf16.mxu0 0
  %5293 = vmatpush1.bf16.msra.mxu0 0
  %5294 = vmatprep.subr.bf16.mxu0 0
  %5295 = vmatpush1.bf16.msra.mxu0 0
  %5296 = vmatprep.subr.bf16.mxu0 0
  %5297 = vmatpush1.bf16.msra.mxu0 0
  %5298 = vmatprep.subr.bf16.mxu0 0
  %5299 = vmatpush1.bf16.msra.mxu0 0
  %5300 = vmatprep.subr.bf16.mxu0 0
  %5301 = vmatpush1.bf16.msra.mxu0 0
  %5302 = vmatprep.subr.bf16.mxu0 0
  %5303 = vmatpush1.bf16.msra.mxu0 0
  %5304 = vmatprep.subr.bf16.mxu0 0
  %5305 = vmatpush1.bf16.msra.mxu0 0
  %5306 = vmatprep.subr.bf16.mxu0 0
  %5307 = vmatpush1.bf16.msra.mxu0 0
  %5308 = vmatprep.subr.bf16.mxu0 0
  %5309 = vmatpush1.bf16.msra.mxu0 0
  %5310 = vmatprep.subr.bf16.mxu0 0
  %5311 = vmatpush1.bf16.msra.mxu0 0
  %5312 = vmatprep.subr.bf16.mxu0 0
  %5313 = vmatpush1.bf16.msra.mxu0 0
  %5314 = vmatprep.subr.bf16.mxu0 0
  %5315 = vmatpush1.bf16.msra.mxu0 0
  %5316 = vmatprep.subr.bf16.mxu0 0
  %5317 = vmatpush1.bf16.msra.mxu0 0
  %5318 = vmatprep.subr.bf16.mxu0 0
  %5319 = vmatpush1.bf16.msra.mxu0 0
  %5320 = vmatprep.mubr.bf16.mxu0 0
  %5321 = vmatmul.mubr.bf16.gmra.mrb[0].mxu0 %v5280
  %v5322 = vpop.f32.mrb[0].mxu0
  %v5323 = vpop.f32.mrb[0].mxu0
  %v5324 = vpop.f32.mrb[0].mxu0
  %v5325 = vpop.f32.mrb[0].mxu0
  %5326 = vmatprep.mubr.bf16.mxu0 0
  %5327 = vmatmul.mubr.bf16.gmra.mrb[0].mxu0 %v5283
  %v5328 = vpop.f32.mrb[0].mxu0
  %v5329 = vadd.f32 0.0, %v5328
  %v5330 = vpop.f32.mrb[0].mxu0
  %v5331 = vpop.f32.mrb[0].mxu0
  %v5332 = vpop.f32.mrb[0].mxu0
  %5333 = vmatprep.mubr.bf16.mxu0 0
  %5334 = vmatmul.mubr.bf16.gmra.mrb[0].mxu0 %v5286
  %v5335 = vpop.f32.mrb[0].mxu0
  %v5336 = vpop.f32.mrb[0].mxu0
  %v5337 = vpop.f32.mrb[0].mxu0
  %v5338 = vadd.f32 0.0, %v5337
  %v5339 = vpop.f32.mrb[0].mxu0
  %5340 = vdwg.mxu0
  %v5341 = vlaneseq
  %v5342 = vshrl.u32 %v5341, 7
  %v5343 = vsub.s32 4, %v5342
  %v5344 = vrot.slane %v5150, %v5343
  %v5345 = vadd.f32 %v5329, %v5344
  %v5346 = vadd.f32 %v5338, %v5344
  %v5347 = vunpack.c.h.b16 %v5120
  %v5348 = vunpack.c.h.b16 %v5123
  %v5349 = vunpack.c.h.b16 %v5126
  %v5350 = vunpack.c.h.b16 %v5129
  %v5351 = vpack.c.b16 %v5348, %v5347
  %v5352 = vpack.c.b16 %v5350, %v5349
  %5355 = vmatprep.subr.bf16.mxu0 0
  %5356 = vmatpush1.bf16.msra.mxu0 %v5351
  %5357 = vmatprep.subr.bf16.mxu0 0
  %5358 = vmatpush1.bf16.msra.mxu0 %v5352
  %5359 = vmatprep.subr.bf16.mxu0 0
  %5360 = vmatpush1.bf16.msra.mxu0 0
  %5361 = vmatprep.subr.bf16.mxu0 0
  %5362 = vmatpush1.bf16.msra.mxu0 0
  %5363 = vmatprep.subr.bf16.mxu0 0
  %5364 = vmatpush1.bf16.msra.mxu0 0
  %5365 = vmatprep.subr.bf16.mxu0 0
  %5366 = vmatpush1.bf16.msra.mxu0 0
  %5367 = vmatprep.subr.bf16.mxu0 0
  %5368 = vmatpush1.bf16.msra.mxu0 0
  %5369 = vmatprep.subr.bf16.mxu0 0
  %5370 = vmatpush1.bf16.msra.mxu0 0
  %5371 = vmatprep.subr.bf16.mxu0 0
  %5372 = vmatpush1.bf16.msra.mxu0 0
  %5373 = vmatprep.subr.bf16.mxu0 0
  %5374 = vmatpush1.bf16.msra.mxu0 0
  %5375 = vmatprep.subr.bf16.mxu0 0
  %5376 = vmatpush1.bf16.msra.mxu0 0
  %5377 = vmatprep.subr.bf16.mxu0 0
  %5378 = vmatpush1.bf16.msra.mxu0 0
  %5379 = vmatprep.subr.bf16.mxu0 0
  %5380 = vmatpush1.bf16.msra.mxu0 0
  %5381 = vmatprep.subr.bf16.mxu0 0
  %5382 = vmatpush1.bf16.msra.mxu0 0
  %5383 = vmatprep.subr.bf16.mxu0 0
  %5384 = vmatpush1.bf16.msra.mxu0 0
  %5385 = vmatprep.subr.bf16.mxu0 0
  %5386 = vmatpush1.bf16.msra.mxu0 0
  %5387 = vmatprep.mubr.bf16.mxu0 0
  %5388 = vmatmul.mubr.bf16.gmra.mrb[0].mxu0 %v5280
  %v5389 = vpop.f32.mrb[0].mxu0
  %v5390 = vadd.f32 0.0, %v5389
  %v5391 = vpop.f32.mrb[0].mxu0
  %v5392 = vpop.f32.mrb[0].mxu0
  %v5393 = vadd.f32 0.0, %v5392
  %v5394 = vpop.f32.mrb[0].mxu0
  %5395 = vmatprep.mubr.bf16.mxu0 0
  %5396 = vmatmul.mubr.bf16.gmra.mrb[0].mxu0 %v5283
  %v5397 = vpop.f32.mrb[0].mxu0
  %v5398 = vadd.f32 0.0, %v5397
  %v5399 = vpop.f32.mrb[0].mxu0
  %v5400 = vpop.f32.mrb[0].mxu0
  %v5401 = vadd.f32 0.0, %v5400
  %v5402 = vpop.f32.mrb[0].mxu0
  %5403 = vmatprep.mubr.bf16.mxu0 0
  %5404 = vmatmul.mubr.bf16.gmra.mrb[0].mxu0 %v5286
  %v5405 = vpop.f32.mrb[0].mxu0
  %v5406 = vadd.f32 0.0, %v5405
  %v5407 = vpop.f32.mrb[0].mxu0
  %v5408 = vpop.f32.mrb[0].mxu0
  %v5409 = vadd.f32 0.0, %v5408
  %v5410 = vpop.f32.mrb[0].mxu0
  %5411 = vdwg.mxu0
  %v5412 = vlaneseq
  %v5413 = vshrl.u32 %v5412, 7
  %v5414 = vsub.s32 5, %v5413
  %v5415 = vrot.slane %v5150, %v5414
  %v5416 = vadd.f32 %v5390, %v5415
  %v5417 = vadd.f32 %v5393, %v5415
  %v5418 = vadd.f32 %v5398, %v5415
  %v5419 = vadd.f32 %v5401, %v5415
  %v5420 = vadd.f32 %v5406, %v5415
  %v5421 = vadd.f32 %v5409, %v5415
  %v5426 = vunpack.c.l.b16 %v5121
  %v5427 = vunpack.c.l.b16 %v5124
  %v5428 = vunpack.c.l.b16 %v5127
  %v5429 = vunpack.c.l.b16 %v5130
  %v5430 = vpack.c.b16 %v5427, %v5426
  %v5431 = vpack.c.b16 %v5429, %v5428
  %5434 = vmatprep.subr.bf16.mxu0 0
  %5435 = vmatpush1.bf16.msra.mxu0 %v5430
  %5436 = vmatprep.subr.bf16.mxu0 0
  %5437 = vmatpush1.bf16.msra.mxu0 %v5431
  %5438 = vmatprep.subr.bf16.mxu0 0
  %5439 = vmatpush1.bf16.msra.mxu0 0
  %5440 = vmatprep.subr.bf16.mxu0 0
  %5441 = vmatpush1.bf16.msra.mxu0 0
  %5442 = vmatprep.subr.bf16.mxu0 0
  %5443 = vmatpush1.bf16.msra.mxu0 0
  %5444 = vmatprep.subr.bf16.mxu0 0
  %5445 = vmatpush1.bf16.msra.mxu0 0
  %5446 = vmatprep.subr.bf16.mxu0 0
  %5447 = vmatpush1.bf16.msra.mxu0 0
  %5448 = vmatprep.subr.bf16.mxu0 0
  %5449 = vmatpush1.bf16.msra.mxu0 0
  %5450 = vmatprep.subr.bf16.mxu0 0
  %5451 = vmatpush1.bf16.msra.mxu0 0
  %5452 = vmatprep.subr.bf16.mxu0 0
  %5453 = vmatpush1.bf16.msra.mxu0 0
  %5454 = vmatprep.subr.bf16.mxu0 0
  %5455 = vmatpush1.bf16.msra.mxu0 0
  %5456 = vmatprep.subr.bf16.mxu0 0
  %5457 = vmatpush1.bf16.msra.mxu0 0
  %5458 = vmatprep.subr.bf16.mxu0 0
  %5459 = vmatpush1.bf16.msra.mxu0 0
  %5460 = vmatprep.subr.bf16.mxu0 0
  %5461 = vmatpush1.bf16.msra.mxu0 0
  %5462 = vmatprep.subr.bf16.mxu0 0
  %5463 = vmatpush1.bf16.msra.mxu0 0
  %5464 = vmatprep.subr.bf16.mxu0 0
  %5465 = vmatpush1.bf16.msra.mxu0 0
  %5466 = vmatprep.mubr.bf16.mxu0 0
  %5467 = vmatmul.mubr.bf16.gmra.mrb[0].mxu0 %v5280
  %v5468 = vpop.f32.mrb[0].mxu0
  %v5469 = vadd.f32 0.0, %v5468
  %v5470 = vpop.f32.mrb[0].mxu0
  %v5471 = vpop.f32.mrb[0].mxu0
  %v5472 = vadd.f32 0.0, %v5471
  %v5473 = vpop.f32.mrb[0].mxu0
  %5474 = vmatprep.mubr.bf16.mxu0 0
  %5475 = vmatmul.mubr.bf16.gmra.mrb[0].mxu0 %v5283
  %v5476 = vpop.f32.mrb[0].mxu0
  %v5477 = vadd.f32 0.0, %v5476
  %v5478 = vpop.f32.mrb[0].mxu0
  %v5479 = vpop.f32.mrb[0].mxu0
  %v5480 = vadd.f32 0.0, %v5479
  %v5481 = vpop.f32.mrb[0].mxu0
  %5482 = vmatprep.mubr.bf16.mxu0 0
  %5483 = vmatmul.mubr.bf16.gmra.mrb[0].mxu0 %v5286
  %v5484 = vpop.f32.mrb[0].mxu0
  %v5485 = vadd.f32 0.0, %v5484
  %v5486 = vpop.f32.mrb[0].mxu0
  %v5487 = vpop.f32.mrb[0].mxu0
  %v5488 = vadd.f32 0.0, %v5487
  %v5489 = vpop.f32.mrb[0].mxu0
  %5490 = vdwg.mxu0
  %v5491 = vlaneseq
  %v5492 = vshrl.u32 %v5491, 7
  %v5493 = vsub.s32 6, %v5492
  %v5494 = vrot.slane %v5150, %v5493
  %v5495 = vadd.f32 %v5469, %v5494
  %v5496 = vadd.f32 %v5472, %v5494
  %v5497 = vadd.f32 %v5477, %v5494
  %v5498 = vadd.f32 %v5480, %v5494
  %v5499 = vadd.f32 %v5485, %v5494
  %v5500 = vadd.f32 %v5488, %v5494
  %v5501 = vpack.c.bf16 %v5345, %v5345
  %v5502 = vpack.c.bf16 %v5346, %v5346
  %v5503 = vpack.c.bf16 %v5417, %v5416
  %v5504 = vpack.c.bf16 %v5418, %v5418
  %v5505 = vpack.c.bf16 %v5420, %v5419
  %v5506 = vpack.c.bf16 %v5421, %v5421
  %v5507 = vpack.c.bf16 %v5496, %v5495
  %v5508 = vpack.c.bf16 %v5497, %v5497
  %v5509 = vpack.c.bf16 %v5499, %v5498
  %v5510 = vpack.c.bf16 %v5500, %v5500
  %v5512 = vsel %vm841, %v5501, 0
  %v5515 = vsel %vm841, %v5503, 0
  %v5518 = vsel %vm841, %v5504, 0
  %5520 = vmatprep.subr.bf16.mxu0 0
  %5521 = vmatpush1.bf16.xpose.msra.mxu0 %v5515
  %5522 = vmatprep.subr.bf16.mxu0 0
  %5523 = vmatpush1.bf16.xpose.msra.mxu0 %v5518
  %5524 = vmatprep.subr.bf16.mxu0 0
  %5525 = vmatpush1.bf16.xpose.msra.mxu0 0
  %5526 = vmatprep.subr.bf16.mxu0 0
  %5527 = vmatpush1.bf16.xpose.msra.mxu0 0
  %5528 = vmatprep.subr.bf16.mxu0 0
  %5529 = vmatpush1.bf16.xpose.msra.mxu0 0
  %5530 = vmatprep.subr.bf16.mxu0 0
  %5531 = vmatpush1.bf16.xpose.msra.mxu0 0
  %5532 = vmatprep.subr.bf16.mxu0 0
  %5533 = vmatpush1.bf16.xpose.msra.mxu0 0
  %5534 = vmatprep.subr.bf16.mxu0 0
  %5535 = vmatpush1.bf16.xpose.msra.mxu0 0
  %5536 = vmatprep.subr.bf16.mxu0 0
  %5537 = vmatpush1.bf16.xpose.msra.mxu0 0
  %5538 = vmatprep.subr.bf16.mxu0 0
  %5539 = vmatpush1.bf16.xpose.msra.mxu0 0
  %5540 = vmatprep.subr.bf16.mxu0 0
  %5541 = vmatpush1.bf16.xpose.msra.mxu0 0
  %5542 = vmatprep.subr.bf16.mxu0 0
  %5543 = vmatpush1.bf16.xpose.msra.mxu0 0
  %5544 = vmatprep.subr.bf16.mxu0 0
  %5545 = vmatpush1.bf16.xpose.msra.mxu0 0
  %5546 = vmatprep.subr.bf16.mxu0 0
  %5547 = vmatpush1.bf16.xpose.msra.mxu0 0
  %5548 = vmatprep.subr.bf16.mxu0 0
  %5549 = vmatpush1.bf16.xpose.msra.mxu0 0
  %5550 = vmatprep.subr.bf16.mxu0 0
  %5551 = vmatpush1.bf16.xpose.msra.mxu0 0
  %5552 = vmatprep.mubr.bf16.mxu0 0
  %5553 = vmatmul.mubr.bf16.gmra.mrb[0].mxu0 %v5512
  %v5554 = vpop.f32.mrb[0].mxu0
  %v5555 = vadd.f32 0.0, %v5554
  %v5556 = vpop.f32.mrb[0].mxu0
  %v5557 = vpop.f32.mrb[0].mxu0
  %v5558 = vpop.f32.mrb[0].mxu0
  %5559 = vdwg.mxu0
  %v5561 = vsel %vm841, %v5502, 0
  %v5564 = vsel %vm841, %v5505, 0
  %v5567 = vsel %vm841, %v5506, 0
  %5569 = vmatprep.subr.bf16.mxu0 0
  %5570 = vmatpush1.bf16.xpose.msra.mxu0 %v5564
  %5571 = vmatprep.subr.bf16.mxu0 0
  %5572 = vmatpush1.bf16.xpose.msra.mxu0 %v5567
  %5573 = vmatprep.subr.bf16.mxu0 0
  %5574 = vmatpush1.bf16.xpose.msra.mxu0 0
  %5575 = vmatprep.subr.bf16.mxu0 0
  %5576 = vmatpush1.bf16.xpose.msra.mxu0 0
  %5577 = vmatprep.subr.bf16.mxu0 0
  %5578 = vmatpush1.bf16.xpose.msra.mxu0 0
  %5579 = vmatprep.subr.bf16.mxu0 0
  %5580 = vmatpush1.bf16.xpose.msra.mxu0 0
  %5581 = vmatprep.subr.bf16.mxu0 0
  %5582 = vmatpush1.bf16.xpose.msra.mxu0 0
  %5583 = vmatprep.subr.bf16.mxu0 0
  %5584 = vmatpush1.bf16.xpose.msra.mxu0 0
  %5585 = vmatprep.subr.bf16.mxu0 0
  %5586 = vmatpush1.bf16.xpose.msra.mxu0 0
  %5587 = vmatprep.subr.bf16.mxu0 0
  %5588 = vmatpush1.bf16.xpose.msra.mxu0 0
  %5589 = vmatprep.subr.bf16.mxu0 0
  %5590 = vmatpush1.bf16.xpose.msra.mxu0 0
  %5591 = vmatprep.subr.bf16.mxu0 0
  %5592 = vmatpush1.bf16.xpose.msra.mxu0 0
  %5593 = vmatprep.subr.bf16.mxu0 0
  %5594 = vmatpush1.bf16.xpose.msra.mxu0 0
  %5595 = vmatprep.subr.bf16.mxu0 0
  %5596 = vmatpush1.bf16.xpose.msra.mxu0 0
  %5597 = vmatprep.subr.bf16.mxu0 0
  %5598 = vmatpush1.bf16.xpose.msra.mxu0 0
  %5599 = vmatprep.subr.bf16.mxu0 0
  %5600 = vmatpush1.bf16.xpose.msra.mxu0 0
  %5601 = vmatprep.mubr.bf16.mxu0 0
  %5602 = vmatmul.mubr.bf16.gmra.mrb[0].mxu0 %v5561
  %v5603 = vpop.f32.mrb[0].mxu0
  %v5604 = vadd.f32 0.0, %v5603
  %v5605 = vpop.f32.mrb[0].mxu0
  %v5606 = vpop.f32.mrb[0].mxu0
  %v5607 = vpop.f32.mrb[0].mxu0
  %5608 = vdwg.mxu0
  %v5609 = vmul.f32 %v5555, 0.35355338
  %v5610 = vmul.f32 %v5604, 0.35355338
  %v5611 = vadd.f32 %v5609, %v452
  %v5612 = vadd.f32 %v5610, %v452
  %v5613 = vsel %vm944, %v5611, -inf
  %5614 = vmax.xlane.f32.xlu0 %v5613
  %v5615 = vpop.xlane.xlu0 %5614
  %v5616 = vsel %vm944, %v5612, -inf
  %5617 = vmax.xlane.f32.xlu0 %v5616
  %v5618 = vpop.xlane.xlu0 %5617
  %v5619 = vsub.f32 %v5611, %v5615
  %v5620 = vsub.f32 %v5612, %v5618
  %v5621 = vmul.f32 %v5619, 1.442695
  %v5622 = vpow.pop %v5621
  %v5623 = vmul.f32 %v5620, 1.442695
  %v5624 = vpow.pop %v5623
  %v5625 = vsel %vm944, %v5622, 0.0
  %5626 = vadd.xlane.f32.xlu0 %v5625
  %v5627 = vpop.xlane.xlu0 %5626
  %v5628 = vsel %vm944, %v5624, 0.0
  %5629 = vadd.xlane.f32.xlu0 %v5628
  %v5630 = vpop.xlane.xlu0 %5629
  %v5631 = vrcp.pop %v5627
  %v5632 = vmul.f32 %v5622, %v5631
  %v5633 = vrcp.pop %v5630
  %v5634 = vmul.f32 %v5624, %v5633
  %v5635 = vpack.c.bf16 %v5632, %v5632
  %v5636 = vpack.c.bf16 %v5634, %v5634
  %v5638 = vsel %vm944, %v5635, 0
  %v5641 = vsel %vm972, %v5508, 0
  %5643 = vmatprep.subr.bf16.mxu0 0
  %5644 = vmatpush1.bf16.msra.mxu0 %v5507
  %5645 = vmatprep.subr.bf16.mxu0 0
  %5646 = vmatpush1.bf16.msra.mxu0 %v5641
  %5647 = vmatprep.subr.bf16.mxu0 0
  %5648 = vmatpush1.bf16.msra.mxu0 0
  %5649 = vmatprep.subr.bf16.mxu0 0
  %5650 = vmatpush1.bf16.msra.mxu0 0
  %5651 = vmatprep.subr.bf16.mxu0 0
  %5652 = vmatpush1.bf16.msra.mxu0 0
  %5653 = vmatprep.subr.bf16.mxu0 0
  %5654 = vmatpush1.bf16.msra.mxu0 0
  %5655 = vmatprep.subr.bf16.mxu0 0
  %5656 = vmatpush1.bf16.msra.mxu0 0
  %5657 = vmatprep.subr.bf16.mxu0 0
  %5658 = vmatpush1.bf16.msra.mxu0 0
  %5659 = vmatprep.subr.bf16.mxu0 0
  %5660 = vmatpush1.bf16.msra.mxu0 0
  %5661 = vmatprep.subr.bf16.mxu0 0
  %5662 = vmatpush1.bf16.msra.mxu0 0
  %5663 = vmatprep.subr.bf16.mxu0 0
  %5664 = vmatpush1.bf16.msra.mxu0 0
  %5665 = vmatprep.subr.bf16.mxu0 0
  %5666 = vmatpush1.bf16.msra.mxu0 0
  %5667 = vmatprep.subr.bf16.mxu0 0
  %5668 = vmatpush1.bf16.msra.mxu0 0
  %5669 = vmatprep.subr.bf16.mxu0 0
  %5670 = vmatpush1.bf16.msra.mxu0 0
  %5671 = vmatprep.subr.bf16.mxu0 0
  %5672 = vmatpush1.bf16.msra.mxu0 0
  %5673 = vmatprep.subr.bf16.mxu0 0
  %5674 = vmatpush1.bf16.msra.mxu0 0
  %5675 = vmatprep.mubr.bf16.mxu0 0
  %5676 = vmatmul.mubr.bf16.gmra.mrb[0].mxu0 %v5638
  %v5677 = vpop.f32.mrb[0].mxu0
  %v5678 = vadd.f32 0.0, %v5677
  %v5679 = vpop.f32.mrb[0].mxu0
  %v5680 = vpop.f32.mrb[0].mxu0
  %v5681 = vpop.f32.mrb[0].mxu0
  %5682 = vdwg.mxu0
  %v5684 = vsel %vm944, %v5636, 0
  %v5687 = vsel %vm972, %v5510, 0
  %5689 = vmatprep.subr.bf16.mxu0 0
  %5690 = vmatpush1.bf16.msra.mxu0 %v5509
  %5691 = vmatprep.subr.bf16.mxu0 0
  %5692 = vmatpush1.bf16.msra.mxu0 %v5687
  %5693 = vmatprep.subr.bf16.mxu0 0
  %5694 = vmatpush1.bf16.msra.mxu0 0
  %5695 = vmatprep.subr.bf16.mxu0 0
  %5696 = vmatpush1.bf16.msra.mxu0 0
  %5697 = vmatprep.subr.bf16.mxu0 0
  %5698 = vmatpush1.bf16.msra.mxu0 0
  %5699 = vmatprep.subr.bf16.mxu0 0
  %5700 = vmatpush1.bf16.msra.mxu0 0
  %5701 = vmatprep.subr.bf16.mxu0 0
  %5702 = vmatpush1.bf16.msra.mxu0 0
  %5703 = vmatprep.subr.bf16.mxu0 0
  %5704 = vmatpush1.bf16.msra.mxu0 0
  %5705 = vmatprep.subr.bf16.mxu0 0
  %5706 = vmatpush1.bf16.msra.mxu0 0
  %5707 = vmatprep.subr.bf16.mxu0 0
  %5708 = vmatpush1.bf16.msra.mxu0 0
  %5709 = vmatprep.subr.bf16.mxu0 0
  %5710 = vmatpush1.bf16.msra.mxu0 0
  %5711 = vmatprep.subr.bf16.mxu0 0
  %5712 = vmatpush1.bf16.msra.mxu0 0
  %5713 = vmatprep.subr.bf16.mxu0 0
  %5714 = vmatpush1.bf16.msra.mxu0 0
  %5715 = vmatprep.subr.bf16.mxu0 0
  %5716 = vmatpush1.bf16.msra.mxu0 0
  %5717 = vmatprep.subr.bf16.mxu0 0
  %5718 = vmatpush1.bf16.msra.mxu0 0
  %5719 = vmatprep.subr.bf16.mxu0 0
  %5720 = vmatpush1.bf16.msra.mxu0 0
  %5721 = vmatprep.mubr.bf16.mxu0 0
  %5722 = vmatmul.mubr.bf16.gmra.mrb[0].mxu0 %v5684
  %v5723 = vpop.f32.mrb[0].mxu0
  %v5724 = vadd.f32 0.0, %v5723
  %v5725 = vpop.f32.mrb[0].mxu0
  %v5726 = vpop.f32.mrb[0].mxu0
  %v5727 = vpop.f32.mrb[0].mxu0
  %5728 = vdwg.mxu0
  %5730 = vrot.lane.b32.xlu0 %v5501, 120
  %v5731 = vpop.permute.xlu0 %5730
  %5734 = vrot.lane.b32.xlu0 %v5503, 120
  %v5735 = vpop.permute.xlu0 %5734
  %5736 = vrot.lane.b32.xlu0 %v5504, 120
  %v5737 = vpop.permute.xlu0 %5736
  %v5739 = vsel %vm841, %v5731, 0
  %v5742 = vsel %vm841, %v5735, 0
  %v5745 = vsel %vm841, %v5737, 0
  %5747 = vmatprep.subr.bf16.mxu0 0
  %5748 = vmatpush1.bf16.xpose.msra.mxu0 %v5742
  %5749 = vmatprep.subr.bf16.mxu0 0
  %5750 = vmatpush1.bf16.xpose.msra.mxu0 %v5745
  %5751 = vmatprep.subr.bf16.mxu0 0
  %5752 = vmatpush1.bf16.xpose.msra.mxu0 0
  %5753 = vmatprep.subr.bf16.mxu0 0
  %5754 = vmatpush1.bf16.xpose.msra.mxu0 0
  %5755 = vmatprep.subr.bf16.mxu0 0
  %5756 = vmatpush1.bf16.xpose.msra.mxu0 0
  %5757 = vmatprep.subr.bf16.mxu0 0
  %5758 = vmatpush1.bf16.xpose.msra.mxu0 0
  %5759 = vmatprep.subr.bf16.mxu0 0
  %5760 = vmatpush1.bf16.xpose.msra.mxu0 0
  %5761 = vmatprep.subr.bf16.mxu0 0
  %5762 = vmatpush1.bf16.xpose.msra.mxu0 0
  %5763 = vmatprep.subr.bf16.mxu0 0
  %5764 = vmatpush1.bf16.xpose.msra.mxu0 0
  %5765 = vmatprep.subr.bf16.mxu0 0
  %5766 = vmatpush1.bf16.xpose.msra.mxu0 0
  %5767 = vmatprep.subr.bf16.mxu0 0
  %5768 = vmatpush1.bf16.xpose.msra.mxu0 0
  %5769 = vmatprep.subr.bf16.mxu0 0
  %5770 = vmatpush1.bf16.xpose.msra.mxu0 0
  %5771 = vmatprep.subr.bf16.mxu0 0
  %5772 = vmatpush1.bf16.xpose.msra.mxu0 0
  %5773 = vmatprep.subr.bf16.mxu0 0
  %5774 = vmatpush1.bf16.xpose.msra.mxu0 0
  %5775 = vmatprep.subr.bf16.mxu0 0
  %5776 = vmatpush1.bf16.xpose.msra.mxu0 0
  %5777 = vmatprep.subr.bf16.mxu0 0
  %5778 = vmatpush1.bf16.xpose.msra.mxu0 0
  %5779 = vmatprep.mubr.bf16.mxu0 0
  %5780 = vmatmul.mubr.bf16.gmra.mrb[0].mxu0 %v5739
  %v5781 = vpop.f32.mrb[0].mxu0
  %v5782 = vadd.f32 0.0, %v5781
  %v5783 = vpop.f32.mrb[0].mxu0
  %v5784 = vpop.f32.mrb[0].mxu0
  %v5785 = vpop.f32.mrb[0].mxu0
  %5786 = vdwg.mxu0
  %5788 = vrot.lane.b32.xlu0 %v5502, 120
  %v5789 = vpop.permute.xlu0 %5788
  %5792 = vrot.lane.b32.xlu0 %v5505, 120
  %v5793 = vpop.permute.xlu0 %5792
  %5794 = vrot.lane.b32.xlu0 %v5506, 120
  %v5795 = vpop.permute.xlu0 %5794
  %v5797 = vsel %vm841, %v5789, 0
  %v5800 = vsel %vm841, %v5793, 0
  %v5803 = vsel %vm841, %v5795, 0
  %5805 = vmatprep.subr.bf16.mxu0 0
  %5806 = vmatpush1.bf16.xpose.msra.mxu0 %v5800
  %5807 = vmatprep.subr.bf16.mxu0 0
  %5808 = vmatpush1.bf16.xpose.msra.mxu0 %v5803
  %5809 = vmatprep.subr.bf16.mxu0 0
  %5810 = vmatpush1.bf16.xpose.msra.mxu0 0
  %5811 = vmatprep.subr.bf16.mxu0 0
  %5812 = vmatpush1.bf16.xpose.msra.mxu0 0
  %5813 = vmatprep.subr.bf16.mxu0 0
  %5814 = vmatpush1.bf16.xpose.msra.mxu0 0
  %5815 = vmatprep.subr.bf16.mxu0 0
  %5816 = vmatpush1.bf16.xpose.msra.mxu0 0
  %5817 = vmatprep.subr.bf16.mxu0 0
  %5818 = vmatpush1.bf16.xpose.msra.mxu0 0
  %5819 = vmatprep.subr.bf16.mxu0 0
  %5820 = vmatpush1.bf16.xpose.msra.mxu0 0
  %5821 = vmatprep.subr.bf16.mxu0 0
  %5822 = vmatpush1.bf16.xpose.msra.mxu0 0
  %5823 = vmatprep.subr.bf16.mxu0 0
  %5824 = vmatpush1.bf16.xpose.msra.mxu0 0
  %5825 = vmatprep.subr.bf16.mxu0 0
  %5826 = vmatpush1.bf16.xpose.msra.mxu0 0
  %5827 = vmatprep.subr.bf16.mxu0 0
  %5828 = vmatpush1.bf16.xpose.msra.mxu0 0
  %5829 = vmatprep.subr.bf16.mxu0 0
  %5830 = vmatpush1.bf16.xpose.msra.mxu0 0
  %5831 = vmatprep.subr.bf16.mxu0 0
  %5832 = vmatpush1.bf16.xpose.msra.mxu0 0
  %5833 = vmatprep.subr.bf16.mxu0 0
  %5834 = vmatpush1.bf16.xpose.msra.mxu0 0
  %5835 = vmatprep.subr.bf16.mxu0 0
  %5836 = vmatpush1.bf16.xpose.msra.mxu0 0
  %5837 = vmatprep.mubr.bf16.mxu0 0
  %5838 = vmatmul.mubr.bf16.gmra.mrb[0].mxu0 %v5797
  %v5839 = vpop.f32.mrb[0].mxu0
  %v5840 = vadd.f32 0.0, %v5839
  %v5841 = vpop.f32.mrb[0].mxu0
  %v5842 = vpop.f32.mrb[0].mxu0
  %v5843 = vpop.f32.mrb[0].mxu0
  %5844 = vdwg.mxu0
  %v5845 = vmul.f32 %v5782, 0.35355338
  %v5846 = vmul.f32 %v5840, 0.35355338
  %v5847 = vadd.f32 %v5845, %v452
  %v5848 = vadd.f32 %v5846, %v452
  %v5849 = vsel %vm944, %v5847, -inf
  %5850 = vmax.xlane.f32.xlu0 %v5849
  %v5851 = vpop.xlane.xlu0 %5850
  %v5852 = vsel %vm944, %v5848, -inf
  %5853 = vmax.xlane.f32.xlu0 %v5852
  %v5854 = vpop.xlane.xlu0 %5853
  %v5855 = vsub.f32 %v5847, %v5851
  %v5856 = vsub.f32 %v5848, %v5854
  %v5857 = vmul.f32 %v5855, 1.442695
  %v5858 = vpow.pop %v5857
  %v5859 = vmul.f32 %v5856, 1.442695
  %v5860 = vpow.pop %v5859
  %v5861 = vsel %vm944, %v5858, 0.0
  %5862 = vadd.xlane.f32.xlu0 %v5861
  %v5863 = vpop.xlane.xlu0 %5862
  %v5864 = vsel %vm944, %v5860, 0.0
  %5865 = vadd.xlane.f32.xlu0 %v5864
  %v5866 = vpop.xlane.xlu0 %5865
  %v5867 = vrcp.pop %v5863
  %v5868 = vmul.f32 %v5858, %v5867
  %v5869 = vrcp.pop %v5866
  %v5870 = vmul.f32 %v5860, %v5869
  %v5871 = vpack.c.bf16 %v5868, %v5868
  %v5872 = vpack.c.bf16 %v5870, %v5870
  %5875 = vrot.lane.b32.xlu0 %v5507, 120
  %v5876 = vpop.permute.xlu0 %5875
  %5877 = vrot.lane.b32.xlu0 %v5508, 120
  %v5878 = vpop.permute.xlu0 %5877
  %v5881 = vsel %vm944, %v5871, 0
  %v5884 = vsel %vm972, %v5878, 0
  %5886 = vmatprep.subr.bf16.mxu0 0
  %5887 = vmatpush1.bf16.msra.mxu0 %v5876
  %5888 = vmatprep.subr.bf16.mxu0 0
  %5889 = vmatpush1.bf16.msra.mxu0 %v5884
  %5890 = vmatprep.subr.bf16.mxu0 0
  %5891 = vmatpush1.bf16.msra.mxu0 0
  %5892 = vmatprep.subr.bf16.mxu0 0
  %5893 = vmatpush1.bf16.msra.mxu0 0
  %5894 = vmatprep.subr.bf16.mxu0 0
  %5895 = vmatpush1.bf16.msra.mxu0 0
  %5896 = vmatprep.subr.bf16.mxu0 0
  %5897 = vmatpush1.bf16.msra.mxu0 0
  %5898 = vmatprep.subr.bf16.mxu0 0
  %5899 = vmatpush1.bf16.msra.mxu0 0
  %5900 = vmatprep.subr.bf16.mxu0 0
  %5901 = vmatpush1.bf16.msra.mxu0 0
  %5902 = vmatprep.subr.bf16.mxu0 0
  %5903 = vmatpush1.bf16.msra.mxu0 0
  %5904 = vmatprep.subr.bf16.mxu0 0
  %5905 = vmatpush1.bf16.msra.mxu0 0
  %5906 = vmatprep.subr.bf16.mxu0 0
  %5907 = vmatpush1.bf16.msra.mxu0 0
  %5908 = vmatprep.subr.bf16.mxu0 0
  %5909 = vmatpush1.bf16.msra.mxu0 0
  %5910 = vmatprep.subr.bf16.mxu0 0
  %5911 = vmatpush1.bf16.msra.mxu0 0
  %5912 = vmatprep.subr.bf16.mxu0 0
  %5913 = vmatpush1.bf16.msra.mxu0 0
  %5914 = vmatprep.subr.bf16.mxu0 0
  %5915 = vmatpush1.bf16.msra.mxu0 0
  %5916 = vmatprep.subr.bf16.mxu0 0
  %5917 = vmatpush1.bf16.msra.mxu0 0
  %5918 = vmatprep.mubr.bf16.mxu0 0
  %5919 = vmatmul.mubr.bf16.gmra.mrb[0].mxu0 %v5881
  %v5920 = vpop.f32.mrb[0].mxu0
  %v5921 = vadd.f32 0.0, %v5920
  %v5922 = vpop.f32.mrb[0].mxu0
  %v5923 = vpop.f32.mrb[0].mxu0
  %v5924 = vpop.f32.mrb[0].mxu0
  %5925 = vdwg.mxu0
  %5928 = vrot.lane.b32.xlu0 %v5509, 120
  %v5929 = vpop.permute.xlu0 %5928
  %5930 = vrot.lane.b32.xlu0 %v5510, 120
  %v5931 = vpop.permute.xlu0 %5930
  %v5934 = vsel %vm944, %v5872, 0
  %v5937 = vsel %vm972, %v5931, 0
  %5939 = vmatprep.subr.bf16.mxu0 0
  %5940 = vmatpush1.bf16.msra.mxu0 %v5929
  %5941 = vmatprep.subr.bf16.mxu0 0
  %5942 = vmatpush1.bf16.msra.mxu0 %v5937
  %5943 = vmatprep.subr.bf16.mxu0 0
  %5944 = vmatpush1.bf16.msra.mxu0 0
  %5945 = vmatprep.subr.bf16.mxu0 0
  %5946 = vmatpush1.bf16.msra.mxu0 0
  %5947 = vmatprep.subr.bf16.mxu0 0
  %5948 = vmatpush1.bf16.msra.mxu0 0
  %5949 = vmatprep.subr.bf16.mxu0 0
  %5950 = vmatpush1.bf16.msra.mxu0 0
  %5951 = vmatprep.subr.bf16.mxu0 0
  %5952 = vmatpush1.bf16.msra.mxu0 0
  %5953 = vmatprep.subr.bf16.mxu0 0
  %5954 = vmatpush1.bf16.msra.mxu0 0
  %5955 = vmatprep.subr.bf16.mxu0 0
  %5956 = vmatpush1.bf16.msra.mxu0 0
  %5957 = vmatprep.subr.bf16.mxu0 0
  %5958 = vmatpush1.bf16.msra.mxu0 0
  %5959 = vmatprep.subr.bf16.mxu0 0
  %5960 = vmatpush1.bf16.msra.mxu0 0
  %5961 = vmatprep.subr.bf16.mxu0 0
  %5962 = vmatpush1.bf16.msra.mxu0 0
  %5963 = vmatprep.subr.bf16.mxu0 0
  %5964 = vmatpush1.bf16.msra.mxu0 0
  %5965 = vmatprep.subr.bf16.mxu0 0
  %5966 = vmatpush1.bf16.msra.mxu0 0
  %5967 = vmatprep.subr.bf16.mxu0 0
  %5968 = vmatpush1.bf16.msra.mxu0 0
  %5969 = vmatprep.subr.bf16.mxu0 0
  %5970 = vmatpush1.bf16.msra.mxu0 0
  %5971 = vmatprep.mubr.bf16.mxu0 0
  %5972 = vmatmul.mubr.bf16.gmra.mrb[0].mxu0 %v5934
  %v5973 = vpop.f32.mrb[0].mxu0
  %v5974 = vadd.f32 0.0, %v5973
  %v5975 = vpop.f32.mrb[0].mxu0
  %v5976 = vpop.f32.mrb[0].mxu0
  %v5977 = vpop.f32.mrb[0].mxu0
  %5978 = vdwg.mxu0
  %5979 = vrot.lane.b32.xlu0 %v5501, 112
  %v5980 = vpop.permute.xlu0 %5979
  %5981 = vrot.lane.b32.xlu0 %v5503, 112
  %v5982 = vpop.permute.xlu0 %5981
  %5983 = vrot.lane.b32.xlu0 %v5504, 112
  %v5984 = vpop.permute.xlu0 %5983
  %v5986 = vsel %vm841, %v5980, 0
  %v5989 = vsel %vm841, %v5982, 0
  %v5992 = vsel %vm841, %v5984, 0
  %5994 = vmatprep.subr.bf16.mxu0 0
  %5995 = vmatpush1.bf16.xpose.msra.mxu0 %v5989
  %5996 = vmatprep.subr.bf16.mxu0 0
  %5997 = vmatpush1.bf16.xpose.msra.mxu0 %v5992
  %5998 = vmatprep.subr.bf16.mxu0 0
  %5999 = vmatpush1.bf16.xpose.msra.mxu0 0
  %6000 = vmatprep.subr.bf16.mxu0 0
  %6001 = vmatpush1.bf16.xpose.msra.mxu0 0
  %6002 = vmatprep.subr.bf16.mxu0 0
  %6003 = vmatpush1.bf16.xpose.msra.mxu0 0
  %6004 = vmatprep.subr.bf16.mxu0 0
  %6005 = vmatpush1.bf16.xpose.msra.mxu0 0
  %6006 = vmatprep.subr.bf16.mxu0 0
  %6007 = vmatpush1.bf16.xpose.msra.mxu0 0
  %6008 = vmatprep.subr.bf16.mxu0 0
  %6009 = vmatpush1.bf16.xpose.msra.mxu0 0
  %6010 = vmatprep.subr.bf16.mxu0 0
  %6011 = vmatpush1.bf16.xpose.msra.mxu0 0
  %6012 = vmatprep.subr.bf16.mxu0 0
  %6013 = vmatpush1.bf16.xpose.msra.mxu0 0
  %6014 = vmatprep.subr.bf16.mxu0 0
  %6015 = vmatpush1.bf16.xpose.msra.mxu0 0
  %6016 = vmatprep.subr.bf16.mxu0 0
  %6017 = vmatpush1.bf16.xpose.msra.mxu0 0
  %6018 = vmatprep.subr.bf16.mxu0 0
  %6019 = vmatpush1.bf16.xpose.msra.mxu0 0
  %6020 = vmatprep.subr.bf16.mxu0 0
  %6021 = vmatpush1.bf16.xpose.msra.mxu0 0
  %6022 = vmatprep.subr.bf16.mxu0 0
  %6023 = vmatpush1.bf16.xpose.msra.mxu0 0
  %6024 = vmatprep.subr.bf16.mxu0 0
  %6025 = vmatpush1.bf16.xpose.msra.mxu0 0
  %6026 = vmatprep.mubr.bf16.mxu0 0
  %6027 = vmatmul.mubr.bf16.gmra.mrb[0].mxu0 %v5986
  %v6028 = vpop.f32.mrb[0].mxu0
  %v6029 = vadd.f32 0.0, %v6028
  %v6030 = vpop.f32.mrb[0].mxu0
  %v6031 = vpop.f32.mrb[0].mxu0
  %v6032 = vpop.f32.mrb[0].mxu0
  %6033 = vdwg.mxu0
  %6034 = vrot.lane.b32.xlu0 %v5502, 112
  %v6035 = vpop.permute.xlu0 %6034
  %6036 = vrot.lane.b32.xlu0 %v5505, 112
  %v6037 = vpop.permute.xlu0 %6036
  %6038 = vrot.lane.b32.xlu0 %v5506, 112
  %v6039 = vpop.permute.xlu0 %6038
  %v6041 = vsel %vm841, %v6035, 0
  %v6044 = vsel %vm841, %v6037, 0
  %v6047 = vsel %vm841, %v6039, 0
  %6049 = vmatprep.subr.bf16.mxu0 0
  %6050 = vmatpush1.bf16.xpose.msra.mxu0 %v6044
  %6051 = vmatprep.subr.bf16.mxu0 0
  %6052 = vmatpush1.bf16.xpose.msra.mxu0 %v6047
  %6053 = vmatprep.subr.bf16.mxu0 0
  %6054 = vmatpush1.bf16.xpose.msra.mxu0 0
  %6055 = vmatprep.subr.bf16.mxu0 0
  %6056 = vmatpush1.bf16.xpose.msra.mxu0 0
  %6057 = vmatprep.subr.bf16.mxu0 0
  %6058 = vmatpush1.bf16.xpose.msra.mxu0 0
  %6059 = vmatprep.subr.bf16.mxu0 0
  %6060 = vmatpush1.bf16.xpose.msra.mxu0 0
  %6061 = vmatprep.subr.bf16.mxu0 0
  %6062 = vmatpush1.bf16.xpose.msra.mxu0 0
  %6063 = vmatprep.subr.bf16.mxu0 0
  %6064 = vmatpush1.bf16.xpose.msra.mxu0 0
  %6065 = vmatprep.subr.bf16.mxu0 0
  %6066 = vmatpush1.bf16.xpose.msra.mxu0 0
  %6067 = vmatprep.subr.bf16.mxu0 0
  %6068 = vmatpush1.bf16.xpose.msra.mxu0 0
  %6069 = vmatprep.subr.bf16.mxu0 0
  %6070 = vmatpush1.bf16.xpose.msra.mxu0 0
  %6071 = vmatprep.subr.bf16.mxu0 0
  %6072 = vmatpush1.bf16.xpose.msra.mxu0 0
  %6073 = vmatprep.subr.bf16.mxu0 0
  %6074 = vmatpush1.bf16.xpose.msra.mxu0 0
  %6075 = vmatprep.subr.bf16.mxu0 0
  %6076 = vmatpush1.bf16.xpose.msra.mxu0 0
  %6077 = vmatprep.subr.bf16.mxu0 0
  %6078 = vmatpush1.bf16.xpose.msra.mxu0 0
  %6079 = vmatprep.subr.bf16.mxu0 0
  %6080 = vmatpush1.bf16.xpose.msra.mxu0 0
  %6081 = vmatprep.mubr.bf16.mxu0 0
  %6082 = vmatmul.mubr.bf16.gmra.mrb[0].mxu0 %v6041
  %v6083 = vpop.f32.mrb[0].mxu0
  %v6084 = vadd.f32 0.0, %v6083
  %v6085 = vpop.f32.mrb[0].mxu0
  %v6086 = vpop.f32.mrb[0].mxu0
  %v6087 = vpop.f32.mrb[0].mxu0
  %6088 = vdwg.mxu0
  %v6089 = vmul.f32 %v6029, 0.35355338
  %v6090 = vmul.f32 %v6084, 0.35355338
  %v6091 = vadd.f32 %v6089, %v452
  %v6092 = vadd.f32 %v6090, %v452
  %v6093 = vsel %vm944, %v6091, -inf
  %6094 = vmax.xlane.f32.xlu0 %v6093
  %v6095 = vpop.xlane.xlu0 %6094
  %v6096 = vsel %vm944, %v6092, -inf
  %6097 = vmax.xlane.f32.xlu0 %v6096
  %v6098 = vpop.xlane.xlu0 %6097
  %v6099 = vsub.f32 %v6091, %v6095
  %v6100 = vsub.f32 %v6092, %v6098
  %v6101 = vmul.f32 %v6099, 1.442695
  %v6102 = vpow.pop %v6101
  %v6103 = vmul.f32 %v6100, 1.442695
  %v6104 = vpow.pop %v6103
  %v6105 = vsel %vm944, %v6102, 0.0
  %6106 = vadd.xlane.f32.xlu0 %v6105
  %v6107 = vpop.xlane.xlu0 %6106
  %v6108 = vsel %vm944, %v6104, 0.0
  %6109 = vadd.xlane.f32.xlu0 %v6108
  %v6110 = vpop.xlane.xlu0 %6109
  %v6111 = vrcp.pop %v6107
  %v6112 = vmul.f32 %v6102, %v6111
  %v6113 = vrcp.pop %v6110
  %v6114 = vmul.f32 %v6104, %v6113
  %v6115 = vpack.c.bf16 %v6112, %v6112
  %v6116 = vpack.c.bf16 %v6114, %v6114
  %6117 = vrot.lane.b32.xlu0 %v5507, 112
  %v6118 = vpop.permute.xlu0 %6117
  %6119 = vrot.lane.b32.xlu0 %v5508, 112
  %v6120 = vpop.permute.xlu0 %6119
  %v6123 = vsel %vm944, %v6115, 0
  %v6126 = vsel %vm972, %v6120, 0
  %6128 = vmatprep.subr.bf16.mxu0 0
  %6129 = vmatpush1.bf16.msra.mxu0 %v6118
  %6130 = vmatprep.subr.bf16.mxu0 0
  %6131 = vmatpush1.bf16.msra.mxu0 %v6126
  %6132 = vmatprep.subr.bf16.mxu0 0
  %6133 = vmatpush1.bf16.msra.mxu0 0
  %6134 = vmatprep.subr.bf16.mxu0 0
  %6135 = vmatpush1.bf16.msra.mxu0 0
  %6136 = vmatprep.subr.bf16.mxu0 0
  %6137 = vmatpush1.bf16.msra.mxu0 0
  %6138 = vmatprep.subr.bf16.mxu0 0
  %6139 = vmatpush1.bf16.msra.mxu0 0
  %6140 = vmatprep.subr.bf16.mxu0 0
  %6141 = vmatpush1.bf16.msra.mxu0 0
  %6142 = vmatprep.subr.bf16.mxu0 0
  %6143 = vmatpush1.bf16.msra.mxu0 0
  %6144 = vmatprep.subr.bf16.mxu0 0
  %6145 = vmatpush1.bf16.msra.mxu0 0
  %6146 = vmatprep.subr.bf16.mxu0 0
  %6147 = vmatpush1.bf16.msra.mxu0 0
  %6148 = vmatprep.subr.bf16.mxu0 0
  %6149 = vmatpush1.bf16.msra.mxu0 0
  %6150 = vmatprep.subr.bf16.mxu0 0
  %6151 = vmatpush1.bf16.msra.mxu0 0
  %6152 = vmatprep.subr.bf16.mxu0 0
  %6153 = vmatpush1.bf16.msra.mxu0 0
  %6154 = vmatprep.subr.bf16.mxu0 0
  %6155 = vmatpush1.bf16.msra.mxu0 0
  %6156 = vmatprep.subr.bf16.mxu0 0
  %6157 = vmatpush1.bf16.msra.mxu0 0
  %6158 = vmatprep.subr.bf16.mxu0 0
  %6159 = vmatpush1.bf16.msra.mxu0 0
  %6160 = vmatprep.mubr.bf16.mxu0 0
  %6161 = vmatmul.mubr.bf16.gmra.mrb[0].mxu0 %v6123
  %v6162 = vpop.f32.mrb[0].mxu0
  %v6163 = vadd.f32 0.0, %v6162
  %v6164 = vpop.f32.mrb[0].mxu0
  %v6165 = vpop.f32.mrb[0].mxu0
  %v6166 = vpop.f32.mrb[0].mxu0
  %6167 = vdwg.mxu0
  %6168 = vrot.lane.b32.xlu0 %v5509, 112
  %v6169 = vpop.permute.xlu0 %6168
  %6170 = vrot.lane.b32.xlu0 %v5510, 112
  %v6171 = vpop.permute.xlu0 %6170
  %v6174 = vsel %vm944, %v6116, 0
  %v6177 = vsel %vm972, %v6171, 0
  %6179 = vmatprep.subr.bf16.mxu0 0
  %6180 = vmatpush1.bf16.msra.mxu0 %v6169
  %6181 = vmatprep.subr.bf16.mxu0 0
  %6182 = vmatpush1.bf16.msra.mxu0 %v6177
  %6183 = vmatprep.subr.bf16.mxu0 0
  %6184 = vmatpush1.bf16.msra.mxu0 0
  %6185 = vmatprep.subr.bf16.mxu0 0
  %6186 = vmatpush1.bf16.msra.mxu0 0
  %6187 = vmatprep.subr.bf16.mxu0 0
  %6188 = vmatpush1.bf16.msra.mxu0 0
  %6189 = vmatprep.subr.bf16.mxu0 0
  %6190 = vmatpush1.bf16.msra.mxu0 0
  %6191 = vmatprep.subr.bf16.mxu0 0
  %6192 = vmatpush1.bf16.msra.mxu0 0
  %6193 = vmatprep.subr.bf16.mxu0 0
  %6194 = vmatpush1.bf16.msra.mxu0 0
  %6195 = vmatprep.subr.bf16.mxu0 0
  %6196 = vmatpush1.bf16.msra.mxu0 0
  %6197 = vmatprep.subr.bf16.mxu0 0
  %6198 = vmatpush1.bf16.msra.mxu0 0
  %6199 = vmatprep.subr.bf16.mxu0 0
  %6200 = vmatpush1.bf16.msra.mxu0 0
  %6201 = vmatprep.subr.bf16.mxu0 0
  %6202 = vmatpush1.bf16.msra.mxu0 0
  %6203 = vmatprep.subr.bf16.mxu0 0
  %6204 = vmatpush1.bf16.msra.mxu0 0
  %6205 = vmatprep.subr.bf16.mxu0 0
  %6206 = vmatpush1.bf16.msra.mxu0 0
  %6207 = vmatprep.subr.bf16.mxu0 0
  %6208 = vmatpush1.bf16.msra.mxu0 0
  %6209 = vmatprep.subr.bf16.mxu0 0
  %6210 = vmatpush1.bf16.msra.mxu0 0
  %6211 = vmatprep.mubr.bf16.mxu0 0
  %6212 = vmatmul.mubr.bf16.gmra.mrb[0].mxu0 %v6174
  %v6213 = vpop.f32.mrb[0].mxu0
  %v6214 = vadd.f32 0.0, %v6213
  %v6215 = vpop.f32.mrb[0].mxu0
  %v6216 = vpop.f32.mrb[0].mxu0
  %v6217 = vpop.f32.mrb[0].mxu0
  %6218 = vdwg.mxu0
  %6219 = vrot.lane.b32.xlu0 %v5501, 104
  %v6220 = vpop.permute.xlu0 %6219
  %6221 = vrot.lane.b32.xlu0 %v5503, 104
  %v6222 = vpop.permute.xlu0 %6221
  %6223 = vrot.lane.b32.xlu0 %v5504, 104
  %v6224 = vpop.permute.xlu0 %6223
  %v6226 = vsel %vm841, %v6220, 0
  %v6229 = vsel %vm841, %v6222, 0
  %v6232 = vsel %vm841, %v6224, 0
  %6234 = vmatprep.subr.bf16.mxu0 0
  %6235 = vmatpush1.bf16.xpose.msra.mxu0 %v6229
  %6236 = vmatprep.subr.bf16.mxu0 0
  %6237 = vmatpush1.bf16.xpose.msra.mxu0 %v6232
  %6238 = vmatprep.subr.bf16.mxu0 0
  %6239 = vmatpush1.bf16.xpose.msra.mxu0 0
  %6240 = vmatprep.subr.bf16.mxu0 0
  %6241 = vmatpush1.bf16.xpose.msra.mxu0 0
  %6242 = vmatprep.subr.bf16.mxu0 0
  %6243 = vmatpush1.bf16.xpose.msra.mxu0 0
  %6244 = vmatprep.subr.bf16.mxu0 0
  %6245 = vmatpush1.bf16.xpose.msra.mxu0 0
  %6246 = vmatprep.subr.bf16.mxu0 0
  %6247 = vmatpush1.bf16.xpose.msra.mxu0 0
  %6248 = vmatprep.subr.bf16.mxu0 0
  %6249 = vmatpush1.bf16.xpose.msra.mxu0 0
  %6250 = vmatprep.subr.bf16.mxu0 0
  %6251 = vmatpush1.bf16.xpose.msra.mxu0 0
  %6252 = vmatprep.subr.bf16.mxu0 0
  %6253 = vmatpush1.bf16.xpose.msra.mxu0 0
  %6254 = vmatprep.subr.bf16.mxu0 0
  %6255 = vmatpush1.bf16.xpose.msra.mxu0 0
  %6256 = vmatprep.subr.bf16.mxu0 0
  %6257 = vmatpush1.bf16.xpose.msra.mxu0 0
  %6258 = vmatprep.subr.bf16.mxu0 0
  %6259 = vmatpush1.bf16.xpose.msra.mxu0 0
  %6260 = vmatprep.subr.bf16.mxu0 0
  %6261 = vmatpush1.bf16.xpose.msra.mxu0 0
  %6262 = vmatprep.subr.bf16.mxu0 0
  %6263 = vmatpush1.bf16.xpose.msra.mxu0 0
  %6264 = vmatprep.subr.bf16.mxu0 0
  %6265 = vmatpush1.bf16.xpose.msra.mxu0 0
  %6266 = vmatprep.mubr.bf16.mxu0 0
  %6267 = vmatmul.mubr.bf16.gmra.mrb[0].mxu0 %v6226
  %v6268 = vpop.f32.mrb[0].mxu0
  %v6269 = vadd.f32 0.0, %v6268
  %v6270 = vpop.f32.mrb[0].mxu0
  %v6271 = vpop.f32.mrb[0].mxu0
  %v6272 = vpop.f32.mrb[0].mxu0
  %6273 = vdwg.mxu0
  %6274 = vrot.lane.b32.xlu0 %v5502, 104
  %v6275 = vpop.permute.xlu0 %6274
  %6276 = vrot.lane.b32.xlu0 %v5505, 104
  %v6277 = vpop.permute.xlu0 %6276
  %6278 = vrot.lane.b32.xlu0 %v5506, 104
  %v6279 = vpop.permute.xlu0 %6278
  %v6281 = vsel %vm841, %v6275, 0
  %v6284 = vsel %vm841, %v6277, 0
  %v6287 = vsel %vm841, %v6279, 0
  %6289 = vmatprep.subr.bf16.mxu0 0
  %6290 = vmatpush1.bf16.xpose.msra.mxu0 %v6284
  %6291 = vmatprep.subr.bf16.mxu0 0
  %6292 = vmatpush1.bf16.xpose.msra.mxu0 %v6287
  %6293 = vmatprep.subr.bf16.mxu0 0
  %6294 = vmatpush1.bf16.xpose.msra.mxu0 0
  %6295 = vmatprep.subr.bf16.mxu0 0
  %6296 = vmatpush1.bf16.xpose.msra.mxu0 0
  %6297 = vmatprep.subr.bf16.mxu0 0
  %6298 = vmatpush1.bf16.xpose.msra.mxu0 0
  %6299 = vmatprep.subr.bf16.mxu0 0
  %6300 = vmatpush1.bf16.xpose.msra.mxu0 0
  %6301 = vmatprep.subr.bf16.mxu0 0
  %6302 = vmatpush1.bf16.xpose.msra.mxu0 0
  %6303 = vmatprep.subr.bf16.mxu0 0
  %6304 = vmatpush1.bf16.xpose.msra.mxu0 0
  %6305 = vmatprep.subr.bf16.mxu0 0
  %6306 = vmatpush1.bf16.xpose.msra.mxu0 0
  %6307 = vmatprep.subr.bf16.mxu0 0
  %6308 = vmatpush1.bf16.xpose.msra.mxu0 0
  %6309 = vmatprep.subr.bf16.mxu0 0
  %6310 = vmatpush1.bf16.xpose.msra.mxu0 0
  %6311 = vmatprep.subr.bf16.mxu0 0
  %6312 = vmatpush1.bf16.xpose.msra.mxu0 0
  %6313 = vmatprep.subr.bf16.mxu0 0
  %6314 = vmatpush1.bf16.xpose.msra.mxu0 0
  %6315 = vmatprep.subr.bf16.mxu0 0
  %6316 = vmatpush1.bf16.xpose.msra.mxu0 0
  %6317 = vmatprep.subr.bf16.mxu0 0
  %6318 = vmatpush1.bf16.xpose.msra.mxu0 0
  %6319 = vmatprep.subr.bf16.mxu0 0
  %6320 = vmatpush1.bf16.xpose.msra.mxu0 0
  %6321 = vmatprep.mubr.bf16.mxu0 0
  %6322 = vmatmul.mubr.bf16.gmra.mrb[0].mxu0 %v6281
  %v6323 = vpop.f32.mrb[0].mxu0
  %v6324 = vadd.f32 0.0, %v6323
  %v6325 = vpop.f32.mrb[0].mxu0
  %v6326 = vpop.f32.mrb[0].mxu0
  %v6327 = vpop.f32.mrb[0].mxu0
  %6328 = vdwg.mxu0
  %v6329 = vmul.f32 %v6269, 0.35355338
  %v6330 = vmul.f32 %v6324, 0.35355338
  %v6331 = vadd.f32 %v6329, %v452
  %v6332 = vadd.f32 %v6330, %v452
  %v6333 = vsel %vm944, %v6331, -inf
  %6334 = vmax.xlane.f32.xlu0 %v6333
  %v6335 = vpop.xlane.xlu0 %6334
  %v6336 = vsel %vm944, %v6332, -inf
  %6337 = vmax.xlane.f32.xlu0 %v6336
  %v6338 = vpop.xlane.xlu0 %6337
  %v6339 = vsub.f32 %v6331, %v6335
  %v6340 = vsub.f32 %v6332, %v6338
  %v6341 = vmul.f32 %v6339, 1.442695
  %v6342 = vpow.pop %v6341
  %v6343 = vmul.f32 %v6340, 1.442695
  %v6344 = vpow.pop %v6343
  %v6345 = vsel %vm944, %v6342, 0.0
  %6346 = vadd.xlane.f32.xlu0 %v6345
  %v6347 = vpop.xlane.xlu0 %6346
  %v6348 = vsel %vm944, %v6344, 0.0
  %6349 = vadd.xlane.f32.xlu0 %v6348
  %v6350 = vpop.xlane.xlu0 %6349
  %v6351 = vrcp.pop %v6347
  %v6352 = vmul.f32 %v6342, %v6351
  %v6353 = vrcp.pop %v6350
  %v6354 = vmul.f32 %v6344, %v6353
  %v6355 = vpack.c.bf16 %v6352, %v6352
  %v6356 = vpack.c.bf16 %v6354, %v6354
  %6357 = vrot.lane.b32.xlu0 %v5507, 104
  %v6358 = vpop.permute.xlu0 %6357
  %6359 = vrot.lane.b32.xlu0 %v5508, 104
  %v6360 = vpop.permute.xlu0 %6359
  %v6363 = vsel %vm944, %v6355, 0
  %v6366 = vsel %vm972, %v6360, 0
  %6368 = vmatprep.subr.bf16.mxu0 0
  %6369 = vmatpush1.bf16.msra.mxu0 %v6358
  %6370 = vmatprep.subr.bf16.mxu0 0
  %6371 = vmatpush1.bf16.msra.mxu0 %v6366
  %6372 = vmatprep.subr.bf16.mxu0 0
  %6373 = vmatpush1.bf16.msra.mxu0 0
  %6374 = vmatprep.subr.bf16.mxu0 0
  %6375 = vmatpush1.bf16.msra.mxu0 0
  %6376 = vmatprep.subr.bf16.mxu0 0
  %6377 = vmatpush1.bf16.msra.mxu0 0
  %6378 = vmatprep.subr.bf16.mxu0 0
  %6379 = vmatpush1.bf16.msra.mxu0 0
  %6380 = vmatprep.subr.bf16.mxu0 0
  %6381 = vmatpush1.bf16.msra.mxu0 0
  %6382 = vmatprep.subr.bf16.mxu0 0
  %6383 = vmatpush1.bf16.msra.mxu0 0
  %6384 = vmatprep.subr.bf16.mxu0 0
  %6385 = vmatpush1.bf16.msra.mxu0 0
  %6386 = vmatprep.subr.bf16.mxu0 0
  %6387 = vmatpush1.bf16.msra.mxu0 0
  %6388 = vmatprep.subr.bf16.mxu0 0
  %6389 = vmatpush1.bf16.msra.mxu0 0
  %6390 = vmatprep.subr.bf16.mxu0 0
  %6391 = vmatpush1.bf16.msra.mxu0 0
  %6392 = vmatprep.subr.bf16.mxu0 0
  %6393 = vmatpush1.bf16.msra.mxu0 0
  %6394 = vmatprep.subr.bf16.mxu0 0
  %6395 = vmatpush1.bf16.msra.mxu0 0
  %6396 = vmatprep.subr.bf16.mxu0 0
  %6397 = vmatpush1.bf16.msra.mxu0 0
  %6398 = vmatprep.subr.bf16.mxu0 0
  %6399 = vmatpush1.bf16.msra.mxu0 0
  %6400 = vmatprep.mubr.bf16.mxu0 0
  %6401 = vmatmul.mubr.bf16.gmra.mrb[0].mxu0 %v6363
  %v6402 = vpop.f32.mrb[0].mxu0
  %v6403 = vadd.f32 0.0, %v6402
  %v6404 = vpop.f32.mrb[0].mxu0
  %v6405 = vpop.f32.mrb[0].mxu0
  %v6406 = vpop.f32.mrb[0].mxu0
  %6407 = vdwg.mxu0
  %6408 = vrot.lane.b32.xlu0 %v5509, 104
  %v6409 = vpop.permute.xlu0 %6408
  %6410 = vrot.lane.b32.xlu0 %v5510, 104
  %v6411 = vpop.permute.xlu0 %6410
  %v6414 = vsel %vm944, %v6356, 0
  %v6417 = vsel %vm972, %v6411, 0
  %6419 = vmatprep.subr.bf16.mxu0 0
  %6420 = vmatpush1.bf16.msra.mxu0 %v6409
  %6421 = vmatprep.subr.bf16.mxu0 0
  %6422 = vmatpush1.bf16.msra.mxu0 %v6417
  %6423 = vmatprep.subr.bf16.mxu0 0
  %6424 = vmatpush1.bf16.msra.mxu0 0
  %6425 = vmatprep.subr.bf16.mxu0 0
  %6426 = vmatpush1.bf16.msra.mxu0 0
  %6427 = vmatprep.subr.bf16.mxu0 0
  %6428 = vmatpush1.bf16.msra.mxu0 0
  %6429 = vmatprep.subr.bf16.mxu0 0
  %6430 = vmatpush1.bf16.msra.mxu0 0
  %6431 = vmatprep.subr.bf16.mxu0 0
  %6432 = vmatpush1.bf16.msra.mxu0 0
  %6433 = vmatprep.subr.bf16.mxu0 0
  %6434 = vmatpush1.bf16.msra.mxu0 0
  %6435 = vmatprep.subr.bf16.mxu0 0
  %6436 = vmatpush1.bf16.msra.mxu0 0
  %6437 = vmatprep.subr.bf16.mxu0 0
  %6438 = vmatpush1.bf16.msra.mxu0 0
  %6439 = vmatprep.subr.bf16.mxu0 0
  %6440 = vmatpush1.bf16.msra.mxu0 0
  %6441 = vmatprep.subr.bf16.mxu0 0
  %6442 = vmatpush1.bf16.msra.mxu0 0
  %6443 = vmatprep.subr.bf16.mxu0 0
  %6444 = vmatpush1.bf16.msra.mxu0 0
  %6445 = vmatprep.subr.bf16.mxu0 0
  %6446 = vmatpush1.bf16.msra.mxu0 0
  %6447 = vmatprep.subr.bf16.mxu0 0
  %6448 = vmatpush1.bf16.msra.mxu0 0
  %6449 = vmatprep.subr.bf16.mxu0 0
  %6450 = vmatpush1.bf16.msra.mxu0 0
  %6451 = vmatprep.mubr.bf16.mxu0 0
  %6452 = vmatmul.mubr.bf16.gmra.mrb[0].mxu0 %v6414
  %v6453 = vpop.f32.mrb[0].mxu0
  %v6454 = vadd.f32 0.0, %v6453
  %v6455 = vpop.f32.mrb[0].mxu0
  %v6456 = vpop.f32.mrb[0].mxu0
  %v6457 = vpop.f32.mrb[0].mxu0
  %6458 = vdwg.mxu0
  %6461 = vrot.lane.b32.xlu0 %v5921, 8
  %v6462 = vpop.permute.xlu0 %6461
  %6463 = vrot.lane.b32.xlu0 %v5974, 8
  %v6464 = vpop.permute.xlu0 %6463
  %6469 = vrot.lane.b32.xlu0 %v6163, 16
  %v6470 = vpop.permute.xlu0 %6469
  %6471 = vrot.lane.b32.xlu0 %v6214, 16
  %v6472 = vpop.permute.xlu0 %6471
  %6477 = vrot.lane.b32.xlu0 %v6403, 24
  %v6478 = vpop.permute.xlu0 %6477
  %6479 = vrot.lane.b32.xlu0 %v6454, 24
  %v6480 = vpop.permute.xlu0 %6479
  %v6483 = vsel %vm841, %v5678, %v6462
  %v6484 = vsel %vm841, %v5724, %v6464
  %v6485 = vsel %vm1818, %v6483, %v6470
  %v6486 = vsel %vm1818, %v6484, %v6472
  %v6487 = vsel %vm944, %v6485, %v6478
  %v6488 = vsel %vm944, %v6486, %v6480
  %v6489 = vpack.c.bf16 %v6487, %v6487
  %v6490 = vpack.c.bf16 %v6488, %v6488
  %v6493 = vunpack.c.l.b16 %v6489
  %v6494 = vunpack.c.l.b16 %v6490
  %v6495 = vpack.c.b16 %v6494, %v6493
  %v6496 = vunpack.c.h.b16 %v5121
  %v6497 = vunpack.c.h.b16 %v5124
  %v6498 = vunpack.c.h.b16 %v5127
  %v6499 = vunpack.c.h.b16 %v5130
  %v6500 = vpack.c.b16 %v6497, %v6496
  %v6501 = vpack.c.b16 %v6499, %v6498
  %v6505 = vsel %vm514, %v6495, 0
  %6507 = vmatprep.subr.bf16.mxu0 0
  %6508 = vmatpush1.bf16.msra.mxu0 %v6500
  %6509 = vmatprep.subr.bf16.mxu0 0
  %6510 = vmatpush1.bf16.msra.mxu0 %v6501
  %6511 = vmatprep.subr.bf16.mxu0 0
  %6512 = vmatpush1.bf16.msra.mxu0 0
  %6513 = vmatprep.subr.bf16.mxu0 0
  %6514 = vmatpush1.bf16.msra.mxu0 0
  %6515 = vmatprep.subr.bf16.mxu0 0
  %6516 = vmatpush1.bf16.msra.mxu0 0
  %6517 = vmatprep.subr.bf16.mxu0 0
  %6518 = vmatpush1.bf16.msra.mxu0 0
  %6519 = vmatprep.subr.bf16.mxu0 0
  %6520 = vmatpush1.bf16.msra.mxu0 0
  %6521 = vmatprep.subr.bf16.mxu0 0
  %6522 = vmatpush1.bf16.msra.mxu0 0
  %6523 = vmatprep.subr.bf16.mxu0 0
  %6524 = vmatpush1.bf16.msra.mxu0 0
  %6525 = vmatprep.subr.bf16.mxu0 0
  %6526 = vmatpush1.bf16.msra.mxu0 0
  %6527 = vmatprep.subr.bf16.mxu0 0
  %6528 = vmatpush1.bf16.msra.mxu0 0
  %6529 = vmatprep.subr.bf16.mxu0 0
  %6530 = vmatpush1.bf16.msra.mxu0 0
  %6531 = vmatprep.subr.bf16.mxu0 0
  %6532 = vmatpush1.bf16.msra.mxu0 0
  %6533 = vmatprep.subr.bf16.mxu0 0
  %6534 = vmatpush1.bf16.msra.mxu0 0
  %6535 = vmatprep.subr.bf16.mxu0 0
  %6536 = vmatpush1.bf16.msra.mxu0 0
  %6537 = vmatprep.subr.bf16.mxu0 0
  %6538 = vmatpush1.bf16.msra.mxu0 0
  %6539 = vmatprep.mubr.bf16.mxu0 0
  %6540 = vmatmul.mubr.bf16.gmra.mrb[0].mxu0 %v6505
  %v6541 = vpop.f32.mrb[0].mxu0
  %v6542 = vadd.f32 0.0, %v6541
  %v6543 = vpop.f32.mrb[0].mxu0
  %v6544 = vpop.f32.mrb[0].mxu0
  %v6545 = vadd.f32 0.0, %v6544
  %v6546 = vpop.f32.mrb[0].mxu0
  %6547 = vdwg.mxu0
  %v6548 = vadd.f32 %v2118, %v6542
  %v6549 = vadd.f32 %v2119, %v6545
  %v6550 = vlaneseq
  %v6551 = vshrl.u32 %v6550, 7
  %v6552 = vsub.s32 7, %v6551
  %v6553 = vrot.slane %v5150, %v6552
  %v6554 = vadd.f32 %v6548, %v6553
  %v6555 = vadd.f32 %v6549, %v6553
  %v6556 = vsel %vm514, %v6554, 0.0
  %6557 = vadd.xlane.f32.xlu0 %v6556
  %v6558 = vpop.xlane.xlu0 %6557
  %v6559 = vsel %vm514, %v6555, 0.0
  %6560 = vadd.xlane.f32.xlu0 %v6559
  %v6561 = vpop.xlane.xlu0 %6560
  %v6562 = vmul.f32 %v6558, %v527
  %v6563 = vmul.f32 %v6561, %v527
  %v6564 = vsub.f32 %v6554, %v6562
  %v6565 = vsub.f32 %v6555, %v6563
  %v6566 = vmul.f32 %v6564, %v6564
  %v6567 = vmul.f32 %v6565, %v6565
  %v6568 = vsel %vm514, %v6566, 0.0
  %6569 = vadd.xlane.f32.xlu0 %v6568
  %v6570 = vpop.xlane.xlu0 %6569
  %v6571 = vsel %vm514, %v6567, 0.0
  %6572 = vadd.xlane.f32.xlu0 %v6571
  %v6573 = vpop.xlane.xlu0 %6572
  %v6574 = vmul.f32 %v6570, %v527
  %v6575 = vmul.f32 %v6573, %v527
  %v6576 = vadd.f32 %v6574, 1e-05
  %v6577 = vadd.f32 %v6575, 1e-05
  %v6578 = vrsqrt.pop %v6576
  %v6579 = vrsqrt.pop %v6577
  %v6580 = vmul.f32 %v6564, %v6578
  %v6581 = vmul.f32 %v6565, %v6579
  %v6582 = vlaneseq
  %v6583 = vshrl.u32 %v6582, 7
  %v6584 = vsub.s32 2, %v6583
  %v6585 = vrot.slane %v5150, %v6584
  %v6586 = vmul.f32 %v6580, %v6585
  %v6587 = vmul.f32 %v6581, %v6585
  %v6588 = vlaneseq
  %v6589 = vshrl.u32 %v6588, 7
  %v6590 = vsub.s32 3, %v6589
  %v6591 = vrot.slane %v5150, %v6590
  %v6592 = vadd.f32 %v6586, %v6591
  %v6593 = vadd.f32 %v6587, %v6591
  %v6594 = vpack.c.bf16 %v6592, %v6592
  %v6595 = vpack.c.bf16 %v6593, %v6593
  %v6598 = vunpack.c.l.b16 %v6594
  %v6599 = vunpack.c.l.b16 %v6595
  %v6600 = vpack.c.b16 %v6599, %v6598
  %v6605 = vunpack.c.l.b16 %v5122
  %v6606 = vunpack.c.l.b16 %v5125
  %v6607 = vunpack.c.l.b16 %v5128
  %v6608 = vunpack.c.l.b16 %v5131
  %v6609 = vpack.c.b16 %v6606, %v6605
  %v6610 = vpack.c.b16 %v6608, %v6607
  %v6614 = vsel %vm514, %v6600, 0
  %6616 = vmatprep.subr.bf16.mxu0 0
  %6617 = vmatpush1.bf16.msra.mxu0 %v6609
  %6618 = vmatprep.subr.bf16.mxu0 0
  %6619 = vmatpush1.bf16.msra.mxu0 %v6610
  %6620 = vmatprep.subr.bf16.mxu0 0
  %6621 = vmatpush1.bf16.msra.mxu0 0
  %6622 = vmatprep.subr.bf16.mxu0 0
  %6623 = vmatpush1.bf16.msra.mxu0 0
  %6624 = vmatprep.subr.bf16.mxu0 0
  %6625 = vmatpush1.bf16.msra.mxu0 0
  %6626 = vmatprep.subr.bf16.mxu0 0
  %6627 = vmatpush1.bf16.msra.mxu0 0
  %6628 = vmatprep.subr.bf16.mxu0 0
  %6629 = vmatpush1.bf16.msra.mxu0 0
  %6630 = vmatprep.subr.bf16.mxu0 0
  %6631 = vmatpush1.bf16.msra.mxu0 0
  %6632 = vmatprep.subr.bf16.mxu0 0
  %6633 = vmatpush1.bf16.msra.mxu0 0
  %6634 = vmatprep.subr.bf16.mxu0 0
  %6635 = vmatpush1.bf16.msra.mxu0 0
  %6636 = vmatprep.subr.bf16.mxu0 0
  %6637 = vmatpush1.bf16.msra.mxu0 0
  %6638 = vmatprep.subr.bf16.mxu0 0
  %6639 = vmatpush1.bf16.msra.mxu0 0
  %6640 = vmatprep.subr.bf16.mxu0 0
  %6641 = vmatpush1.bf16.msra.mxu0 0
  %6642 = vmatprep.subr.bf16.mxu0 0
  %6643 = vmatpush1.bf16.msra.mxu0 0
  %6644 = vmatprep.subr.bf16.mxu0 0
  %6645 = vmatpush1.bf16.msra.mxu0 0
  %6646 = vmatprep.subr.bf16.mxu0 0
  %6647 = vmatpush1.bf16.msra.mxu0 0
  %6648 = vmatprep.mubr.bf16.mxu0 0
  %6649 = vmatmul.mubr.bf16.gmra.mrb[0].mxu0 %v6614
  %v6650 = vpop.f32.mrb[0].mxu0
  %v6651 = vadd.f32 0.0, %v6650
  %v6652 = vpop.f32.mrb[0].mxu0
  %v6653 = vpop.f32.mrb[0].mxu0
  %v6654 = vadd.f32 0.0, %v6653
  %v6655 = vpop.f32.mrb[0].mxu0
  %6656 = vdwg.mxu0
  %v6657 = vlaneseq
  %v6658 = vshrl.u32 %v6657, 7
  %v6659 = vsub.s32 0, %v6658
  %v6660 = vrot.slane %v5151, %v6659
  %v6661 = vadd.f32 %v6651, %v6660
  %v6662 = vadd.f32 %v6654, %v6660
  %v6663 = vmul.f32 %v6661, %v6661
  %v6664 = vmul.f32 %v6662, %v6662
  %v6665 = vmul.f32 %v6661, %v6663
  %v6666 = vmul.f32 %v6662, %v6664
  %v6667 = vmul.f32 %v6665, 0.044715
  %v6668 = vmul.f32 %v6666, 0.044715
  %v6669 = vadd.f32 %v6661, %v6667
  %v6670 = vadd.f32 %v6662, %v6668
  %v6671 = vmul.f32 %v6669, 0.7978846
  %v6672 = vmul.f32 %v6670, 0.7978846
  %v6673 = vtanh.pop %v6671
  %v6674 = vtanh.pop %v6672
  %v6675 = vadd.f32 %v6673, 1.0
  %v6676 = vadd.f32 %v6674, 1.0
  %v6677 = vmul.f32 %v6675, 0.5
  %v6678 = vmul.f32 %v6676, 0.5
  %v6679 = vmul.f32 %v6661, %v6677
  %v6680 = vmul.f32 %v6662, %v6678
  %v6681 = vpack.c.bf16 %v6679, %v6679
  %v6682 = vpack.c.bf16 %v6680, %v6680
  %v6685 = vunpack.c.l.b16 %v6681
  %v6686 = vunpack.c.l.b16 %v6682
  %v6687 = vpack.c.b16 %v6686, %v6685
  %v6705 = vunpack.c.l.b16 %v5133
  %v6706 = vunpack.c.l.b16 %v5134
  %v6707 = vunpack.c.l.b16 %v5135
  %v6708 = vunpack.c.l.b16 %v5136
  %v6709 = vunpack.c.l.b16 %v5137
  %v6710 = vunpack.c.l.b16 %v5138
  %v6711 = vunpack.c.l.b16 %v5139
  %v6712 = vunpack.c.l.b16 %v5140
  %v6713 = vunpack.c.l.b16 %v5141
  %v6714 = vunpack.c.l.b16 %v5142
  %v6715 = vunpack.c.l.b16 %v5143
  %v6716 = vunpack.c.l.b16 %v5144
  %v6717 = vunpack.c.l.b16 %v5145
  %v6718 = vunpack.c.l.b16 %v5146
  %v6719 = vunpack.c.l.b16 %v5147
  %v6720 = vunpack.c.l.b16 %v5148
  %v6721 = vpack.c.b16 %v6706, %v6705
  %v6722 = vpack.c.b16 %v6708, %v6707
  %v6723 = vpack.c.b16 %v6710, %v6709
  %v6724 = vpack.c.b16 %v6712, %v6711
  %v6725 = vpack.c.b16 %v6714, %v6713
  %v6726 = vpack.c.b16 %v6716, %v6715
  %v6727 = vpack.c.b16 %v6718, %v6717
  %v6728 = vpack.c.b16 %v6720, %v6719
  %6737 = vmatprep.subr.bf16.mxu0 0
  %6738 = vmatpush1.bf16.msra.mxu0 %v6721
  %6739 = vmatprep.subr.bf16.mxu0 0
  %6740 = vmatpush1.bf16.msra.mxu0 %v6722
  %6741 = vmatprep.subr.bf16.mxu0 0
  %6742 = vmatpush1.bf16.msra.mxu0 %v6723
  %6743 = vmatprep.subr.bf16.mxu0 0
  %6744 = vmatpush1.bf16.msra.mxu0 %v6724
  %6745 = vmatprep.subr.bf16.mxu0 0
  %6746 = vmatpush1.bf16.msra.mxu0 %v6725
  %6747 = vmatprep.subr.bf16.mxu0 0
  %6748 = vmatpush1.bf16.msra.mxu0 %v6726
  %6749 = vmatprep.subr.bf16.mxu0 0
  %6750 = vmatpush1.bf16.msra.mxu0 %v6727
  %6751 = vmatprep.subr.bf16.mxu0 0
  %6752 = vmatpush1.bf16.msra.mxu0 %v6728
  %6753 = vmatprep.subr.bf16.mxu0 0
  %6754 = vmatpush1.bf16.msra.mxu0 0
  %6755 = vmatprep.subr.bf16.mxu0 0
  %6756 = vmatpush1.bf16.msra.mxu0 0
  %6757 = vmatprep.subr.bf16.mxu0 0
  %6758 = vmatpush1.bf16.msra.mxu0 0
  %6759 = vmatprep.subr.bf16.mxu0 0
  %6760 = vmatpush1.bf16.msra.mxu0 0
  %6761 = vmatprep.subr.bf16.mxu0 0
  %6762 = vmatpush1.bf16.msra.mxu0 0
  %6763 = vmatprep.subr.bf16.mxu0 0
  %6764 = vmatpush1.bf16.msra.mxu0 0
  %6765 = vmatprep.subr.bf16.mxu0 0
  %6766 = vmatpush1.bf16.msra.mxu0 0
  %6767 = vmatprep.subr.bf16.mxu0 0
  %6768 = vmatpush1.bf16.msra.mxu0 0
  %6769 = vmatprep.mubr.bf16.mxu0 0
  %6770 = vmatmul.mubr.bf16.gmra.mrb[0].mxu0 %v6687
  %v6771 = vpop.f32.mrb[0].mxu0
  %v6772 = vadd.f32 0.0, %v6771
  %v6773 = vpop.f32.mrb[0].mxu0
  %v6774 = vpop.f32.mrb[0].mxu0
  %v6775 = vadd.f32 0.0, %v6774
  %v6776 = vpop.f32.mrb[0].mxu0
  %6777 = vdwg.mxu0
  %v6778 = vadd.f32 %v6554, %v6772
  %v6779 = vadd.f32 %v6555, %v6775
  %v6780 = vlaneseq
  %v6781 = vshrl.u32 %v6780, 7
  %v6782 = vsub.s32 1, %v6781
  %v6783 = vrot.slane %v5151, %v6782
  %v6784 = vadd.f32 %v6778, %v6783
  %v6785 = vadd.f32 %v6779, %v6783
  %s6786 = scalar_lea.vmem %s4, 240
  %v6787 = vld [vmem:[%s6786] sm:$0xff]
  %v6788 = vld [vmem:[%s6786 + $0x8] sm:$0xff]
  %v6789 = vld [vmem:[%s6786 + $0x10] sm:$0xf]
  %v6790 = vld [vmem:[%s6786 + $0x14] sm:$0xff]
  %v6791 = vld [vmem:[%s6786 + $0x1c] sm:$0xff]
  %v6792 = vld [vmem:[%s6786 + $0x24] sm:$0xf]
  %v6793 = vld [vmem:[%s6786 + $0x28] sm:$0xff]
  %v6794 = vld [vmem:[%s6786 + $0x30] sm:$0xff]
  %v6795 = vld [vmem:[%s6786 + $0x38] sm:$0xf]
  %v6796 = vld [vmem:[%s6786 + $0x3c] sm:$0xff]
  %v6797 = vld [vmem:[%s6786 + $0x44] sm:$0xff]
  %v6798 = vld [vmem:[%s6786 + $0x4c] sm:$0xf]
  %s6799 = scalar_lea.vmem %s5, 192
  %v6800 = vld [vmem:[%s6799] sm:$0xf]
  %v6801 = vld [vmem:[%s6799 + $0x4] sm:$0xf]
  %v6802 = vld [vmem:[%s6799 + $0x8] sm:$0xf]
  %v6803 = vld [vmem:[%s6799 + $0xc] sm:$0xf]
  %v6804 = vld [vmem:[%s6799 + $0x10] sm:$0xf]
  %v6805 = vld [vmem:[%s6799 + $0x14] sm:$0xf]
  %v6806 = vld [vmem:[%s6799 + $0x18] sm:$0xf]
  %v6807 = vld [vmem:[%s6799 + $0x1c] sm:$0xf]
  %v6808 = vld [vmem:[%s6799 + $0x20] sm:$0xf]
  %v6809 = vld [vmem:[%s6799 + $0x24] sm:$0xf]
  %v6810 = vld [vmem:[%s6799 + $0x28] sm:$0xf]
  %v6811 = vld [vmem:[%s6799 + $0x2c] sm:$0xf]
  %v6812 = vld [vmem:[%s6799 + $0x30] sm:$0xf]
  %v6813 = vld [vmem:[%s6799 + $0x34] sm:$0xf]
  %v6814 = vld [vmem:[%s6799 + $0x38] sm:$0xf]
  %v6815 = vld [vmem:[%s6799 + $0x3c] sm:$0xf]
  %s6816 = scalar_lea.vmem %s6, 48
  %v6817 = vld [vmem:[%s6816] sm:$0xff]
  %v6818 = vld [vmem:[%s6816 + $0x8] sm:$0x3]
  %v6819 = vsel %vm2153, %v3893, 0.0
  %6820 = vadd.xlane.f32.xlu0 %v6819
  %v6821 = vpop.xlane.xlu0 %6820
  %v6822 = vsel %vm2153, %v3894, 0.0
  %6823 = vadd.xlane.f32.xlu0 %v6822
  %v6824 = vpop.xlane.xlu0 %6823
  %v6825 = vmul.f32 %v6821, %v527
  %v6826 = vmul.f32 %v6824, %v527
  %v6827 = vsub.f32 %v3893, %v6825
  %v6828 = vsub.f32 %v3894, %v6826
  %v6829 = vmul.f32 %v6827, %v6827
  %v6830 = vmul.f32 %v6828, %v6828
  %v6831 = vsel %vm2153, %v6829, 0.0
  %6832 = vadd.xlane.f32.xlu0 %v6831
  %v6833 = vpop.xlane.xlu0 %6832
  %v6834 = vsel %vm2153, %v6830, 0.0
  %6835 = vadd.xlane.f32.xlu0 %v6834
  %v6836 = vpop.xlane.xlu0 %6835
  %v6837 = vmul.f32 %v6833, %v527
  %v6838 = vmul.f32 %v6836, %v527
  %v6839 = vadd.f32 %v6837, 1e-05
  %v6840 = vadd.f32 %v6838, 1e-05
  %v6841 = vrsqrt.pop %v6839
  %v6842 = vrsqrt.pop %v6840
  %v6843 = vmul.f32 %v6827, %v6841
  %v6844 = vmul.f32 %v6828, %v6842
  %v6845 = vlaneseq
  %v6846 = vshrl.u32 %v6845, 7
  %v6847 = vsub.s32 0, %v6846
  %v6848 = vrot.slane %v6817, %v6847
  %v6849 = vmul.f32 %v5224, %v6848
  %v6850 = vmul.f32 %v5225, %v6848
  %v6851 = vmul.f32 %v6843, %v6848
  %v6852 = vmul.f32 %v5227, %v6848
  %v6853 = vmul.f32 %v5228, %v6848
  %v6854 = vmul.f32 %v6844, %v6848
  %v6855 = vlaneseq
  %v6856 = vshrl.u32 %v6855, 7
  %v6857 = vsub.s32 1, %v6856
  %v6858 = vrot.slane %v6817, %v6857
  %v6859 = vadd.f32 %v6849, %v6858
  %v6860 = vadd.f32 %v6850, %v6858
  %v6861 = vadd.f32 %v6851, %v6858
  %v6862 = vadd.f32 %v6852, %v6858
  %v6863 = vadd.f32 %v6853, %v6858
  %v6864 = vadd.f32 %v6854, %v6858
  %v6865 = vpack.c.bf16 %v6860, %v6859
  %v6866 = vpack.c.bf16 %v6861, %v6861
  %v6867 = vpack.c.bf16 %v6863, %v6862
  %v6868 = vpack.c.bf16 %v6864, %v6864
  %v6873 = vcombine.high %v6865, %v6865
  %v6875 = vunpack.c.l.s4 1983009808
  %v6876 = vunpack.c.0.s8 %v6875
  %v6877 = vlaneseq
  %v6878 = vshrl.u32 %v6877, 7
  %v6879 = vsub.s32 %v6876, %v6878
  %v6880 = vrot.slane %v6865, %v6879
  %v6882 = vunpack.c.l.s4 1983009808
  %v6883 = vunpack.c.0.s8 %v6882
  %v6884 = vlaneseq
  %v6885 = vshrl.u32 %v6884, 7
  %v6886 = vsub.s32 %v6883, %v6885
  %v6887 = vrot.slane %v6873, %v6886
  %v6888 = vcombine.high %v6880, %v6880
  %v6889 = vcombine.high %v6887, %v6887
  %v6891 = vunpack.c.l.s4 1983009808
  %v6892 = vunpack.c.0.s8 %v6891
  %v6893 = vlaneseq
  %v6894 = vshrl.u32 %v6893, 7
  %v6895 = vsub.s32 %v6892, %v6894
  %v6896 = vrot.slane %v6866, %v6895
  %v6897 = vcombine.high %v6867, %v6867
  %v6899 = vunpack.c.l.s4 1983009808
  %v6900 = vunpack.c.0.s8 %v6899
  %v6901 = vlaneseq
  %v6902 = vshrl.u32 %v6901, 7
  %v6903 = vsub.s32 %v6900, %v6902
  %v6904 = vrot.slane %v6867, %v6903
  %v6906 = vunpack.c.l.s4 1983009808
  %v6907 = vunpack.c.0.s8 %v6906
  %v6908 = vlaneseq
  %v6909 = vshrl.u32 %v6908, 7
  %v6910 = vsub.s32 %v6907, %v6909
  %v6911 = vrot.slane %v6897, %v6910
  %v6912 = vcombine.high %v6904, %v6904
  %v6913 = vcombine.high %v6911, %v6911
  %v6915 = vunpack.c.l.s4 1983009808
  %v6916 = vunpack.c.0.s8 %v6915
  %v6917 = vlaneseq
  %v6918 = vshrl.u32 %v6917, 7
  %v6919 = vsub.s32 %v6916, %v6918
  %v6920 = vrot.slane %v6868, %v6919
  %v6921 = vcombine.low %v6880, %v6888
  %v6922 = vcombine.low %v6887, %v6889
  %v6924 = vunpack.c.l.s4 1983009808
  %v6925 = vunpack.c.0.s8 %v6924
  %v6926 = vlaneseq
  %v6927 = vshrl.u32 %v6926, 7
  %v6928 = vsub.s32 %v6925, %v6927
  %v6929 = vrot.slane %v6921, %v6928
  %v6931 = vunpack.c.l.s4 1983009808
  %v6932 = vunpack.c.0.s8 %v6931
  %v6933 = vlaneseq
  %v6934 = vshrl.u32 %v6933, 7
  %v6935 = vsub.s32 %v6932, %v6934
  %v6936 = vrot.slane %v6922, %v6935
  %v6937 = vcombine.low %v6929, %v6936
  %v6938 = vcombine.low %v6896, %v6904
  %v6939 = vcombine.low %v6912, %v6911
  %v6941 = vunpack.c.l.s4 1983009808
  %v6942 = vunpack.c.0.s8 %v6941
  %v6943 = vlaneseq
  %v6944 = vshrl.u32 %v6943, 7
  %v6945 = vsub.s32 %v6942, %v6944
  %v6946 = vrot.slane %v6938, %v6945
  %v6948 = vunpack.c.l.s4 1983009808
  %v6949 = vunpack.c.0.s8 %v6948
  %v6950 = vlaneseq
  %v6951 = vshrl.u32 %v6950, 7
  %v6952 = vsub.s32 %v6949, %v6951
  %v6953 = vrot.slane %v6939, %v6952
  %v6954 = vcombine.low %v6946, %v6953
  %v6955 = vcombine.low %v6913, %v6920
  %v6957 = vunpack.c.l.s4 1983009808
  %v6958 = vunpack.c.0.s8 %v6957
  %v6959 = vlaneseq
  %v6960 = vshrl.u32 %v6959, 7
  %v6961 = vsub.s32 %v6958, %v6960
  %v6962 = vrot.slane %v6955, %v6961
  %v6967 = vunpack.c.l.b16 %v6787
  %v6968 = vunpack.c.l.b16 %v6790
  %v6969 = vunpack.c.l.b16 %v6793
  %v6970 = vunpack.c.l.b16 %v6796
  %v6971 = vpack.c.b16 %v6968, %v6967
  %v6972 = vpack.c.b16 %v6970, %v6969
  %v6976 = vsel %vm514, %v6937, 0
  %v6979 = vsel %vm514, %v6954, 0
  %v6982 = vsel %vm514, %v6962, 0
  %6984 = vmatprep.subr.bf16.mxu0 0
  %6985 = vmatpush1.bf16.msra.mxu0 %v6971
  %6986 = vmatprep.subr.bf16.mxu0 0
  %6987 = vmatpush1.bf16.msra.mxu0 %v6972
  %6988 = vmatprep.subr.bf16.mxu0 0
  %6989 = vmatpush1.bf16.msra.mxu0 0
  %6990 = vmatprep.subr.bf16.mxu0 0
  %6991 = vmatpush1.bf16.msra.mxu0 0
  %6992 = vmatprep.subr.bf16.mxu0 0
  %6993 = vmatpush1.bf16.msra.mxu0 0
  %6994 = vmatprep.subr.bf16.mxu0 0
  %6995 = vmatpush1.bf16.msra.mxu0 0
  %6996 = vmatprep.subr.bf16.mxu0 0
  %6997 = vmatpush1.bf16.msra.mxu0 0
  %6998 = vmatprep.subr.bf16.mxu0 0
  %6999 = vmatpush1.bf16.msra.mxu0 0
  %7000 = vmatprep.subr.bf16.mxu0 0
  %7001 = vmatpush1.bf16.msra.mxu0 0
  %7002 = vmatprep.subr.bf16.mxu0 0
  %7003 = vmatpush1.bf16.msra.mxu0 0
  %7004 = vmatprep.subr.bf16.mxu0 0
  %7005 = vmatpush1.bf16.msra.mxu0 0
  %7006 = vmatprep.subr.bf16.mxu0 0
  %7007 = vmatpush1.bf16.msra.mxu0 0
  %7008 = vmatprep.subr.bf16.mxu0 0
  %7009 = vmatpush1.bf16.msra.mxu0 0
  %7010 = vmatprep.subr.bf16.mxu0 0
  %7011 = vmatpush1.bf16.msra.mxu0 0
  %7012 = vmatprep.subr.bf16.mxu0 0
  %7013 = vmatpush1.bf16.msra.mxu0 0
  %7014 = vmatprep.subr.bf16.mxu0 0
  %7015 = vmatpush1.bf16.msra.mxu0 0
  %7016 = vmatprep.mubr.bf16.mxu0 0
  %7017 = vmatmul.mubr.bf16.gmra.mrb[0].mxu0 %v6976
  %v7018 = vpop.f32.mrb[0].mxu0
  %v7019 = vpop.f32.mrb[0].mxu0
  %v7020 = vpop.f32.mrb[0].mxu0
  %v7021 = vpop.f32.mrb[0].mxu0
  %7022 = vmatprep.mubr.bf16.mxu0 0
  %7023 = vmatmul.mubr.bf16.gmra.mrb[0].mxu0 %v6979
  %v7024 = vpop.f32.mrb[0].mxu0
  %v7025 = vadd.f32 0.0, %v7024
  %v7026 = vpop.f32.mrb[0].mxu0
  %v7027 = vpop.f32.mrb[0].mxu0
  %v7028 = vpop.f32.mrb[0].mxu0
  %7029 = vmatprep.mubr.bf16.mxu0 0
  %7030 = vmatmul.mubr.bf16.gmra.mrb[0].mxu0 %v6982
  %v7031 = vpop.f32.mrb[0].mxu0
  %v7032 = vadd.f32 0.0, %v7031
  %v7033 = vpop.f32.mrb[0].mxu0
  %v7034 = vpop.f32.mrb[0].mxu0
  %v7035 = vpop.f32.mrb[0].mxu0
  %7036 = vdwg.mxu0
  %v7038 = vcombine.high %v7032, %v7032
  %v7040 = vlaneseq
  %v7041 = vshrl.u32 %v7040, 7
  %v7042 = vsub.s32 4, %v7041
  %v7043 = vrot.slane %v6817, %v7042
  %v7044 = vadd.f32 %v7025, %v7043
  %v7045 = vadd.f32 %v7038, %v7043
  %v7046 = vunpack.c.h.b16 %v6787
  %v7047 = vunpack.c.h.b16 %v6790
  %v7048 = vunpack.c.h.b16 %v6793
  %v7049 = vunpack.c.h.b16 %v6796
  %v7050 = vpack.c.b16 %v7047, %v7046
  %v7051 = vpack.c.b16 %v7049, %v7048
  %7054 = vmatprep.subr.bf16.mxu0 0
  %7055 = vmatpush1.bf16.msra.mxu0 %v7050
  %7056 = vmatprep.subr.bf16.mxu0 0
  %7057 = vmatpush1.bf16.msra.mxu0 %v7051
  %7058 = vmatprep.subr.bf16.mxu0 0
  %7059 = vmatpush1.bf16.msra.mxu0 0
  %7060 = vmatprep.subr.bf16.mxu0 0
  %7061 = vmatpush1.bf16.msra.mxu0 0
  %7062 = vmatprep.subr.bf16.mxu0 0
  %7063 = vmatpush1.bf16.msra.mxu0 0
  %7064 = vmatprep.subr.bf16.mxu0 0
  %7065 = vmatpush1.bf16.msra.mxu0 0
  %7066 = vmatprep.subr.bf16.mxu0 0
  %7067 = vmatpush1.bf16.msra.mxu0 0
  %7068 = vmatprep.subr.bf16.mxu0 0
  %7069 = vmatpush1.bf16.msra.mxu0 0
  %7070 = vmatprep.subr.bf16.mxu0 0
  %7071 = vmatpush1.bf16.msra.mxu0 0
  %7072 = vmatprep.subr.bf16.mxu0 0
  %7073 = vmatpush1.bf16.msra.mxu0 0
  %7074 = vmatprep.subr.bf16.mxu0 0
  %7075 = vmatpush1.bf16.msra.mxu0 0
  %7076 = vmatprep.subr.bf16.mxu0 0
  %7077 = vmatpush1.bf16.msra.mxu0 0
  %7078 = vmatprep.subr.bf16.mxu0 0
  %7079 = vmatpush1.bf16.msra.mxu0 0
  %7080 = vmatprep.subr.bf16.mxu0 0
  %7081 = vmatpush1.bf16.msra.mxu0 0
  %7082 = vmatprep.subr.bf16.mxu0 0
  %7083 = vmatpush1.bf16.msra.mxu0 0
  %7084 = vmatprep.subr.bf16.mxu0 0
  %7085 = vmatpush1.bf16.msra.mxu0 0
  %7086 = vmatprep.mubr.bf16.mxu0 0
  %7087 = vmatmul.mubr.bf16.gmra.mrb[0].mxu0 %v6976
  %v7088 = vpop.f32.mrb[0].mxu0
  %v7089 = vadd.f32 0.0, %v7088
  %v7090 = vpop.f32.mrb[0].mxu0
  %v7091 = vpop.f32.mrb[0].mxu0
  %v7092 = vadd.f32 0.0, %v7091
  %v7093 = vpop.f32.mrb[0].mxu0
  %7094 = vmatprep.mubr.bf16.mxu0 0
  %7095 = vmatmul.mubr.bf16.gmra.mrb[0].mxu0 %v6979
  %v7096 = vpop.f32.mrb[0].mxu0
  %v7097 = vadd.f32 0.0, %v7096
  %v7098 = vpop.f32.mrb[0].mxu0
  %v7099 = vpop.f32.mrb[0].mxu0
  %v7100 = vadd.f32 0.0, %v7099
  %v7101 = vpop.f32.mrb[0].mxu0
  %7102 = vmatprep.mubr.bf16.mxu0 0
  %7103 = vmatmul.mubr.bf16.gmra.mrb[0].mxu0 %v6982
  %v7104 = vpop.f32.mrb[0].mxu0
  %v7105 = vadd.f32 0.0, %v7104
  %v7106 = vpop.f32.mrb[0].mxu0
  %v7107 = vpop.f32.mrb[0].mxu0
  %v7108 = vpop.f32.mrb[0].mxu0
  %7109 = vdwg.mxu0
  %v7115 = vcombine.high %v7089, %v7089
  %v7116 = vcombine.high %v7092, %v7092
  %v7117 = vcombine.high %v7097, %v7097
  %v7118 = vcombine.high %v7100, %v7100
  %v7119 = vcombine.high %v7105, %v7105
  %v7125 = vlaneseq
  %v7126 = vshrl.u32 %v7125, 7
  %v7127 = vsub.s32 5, %v7126
  %v7128 = vrot.slane %v6817, %v7127
  %v7130 = vcombine.high %v7128, %v7128
  %v7132 = vadd.f32 %v7089, %v7128
  %v7133 = vadd.f32 %v7115, %v7130
  %v7134 = vadd.f32 %v7092, %v7128
  %v7135 = vadd.f32 %v7116, %v7130
  %v7136 = vadd.f32 %v7097, %v7128
  %v7137 = vadd.f32 %v7117, %v7128
  %v7138 = vadd.f32 %v7100, %v7130
  %v7139 = vadd.f32 %v7118, %v7128
  %v7140 = vadd.f32 %v7105, %v7130
  %v7141 = vadd.f32 %v7119, %v7128
  %v7146 = vunpack.c.l.b16 %v6788
  %v7147 = vunpack.c.l.b16 %v6791
  %v7148 = vunpack.c.l.b16 %v6794
  %v7149 = vunpack.c.l.b16 %v6797
  %v7150 = vpack.c.b16 %v7147, %v7146
  %v7151 = vpack.c.b16 %v7149, %v7148
  %7154 = vmatprep.subr.bf16.mxu0 0
  %7155 = vmatpush1.bf16.msra.mxu0 %v7150
  %7156 = vmatprep.subr.bf16.mxu0 0
  %7157 = vmatpush1.bf16.msra.mxu0 %v7151
  %7158 = vmatprep.subr.bf16.mxu0 0
  %7159 = vmatpush1.bf16.msra.mxu0 0
  %7160 = vmatprep.subr.bf16.mxu0 0
  %7161 = vmatpush1.bf16.msra.mxu0 0
  %7162 = vmatprep.subr.bf16.mxu0 0
  %7163 = vmatpush1.bf16.msra.mxu0 0
  %7164 = vmatprep.subr.bf16.mxu0 0
  %7165 = vmatpush1.bf16.msra.mxu0 0
  %7166 = vmatprep.subr.bf16.mxu0 0
  %7167 = vmatpush1.bf16.msra.mxu0 0
  %7168 = vmatprep.subr.bf16.mxu0 0
  %7169 = vmatpush1.bf16.msra.mxu0 0
  %7170 = vmatprep.subr.bf16.mxu0 0
  %7171 = vmatpush1.bf16.msra.mxu0 0
  %7172 = vmatprep.subr.bf16.mxu0 0
  %7173 = vmatpush1.bf16.msra.mxu0 0
  %7174 = vmatprep.subr.bf16.mxu0 0
  %7175 = vmatpush1.bf16.msra.mxu0 0
  %7176 = vmatprep.subr.bf16.mxu0 0
  %7177 = vmatpush1.bf16.msra.mxu0 0
  %7178 = vmatprep.subr.bf16.mxu0 0
  %7179 = vmatpush1.bf16.msra.mxu0 0
  %7180 = vmatprep.subr.bf16.mxu0 0
  %7181 = vmatpush1.bf16.msra.mxu0 0
  %7182 = vmatprep.subr.bf16.mxu0 0
  %7183 = vmatpush1.bf16.msra.mxu0 0
  %7184 = vmatprep.subr.bf16.mxu0 0
  %7185 = vmatpush1.bf16.msra.mxu0 0
  %7186 = vmatprep.mubr.bf16.mxu0 0
  %7187 = vmatmul.mubr.bf16.gmra.mrb[0].mxu0 %v6976
  %v7188 = vpop.f32.mrb[0].mxu0
  %v7189 = vadd.f32 0.0, %v7188
  %v7190 = vpop.f32.mrb[0].mxu0
  %v7191 = vpop.f32.mrb[0].mxu0
  %v7192 = vadd.f32 0.0, %v7191
  %v7193 = vpop.f32.mrb[0].mxu0
  %7194 = vmatprep.mubr.bf16.mxu0 0
  %7195 = vmatmul.mubr.bf16.gmra.mrb[0].mxu0 %v6979
  %v7196 = vpop.f32.mrb[0].mxu0
  %v7197 = vadd.f32 0.0, %v7196
  %v7198 = vpop.f32.mrb[0].mxu0
  %v7199 = vpop.f32.mrb[0].mxu0
  %v7200 = vadd.f32 0.0, %v7199
  %v7201 = vpop.f32.mrb[0].mxu0
  %7202 = vmatprep.mubr.bf16.mxu0 0
  %7203 = vmatmul.mubr.bf16.gmra.mrb[0].mxu0 %v6982
  %v7204 = vpop.f32.mrb[0].mxu0
  %v7205 = vadd.f32 0.0, %v7204
  %v7206 = vpop.f32.mrb[0].mxu0
  %v7207 = vpop.f32.mrb[0].mxu0
  %v7208 = vpop.f32.mrb[0].mxu0
  %7209 = vdwg.mxu0
  %v7215 = vcombine.high %v7189, %v7189
  %v7216 = vcombine.high %v7192, %v7192
  %v7217 = vcombine.high %v7197, %v7197
  %v7218 = vcombine.high %v7200, %v7200
  %v7219 = vcombine.high %v7205, %v7205
  %v7225 = vlaneseq
  %v7226 = vshrl.u32 %v7225, 7
  %v7227 = vsub.s32 6, %v7226
  %v7228 = vrot.slane %v6817, %v7227
  %v7230 = vcombine.high %v7228, %v7228
  %v7232 = vadd.f32 %v7189, %v7228
  %v7233 = vadd.f32 %v7215, %v7230
  %v7234 = vadd.f32 %v7192, %v7228
  %v7235 = vadd.f32 %v7216, %v7230
  %v7236 = vadd.f32 %v7197, %v7228
  %v7237 = vadd.f32 %v7217, %v7228
  %v7238 = vadd.f32 %v7200, %v7230
  %v7239 = vadd.f32 %v7218, %v7228
  %v7240 = vadd.f32 %v7205, %v7230
  %v7241 = vadd.f32 %v7219, %v7228
  %v7242 = vpack.c.bf16 %v7044, %v7044
  %v7243 = vpack.c.bf16 %v7045, %v7045
  %v7252 = vcombine.low %v7132, %v7133
  %v7253 = vcombine.low %v7134, %v7135
  %v7254 = vcombine.low %v7137, %v7138
  %v7255 = vcombine.low %v7139, %v7140
  %v7260 = vpack.c.bf16 %v7253, %v7252
  %v7261 = vpack.c.bf16 %v7136, %v7136
  %v7262 = vpack.c.bf16 %v7255, %v7254
  %v7263 = vpack.c.bf16 %v7141, %v7141
  %v7272 = vcombine.low %v7232, %v7233
  %v7273 = vcombine.low %v7234, %v7235
  %v7274 = vcombine.low %v7237, %v7238
  %v7275 = vcombine.low %v7239, %v7240
  %v7280 = vpack.c.bf16 %v7273, %v7272
  %v7281 = vpack.c.bf16 %v7236, %v7236
  %v7282 = vpack.c.bf16 %v7275, %v7274
  %v7283 = vpack.c.bf16 %v7241, %v7241
  %v7285 = vsel %vm841, %v7242, 0
  %v7288 = vsel %vm841, %v7260, 0
  %v7291 = vsel %vm841, %v7261, 0
  %7293 = vmatprep.subr.bf16.mxu0 0
  %7294 = vmatpush1.bf16.xpose.msra.mxu0 %v7288
  %7295 = vmatprep.subr.bf16.mxu0 0
  %7296 = vmatpush1.bf16.xpose.msra.mxu0 %v7291
  %7297 = vmatprep.subr.bf16.mxu0 0
  %7298 = vmatpush1.bf16.xpose.msra.mxu0 0
  %7299 = vmatprep.subr.bf16.mxu0 0
  %7300 = vmatpush1.bf16.xpose.msra.mxu0 0
  %7301 = vmatprep.subr.bf16.mxu0 0
  %7302 = vmatpush1.bf16.xpose.msra.mxu0 0
  %7303 = vmatprep.subr.bf16.mxu0 0
  %7304 = vmatpush1.bf16.xpose.msra.mxu0 0
  %7305 = vmatprep.subr.bf16.mxu0 0
  %7306 = vmatpush1.bf16.xpose.msra.mxu0 0
  %7307 = vmatprep.subr.bf16.mxu0 0
  %7308 = vmatpush1.bf16.xpose.msra.mxu0 0
  %7309 = vmatprep.subr.bf16.mxu0 0
  %7310 = vmatpush1.bf16.xpose.msra.mxu0 0
  %7311 = vmatprep.subr.bf16.mxu0 0
  %7312 = vmatpush1.bf16.xpose.msra.mxu0 0
  %7313 = vmatprep.subr.bf16.mxu0 0
  %7314 = vmatpush1.bf16.xpose.msra.mxu0 0
  %7315 = vmatprep.subr.bf16.mxu0 0
  %7316 = vmatpush1.bf16.xpose.msra.mxu0 0
  %7317 = vmatprep.subr.bf16.mxu0 0
  %7318 = vmatpush1.bf16.xpose.msra.mxu0 0
  %7319 = vmatprep.subr.bf16.mxu0 0
  %7320 = vmatpush1.bf16.xpose.msra.mxu0 0
  %7321 = vmatprep.subr.bf16.mxu0 0
  %7322 = vmatpush1.bf16.xpose.msra.mxu0 0
  %7323 = vmatprep.subr.bf16.mxu0 0
  %7324 = vmatpush1.bf16.xpose.msra.mxu0 0
  %7325 = vmatprep.mubr.bf16.mxu0 0
  %7326 = vmatmul.mubr.bf16.gmra.mrb[0].mxu0 %v7285
  %v7327 = vpop.f32.mrb[0].mxu0
  %v7328 = vadd.f32 0.0, %v7327
  %v7329 = vpop.f32.mrb[0].mxu0
  %v7330 = vpop.f32.mrb[0].mxu0
  %v7331 = vpop.f32.mrb[0].mxu0
  %7332 = vdwg.mxu0
  %v7334 = vsel %vm841, %v7243, 0
  %v7337 = vsel %vm841, %v7262, 0
  %v7340 = vsel %vm841, %v7263, 0
  %7342 = vmatprep.subr.bf16.mxu0 0
  %7343 = vmatpush1.bf16.xpose.msra.mxu0 %v7337
  %7344 = vmatprep.subr.bf16.mxu0 0
  %7345 = vmatpush1.bf16.xpose.msra.mxu0 %v7340
  %7346 = vmatprep.subr.bf16.mxu0 0
  %7347 = vmatpush1.bf16.xpose.msra.mxu0 0
  %7348 = vmatprep.subr.bf16.mxu0 0
  %7349 = vmatpush1.bf16.xpose.msra.mxu0 0
  %7350 = vmatprep.subr.bf16.mxu0 0
  %7351 = vmatpush1.bf16.xpose.msra.mxu0 0
  %7352 = vmatprep.subr.bf16.mxu0 0
  %7353 = vmatpush1.bf16.xpose.msra.mxu0 0
  %7354 = vmatprep.subr.bf16.mxu0 0
  %7355 = vmatpush1.bf16.xpose.msra.mxu0 0
  %7356 = vmatprep.subr.bf16.mxu0 0
  %7357 = vmatpush1.bf16.xpose.msra.mxu0 0
  %7358 = vmatprep.subr.bf16.mxu0 0
  %7359 = vmatpush1.bf16.xpose.msra.mxu0 0
  %7360 = vmatprep.subr.bf16.mxu0 0
  %7361 = vmatpush1.bf16.xpose.msra.mxu0 0
  %7362 = vmatprep.subr.bf16.mxu0 0
  %7363 = vmatpush1.bf16.xpose.msra.mxu0 0
  %7364 = vmatprep.subr.bf16.mxu0 0
  %7365 = vmatpush1.bf16.xpose.msra.mxu0 0
  %7366 = vmatprep.subr.bf16.mxu0 0
  %7367 = vmatpush1.bf16.xpose.msra.mxu0 0
  %7368 = vmatprep.subr.bf16.mxu0 0
  %7369 = vmatpush1.bf16.xpose.msra.mxu0 0
  %7370 = vmatprep.subr.bf16.mxu0 0
  %7371 = vmatpush1.bf16.xpose.msra.mxu0 0
  %7372 = vmatprep.subr.bf16.mxu0 0
  %7373 = vmatpush1.bf16.xpose.msra.mxu0 0
  %7374 = vmatprep.mubr.bf16.mxu0 0
  %7375 = vmatmul.mubr.bf16.gmra.mrb[0].mxu0 %v7334
  %v7376 = vpop.f32.mrb[0].mxu0
  %v7377 = vadd.f32 0.0, %v7376
  %v7378 = vpop.f32.mrb[0].mxu0
  %v7379 = vpop.f32.mrb[0].mxu0
  %v7380 = vpop.f32.mrb[0].mxu0
  %7381 = vdwg.mxu0
  %v7382 = vmul.f32 %v7328, 0.35355338
  %v7383 = vmul.f32 %v7377, 0.35355338
  %v7384 = vadd.f32 %v7382, %v452
  %v7385 = vadd.f32 %v7383, %v452
  %v7386 = vsel %vm2698, %v7384, -inf
  %7387 = vmax.xlane.f32.xlu0 %v7386
  %v7388 = vpop.xlane.xlu0 %7387
  %v7389 = vsel %vm2698, %v7385, -inf
  %7390 = vmax.xlane.f32.xlu0 %v7389
  %v7391 = vpop.xlane.xlu0 %7390
  %v7392 = vsub.f32 %v7384, %v7388
  %v7393 = vsub.f32 %v7385, %v7391
  %v7394 = vmul.f32 %v7392, 1.442695
  %v7395 = vpow.pop %v7394
  %v7396 = vmul.f32 %v7393, 1.442695
  %v7397 = vpow.pop %v7396
  %v7398 = vsel %vm2698, %v7395, 0.0
  %7399 = vadd.xlane.f32.xlu0 %v7398
  %v7400 = vpop.xlane.xlu0 %7399
  %v7401 = vsel %vm2698, %v7397, 0.0
  %7402 = vadd.xlane.f32.xlu0 %v7401
  %v7403 = vpop.xlane.xlu0 %7402
  %v7404 = vrcp.pop %v7400
  %v7405 = vmul.f32 %v7395, %v7404
  %v7406 = vrcp.pop %v7403
  %v7407 = vmul.f32 %v7397, %v7406
  %v7408 = vpack.c.bf16 %v7405, %v7405
  %v7409 = vpack.c.bf16 %v7407, %v7407
  %v7411 = vsel %vm2723, %v7408, 0
  %v7414 = vsel %vm2727, %v7281, 0
  %7416 = vmatprep.subr.bf16.mxu0 0
  %7417 = vmatpush1.bf16.msra.mxu0 %v7280
  %7418 = vmatprep.subr.bf16.mxu0 0
  %7419 = vmatpush1.bf16.msra.mxu0 %v7414
  %7420 = vmatprep.subr.bf16.mxu0 0
  %7421 = vmatpush1.bf16.msra.mxu0 0
  %7422 = vmatprep.subr.bf16.mxu0 0
  %7423 = vmatpush1.bf16.msra.mxu0 0
  %7424 = vmatprep.subr.bf16.mxu0 0
  %7425 = vmatpush1.bf16.msra.mxu0 0
  %7426 = vmatprep.subr.bf16.mxu0 0
  %7427 = vmatpush1.bf16.msra.mxu0 0
  %7428 = vmatprep.subr.bf16.mxu0 0
  %7429 = vmatpush1.bf16.msra.mxu0 0
  %7430 = vmatprep.subr.bf16.mxu0 0
  %7431 = vmatpush1.bf16.msra.mxu0 0
  %7432 = vmatprep.subr.bf16.mxu0 0
  %7433 = vmatpush1.bf16.msra.mxu0 0
  %7434 = vmatprep.subr.bf16.mxu0 0
  %7435 = vmatpush1.bf16.msra.mxu0 0
  %7436 = vmatprep.subr.bf16.mxu0 0
  %7437 = vmatpush1.bf16.msra.mxu0 0
  %7438 = vmatprep.subr.bf16.mxu0 0
  %7439 = vmatpush1.bf16.msra.mxu0 0
  %7440 = vmatprep.subr.bf16.mxu0 0
  %7441 = vmatpush1.bf16.msra.mxu0 0
  %7442 = vmatprep.subr.bf16.mxu0 0
  %7443 = vmatpush1.bf16.msra.mxu0 0
  %7444 = vmatprep.subr.bf16.mxu0 0
  %7445 = vmatpush1.bf16.msra.mxu0 0
  %7446 = vmatprep.subr.bf16.mxu0 0
  %7447 = vmatpush1.bf16.msra.mxu0 0
  %7448 = vmatprep.mubr.bf16.mxu0 0
  %7449 = vmatmul.mubr.bf16.gmra.mrb[0].mxu0 %v7411
  %v7450 = vpop.f32.mrb[0].mxu0
  %v7451 = vadd.f32 0.0, %v7450
  %v7452 = vpop.f32.mrb[0].mxu0
  %v7453 = vpop.f32.mrb[0].mxu0
  %v7454 = vpop.f32.mrb[0].mxu0
  %7455 = vdwg.mxu0
  %v7457 = vsel %vm2723, %v7409, 0
  %v7460 = vsel %vm2727, %v7283, 0
  %7462 = vmatprep.subr.bf16.mxu0 0
  %7463 = vmatpush1.bf16.msra.mxu0 %v7282
  %7464 = vmatprep.subr.bf16.mxu0 0
  %7465 = vmatpush1.bf16.msra.mxu0 %v7460
  %7466 = vmatprep.subr.bf16.mxu0 0
  %7467 = vmatpush1.bf16.msra.mxu0 0
  %7468 = vmatprep.subr.bf16.mxu0 0
  %7469 = vmatpush1.bf16.msra.mxu0 0
  %7470 = vmatprep.subr.bf16.mxu0 0
  %7471 = vmatpush1.bf16.msra.mxu0 0
  %7472 = vmatprep.subr.bf16.mxu0 0
  %7473 = vmatpush1.bf16.msra.mxu0 0
  %7474 = vmatprep.subr.bf16.mxu0 0
  %7475 = vmatpush1.bf16.msra.mxu0 0
  %7476 = vmatprep.subr.bf16.mxu0 0
  %7477 = vmatpush1.bf16.msra.mxu0 0
  %7478 = vmatprep.subr.bf16.mxu0 0
  %7479 = vmatpush1.bf16.msra.mxu0 0
  %7480 = vmatprep.subr.bf16.mxu0 0
  %7481 = vmatpush1.bf16.msra.mxu0 0
  %7482 = vmatprep.subr.bf16.mxu0 0
  %7483 = vmatpush1.bf16.msra.mxu0 0
  %7484 = vmatprep.subr.bf16.mxu0 0
  %7485 = vmatpush1.bf16.msra.mxu0 0
  %7486 = vmatprep.subr.bf16.mxu0 0
  %7487 = vmatpush1.bf16.msra.mxu0 0
  %7488 = vmatprep.subr.bf16.mxu0 0
  %7489 = vmatpush1.bf16.msra.mxu0 0
  %7490 = vmatprep.subr.bf16.mxu0 0
  %7491 = vmatpush1.bf16.msra.mxu0 0
  %7492 = vmatprep.subr.bf16.mxu0 0
  %7493 = vmatpush1.bf16.msra.mxu0 0
  %7494 = vmatprep.mubr.bf16.mxu0 0
  %7495 = vmatmul.mubr.bf16.gmra.mrb[0].mxu0 %v7457
  %v7496 = vpop.f32.mrb[0].mxu0
  %v7497 = vadd.f32 0.0, %v7496
  %v7498 = vpop.f32.mrb[0].mxu0
  %v7499 = vpop.f32.mrb[0].mxu0
  %v7500 = vpop.f32.mrb[0].mxu0
  %7501 = vdwg.mxu0
  %7503 = vrot.lane.b32.xlu0 %v7242, 120
  %v7504 = vpop.permute.xlu0 %7503
  %7507 = vrot.lane.b32.xlu0 %v7260, 120
  %v7508 = vpop.permute.xlu0 %7507
  %7509 = vrot.lane.b32.xlu0 %v7261, 120
  %v7510 = vpop.permute.xlu0 %7509
  %v7512 = vsel %vm841, %v7504, 0
  %v7515 = vsel %vm841, %v7508, 0
  %v7518 = vsel %vm841, %v7510, 0
  %7520 = vmatprep.subr.bf16.mxu0 0
  %7521 = vmatpush1.bf16.xpose.msra.mxu0 %v7515
  %7522 = vmatprep.subr.bf16.mxu0 0
  %7523 = vmatpush1.bf16.xpose.msra.mxu0 %v7518
  %7524 = vmatprep.subr.bf16.mxu0 0
  %7525 = vmatpush1.bf16.xpose.msra.mxu0 0
  %7526 = vmatprep.subr.bf16.mxu0 0
  %7527 = vmatpush1.bf16.xpose.msra.mxu0 0
  %7528 = vmatprep.subr.bf16.mxu0 0
  %7529 = vmatpush1.bf16.xpose.msra.mxu0 0
  %7530 = vmatprep.subr.bf16.mxu0 0
  %7531 = vmatpush1.bf16.xpose.msra.mxu0 0
  %7532 = vmatprep.subr.bf16.mxu0 0
  %7533 = vmatpush1.bf16.xpose.msra.mxu0 0
  %7534 = vmatprep.subr.bf16.mxu0 0
  %7535 = vmatpush1.bf16.xpose.msra.mxu0 0
  %7536 = vmatprep.subr.bf16.mxu0 0
  %7537 = vmatpush1.bf16.xpose.msra.mxu0 0
  %7538 = vmatprep.subr.bf16.mxu0 0
  %7539 = vmatpush1.bf16.xpose.msra.mxu0 0
  %7540 = vmatprep.subr.bf16.mxu0 0
  %7541 = vmatpush1.bf16.xpose.msra.mxu0 0
  %7542 = vmatprep.subr.bf16.mxu0 0
  %7543 = vmatpush1.bf16.xpose.msra.mxu0 0
  %7544 = vmatprep.subr.bf16.mxu0 0
  %7545 = vmatpush1.bf16.xpose.msra.mxu0 0
  %7546 = vmatprep.subr.bf16.mxu0 0
  %7547 = vmatpush1.bf16.xpose.msra.mxu0 0
  %7548 = vmatprep.subr.bf16.mxu0 0
  %7549 = vmatpush1.bf16.xpose.msra.mxu0 0
  %7550 = vmatprep.subr.bf16.mxu0 0
  %7551 = vmatpush1.bf16.xpose.msra.mxu0 0
  %7552 = vmatprep.mubr.bf16.mxu0 0
  %7553 = vmatmul.mubr.bf16.gmra.mrb[0].mxu0 %v7512
  %v7554 = vpop.f32.mrb[0].mxu0
  %v7555 = vadd.f32 0.0, %v7554
  %v7556 = vpop.f32.mrb[0].mxu0
  %v7557 = vpop.f32.mrb[0].mxu0
  %v7558 = vpop.f32.mrb[0].mxu0
  %7559 = vdwg.mxu0
  %7561 = vrot.lane.b32.xlu0 %v7243, 120
  %v7562 = vpop.permute.xlu0 %7561
  %7565 = vrot.lane.b32.xlu0 %v7262, 120
  %v7566 = vpop.permute.xlu0 %7565
  %7567 = vrot.lane.b32.xlu0 %v7263, 120
  %v7568 = vpop.permute.xlu0 %7567
  %v7570 = vsel %vm841, %v7562, 0
  %v7573 = vsel %vm841, %v7566, 0
  %v7576 = vsel %vm841, %v7568, 0
  %7578 = vmatprep.subr.bf16.mxu0 0
  %7579 = vmatpush1.bf16.xpose.msra.mxu0 %v7573
  %7580 = vmatprep.subr.bf16.mxu0 0
  %7581 = vmatpush1.bf16.xpose.msra.mxu0 %v7576
  %7582 = vmatprep.subr.bf16.mxu0 0
  %7583 = vmatpush1.bf16.xpose.msra.mxu0 0
  %7584 = vmatprep.subr.bf16.mxu0 0
  %7585 = vmatpush1.bf16.xpose.msra.mxu0 0
  %7586 = vmatprep.subr.bf16.mxu0 0
  %7587 = vmatpush1.bf16.xpose.msra.mxu0 0
  %7588 = vmatprep.subr.bf16.mxu0 0
  %7589 = vmatpush1.bf16.xpose.msra.mxu0 0
  %7590 = vmatprep.subr.bf16.mxu0 0
  %7591 = vmatpush1.bf16.xpose.msra.mxu0 0
  %7592 = vmatprep.subr.bf16.mxu0 0
  %7593 = vmatpush1.bf16.xpose.msra.mxu0 0
  %7594 = vmatprep.subr.bf16.mxu0 0
  %7595 = vmatpush1.bf16.xpose.msra.mxu0 0
  %7596 = vmatprep.subr.bf16.mxu0 0
  %7597 = vmatpush1.bf16.xpose.msra.mxu0 0
  %7598 = vmatprep.subr.bf16.mxu0 0
  %7599 = vmatpush1.bf16.xpose.msra.mxu0 0
  %7600 = vmatprep.subr.bf16.mxu0 0
  %7601 = vmatpush1.bf16.xpose.msra.mxu0 0
  %7602 = vmatprep.subr.bf16.mxu0 0
  %7603 = vmatpush1.bf16.xpose.msra.mxu0 0
  %7604 = vmatprep.subr.bf16.mxu0 0
  %7605 = vmatpush1.bf16.xpose.msra.mxu0 0
  %7606 = vmatprep.subr.bf16.mxu0 0
  %7607 = vmatpush1.bf16.xpose.msra.mxu0 0
  %7608 = vmatprep.subr.bf16.mxu0 0
  %7609 = vmatpush1.bf16.xpose.msra.mxu0 0
  %7610 = vmatprep.mubr.bf16.mxu0 0
  %7611 = vmatmul.mubr.bf16.gmra.mrb[0].mxu0 %v7570
  %v7612 = vpop.f32.mrb[0].mxu0
  %v7613 = vadd.f32 0.0, %v7612
  %v7614 = vpop.f32.mrb[0].mxu0
  %v7615 = vpop.f32.mrb[0].mxu0
  %v7616 = vpop.f32.mrb[0].mxu0
  %7617 = vdwg.mxu0
  %v7618 = vmul.f32 %v7555, 0.35355338
  %v7619 = vmul.f32 %v7613, 0.35355338
  %v7620 = vadd.f32 %v7618, %v452
  %v7621 = vadd.f32 %v7619, %v452
  %v7622 = vsel %vm2698, %v7620, -inf
  %7623 = vmax.xlane.f32.xlu0 %v7622
  %v7624 = vpop.xlane.xlu0 %7623
  %v7625 = vsel %vm2698, %v7621, -inf
  %7626 = vmax.xlane.f32.xlu0 %v7625
  %v7627 = vpop.xlane.xlu0 %7626
  %v7628 = vsub.f32 %v7620, %v7624
  %v7629 = vsub.f32 %v7621, %v7627
  %v7630 = vmul.f32 %v7628, 1.442695
  %v7631 = vpow.pop %v7630
  %v7632 = vmul.f32 %v7629, 1.442695
  %v7633 = vpow.pop %v7632
  %v7634 = vsel %vm2698, %v7631, 0.0
  %7635 = vadd.xlane.f32.xlu0 %v7634
  %v7636 = vpop.xlane.xlu0 %7635
  %v7637 = vsel %vm2698, %v7633, 0.0
  %7638 = vadd.xlane.f32.xlu0 %v7637
  %v7639 = vpop.xlane.xlu0 %7638
  %v7640 = vrcp.pop %v7636
  %v7641 = vmul.f32 %v7631, %v7640
  %v7642 = vrcp.pop %v7639
  %v7643 = vmul.f32 %v7633, %v7642
  %v7644 = vpack.c.bf16 %v7641, %v7641
  %v7645 = vpack.c.bf16 %v7643, %v7643
  %7648 = vrot.lane.b32.xlu0 %v7280, 120
  %v7649 = vpop.permute.xlu0 %7648
  %7650 = vrot.lane.b32.xlu0 %v7281, 120
  %v7651 = vpop.permute.xlu0 %7650
  %v7654 = vsel %vm2723, %v7644, 0
  %v7657 = vsel %vm2727, %v7651, 0
  %7659 = vmatprep.subr.bf16.mxu0 0
  %7660 = vmatpush1.bf16.msra.mxu0 %v7649
  %7661 = vmatprep.subr.bf16.mxu0 0
  %7662 = vmatpush1.bf16.msra.mxu0 %v7657
  %7663 = vmatprep.subr.bf16.mxu0 0
  %7664 = vmatpush1.bf16.msra.mxu0 0
  %7665 = vmatprep.subr.bf16.mxu0 0
  %7666 = vmatpush1.bf16.msra.mxu0 0
  %7667 = vmatprep.subr.bf16.mxu0 0
  %7668 = vmatpush1.bf16.msra.mxu0 0
  %7669 = vmatprep.subr.bf16.mxu0 0
  %7670 = vmatpush1.bf16.msra.mxu0 0
  %7671 = vmatprep.subr.bf16.mxu0 0
  %7672 = vmatpush1.bf16.msra.mxu0 0
  %7673 = vmatprep.subr.bf16.mxu0 0
  %7674 = vmatpush1.bf16.msra.mxu0 0
  %7675 = vmatprep.subr.bf16.mxu0 0
  %7676 = vmatpush1.bf16.msra.mxu0 0
  %7677 = vmatprep.subr.bf16.mxu0 0
  %7678 = vmatpush1.bf16.msra.mxu0 0
  %7679 = vmatprep.subr.bf16.mxu0 0
  %7680 = vmatpush1.bf16.msra.mxu0 0
  %7681 = vmatprep.subr.bf16.mxu0 0
  %7682 = vmatpush1.bf16.msra.mxu0 0
  %7683 = vmatprep.subr.bf16.mxu0 0
  %7684 = vmatpush1.bf16.msra.mxu0 0
  %7685 = vmatprep.subr.bf16.mxu0 0
  %7686 = vmatpush1.bf16.msra.mxu0 0
  %7687 = vmatprep.subr.bf16.mxu0 0
  %7688 = vmatpush1.bf16.msra.mxu0 0
  %7689 = vmatprep.subr.bf16.mxu0 0
  %7690 = vmatpush1.bf16.msra.mxu0 0
  %7691 = vmatprep.mubr.bf16.mxu0 0
  %7692 = vmatmul.mubr.bf16.gmra.mrb[0].mxu0 %v7654
  %v7693 = vpop.f32.mrb[0].mxu0
  %v7694 = vadd.f32 0.0, %v7693
  %v7695 = vpop.f32.mrb[0].mxu0
  %v7696 = vpop.f32.mrb[0].mxu0
  %v7697 = vpop.f32.mrb[0].mxu0
  %7698 = vdwg.mxu0
  %7701 = vrot.lane.b32.xlu0 %v7282, 120
  %v7702 = vpop.permute.xlu0 %7701
  %7703 = vrot.lane.b32.xlu0 %v7283, 120
  %v7704 = vpop.permute.xlu0 %7703
  %v7707 = vsel %vm2723, %v7645, 0
  %v7710 = vsel %vm2727, %v7704, 0
  %7712 = vmatprep.subr.bf16.mxu0 0
  %7713 = vmatpush1.bf16.msra.mxu0 %v7702
  %7714 = vmatprep.subr.bf16.mxu0 0
  %7715 = vmatpush1.bf16.msra.mxu0 %v7710
  %7716 = vmatprep.subr.bf16.mxu0 0
  %7717 = vmatpush1.bf16.msra.mxu0 0
  %7718 = vmatprep.subr.bf16.mxu0 0
  %7719 = vmatpush1.bf16.msra.mxu0 0
  %7720 = vmatprep.subr.bf16.mxu0 0
  %7721 = vmatpush1.bf16.msra.mxu0 0
  %7722 = vmatprep.subr.bf16.mxu0 0
  %7723 = vmatpush1.bf16.msra.mxu0 0
  %7724 = vmatprep.subr.bf16.mxu0 0
  %7725 = vmatpush1.bf16.msra.mxu0 0
  %7726 = vmatprep.subr.bf16.mxu0 0
  %7727 = vmatpush1.bf16.msra.mxu0 0
  %7728 = vmatprep.subr.bf16.mxu0 0
  %7729 = vmatpush1.bf16.msra.mxu0 0
  %7730 = vmatprep.subr.bf16.mxu0 0
  %7731 = vmatpush1.bf16.msra.mxu0 0
  %7732 = vmatprep.subr.bf16.mxu0 0
  %7733 = vmatpush1.bf16.msra.mxu0 0
  %7734 = vmatprep.subr.bf16.mxu0 0
  %7735 = vmatpush1.bf16.msra.mxu0 0
  %7736 = vmatprep.subr.bf16.mxu0 0
  %7737 = vmatpush1.bf16.msra.mxu0 0
  %7738 = vmatprep.subr.bf16.mxu0 0
  %7739 = vmatpush1.bf16.msra.mxu0 0
  %7740 = vmatprep.subr.bf16.mxu0 0
  %7741 = vmatpush1.bf16.msra.mxu0 0
  %7742 = vmatprep.subr.bf16.mxu0 0
  %7743 = vmatpush1.bf16.msra.mxu0 0
  %7744 = vmatprep.mubr.bf16.mxu0 0
  %7745 = vmatmul.mubr.bf16.gmra.mrb[0].mxu0 %v7707
  %v7746 = vpop.f32.mrb[0].mxu0
  %v7747 = vadd.f32 0.0, %v7746
  %v7748 = vpop.f32.mrb[0].mxu0
  %v7749 = vpop.f32.mrb[0].mxu0
  %v7750 = vpop.f32.mrb[0].mxu0
  %7751 = vdwg.mxu0
  %7752 = vrot.lane.b32.xlu0 %v7242, 112
  %v7753 = vpop.permute.xlu0 %7752
  %7754 = vrot.lane.b32.xlu0 %v7260, 112
  %v7755 = vpop.permute.xlu0 %7754
  %7756 = vrot.lane.b32.xlu0 %v7261, 112
  %v7757 = vpop.permute.xlu0 %7756
  %v7759 = vsel %vm841, %v7753, 0
  %v7762 = vsel %vm841, %v7755, 0
  %v7765 = vsel %vm841, %v7757, 0
  %7767 = vmatprep.subr.bf16.mxu0 0
  %7768 = vmatpush1.bf16.xpose.msra.mxu0 %v7762
  %7769 = vmatprep.subr.bf16.mxu0 0
  %7770 = vmatpush1.bf16.xpose.msra.mxu0 %v7765
  %7771 = vmatprep.subr.bf16.mxu0 0
  %7772 = vmatpush1.bf16.xpose.msra.mxu0 0
  %7773 = vmatprep.subr.bf16.mxu0 0
  %7774 = vmatpush1.bf16.xpose.msra.mxu0 0
  %7775 = vmatprep.subr.bf16.mxu0 0
  %7776 = vmatpush1.bf16.xpose.msra.mxu0 0
  %7777 = vmatprep.subr.bf16.mxu0 0
  %7778 = vmatpush1.bf16.xpose.msra.mxu0 0
  %7779 = vmatprep.subr.bf16.mxu0 0
  %7780 = vmatpush1.bf16.xpose.msra.mxu0 0
  %7781 = vmatprep.subr.bf16.mxu0 0
  %7782 = vmatpush1.bf16.xpose.msra.mxu0 0
  %7783 = vmatprep.subr.bf16.mxu0 0
  %7784 = vmatpush1.bf16.xpose.msra.mxu0 0
  %7785 = vmatprep.subr.bf16.mxu0 0
  %7786 = vmatpush1.bf16.xpose.msra.mxu0 0
  %7787 = vmatprep.subr.bf16.mxu0 0
  %7788 = vmatpush1.bf16.xpose.msra.mxu0 0
  %7789 = vmatprep.subr.bf16.mxu0 0
  %7790 = vmatpush1.bf16.xpose.msra.mxu0 0
  %7791 = vmatprep.subr.bf16.mxu0 0
  %7792 = vmatpush1.bf16.xpose.msra.mxu0 0
  %7793 = vmatprep.subr.bf16.mxu0 0
  %7794 = vmatpush1.bf16.xpose.msra.mxu0 0
  %7795 = vmatprep.subr.bf16.mxu0 0
  %7796 = vmatpush1.bf16.xpose.msra.mxu0 0
  %7797 = vmatprep.subr.bf16.mxu0 0
  %7798 = vmatpush1.bf16.xpose.msra.mxu0 0
  %7799 = vmatprep.mubr.bf16.mxu0 0
  %7800 = vmatmul.mubr.bf16.gmra.mrb[0].mxu0 %v7759
  %v7801 = vpop.f32.mrb[0].mxu0
  %v7802 = vadd.f32 0.0, %v7801
  %v7803 = vpop.f32.mrb[0].mxu0
  %v7804 = vpop.f32.mrb[0].mxu0
  %v7805 = vpop.f32.mrb[0].mxu0
  %7806 = vdwg.mxu0
  %7807 = vrot.lane.b32.xlu0 %v7243, 112
  %v7808 = vpop.permute.xlu0 %7807
  %7809 = vrot.lane.b32.xlu0 %v7262, 112
  %v7810 = vpop.permute.xlu0 %7809
  %7811 = vrot.lane.b32.xlu0 %v7263, 112
  %v7812 = vpop.permute.xlu0 %7811
  %v7814 = vsel %vm841, %v7808, 0
  %v7817 = vsel %vm841, %v7810, 0
  %v7820 = vsel %vm841, %v7812, 0
  %7822 = vmatprep.subr.bf16.mxu0 0
  %7823 = vmatpush1.bf16.xpose.msra.mxu0 %v7817
  %7824 = vmatprep.subr.bf16.mxu0 0
  %7825 = vmatpush1.bf16.xpose.msra.mxu0 %v7820
  %7826 = vmatprep.subr.bf16.mxu0 0
  %7827 = vmatpush1.bf16.xpose.msra.mxu0 0
  %7828 = vmatprep.subr.bf16.mxu0 0
  %7829 = vmatpush1.bf16.xpose.msra.mxu0 0
  %7830 = vmatprep.subr.bf16.mxu0 0
  %7831 = vmatpush1.bf16.xpose.msra.mxu0 0
  %7832 = vmatprep.subr.bf16.mxu0 0
  %7833 = vmatpush1.bf16.xpose.msra.mxu0 0
  %7834 = vmatprep.subr.bf16.mxu0 0
  %7835 = vmatpush1.bf16.xpose.msra.mxu0 0
  %7836 = vmatprep.subr.bf16.mxu0 0
  %7837 = vmatpush1.bf16.xpose.msra.mxu0 0
  %7838 = vmatprep.subr.bf16.mxu0 0
  %7839 = vmatpush1.bf16.xpose.msra.mxu0 0
  %7840 = vmatprep.subr.bf16.mxu0 0
  %7841 = vmatpush1.bf16.xpose.msra.mxu0 0
  %7842 = vmatprep.subr.bf16.mxu0 0
  %7843 = vmatpush1.bf16.xpose.msra.mxu0 0
  %7844 = vmatprep.subr.bf16.mxu0 0
  %7845 = vmatpush1.bf16.xpose.msra.mxu0 0
  %7846 = vmatprep.subr.bf16.mxu0 0
  %7847 = vmatpush1.bf16.xpose.msra.mxu0 0
  %7848 = vmatprep.subr.bf16.mxu0 0
  %7849 = vmatpush1.bf16.xpose.msra.mxu0 0
  %7850 = vmatprep.subr.bf16.mxu0 0
  %7851 = vmatpush1.bf16.xpose.msra.mxu0 0
  %7852 = vmatprep.subr.bf16.mxu0 0
  %7853 = vmatpush1.bf16.xpose.msra.mxu0 0
  %7854 = vmatprep.mubr.bf16.mxu0 0
  %7855 = vmatmul.mubr.bf16.gmra.mrb[0].mxu0 %v7814
  %v7856 = vpop.f32.mrb[0].mxu0
  %v7857 = vadd.f32 0.0, %v7856
  %v7858 = vpop.f32.mrb[0].mxu0
  %v7859 = vpop.f32.mrb[0].mxu0
  %v7860 = vpop.f32.mrb[0].mxu0
  %7861 = vdwg.mxu0
  %v7862 = vmul.f32 %v7802, 0.35355338
  %v7863 = vmul.f32 %v7857, 0.35355338
  %v7864 = vadd.f32 %v7862, %v452
  %v7865 = vadd.f32 %v7863, %v452
  %v7866 = vsel %vm2698, %v7864, -inf
  %7867 = vmax.xlane.f32.xlu0 %v7866
  %v7868 = vpop.xlane.xlu0 %7867
  %v7869 = vsel %vm2698, %v7865, -inf
  %7870 = vmax.xlane.f32.xlu0 %v7869
  %v7871 = vpop.xlane.xlu0 %7870
  %v7872 = vsub.f32 %v7864, %v7868
  %v7873 = vsub.f32 %v7865, %v7871
  %v7874 = vmul.f32 %v7872, 1.442695
  %v7875 = vpow.pop %v7874
  %v7876 = vmul.f32 %v7873, 1.442695
  %v7877 = vpow.pop %v7876
  %v7878 = vsel %vm2698, %v7875, 0.0
  %7879 = vadd.xlane.f32.xlu0 %v7878
  %v7880 = vpop.xlane.xlu0 %7879
  %v7881 = vsel %vm2698, %v7877, 0.0
  %7882 = vadd.xlane.f32.xlu0 %v7881
  %v7883 = vpop.xlane.xlu0 %7882
  %v7884 = vrcp.pop %v7880
  %v7885 = vmul.f32 %v7875, %v7884
  %v7886 = vrcp.pop %v7883
  %v7887 = vmul.f32 %v7877, %v7886
  %v7888 = vpack.c.bf16 %v7885, %v7885
  %v7889 = vpack.c.bf16 %v7887, %v7887
  %7890 = vrot.lane.b32.xlu0 %v7280, 112
  %v7891 = vpop.permute.xlu0 %7890
  %7892 = vrot.lane.b32.xlu0 %v7281, 112
  %v7893 = vpop.permute.xlu0 %7892
  %v7896 = vsel %vm2723, %v7888, 0
  %v7899 = vsel %vm2727, %v7893, 0
  %7901 = vmatprep.subr.bf16.mxu0 0
  %7902 = vmatpush1.bf16.msra.mxu0 %v7891
  %7903 = vmatprep.subr.bf16.mxu0 0
  %7904 = vmatpush1.bf16.msra.mxu0 %v7899
  %7905 = vmatprep.subr.bf16.mxu0 0
  %7906 = vmatpush1.bf16.msra.mxu0 0
  %7907 = vmatprep.subr.bf16.mxu0 0
  %7908 = vmatpush1.bf16.msra.mxu0 0
  %7909 = vmatprep.subr.bf16.mxu0 0
  %7910 = vmatpush1.bf16.msra.mxu0 0
  %7911 = vmatprep.subr.bf16.mxu0 0
  %7912 = vmatpush1.bf16.msra.mxu0 0
  %7913 = vmatprep.subr.bf16.mxu0 0
  %7914 = vmatpush1.bf16.msra.mxu0 0
  %7915 = vmatprep.subr.bf16.mxu0 0
  %7916 = vmatpush1.bf16.msra.mxu0 0
  %7917 = vmatprep.subr.bf16.mxu0 0
  %7918 = vmatpush1.bf16.msra.mxu0 0
  %7919 = vmatprep.subr.bf16.mxu0 0
  %7920 = vmatpush1.bf16.msra.mxu0 0
  %7921 = vmatprep.subr.bf16.mxu0 0
  %7922 = vmatpush1.bf16.msra.mxu0 0
  %7923 = vmatprep.subr.bf16.mxu0 0
  %7924 = vmatpush1.bf16.msra.mxu0 0
  %7925 = vmatprep.subr.bf16.mxu0 0
  %7926 = vmatpush1.bf16.msra.mxu0 0
  %7927 = vmatprep.subr.bf16.mxu0 0
  %7928 = vmatpush1.bf16.msra.mxu0 0
  %7929 = vmatprep.subr.bf16.mxu0 0
  %7930 = vmatpush1.bf16.msra.mxu0 0
  %7931 = vmatprep.subr.bf16.mxu0 0
  %7932 = vmatpush1.bf16.msra.mxu0 0
  %7933 = vmatprep.mubr.bf16.mxu0 0
  %7934 = vmatmul.mubr.bf16.gmra.mrb[0].mxu0 %v7896
  %v7935 = vpop.f32.mrb[0].mxu0
  %v7936 = vadd.f32 0.0, %v7935
  %v7937 = vpop.f32.mrb[0].mxu0
  %v7938 = vpop.f32.mrb[0].mxu0
  %v7939 = vpop.f32.mrb[0].mxu0
  %7940 = vdwg.mxu0
  %7941 = vrot.lane.b32.xlu0 %v7282, 112
  %v7942 = vpop.permute.xlu0 %7941
  %7943 = vrot.lane.b32.xlu0 %v7283, 112
  %v7944 = vpop.permute.xlu0 %7943
  %v7947 = vsel %vm2723, %v7889, 0
  %v7950 = vsel %vm2727, %v7944, 0
  %7952 = vmatprep.subr.bf16.mxu0 0
  %7953 = vmatpush1.bf16.msra.mxu0 %v7942
  %7954 = vmatprep.subr.bf16.mxu0 0
  %7955 = vmatpush1.bf16.msra.mxu0 %v7950
  %7956 = vmatprep.subr.bf16.mxu0 0
  %7957 = vmatpush1.bf16.msra.mxu0 0
  %7958 = vmatprep.subr.bf16.mxu0 0
  %7959 = vmatpush1.bf16.msra.mxu0 0
  %7960 = vmatprep.subr.bf16.mxu0 0
  %7961 = vmatpush1.bf16.msra.mxu0 0
  %7962 = vmatprep.subr.bf16.mxu0 0
  %7963 = vmatpush1.bf16.msra.mxu0 0
  %7964 = vmatprep.subr.bf16.mxu0 0
  %7965 = vmatpush1.bf16.msra.mxu0 0
  %7966 = vmatprep.subr.bf16.mxu0 0
  %7967 = vmatpush1.bf16.msra.mxu0 0
  %7968 = vmatprep.subr.bf16.mxu0 0
  %7969 = vmatpush1.bf16.msra.mxu0 0
  %7970 = vmatprep.subr.bf16.mxu0 0
  %7971 = vmatpush1.bf16.msra.mxu0 0
  %7972 = vmatprep.subr.bf16.mxu0 0
  %7973 = vmatpush1.bf16.msra.mxu0 0
  %7974 = vmatprep.subr.bf16.mxu0 0
  %7975 = vmatpush1.bf16.msra.mxu0 0
  %7976 = vmatprep.subr.bf16.mxu0 0
  %7977 = vmatpush1.bf16.msra.mxu0 0
  %7978 = vmatprep.subr.bf16.mxu0 0
  %7979 = vmatpush1.bf16.msra.mxu0 0
  %7980 = vmatprep.subr.bf16.mxu0 0
  %7981 = vmatpush1.bf16.msra.mxu0 0
  %7982 = vmatprep.subr.bf16.mxu0 0
  %7983 = vmatpush1.bf16.msra.mxu0 0
  %7984 = vmatprep.mubr.bf16.mxu0 0
  %7985 = vmatmul.mubr.bf16.gmra.mrb[0].mxu0 %v7947
  %v7986 = vpop.f32.mrb[0].mxu0
  %v7987 = vadd.f32 0.0, %v7986
  %v7988 = vpop.f32.mrb[0].mxu0
  %v7989 = vpop.f32.mrb[0].mxu0
  %v7990 = vpop.f32.mrb[0].mxu0
  %7991 = vdwg.mxu0
  %7992 = vrot.lane.b32.xlu0 %v7242, 104
  %v7993 = vpop.permute.xlu0 %7992
  %7994 = vrot.lane.b32.xlu0 %v7260, 104
  %v7995 = vpop.permute.xlu0 %7994
  %7996 = vrot.lane.b32.xlu0 %v7261, 104
  %v7997 = vpop.permute.xlu0 %7996
  %v7999 = vsel %vm841, %v7993, 0
  %v8002 = vsel %vm841, %v7995, 0
  %v8005 = vsel %vm841, %v7997, 0
  %8007 = vmatprep.subr.bf16.mxu0 0
  %8008 = vmatpush1.bf16.xpose.msra.mxu0 %v8002
  %8009 = vmatprep.subr.bf16.mxu0 0
  %8010 = vmatpush1.bf16.xpose.msra.mxu0 %v8005
  %8011 = vmatprep.subr.bf16.mxu0 0
  %8012 = vmatpush1.bf16.xpose.msra.mxu0 0
  %8013 = vmatprep.subr.bf16.mxu0 0
  %8014 = vmatpush1.bf16.xpose.msra.mxu0 0
  %8015 = vmatprep.subr.bf16.mxu0 0
  %8016 = vmatpush1.bf16.xpose.msra.mxu0 0
  %8017 = vmatprep.subr.bf16.mxu0 0
  %8018 = vmatpush1.bf16.xpose.msra.mxu0 0
  %8019 = vmatprep.subr.bf16.mxu0 0
  %8020 = vmatpush1.bf16.xpose.msra.mxu0 0
  %8021 = vmatprep.subr.bf16.mxu0 0
  %8022 = vmatpush1.bf16.xpose.msra.mxu0 0
  %8023 = vmatprep.subr.bf16.mxu0 0
  %8024 = vmatpush1.bf16.xpose.msra.mxu0 0
  %8025 = vmatprep.subr.bf16.mxu0 0
  %8026 = vmatpush1.bf16.xpose.msra.mxu0 0
  %8027 = vmatprep.subr.bf16.mxu0 0
  %8028 = vmatpush1.bf16.xpose.msra.mxu0 0
  %8029 = vmatprep.subr.bf16.mxu0 0
  %8030 = vmatpush1.bf16.xpose.msra.mxu0 0
  %8031 = vmatprep.subr.bf16.mxu0 0
  %8032 = vmatpush1.bf16.xpose.msra.mxu0 0
  %8033 = vmatprep.subr.bf16.mxu0 0
  %8034 = vmatpush1.bf16.xpose.msra.mxu0 0
  %8035 = vmatprep.subr.bf16.mxu0 0
  %8036 = vmatpush1.bf16.xpose.msra.mxu0 0
  %8037 = vmatprep.subr.bf16.mxu0 0
  %8038 = vmatpush1.bf16.xpose.msra.mxu0 0
  %8039 = vmatprep.mubr.bf16.mxu0 0
  %8040 = vmatmul.mubr.bf16.gmra.mrb[0].mxu0 %v7999
  %v8041 = vpop.f32.mrb[0].mxu0
  %v8042 = vadd.f32 0.0, %v8041
  %v8043 = vpop.f32.mrb[0].mxu0
  %v8044 = vpop.f32.mrb[0].mxu0
  %v8045 = vpop.f32.mrb[0].mxu0
  %8046 = vdwg.mxu0
  %8047 = vrot.lane.b32.xlu0 %v7243, 104
  %v8048 = vpop.permute.xlu0 %8047
  %8049 = vrot.lane.b32.xlu0 %v7262, 104
  %v8050 = vpop.permute.xlu0 %8049
  %8051 = vrot.lane.b32.xlu0 %v7263, 104
  %v8052 = vpop.permute.xlu0 %8051
  %v8054 = vsel %vm841, %v8048, 0
  %v8057 = vsel %vm841, %v8050, 0
  %v8060 = vsel %vm841, %v8052, 0
  %8062 = vmatprep.subr.bf16.mxu0 0
  %8063 = vmatpush1.bf16.xpose.msra.mxu0 %v8057
  %8064 = vmatprep.subr.bf16.mxu0 0
  %8065 = vmatpush1.bf16.xpose.msra.mxu0 %v8060
  %8066 = vmatprep.subr.bf16.mxu0 0
  %8067 = vmatpush1.bf16.xpose.msra.mxu0 0
  %8068 = vmatprep.subr.bf16.mxu0 0
  %8069 = vmatpush1.bf16.xpose.msra.mxu0 0
  %8070 = vmatprep.subr.bf16.mxu0 0
  %8071 = vmatpush1.bf16.xpose.msra.mxu0 0
  %8072 = vmatprep.subr.bf16.mxu0 0
  %8073 = vmatpush1.bf16.xpose.msra.mxu0 0
  %8074 = vmatprep.subr.bf16.mxu0 0
  %8075 = vmatpush1.bf16.xpose.msra.mxu0 0
  %8076 = vmatprep.subr.bf16.mxu0 0
  %8077 = vmatpush1.bf16.xpose.msra.mxu0 0
  %8078 = vmatprep.subr.bf16.mxu0 0
  %8079 = vmatpush1.bf16.xpose.msra.mxu0 0
  %8080 = vmatprep.subr.bf16.mxu0 0
  %8081 = vmatpush1.bf16.xpose.msra.mxu0 0
  %8082 = vmatprep.subr.bf16.mxu0 0
  %8083 = vmatpush1.bf16.xpose.msra.mxu0 0
  %8084 = vmatprep.subr.bf16.mxu0 0
  %8085 = vmatpush1.bf16.xpose.msra.mxu0 0
  %8086 = vmatprep.subr.bf16.mxu0 0
  %8087 = vmatpush1.bf16.xpose.msra.mxu0 0
  %8088 = vmatprep.subr.bf16.mxu0 0
  %8089 = vmatpush1.bf16.xpose.msra.mxu0 0
  %8090 = vmatprep.subr.bf16.mxu0 0
  %8091 = vmatpush1.bf16.xpose.msra.mxu0 0
  %8092 = vmatprep.subr.bf16.mxu0 0
  %8093 = vmatpush1.bf16.xpose.msra.mxu0 0
  %8094 = vmatprep.mubr.bf16.mxu0 0
  %8095 = vmatmul.mubr.bf16.gmra.mrb[0].mxu0 %v8054
  %v8096 = vpop.f32.mrb[0].mxu0
  %v8097 = vadd.f32 0.0, %v8096
  %v8098 = vpop.f32.mrb[0].mxu0
  %v8099 = vpop.f32.mrb[0].mxu0
  %v8100 = vpop.f32.mrb[0].mxu0
  %8101 = vdwg.mxu0
  %v8102 = vmul.f32 %v8042, 0.35355338
  %v8103 = vmul.f32 %v8097, 0.35355338
  %v8104 = vadd.f32 %v8102, %v452
  %v8105 = vadd.f32 %v8103, %v452
  %v8106 = vsel %vm2698, %v8104, -inf
  %8107 = vmax.xlane.f32.xlu0 %v8106
  %v8108 = vpop.xlane.xlu0 %8107
  %v8109 = vsel %vm2698, %v8105, -inf
  %8110 = vmax.xlane.f32.xlu0 %v8109
  %v8111 = vpop.xlane.xlu0 %8110
  %v8112 = vsub.f32 %v8104, %v8108
  %v8113 = vsub.f32 %v8105, %v8111
  %v8114 = vmul.f32 %v8112, 1.442695
  %v8115 = vpow.pop %v8114
  %v8116 = vmul.f32 %v8113, 1.442695
  %v8117 = vpow.pop %v8116
  %v8118 = vsel %vm2698, %v8115, 0.0
  %8119 = vadd.xlane.f32.xlu0 %v8118
  %v8120 = vpop.xlane.xlu0 %8119
  %v8121 = vsel %vm2698, %v8117, 0.0
  %8122 = vadd.xlane.f32.xlu0 %v8121
  %v8123 = vpop.xlane.xlu0 %8122
  %v8124 = vrcp.pop %v8120
  %v8125 = vmul.f32 %v8115, %v8124
  %v8126 = vrcp.pop %v8123
  %v8127 = vmul.f32 %v8117, %v8126
  %v8128 = vpack.c.bf16 %v8125, %v8125
  %v8129 = vpack.c.bf16 %v8127, %v8127
  %8130 = vrot.lane.b32.xlu0 %v7280, 104
  %v8131 = vpop.permute.xlu0 %8130
  %8132 = vrot.lane.b32.xlu0 %v7281, 104
  %v8133 = vpop.permute.xlu0 %8132
  %v8136 = vsel %vm2723, %v8128, 0
  %v8139 = vsel %vm2727, %v8133, 0
  %8141 = vmatprep.subr.bf16.mxu0 0
  %8142 = vmatpush1.bf16.msra.mxu0 %v8131
  %8143 = vmatprep.subr.bf16.mxu0 0
  %8144 = vmatpush1.bf16.msra.mxu0 %v8139
  %8145 = vmatprep.subr.bf16.mxu0 0
  %8146 = vmatpush1.bf16.msra.mxu0 0
  %8147 = vmatprep.subr.bf16.mxu0 0
  %8148 = vmatpush1.bf16.msra.mxu0 0
  %8149 = vmatprep.subr.bf16.mxu0 0
  %8150 = vmatpush1.bf16.msra.mxu0 0
  %8151 = vmatprep.subr.bf16.mxu0 0
  %8152 = vmatpush1.bf16.msra.mxu0 0
  %8153 = vmatprep.subr.bf16.mxu0 0
  %8154 = vmatpush1.bf16.msra.mxu0 0
  %8155 = vmatprep.subr.bf16.mxu0 0
  %8156 = vmatpush1.bf16.msra.mxu0 0
  %8157 = vmatprep.subr.bf16.mxu0 0
  %8158 = vmatpush1.bf16.msra.mxu0 0
  %8159 = vmatprep.subr.bf16.mxu0 0
  %8160 = vmatpush1.bf16.msra.mxu0 0
  %8161 = vmatprep.subr.bf16.mxu0 0
  %8162 = vmatpush1.bf16.msra.mxu0 0
  %8163 = vmatprep.subr.bf16.mxu0 0
  %8164 = vmatpush1.bf16.msra.mxu0 0
  %8165 = vmatprep.subr.bf16.mxu0 0
  %8166 = vmatpush1.bf16.msra.mxu0 0
  %8167 = vmatprep.subr.bf16.mxu0 0
  %8168 = vmatpush1.bf16.msra.mxu0 0
  %8169 = vmatprep.subr.bf16.mxu0 0
  %8170 = vmatpush1.bf16.msra.mxu0 0
  %8171 = vmatprep.subr.bf16.mxu0 0
  %8172 = vmatpush1.bf16.msra.mxu0 0
  %8173 = vmatprep.mubr.bf16.mxu0 0
  %8174 = vmatmul.mubr.bf16.gmra.mrb[0].mxu0 %v8136
  %v8175 = vpop.f32.mrb[0].mxu0
  %v8176 = vadd.f32 0.0, %v8175
  %v8177 = vpop.f32.mrb[0].mxu0
  %v8178 = vpop.f32.mrb[0].mxu0
  %v8179 = vpop.f32.mrb[0].mxu0
  %8180 = vdwg.mxu0
  %8181 = vrot.lane.b32.xlu0 %v7282, 104
  %v8182 = vpop.permute.xlu0 %8181
  %8183 = vrot.lane.b32.xlu0 %v7283, 104
  %v8184 = vpop.permute.xlu0 %8183
  %v8187 = vsel %vm2723, %v8129, 0
  %v8190 = vsel %vm2727, %v8184, 0
  %8192 = vmatprep.subr.bf16.mxu0 0
  %8193 = vmatpush1.bf16.msra.mxu0 %v8182
  %8194 = vmatprep.subr.bf16.mxu0 0
  %8195 = vmatpush1.bf16.msra.mxu0 %v8190
  %8196 = vmatprep.subr.bf16.mxu0 0
  %8197 = vmatpush1.bf16.msra.mxu0 0
  %8198 = vmatprep.subr.bf16.mxu0 0
  %8199 = vmatpush1.bf16.msra.mxu0 0
  %8200 = vmatprep.subr.bf16.mxu0 0
  %8201 = vmatpush1.bf16.msra.mxu0 0
  %8202 = vmatprep.subr.bf16.mxu0 0
  %8203 = vmatpush1.bf16.msra.mxu0 0
  %8204 = vmatprep.subr.bf16.mxu0 0
  %8205 = vmatpush1.bf16.msra.mxu0 0
  %8206 = vmatprep.subr.bf16.mxu0 0
  %8207 = vmatpush1.bf16.msra.mxu0 0
  %8208 = vmatprep.subr.bf16.mxu0 0
  %8209 = vmatpush1.bf16.msra.mxu0 0
  %8210 = vmatprep.subr.bf16.mxu0 0
  %8211 = vmatpush1.bf16.msra.mxu0 0
  %8212 = vmatprep.subr.bf16.mxu0 0
  %8213 = vmatpush1.bf16.msra.mxu0 0
  %8214 = vmatprep.subr.bf16.mxu0 0
  %8215 = vmatpush1.bf16.msra.mxu0 0
  %8216 = vmatprep.subr.bf16.mxu0 0
  %8217 = vmatpush1.bf16.msra.mxu0 0
  %8218 = vmatprep.subr.bf16.mxu0 0
  %8219 = vmatpush1.bf16.msra.mxu0 0
  %8220 = vmatprep.subr.bf16.mxu0 0
  %8221 = vmatpush1.bf16.msra.mxu0 0
  %8222 = vmatprep.subr.bf16.mxu0 0
  %8223 = vmatpush1.bf16.msra.mxu0 0
  %8224 = vmatprep.mubr.bf16.mxu0 0
  %8225 = vmatmul.mubr.bf16.gmra.mrb[0].mxu0 %v8187
  %v8226 = vpop.f32.mrb[0].mxu0
  %v8227 = vadd.f32 0.0, %v8226
  %v8228 = vpop.f32.mrb[0].mxu0
  %v8229 = vpop.f32.mrb[0].mxu0
  %v8230 = vpop.f32.mrb[0].mxu0
  %8231 = vdwg.mxu0
  %8234 = vrot.lane.b32.xlu0 %v7694, 8
  %v8235 = vpop.permute.xlu0 %8234
  %8236 = vrot.lane.b32.xlu0 %v7747, 8
  %v8237 = vpop.permute.xlu0 %8236
  %8242 = vrot.lane.b32.xlu0 %v7936, 16
  %v8243 = vpop.permute.xlu0 %8242
  %8244 = vrot.lane.b32.xlu0 %v7987, 16
  %v8245 = vpop.permute.xlu0 %8244
  %8250 = vrot.lane.b32.xlu0 %v8176, 24
  %v8251 = vpop.permute.xlu0 %8250
  %8252 = vrot.lane.b32.xlu0 %v8227, 24
  %v8253 = vpop.permute.xlu0 %8252
  %v8256 = vsel %vm841, %v7451, %v8235
  %v8257 = vsel %vm841, %v7497, %v8237
  %v8258 = vsel %vm1818, %v8256, %v8243
  %v8259 = vsel %vm1818, %v8257, %v8245
  %v8260 = vsel %vm944, %v8258, %v8251
  %v8261 = vsel %vm944, %v8259, %v8253
  %v8262 = vpack.c.bf16 %v8260, %v8260
  %v8263 = vpack.c.bf16 %v8261, %v8261
  %v8266 = vcombine.low %v8262, %v8263
  %v8268 = vunpack.c.l.s4 1983009808
  %v8269 = vunpack.c.0.s8 %v8268
  %v8270 = vlaneseq
  %v8271 = vshrl.u32 %v8270, 7
  %v8272 = vsub.s32 %v8269, %v8271
  %v8273 = vrot.slane %v8266, %v8272
  %v8274 = vunpack.c.h.b16 %v6788
  %v8275 = vunpack.c.h.b16 %v6791
  %v8276 = vunpack.c.h.b16 %v6794
  %v8277 = vunpack.c.h.b16 %v6797
  %v8278 = vpack.c.b16 %v8275, %v8274
  %v8279 = vpack.c.b16 %v8277, %v8276
  %v8283 = vsel %vm514, %v8273, 0
  %8285 = vmatprep.subr.bf16.mxu0 0
  %8286 = vmatpush1.bf16.msra.mxu0 %v8278
  %8287 = vmatprep.subr.bf16.mxu0 0
  %8288 = vmatpush1.bf16.msra.mxu0 %v8279
  %8289 = vmatprep.subr.bf16.mxu0 0
  %8290 = vmatpush1.bf16.msra.mxu0 0
  %8291 = vmatprep.subr.bf16.mxu0 0
  %8292 = vmatpush1.bf16.msra.mxu0 0
  %8293 = vmatprep.subr.bf16.mxu0 0
  %8294 = vmatpush1.bf16.msra.mxu0 0
  %8295 = vmatprep.subr.bf16.mxu0 0
  %8296 = vmatpush1.bf16.msra.mxu0 0
  %8297 = vmatprep.subr.bf16.mxu0 0
  %8298 = vmatpush1.bf16.msra.mxu0 0
  %8299 = vmatprep.subr.bf16.mxu0 0
  %8300 = vmatpush1.bf16.msra.mxu0 0
  %8301 = vmatprep.subr.bf16.mxu0 0
  %8302 = vmatpush1.bf16.msra.mxu0 0
  %8303 = vmatprep.subr.bf16.mxu0 0
  %8304 = vmatpush1.bf16.msra.mxu0 0
  %8305 = vmatprep.subr.bf16.mxu0 0
  %8306 = vmatpush1.bf16.msra.mxu0 0
  %8307 = vmatprep.subr.bf16.mxu0 0
  %8308 = vmatpush1.bf16.msra.mxu0 0
  %8309 = vmatprep.subr.bf16.mxu0 0
  %8310 = vmatpush1.bf16.msra.mxu0 0
  %8311 = vmatprep.subr.bf16.mxu0 0
  %8312 = vmatpush1.bf16.msra.mxu0 0
  %8313 = vmatprep.subr.bf16.mxu0 0
  %8314 = vmatpush1.bf16.msra.mxu0 0
  %8315 = vmatprep.subr.bf16.mxu0 0
  %8316 = vmatpush1.bf16.msra.mxu0 0
  %8317 = vmatprep.mubr.bf16.mxu0 0
  %8318 = vmatmul.mubr.bf16.gmra.mrb[0].mxu0 %v8283
  %v8319 = vpop.f32.mrb[0].mxu0
  %v8320 = vadd.f32 0.0, %v8319
  %v8321 = vpop.f32.mrb[0].mxu0
  %v8322 = vpop.f32.mrb[0].mxu0
  %v8323 = vpop.f32.mrb[0].mxu0
  %8324 = vdwg.mxu0
  %v8326 = vcombine.high %v8320, %v8320
  %v8328 = vadd.f32 %v3893, %v8320
  %v8329 = vadd.f32 %v3894, %v8326
  %v8330 = vlaneseq
  %v8331 = vshrl.u32 %v8330, 7
  %v8332 = vsub.s32 7, %v8331
  %v8333 = vrot.slane %v6817, %v8332
  %v8334 = vadd.f32 %v8328, %v8333
  %v8335 = vadd.f32 %v8329, %v8333
  %v8336 = vsel %vm2153, %v8334, 0.0
  %8337 = vadd.xlane.f32.xlu0 %v8336
  %v8338 = vpop.xlane.xlu0 %8337
  %v8339 = vsel %vm2153, %v8335, 0.0
  %8340 = vadd.xlane.f32.xlu0 %v8339
  %v8341 = vpop.xlane.xlu0 %8340
  %v8342 = vmul.f32 %v8338, %v527
  %v8343 = vmul.f32 %v8341, %v527
  %v8344 = vsub.f32 %v8334, %v8342
  %v8345 = vsub.f32 %v8335, %v8343
  %v8346 = vmul.f32 %v8344, %v8344
  %v8347 = vmul.f32 %v8345, %v8345
  %v8348 = vsel %vm2153, %v8346, 0.0
  %8349 = vadd.xlane.f32.xlu0 %v8348
  %v8350 = vpop.xlane.xlu0 %8349
  %v8351 = vsel %vm2153, %v8347, 0.0
  %8352 = vadd.xlane.f32.xlu0 %v8351
  %v8353 = vpop.xlane.xlu0 %8352
  %v8354 = vmul.f32 %v8350, %v527
  %v8355 = vmul.f32 %v8353, %v527
  %v8356 = vadd.f32 %v8354, 1e-05
  %v8357 = vadd.f32 %v8355, 1e-05
  %v8358 = vrsqrt.pop %v8356
  %v8359 = vrsqrt.pop %v8357
  %v8360 = vmul.f32 %v8344, %v8358
  %v8361 = vmul.f32 %v8345, %v8359
  %v8362 = vlaneseq
  %v8363 = vshrl.u32 %v8362, 7
  %v8364 = vsub.s32 2, %v8363
  %v8365 = vrot.slane %v6817, %v8364
  %v8366 = vmul.f32 %v8360, %v8365
  %v8367 = vmul.f32 %v8361, %v8365
  %v8368 = vlaneseq
  %v8369 = vshrl.u32 %v8368, 7
  %v8370 = vsub.s32 3, %v8369
  %v8371 = vrot.slane %v6817, %v8370
  %v8372 = vadd.f32 %v8366, %v8371
  %v8373 = vadd.f32 %v8367, %v8371
  %v8374 = vpack.c.bf16 %v8372, %v8372
  %v8375 = vpack.c.bf16 %v8373, %v8373
  %v8378 = vcombine.low %v8374, %v8375
  %v8380 = vunpack.c.l.s4 1983009808
  %v8381 = vunpack.c.0.s8 %v8380
  %v8382 = vlaneseq
  %v8383 = vshrl.u32 %v8382, 7
  %v8384 = vsub.s32 %v8381, %v8383
  %v8385 = vrot.slane %v8378, %v8384
  %v8390 = vunpack.c.l.b16 %v6789
  %v8391 = vunpack.c.l.b16 %v6792
  %v8392 = vunpack.c.l.b16 %v6795
  %v8393 = vunpack.c.l.b16 %v6798
  %v8394 = vpack.c.b16 %v8391, %v8390
  %v8395 = vpack.c.b16 %v8393, %v8392
  %v8399 = vsel %vm514, %v8385, 0
  %8401 = vmatprep.subr.bf16.mxu0 0
  %8402 = vmatpush1.bf16.msra.mxu0 %v8394
  %8403 = vmatprep.subr.bf16.mxu0 0
  %8404 = vmatpush1.bf16.msra.mxu0 %v8395
  %8405 = vmatprep.subr.bf16.mxu0 0
  %8406 = vmatpush1.bf16.msra.mxu0 0
  %8407 = vmatprep.subr.bf16.mxu0 0
  %8408 = vmatpush1.bf16.msra.mxu0 0
  %8409 = vmatprep.subr.bf16.mxu0 0
  %8410 = vmatpush1.bf16.msra.mxu0 0
  %8411 = vmatprep.subr.bf16.mxu0 0
  %8412 = vmatpush1.bf16.msra.mxu0 0
  %8413 = vmatprep.subr.bf16.mxu0 0
  %8414 = vmatpush1.bf16.msra.mxu0 0
  %8415 = vmatprep.subr.bf16.mxu0 0
  %8416 = vmatpush1.bf16.msra.mxu0 0
  %8417 = vmatprep.subr.bf16.mxu0 0
  %8418 = vmatpush1.bf16.msra.mxu0 0
  %8419 = vmatprep.subr.bf16.mxu0 0
  %8420 = vmatpush1.bf16.msra.mxu0 0
  %8421 = vmatprep.subr.bf16.mxu0 0
  %8422 = vmatpush1.bf16.msra.mxu0 0
  %8423 = vmatprep.subr.bf16.mxu0 0
  %8424 = vmatpush1.bf16.msra.mxu0 0
  %8425 = vmatprep.subr.bf16.mxu0 0
  %8426 = vmatpush1.bf16.msra.mxu0 0
  %8427 = vmatprep.subr.bf16.mxu0 0
  %8428 = vmatpush1.bf16.msra.mxu0 0
  %8429 = vmatprep.subr.bf16.mxu0 0
  %8430 = vmatpush1.bf16.msra.mxu0 0
  %8431 = vmatprep.subr.bf16.mxu0 0
  %8432 = vmatpush1.bf16.msra.mxu0 0
  %8433 = vmatprep.mubr.bf16.mxu0 0
  %8434 = vmatmul.mubr.bf16.gmra.mrb[0].mxu0 %v8399
  %v8435 = vpop.f32.mrb[0].mxu0
  %v8436 = vadd.f32 0.0, %v8435
  %v8437 = vpop.f32.mrb[0].mxu0
  %v8438 = vpop.f32.mrb[0].mxu0
  %v8439 = vpop.f32.mrb[0].mxu0
  %8440 = vdwg.mxu0
  %v8442 = vcombine.high %v8436, %v8436
  %v8444 = vlaneseq
  %v8445 = vshrl.u32 %v8444, 7
  %v8446 = vsub.s32 0, %v8445
  %v8447 = vrot.slane %v6818, %v8446
  %v8448 = vadd.f32 %v8436, %v8447
  %v8449 = vadd.f32 %v8442, %v8447
  %v8450 = vmul.f32 %v8448, %v8448
  %v8451 = vmul.f32 %v8449, %v8449
  %v8452 = vmul.f32 %v8448, %v8450
  %v8453 = vmul.f32 %v8449, %v8451
  %v8454 = vmul.f32 %v8452, 0.044715
  %v8455 = vmul.f32 %v8453, 0.044715
  %v8456 = vadd.f32 %v8448, %v8454
  %v8457 = vadd.f32 %v8449, %v8455
  %v8458 = vmul.f32 %v8456, 0.7978846
  %v8459 = vmul.f32 %v8457, 0.7978846
  %v8460 = vtanh.pop %v8458
  %v8461 = vtanh.pop %v8459
  %v8462 = vadd.f32 %v8460, 1.0
  %v8463 = vadd.f32 %v8461, 1.0
  %v8464 = vmul.f32 %v8462, 0.5
  %v8465 = vmul.f32 %v8463, 0.5
  %v8466 = vmul.f32 %v8448, %v8464
  %v8467 = vmul.f32 %v8449, %v8465
  %v8468 = vpack.c.bf16 %v8466, %v8466
  %v8469 = vpack.c.bf16 %v8467, %v8467
  %v8472 = vcombine.low %v8468, %v8469
  %v8474 = vunpack.c.l.s4 1983009808
  %v8475 = vunpack.c.0.s8 %v8474
  %v8476 = vlaneseq
  %v8477 = vshrl.u32 %v8476, 7
  %v8478 = vsub.s32 %v8475, %v8477
  %v8479 = vrot.slane %v8472, %v8478
  %v8497 = vunpack.c.l.b16 %v6800
  %v8498 = vunpack.c.l.b16 %v6801
  %v8499 = vunpack.c.l.b16 %v6802
  %v8500 = vunpack.c.l.b16 %v6803
  %v8501 = vunpack.c.l.b16 %v6804
  %v8502 = vunpack.c.l.b16 %v6805
  %v8503 = vunpack.c.l.b16 %v6806
  %v8504 = vunpack.c.l.b16 %v6807
  %v8505 = vunpack.c.l.b16 %v6808
  %v8506 = vunpack.c.l.b16 %v6809
  %v8507 = vunpack.c.l.b16 %v6810
  %v8508 = vunpack.c.l.b16 %v6811
  %v8509 = vunpack.c.l.b16 %v6812
  %v8510 = vunpack.c.l.b16 %v6813
  %v8511 = vunpack.c.l.b16 %v6814
  %v8512 = vunpack.c.l.b16 %v6815
  %v8513 = vpack.c.b16 %v8498, %v8497
  %v8514 = vpack.c.b16 %v8500, %v8499
  %v8515 = vpack.c.b16 %v8502, %v8501
  %v8516 = vpack.c.b16 %v8504, %v8503
  %v8517 = vpack.c.b16 %v8506, %v8505
  %v8518 = vpack.c.b16 %v8508, %v8507
  %v8519 = vpack.c.b16 %v8510, %v8509
  %v8520 = vpack.c.b16 %v8512, %v8511
  %8529 = vmatprep.subr.bf16.mxu0 0
  %8530 = vmatpush1.bf16.msra.mxu0 %v8513
  %8531 = vmatprep.subr.bf16.mxu0 0
  %8532 = vmatpush1.bf16.msra.mxu0 %v8514
  %8533 = vmatprep.subr.bf16.mxu0 0
  %8534 = vmatpush1.bf16.msra.mxu0 %v8515
  %8535 = vmatprep.subr.bf16.mxu0 0
  %8536 = vmatpush1.bf16.msra.mxu0 %v8516
  %8537 = vmatprep.subr.bf16.mxu0 0
  %8538 = vmatpush1.bf16.msra.mxu0 %v8517
  %8539 = vmatprep.subr.bf16.mxu0 0
  %8540 = vmatpush1.bf16.msra.mxu0 %v8518
  %8541 = vmatprep.subr.bf16.mxu0 0
  %8542 = vmatpush1.bf16.msra.mxu0 %v8519
  %8543 = vmatprep.subr.bf16.mxu0 0
  %8544 = vmatpush1.bf16.msra.mxu0 %v8520
  %8545 = vmatprep.subr.bf16.mxu0 0
  %8546 = vmatpush1.bf16.msra.mxu0 0
  %8547 = vmatprep.subr.bf16.mxu0 0
  %8548 = vmatpush1.bf16.msra.mxu0 0
  %8549 = vmatprep.subr.bf16.mxu0 0
  %8550 = vmatpush1.bf16.msra.mxu0 0
  %8551 = vmatprep.subr.bf16.mxu0 0
  %8552 = vmatpush1.bf16.msra.mxu0 0
  %8553 = vmatprep.subr.bf16.mxu0 0
  %8554 = vmatpush1.bf16.msra.mxu0 0
  %8555 = vmatprep.subr.bf16.mxu0 0
  %8556 = vmatpush1.bf16.msra.mxu0 0
  %8557 = vmatprep.subr.bf16.mxu0 0
  %8558 = vmatpush1.bf16.msra.mxu0 0
  %8559 = vmatprep.subr.bf16.mxu0 0
  %8560 = vmatpush1.bf16.msra.mxu0 0
  %8561 = vmatprep.mubr.bf16.mxu0 0
  %8562 = vmatmul.mubr.bf16.gmra.mrb[0].mxu0 %v8479
  %v8563 = vpop.f32.mrb[0].mxu0
  %v8564 = vadd.f32 0.0, %v8563
  %v8565 = vpop.f32.mrb[0].mxu0
  %v8566 = vpop.f32.mrb[0].mxu0
  %v8567 = vpop.f32.mrb[0].mxu0
  %8568 = vdwg.mxu0
  %v8570 = vcombine.high %v8564, %v8564
  %v8572 = vadd.f32 %v8334, %v8564
  %v8573 = vadd.f32 %v8335, %v8570
  %v8574 = vlaneseq
  %v8575 = vshrl.u32 %v8574, 7
  %v8576 = vsub.s32 1, %v8575
  %v8577 = vrot.slane %v6818, %v8576
  %v8578 = vadd.f32 %v8572, %v8577
  %v8579 = vadd.f32 %v8573, %v8577
  %s8580 = scalar_lea.vmem %s7, 64
  %v8581 = vld [vmem:[%s8580] sm:$0xff]
  %v8582 = vld [vmem:[%s8580 + $0x8] sm:$0xff]
  %v8583 = vld [vmem:[%s8580 + $0x10] sm:$0xff]
  %v8584 = vld [vmem:[%s8580 + $0x18] sm:$0xff]
  %v8585 = vld [vmem:[%s8580 + $0x20] sm:$0xff]
  %v8586 = vld [vmem:[%s8580 + $0x28] sm:$0xff]
  %v8587 = vld [vmem:[%s8580 + $0x30] sm:$0xff]
  %v8588 = vld [vmem:[%s8580 + $0x38] sm:$0xff]
  %s8589 = scalar_lea.vmem %s8, 4
  %v8590 = vld [vmem:[%s8589] sm:$0xf]
  %s8591 = scalar_lea.vmem %s9, 16
  %v8592 = vld [vmem:[%s8591] sm:$0xf]
  %v8593 = vld [vmem:[%s8591 + $0x4] sm:$0xf]
  %v8594 = vld [vmem:[%s8591 + $0x8] sm:$0xf]
  %v8595 = vld [vmem:[%s8591 + $0xc] sm:$0xf]
  %s8596 = scalar_lea.vmem %s10, 16
  %v8597 = vld [vmem:[%s8596] sm:$0xff]
  %v8598 = vld [vmem:[%s8596 + $0x8] sm:$0xf]
  %v8599 = vlaneseq
  %v8600 = vshrl.u32 %v8599, 7
  %v8601 = vsub.s32 0, %v8600
  %v8602 = vrot.slane %v8597, %v8601
  %v8603 = vmul.f32 %v5224, %v8602
  %v8604 = vmul.f32 %v5225, %v8602
  %v8605 = vmul.f32 %v5227, %v8602
  %v8606 = vmul.f32 %v5228, %v8602
  %v8607 = vlaneseq
  %v8608 = vshrl.u32 %v8607, 7
  %v8609 = vsub.s32 1, %v8608
  %v8610 = vrot.slane %v8597, %v8609
  %v8611 = vadd.f32 %v8603, %v8610
  %v8612 = vadd.f32 %v8604, %v8610
  %v8613 = vadd.f32 %v8605, %v8610
  %v8614 = vadd.f32 %v8606, %v8610
  %v8615 = vpack.c.bf16 %v8612, %v8611
  %v8616 = vpack.c.bf16 %v8614, %v8613
  %v8617 = vlaneseq
  %v8618 = vshrl.u32 %v8617, 7
  %v8619 = vsub.s32 2, %v8618
  %v8620 = vrot.slane %v8597, %v8619
  %v8621 = vmul.f32 %v5226, %v8620
  %v8622 = vmul.f32 %v6843, %v8620
  %v8623 = vmul.f32 %v5229, %v8620
  %v8624 = vmul.f32 %v6844, %v8620
  %v8625 = vlaneseq
  %v8626 = vshrl.u32 %v8625, 7
  %v8627 = vsub.s32 3, %v8626
  %v8628 = vrot.slane %v8597, %v8627
  %v8629 = vadd.f32 %v8621, %v8628
  %v8630 = vadd.f32 %v8622, %v8628
  %v8631 = vadd.f32 %v8623, %v8628
  %v8632 = vadd.f32 %v8624, %v8628
  %v8633 = vpack.c.bf16 %v8630, %v8629
  %v8634 = vpack.c.bf16 %v8632, %v8631
  %v8639 = vunpack.c.l.b16 %v8581
  %v8640 = vunpack.c.l.b16 %v8583
  %v8641 = vunpack.c.l.b16 %v8585
  %v8642 = vunpack.c.l.b16 %v8587
  %v8643 = vpack.c.b16 %v8640, %v8639
  %v8644 = vpack.c.b16 %v8642, %v8641
  %v8648 = vsel %vm514, %v8615, 0
  %v8651 = vsel %vm514, %v8616, 0
  %8653 = vmatprep.subr.bf16.mxu0 0
  %8654 = vmatpush1.bf16.msra.mxu0 %v8643
  %8655 = vmatprep.subr.bf16.mxu0 0
  %8656 = vmatpush1.bf16.msra.mxu0 %v8644
  %8657 = vmatprep.subr.bf16.mxu0 0
  %8658 = vmatpush1.bf16.msra.mxu0 0
  %8659 = vmatprep.subr.bf16.mxu0 0
  %8660 = vmatpush1.bf16.msra.mxu0 0
  %8661 = vmatprep.subr.bf16.mxu0 0
  %8662 = vmatpush1.bf16.msra.mxu0 0
  %8663 = vmatprep.subr.bf16.mxu0 0
  %8664 = vmatpush1.bf16.msra.mxu0 0
  %8665 = vmatprep.subr.bf16.mxu0 0
  %8666 = vmatpush1.bf16.msra.mxu0 0
  %8667 = vmatprep.subr.bf16.mxu0 0
  %8668 = vmatpush1.bf16.msra.mxu0 0
  %8669 = vmatprep.subr.bf16.mxu0 0
  %8670 = vmatpush1.bf16.msra.mxu0 0
  %8671 = vmatprep.subr.bf16.mxu0 0
  %8672 = vmatpush1.bf16.msra.mxu0 0
  %8673 = vmatprep.subr.bf16.mxu0 0
  %8674 = vmatpush1.bf16.msra.mxu0 0
  %8675 = vmatprep.subr.bf16.mxu0 0
  %8676 = vmatpush1.bf16.msra.mxu0 0
  %8677 = vmatprep.subr.bf16.mxu0 0
  %8678 = vmatpush1.bf16.msra.mxu0 0
  %8679 = vmatprep.subr.bf16.mxu0 0
  %8680 = vmatpush1.bf16.msra.mxu0 0
  %8681 = vmatprep.subr.bf16.mxu0 0
  %8682 = vmatpush1.bf16.msra.mxu0 0
  %8683 = vmatprep.subr.bf16.mxu0 0
  %8684 = vmatpush1.bf16.msra.mxu0 0
  %8685 = vmatprep.mubr.bf16.mxu0 0
  %8686 = vmatmul.mubr.bf16.gmra.mrb[0].mxu0 %v8648
  %v8687 = vpop.f32.mrb[0].mxu0
  %v8688 = vadd.f32 0.0, %v8687
  %v8689 = vpop.f32.mrb[0].mxu0
  %v8690 = vpop.f32.mrb[0].mxu0
  %v8691 = vadd.f32 0.0, %v8690
  %v8692 = vpop.f32.mrb[0].mxu0
  %8693 = vmatprep.mubr.bf16.mxu0 0
  %8694 = vmatmul.mubr.bf16.gmra.mrb[0].mxu0 %v8651
  %v8695 = vpop.f32.mrb[0].mxu0
  %v8696 = vadd.f32 0.0, %v8695
  %v8697 = vpop.f32.mrb[0].mxu0
  %v8698 = vpop.f32.mrb[0].mxu0
  %v8699 = vadd.f32 0.0, %v8698
  %v8700 = vpop.f32.mrb[0].mxu0
  %8701 = vdwg.mxu0
  %v8702 = vlaneseq
  %v8703 = vshrl.u32 %v8702, 7
  %v8704 = vsub.s32 6, %v8703
  %v8705 = vrot.slane %v8597, %v8704
  %v8706 = vadd.f32 %v8688, %v8705
  %v8707 = vadd.f32 %v8691, %v8705
  %v8708 = vadd.f32 %v8696, %v8705
  %v8709 = vadd.f32 %v8699, %v8705
  %v8712 = vcombine.high %v8633, %v8633
  %v8714 = vunpack.c.l.s4 1983009808
  %v8715 = vunpack.c.0.s8 %v8714
  %v8716 = vlaneseq
  %v8717 = vshrl.u32 %v8716, 7
  %v8718 = vsub.s32 %v8715, %v8717
  %v8719 = vrot.slane %v8633, %v8718
  %v8721 = vunpack.c.l.s4 1983009808
  %v8722 = vunpack.c.0.s8 %v8721
  %v8723 = vlaneseq
  %v8724 = vshrl.u32 %v8723, 7
  %v8725 = vsub.s32 %v8722, %v8724
  %v8726 = vrot.slane %v8712, %v8725
  %v8727 = vcombine.high %v8719, %v8719
  %v8728 = vcombine.high %v8634, %v8634
  %v8730 = vunpack.c.l.s4 1983009808
  %v8731 = vunpack.c.0.s8 %v8730
  %v8732 = vlaneseq
  %v8733 = vshrl.u32 %v8732, 7
  %v8734 = vsub.s32 %v8731, %v8733
  %v8735 = vrot.slane %v8634, %v8734
  %v8737 = vunpack.c.l.s4 1983009808
  %v8738 = vunpack.c.0.s8 %v8737
  %v8739 = vlaneseq
  %v8740 = vshrl.u32 %v8739, 7
  %v8741 = vsub.s32 %v8738, %v8740
  %v8742 = vrot.slane %v8728, %v8741
  %v8743 = vcombine.high %v8735, %v8735
  %v8744 = vcombine.low %v8719, %v8727
  %v8745 = vcombine.low %v8726, %v8735
  %v8747 = vunpack.c.l.s4 1983009808
  %v8748 = vunpack.c.0.s8 %v8747
  %v8749 = vlaneseq
  %v8750 = vshrl.u32 %v8749, 7
  %v8751 = vsub.s32 %v8748, %v8750
  %v8752 = vrot.slane %v8744, %v8751
  %v8754 = vunpack.c.l.s4 1983009808
  %v8755 = vunpack.c.0.s8 %v8754
  %v8756 = vlaneseq
  %v8757 = vshrl.u32 %v8756, 7
  %v8758 = vsub.s32 %v8755, %v8757
  %v8759 = vrot.slane %v8745, %v8758
  %v8760 = vcombine.low %v8752, %v8759
  %v8761 = vcombine.low %v8743, %v8742
  %v8763 = vunpack.c.l.s4 1983009808
  %v8764 = vunpack.c.0.s8 %v8763
  %v8765 = vlaneseq
  %v8766 = vshrl.u32 %v8765, 7
  %v8767 = vsub.s32 %v8764, %v8766
  %v8768 = vrot.slane %v8761, %v8767
  %v8769 = vunpack.c.h.b16 %v8581
  %v8770 = vunpack.c.h.b16 %v8583
  %v8771 = vunpack.c.h.b16 %v8585
  %v8772 = vunpack.c.h.b16 %v8587
  %v8773 = vpack.c.b16 %v8770, %v8769
  %v8774 = vpack.c.b16 %v8772, %v8771
  %v8778 = vsel %vm514, %v8760, 0
  %v8781 = vsel %vm514, %v8768, 0
  %8783 = vmatprep.subr.bf16.mxu0 0
  %8784 = vmatpush1.bf16.msra.mxu0 %v8773
  %8785 = vmatprep.subr.bf16.mxu0 0
  %8786 = vmatpush1.bf16.msra.mxu0 %v8774
  %8787 = vmatprep.subr.bf16.mxu0 0
  %8788 = vmatpush1.bf16.msra.mxu0 0
  %8789 = vmatprep.subr.bf16.mxu0 0
  %8790 = vmatpush1.bf16.msra.mxu0 0
  %8791 = vmatprep.subr.bf16.mxu0 0
  %8792 = vmatpush1.bf16.msra.mxu0 0
  %8793 = vmatprep.subr.bf16.mxu0 0
  %8794 = vmatpush1.bf16.msra.mxu0 0
  %8795 = vmatprep.subr.bf16.mxu0 0
  %8796 = vmatpush1.bf16.msra.mxu0 0
  %8797 = vmatprep.subr.bf16.mxu0 0
  %8798 = vmatpush1.bf16.msra.mxu0 0
  %8799 = vmatprep.subr.bf16.mxu0 0
  %8800 = vmatpush1.bf16.msra.mxu0 0
  %8801 = vmatprep.subr.bf16.mxu0 0
  %8802 = vmatpush1.bf16.msra.mxu0 0
  %8803 = vmatprep.subr.bf16.mxu0 0
  %8804 = vmatpush1.bf16.msra.mxu0 0
  %8805 = vmatprep.subr.bf16.mxu0 0
  %8806 = vmatpush1.bf16.msra.mxu0 0
  %8807 = vmatprep.subr.bf16.mxu0 0
  %8808 = vmatpush1.bf16.msra.mxu0 0
  %8809 = vmatprep.subr.bf16.mxu0 0
  %8810 = vmatpush1.bf16.msra.mxu0 0
  %8811 = vmatprep.subr.bf16.mxu0 0
  %8812 = vmatpush1.bf16.msra.mxu0 0
  %8813 = vmatprep.subr.bf16.mxu0 0
  %8814 = vmatpush1.bf16.msra.mxu0 0
  %8815 = vmatprep.mubr.bf16.mxu0 0
  %8816 = vmatmul.mubr.bf16.gmra.mrb[0].mxu0 %v8778
  %v8817 = vpop.f32.mrb[0].mxu0
  %v8818 = vadd.f32 0.0, %v8817
  %v8819 = vpop.f32.mrb[0].mxu0
  %v8820 = vpop.f32.mrb[0].mxu0
  %v8821 = vadd.f32 0.0, %v8820
  %v8822 = vpop.f32.mrb[0].mxu0
  %8823 = vmatprep.mubr.bf16.mxu0 0
  %8824 = vmatmul.mubr.bf16.gmra.mrb[0].mxu0 %v8781
  %v8825 = vpop.f32.mrb[0].mxu0
  %v8826 = vadd.f32 0.0, %v8825
  %v8827 = vpop.f32.mrb[0].mxu0
  %v8828 = vpop.f32.mrb[0].mxu0
  %v8829 = vpop.f32.mrb[0].mxu0
  %8830 = vdwg.mxu0
  %v8834 = vcombine.high %v8818, %v8818
  %v8835 = vcombine.high %v8821, %v8821
  %v8836 = vcombine.high %v8826, %v8826
  %v8840 = vlaneseq
  %v8841 = vshrl.u32 %v8840, 7
  %v8842 = vsub.s32 7, %v8841
  %v8843 = vrot.slane %v8597, %v8842
  %v8845 = vcombine.high %v8843, %v8843
  %v8847 = vadd.f32 %v8818, %v8843
  %v8848 = vadd.f32 %v8834, %v8845
  %v8849 = vadd.f32 %v8821, %v8843
  %v8850 = vadd.f32 %v8835, %v8843
  %v8851 = vadd.f32 %v8826, %v8845
  %v8852 = vadd.f32 %v8836, %v8843
  %v8857 = vunpack.c.l.b16 %v8582
  %v8858 = vunpack.c.l.b16 %v8584
  %v8859 = vunpack.c.l.b16 %v8586
  %v8860 = vunpack.c.l.b16 %v8588
  %v8861 = vpack.c.b16 %v8858, %v8857
  %v8862 = vpack.c.b16 %v8860, %v8859
  %8865 = vmatprep.subr.bf16.mxu0 0
  %8866 = vmatpush1.bf16.msra.mxu0 %v8861
  %8867 = vmatprep.subr.bf16.mxu0 0
  %8868 = vmatpush1.bf16.msra.mxu0 %v8862
  %8869 = vmatprep.subr.bf16.mxu0 0
  %8870 = vmatpush1.bf16.msra.mxu0 0
  %8871 = vmatprep.subr.bf16.mxu0 0
  %8872 = vmatpush1.bf16.msra.mxu0 0
  %8873 = vmatprep.subr.bf16.mxu0 0
  %8874 = vmatpush1.bf16.msra.mxu0 0
  %8875 = vmatprep.subr.bf16.mxu0 0
  %8876 = vmatpush1.bf16.msra.mxu0 0
  %8877 = vmatprep.subr.bf16.mxu0 0
  %8878 = vmatpush1.bf16.msra.mxu0 0
  %8879 = vmatprep.subr.bf16.mxu0 0
  %8880 = vmatpush1.bf16.msra.mxu0 0
  %8881 = vmatprep.subr.bf16.mxu0 0
  %8882 = vmatpush1.bf16.msra.mxu0 0
  %8883 = vmatprep.subr.bf16.mxu0 0
  %8884 = vmatpush1.bf16.msra.mxu0 0
  %8885 = vmatprep.subr.bf16.mxu0 0
  %8886 = vmatpush1.bf16.msra.mxu0 0
  %8887 = vmatprep.subr.bf16.mxu0 0
  %8888 = vmatpush1.bf16.msra.mxu0 0
  %8889 = vmatprep.subr.bf16.mxu0 0
  %8890 = vmatpush1.bf16.msra.mxu0 0
  %8891 = vmatprep.subr.bf16.mxu0 0
  %8892 = vmatpush1.bf16.msra.mxu0 0
  %8893 = vmatprep.subr.bf16.mxu0 0
  %8894 = vmatpush1.bf16.msra.mxu0 0
  %8895 = vmatprep.subr.bf16.mxu0 0
  %8896 = vmatpush1.bf16.msra.mxu0 0
  %8897 = vmatprep.mubr.bf16.mxu0 0
  %8898 = vmatmul.mubr.bf16.gmra.mrb[0].mxu0 %v8778
  %v8899 = vpop.f32.mrb[0].mxu0
  %v8900 = vadd.f32 0.0, %v8899
  %v8901 = vpop.f32.mrb[0].mxu0
  %v8902 = vpop.f32.mrb[0].mxu0
  %v8903 = vadd.f32 0.0, %v8902
  %v8904 = vpop.f32.mrb[0].mxu0
  %8905 = vmatprep.mubr.bf16.mxu0 0
  %8906 = vmatmul.mubr.bf16.gmra.mrb[0].mxu0 %v8781
  %v8907 = vpop.f32.mrb[0].mxu0
  %v8908 = vadd.f32 0.0, %v8907
  %v8909 = vpop.f32.mrb[0].mxu0
  %v8910 = vpop.f32.mrb[0].mxu0
  %v8911 = vpop.f32.mrb[0].mxu0
  %8912 = vdwg.mxu0
  %v8916 = vcombine.high %v8900, %v8900
  %v8917 = vcombine.high %v8903, %v8903
  %v8918 = vcombine.high %v8908, %v8908
  %v8922 = vlaneseq
  %v8923 = vshrl.u32 %v8922, 7
  %v8924 = vsub.s32 0, %v8923
  %v8925 = vrot.slane %v8598, %v8924
  %v8927 = vcombine.high %v8925, %v8925
  %v8929 = vadd.f32 %v8900, %v8925
  %v8930 = vadd.f32 %v8916, %v8927
  %v8931 = vadd.f32 %v8903, %v8925
  %v8932 = vadd.f32 %v8917, %v8925
  %v8933 = vadd.f32 %v8908, %v8927
  %v8934 = vadd.f32 %v8918, %v8925
  %v8935 = vpack.c.bf16 %v8707, %v8706
  %v8936 = vpack.c.bf16 %v8709, %v8708
  %v8941 = vcombine.low %v8847, %v8848
  %v8942 = vcombine.low %v8850, %v8851
  %v8945 = vpack.c.bf16 %v8849, %v8941
  %v8946 = vpack.c.bf16 %v8852, %v8942
  %v8951 = vcombine.low %v8929, %v8930
  %v8952 = vcombine.low %v8932, %v8933
  %v8955 = vpack.c.bf16 %v8931, %v8951
  %v8956 = vpack.c.bf16 %v8934, %v8952
  %v8958 = vsel %vm4260, %v8935, 0
  %v8961 = vsel %vm4260, %v8945, 0
  %8963 = vmatprep.subr.bf16.mxu0 0
  %8964 = vmatpush1.bf16.xpose.msra.mxu0 %v8961
  %8965 = vmatprep.subr.bf16.mxu0 0
  %8966 = vmatpush1.bf16.xpose.msra.mxu0 0
  %8967 = vmatprep.subr.bf16.mxu0 0
  %8968 = vmatpush1.bf16.xpose.msra.mxu0 0
  %8969 = vmatprep.subr.bf16.mxu0 0
  %8970 = vmatpush1.bf16.xpose.msra.mxu0 0
  %8971 = vmatprep.subr.bf16.mxu0 0
  %8972 = vmatpush1.bf16.xpose.msra.mxu0 0
  %8973 = vmatprep.subr.bf16.mxu0 0
  %8974 = vmatpush1.bf16.xpose.msra.mxu0 0
  %8975 = vmatprep.subr.bf16.mxu0 0
  %8976 = vmatpush1.bf16.xpose.msra.mxu0 0
  %8977 = vmatprep.subr.bf16.mxu0 0
  %8978 = vmatpush1.bf16.xpose.msra.mxu0 0
  %8979 = vmatprep.subr.bf16.mxu0 0
  %8980 = vmatpush1.bf16.xpose.msra.mxu0 0
  %8981 = vmatprep.subr.bf16.mxu0 0
  %8982 = vmatpush1.bf16.xpose.msra.mxu0 0
  %8983 = vmatprep.subr.bf16.mxu0 0
  %8984 = vmatpush1.bf16.xpose.msra.mxu0 0
  %8985 = vmatprep.subr.bf16.mxu0 0
  %8986 = vmatpush1.bf16.xpose.msra.mxu0 0
  %8987 = vmatprep.subr.bf16.mxu0 0
  %8988 = vmatpush1.bf16.xpose.msra.mxu0 0
  %8989 = vmatprep.subr.bf16.mxu0 0
  %8990 = vmatpush1.bf16.xpose.msra.mxu0 0
  %8991 = vmatprep.subr.bf16.mxu0 0
  %8992 = vmatpush1.bf16.xpose.msra.mxu0 0
  %8993 = vmatprep.subr.bf16.mxu0 0
  %8994 = vmatpush1.bf16.xpose.msra.mxu0 0
  %8995 = vmatprep.mubr.bf16.mxu0 0
  %8996 = vmatmul.mubr.bf16.gmra.mrb[0].mxu0 %v8958
  %v8997 = vpop.f32.mrb[0].mxu0
  %v8998 = vadd.f32 0.0, %v8997
  %v8999 = vpop.f32.mrb[0].mxu0
  %v9000 = vpop.f32.mrb[0].mxu0
  %v9001 = vadd.f32 0.0, %v9000
  %v9002 = vpop.f32.mrb[0].mxu0
  %9003 = vdwg.mxu0
  %v9005 = vsel %vm4260, %v8936, 0
  %v9008 = vsel %vm4260, %v8946, 0
  %9010 = vmatprep.subr.bf16.mxu0 0
  %9011 = vmatpush1.bf16.xpose.msra.mxu0 %v9008
  %9012 = vmatprep.subr.bf16.mxu0 0
  %9013 = vmatpush1.bf16.xpose.msra.mxu0 0
  %9014 = vmatprep.subr.bf16.mxu0 0
  %9015 = vmatpush1.bf16.xpose.msra.mxu0 0
  %9016 = vmatprep.subr.bf16.mxu0 0
  %9017 = vmatpush1.bf16.xpose.msra.mxu0 0
  %9018 = vmatprep.subr.bf16.mxu0 0
  %9019 = vmatpush1.bf16.xpose.msra.mxu0 0
  %9020 = vmatprep.subr.bf16.mxu0 0
  %9021 = vmatpush1.bf16.xpose.msra.mxu0 0
  %9022 = vmatprep.subr.bf16.mxu0 0
  %9023 = vmatpush1.bf16.xpose.msra.mxu0 0
  %9024 = vmatprep.subr.bf16.mxu0 0
  %9025 = vmatpush1.bf16.xpose.msra.mxu0 0
  %9026 = vmatprep.subr.bf16.mxu0 0
  %9027 = vmatpush1.bf16.xpose.msra.mxu0 0
  %9028 = vmatprep.subr.bf16.mxu0 0
  %9029 = vmatpush1.bf16.xpose.msra.mxu0 0
  %9030 = vmatprep.subr.bf16.mxu0 0
  %9031 = vmatpush1.bf16.xpose.msra.mxu0 0
  %9032 = vmatprep.subr.bf16.mxu0 0
  %9033 = vmatpush1.bf16.xpose.msra.mxu0 0
  %9034 = vmatprep.subr.bf16.mxu0 0
  %9035 = vmatpush1.bf16.xpose.msra.mxu0 0
  %9036 = vmatprep.subr.bf16.mxu0 0
  %9037 = vmatpush1.bf16.xpose.msra.mxu0 0
  %9038 = vmatprep.subr.bf16.mxu0 0
  %9039 = vmatpush1.bf16.xpose.msra.mxu0 0
  %9040 = vmatprep.subr.bf16.mxu0 0
  %9041 = vmatpush1.bf16.xpose.msra.mxu0 0
  %9042 = vmatprep.mubr.bf16.mxu0 0
  %9043 = vmatmul.mubr.bf16.gmra.mrb[0].mxu0 %v9005
  %v9044 = vpop.f32.mrb[0].mxu0
  %v9045 = vadd.f32 0.0, %v9044
  %v9046 = vpop.f32.mrb[0].mxu0
  %v9047 = vpop.f32.mrb[0].mxu0
  %v9048 = vadd.f32 0.0, %v9047
  %v9049 = vpop.f32.mrb[0].mxu0
  %9050 = vdwg.mxu0
  %v9051 = vmul.f32 %v8998, 0.5
  %v9052 = vmul.f32 %v9001, 0.5
  %v9053 = vmul.f32 %v9045, 0.5
  %v9054 = vmul.f32 %v9048, 0.5
  %v9055 = vadd.f32 %v9051, %v476
  %v9056 = vadd.f32 %v9052, %v477
  %v9057 = vadd.f32 %v9053, %v476
  %v9058 = vadd.f32 %v9054, %v477
  %v9059 = vsel %vm4363, %v9055, -inf
  %9060 = vmax.xlane.f32.xlu0 %v9059
  %v9061 = vpop.xlane.xlu0 %9060
  %v9062 = vsel %vm4363, %v9056, -inf
  %9063 = vmax.xlane.f32.xlu0 %v9062
  %v9064 = vpop.xlane.xlu0 %9063
  %v9065 = vsel %vm4363, %v9057, -inf
  %9066 = vmax.xlane.f32.xlu0 %v9065
  %v9067 = vpop.xlane.xlu0 %9066
  %v9068 = vsel %vm4363, %v9058, -inf
  %9069 = vmax.xlane.f32.xlu0 %v9068
  %v9070 = vpop.xlane.xlu0 %9069
  %v9071 = vsub.f32 %v9055, %v9061
  %v9072 = vsub.f32 %v9056, %v9064
  %v9073 = vsub.f32 %v9057, %v9067
  %v9074 = vsub.f32 %v9058, %v9070
  %v9075 = vmul.f32 %v9071, 1.442695
  %v9076 = vpow.pop %v9075
  %v9077 = vmul.f32 %v9072, 1.442695
  %v9078 = vpow.pop %v9077
  %v9079 = vmul.f32 %v9073, 1.442695
  %v9080 = vpow.pop %v9079
  %v9081 = vmul.f32 %v9074, 1.442695
  %v9082 = vpow.pop %v9081
  %v9083 = vsel %vm4363, %v9076, 0.0
  %9084 = vadd.xlane.f32.xlu0 %v9083
  %v9085 = vpop.xlane.xlu0 %9084
  %v9086 = vsel %vm4363, %v9078, 0.0
  %9087 = vadd.xlane.f32.xlu0 %v9086
  %v9088 = vpop.xlane.xlu0 %9087
  %v9089 = vsel %vm4363, %v9080, 0.0
  %9090 = vadd.xlane.f32.xlu0 %v9089
  %v9091 = vpop.xlane.xlu0 %9090
  %v9092 = vsel %vm4363, %v9082, 0.0
  %9093 = vadd.xlane.f32.xlu0 %v9092
  %v9094 = vpop.xlane.xlu0 %9093
  %v9095 = vrcp.pop %v9085
  %v9096 = vmul.f32 %v9076, %v9095
  %v9097 = vrcp.pop %v9088
  %v9098 = vmul.f32 %v9078, %v9097
  %v9099 = vrcp.pop %v9091
  %v9100 = vmul.f32 %v9080, %v9099
  %v9101 = vrcp.pop %v9094
  %v9102 = vmul.f32 %v9082, %v9101
  %v9103 = vpack.c.bf16 %v9098, %v9096
  %v9104 = vpack.c.bf16 %v9102, %v9100
  %v9106 = vsel %vm4363, %v9103, 0
  %v9109 = vsel %vm4413, %v8955, 0
  %9111 = vmatprep.subr.bf16.mxu0 0
  %9112 = vmatpush1.bf16.msra.mxu0 %v9109
  %9113 = vmatprep.subr.bf16.mxu0 0
  %9114 = vmatpush1.bf16.msra.mxu0 0
  %9115 = vmatprep.subr.bf16.mxu0 0
  %9116 = vmatpush1.bf16.msra.mxu0 0
  %9117 = vmatprep.subr.bf16.mxu0 0
  %9118 = vmatpush1.bf16.msra.mxu0 0
  %9119 = vmatprep.subr.bf16.mxu0 0
  %9120 = vmatpush1.bf16.msra.mxu0 0
  %9121 = vmatprep.subr.bf16.mxu0 0
  %9122 = vmatpush1.bf16.msra.mxu0 0
  %9123 = vmatprep.subr.bf16.mxu0 0
  %9124 = vmatpush1.bf16.msra.mxu0 0
  %9125 = vmatprep.subr.bf16.mxu0 0
  %9126 = vmatpush1.bf16.msra.mxu0 0
  %9127 = vmatprep.subr.bf16.mxu0 0
  %9128 = vmatpush1.bf16.msra.mxu0 0
  %9129 = vmatprep.subr.bf16.mxu0 0
  %9130 = vmatpush1.bf16.msra.mxu0 0
  %9131 = vmatprep.subr.bf16.mxu0 0
  %9132 = vmatpush1.bf16.msra.mxu0 0
  %9133 = vmatprep.subr.bf16.mxu0 0
  %9134 = vmatpush1.bf16.msra.mxu0 0
  %9135 = vmatprep.subr.bf16.mxu0 0
  %9136 = vmatpush1.bf16.msra.mxu0 0
  %9137 = vmatprep.subr.bf16.mxu0 0
  %9138 = vmatpush1.bf16.msra.mxu0 0
  %9139 = vmatprep.subr.bf16.mxu0 0
  %9140 = vmatpush1.bf16.msra.mxu0 0
  %9141 = vmatprep.subr.bf16.mxu0 0
  %9142 = vmatpush1.bf16.msra.mxu0 0
  %9143 = vmatprep.mubr.bf16.mxu0 0
  %9144 = vmatmul.mubr.bf16.gmra.mrb[0].mxu0 %v9106
  %v9145 = vpop.f32.mrb[0].mxu0
  %v9146 = vadd.f32 0.0, %v9145
  %v9147 = vpop.f32.mrb[0].mxu0
  %v9148 = vpop.f32.mrb[0].mxu0
  %v9149 = vadd.f32 0.0, %v9148
  %v9150 = vpop.f32.mrb[0].mxu0
  %9151 = vdwg.mxu0
  %v9153 = vsel %vm4363, %v9104, 0
  %v9156 = vsel %vm4413, %v8956, 0
  %9158 = vmatprep.subr.bf16.mxu0 0
  %9159 = vmatpush1.bf16.msra.mxu0 %v9156
  %9160 = vmatprep.subr.bf16.mxu0 0
  %9161 = vmatpush1.bf16.msra.mxu0 0
  %9162 = vmatprep.subr.bf16.mxu0 0
  %9163 = vmatpush1.bf16.msra.mxu0 0
  %9164 = vmatprep.subr.bf16.mxu0 0
  %9165 = vmatpush1.bf16.msra.mxu0 0
  %9166 = vmatprep.subr.bf16.mxu0 0
  %9167 = vmatpush1.bf16.msra.mxu0 0
  %9168 = vmatprep.subr.bf16.mxu0 0
  %9169 = vmatpush1.bf16.msra.mxu0 0
  %9170 = vmatprep.subr.bf16.mxu0 0
  %9171 = vmatpush1.bf16.msra.mxu0 0
  %9172 = vmatprep.subr.bf16.mxu0 0
  %9173 = vmatpush1.bf16.msra.mxu0 0
  %9174 = vmatprep.subr.bf16.mxu0 0
  %9175 = vmatpush1.bf16.msra.mxu0 0
  %9176 = vmatprep.subr.bf16.mxu0 0
  %9177 = vmatpush1.bf16.msra.mxu0 0
  %9178 = vmatprep.subr.bf16.mxu0 0
  %9179 = vmatpush1.bf16.msra.mxu0 0
  %9180 = vmatprep.subr.bf16.mxu0 0
  %9181 = vmatpush1.bf16.msra.mxu0 0
  %9182 = vmatprep.subr.bf16.mxu0 0
  %9183 = vmatpush1.bf16.msra.mxu0 0
  %9184 = vmatprep.subr.bf16.mxu0 0
  %9185 = vmatpush1.bf16.msra.mxu0 0
  %9186 = vmatprep.subr.bf16.mxu0 0
  %9187 = vmatpush1.bf16.msra.mxu0 0
  %9188 = vmatprep.subr.bf16.mxu0 0
  %9189 = vmatpush1.bf16.msra.mxu0 0
  %9190 = vmatprep.mubr.bf16.mxu0 0
  %9191 = vmatmul.mubr.bf16.gmra.mrb[0].mxu0 %v9153
  %v9192 = vpop.f32.mrb[0].mxu0
  %v9193 = vadd.f32 0.0, %v9192
  %v9194 = vpop.f32.mrb[0].mxu0
  %v9195 = vpop.f32.mrb[0].mxu0
  %v9196 = vadd.f32 0.0, %v9195
  %v9197 = vpop.f32.mrb[0].mxu0
  %9198 = vdwg.mxu0
  %9200 = vrot.lane.b32.xlu0 %v8935, 124
  %v9201 = vpop.permute.xlu0 %9200
  %9203 = vrot.lane.b32.xlu0 %v8945, 124
  %v9204 = vpop.permute.xlu0 %9203
  %v9206 = vsel %vm4260, %v9201, 0
  %v9209 = vsel %vm4260, %v9204, 0
  %9211 = vmatprep.subr.bf16.mxu0 0
  %9212 = vmatpush1.bf16.xpose.msra.mxu0 %v9209
  %9213 = vmatprep.subr.bf16.mxu0 0
  %9214 = vmatpush1.bf16.xpose.msra.mxu0 0
  %9215 = vmatprep.subr.bf16.mxu0 0
  %9216 = vmatpush1.bf16.xpose.msra.mxu0 0
  %9217 = vmatprep.subr.bf16.mxu0 0
  %9218 = vmatpush1.bf16.xpose.msra.mxu0 0
  %9219 = vmatprep.subr.bf16.mxu0 0
  %9220 = vmatpush1.bf16.xpose.msra.mxu0 0
  %9221 = vmatprep.subr.bf16.mxu0 0
  %9222 = vmatpush1.bf16.xpose.msra.mxu0 0
  %9223 = vmatprep.subr.bf16.mxu0 0
  %9224 = vmatpush1.bf16.xpose.msra.mxu0 0
  %9225 = vmatprep.subr.bf16.mxu0 0
  %9226 = vmatpush1.bf16.xpose.msra.mxu0 0
  %9227 = vmatprep.subr.bf16.mxu0 0
  %9228 = vmatpush1.bf16.xpose.msra.mxu0 0
  %9229 = vmatprep.subr.bf16.mxu0 0
  %9230 = vmatpush1.bf16.xpose.msra.mxu0 0
  %9231 = vmatprep.subr.bf16.mxu0 0
  %9232 = vmatpush1.bf16.xpose.msra.mxu0 0
  %9233 = vmatprep.subr.bf16.mxu0 0
  %9234 = vmatpush1.bf16.xpose.msra.mxu0 0
  %9235 = vmatprep.subr.bf16.mxu0 0
  %9236 = vmatpush1.bf16.xpose.msra.mxu0 0
  %9237 = vmatprep.subr.bf16.mxu0 0
  %9238 = vmatpush1.bf16.xpose.msra.mxu0 0
  %9239 = vmatprep.subr.bf16.mxu0 0
  %9240 = vmatpush1.bf16.xpose.msra.mxu0 0
  %9241 = vmatprep.subr.bf16.mxu0 0
  %9242 = vmatpush1.bf16.xpose.msra.mxu0 0
  %9243 = vmatprep.mubr.bf16.mxu0 0
  %9244 = vmatmul.mubr.bf16.gmra.mrb[0].mxu0 %v9206
  %v9245 = vpop.f32.mrb[0].mxu0
  %v9246 = vadd.f32 0.0, %v9245
  %v9247 = vpop.f32.mrb[0].mxu0
  %v9248 = vpop.f32.mrb[0].mxu0
  %v9249 = vadd.f32 0.0, %v9248
  %v9250 = vpop.f32.mrb[0].mxu0
  %9251 = vdwg.mxu0
  %9253 = vrot.lane.b32.xlu0 %v8936, 124
  %v9254 = vpop.permute.xlu0 %9253
  %9256 = vrot.lane.b32.xlu0 %v8946, 124
  %v9257 = vpop.permute.xlu0 %9256
  %v9259 = vsel %vm4260, %v9254, 0
  %v9262 = vsel %vm4260, %v9257, 0
  %9264 = vmatprep.subr.bf16.mxu0 0
  %9265 = vmatpush1.bf16.xpose.msra.mxu0 %v9262
  %9266 = vmatprep.subr.bf16.mxu0 0
  %9267 = vmatpush1.bf16.xpose.msra.mxu0 0
  %9268 = vmatprep.subr.bf16.mxu0 0
  %9269 = vmatpush1.bf16.xpose.msra.mxu0 0
  %9270 = vmatprep.subr.bf16.mxu0 0
  %9271 = vmatpush1.bf16.xpose.msra.mxu0 0
  %9272 = vmatprep.subr.bf16.mxu0 0
  %9273 = vmatpush1.bf16.xpose.msra.mxu0 0
  %9274 = vmatprep.subr.bf16.mxu0 0
  %9275 = vmatpush1.bf16.xpose.msra.mxu0 0
  %9276 = vmatprep.subr.bf16.mxu0 0
  %9277 = vmatpush1.bf16.xpose.msra.mxu0 0
  %9278 = vmatprep.subr.bf16.mxu0 0
  %9279 = vmatpush1.bf16.xpose.msra.mxu0 0
  %9280 = vmatprep.subr.bf16.mxu0 0
  %9281 = vmatpush1.bf16.xpose.msra.mxu0 0
  %9282 = vmatprep.subr.bf16.mxu0 0
  %9283 = vmatpush1.bf16.xpose.msra.mxu0 0
  %9284 = vmatprep.subr.bf16.mxu0 0
  %9285 = vmatpush1.bf16.xpose.msra.mxu0 0
  %9286 = vmatprep.subr.bf16.mxu0 0
  %9287 = vmatpush1.bf16.xpose.msra.mxu0 0
  %9288 = vmatprep.subr.bf16.mxu0 0
  %9289 = vmatpush1.bf16.xpose.msra.mxu0 0
  %9290 = vmatprep.subr.bf16.mxu0 0
  %9291 = vmatpush1.bf16.xpose.msra.mxu0 0
  %9292 = vmatprep.subr.bf16.mxu0 0
  %9293 = vmatpush1.bf16.xpose.msra.mxu0 0
  %9294 = vmatprep.subr.bf16.mxu0 0
  %9295 = vmatpush1.bf16.xpose.msra.mxu0 0
  %9296 = vmatprep.mubr.bf16.mxu0 0
  %9297 = vmatmul.mubr.bf16.gmra.mrb[0].mxu0 %v9259
  %v9298 = vpop.f32.mrb[0].mxu0
  %v9299 = vadd.f32 0.0, %v9298
  %v9300 = vpop.f32.mrb[0].mxu0
  %v9301 = vpop.f32.mrb[0].mxu0
  %v9302 = vadd.f32 0.0, %v9301
  %v9303 = vpop.f32.mrb[0].mxu0
  %9304 = vdwg.mxu0
  %v9305 = vmul.f32 %v9246, 0.5
  %v9306 = vmul.f32 %v9249, 0.5
  %v9307 = vmul.f32 %v9299, 0.5
  %v9308 = vmul.f32 %v9302, 0.5
  %v9309 = vadd.f32 %v9305, %v476
  %v9310 = vadd.f32 %v9306, %v477
  %v9311 = vadd.f32 %v9307, %v476
  %v9312 = vadd.f32 %v9308, %v477
  %v9313 = vsel %vm4363, %v9309, -inf
  %9314 = vmax.xlane.f32.xlu0 %v9313
  %v9315 = vpop.xlane.xlu0 %9314
  %v9316 = vsel %vm4363, %v9310, -inf
  %9317 = vmax.xlane.f32.xlu0 %v9316
  %v9318 = vpop.xlane.xlu0 %9317
  %v9319 = vsel %vm4363, %v9311, -inf
  %9320 = vmax.xlane.f32.xlu0 %v9319
  %v9321 = vpop.xlane.xlu0 %9320
  %v9322 = vsel %vm4363, %v9312, -inf
  %9323 = vmax.xlane.f32.xlu0 %v9322
  %v9324 = vpop.xlane.xlu0 %9323
  %v9325 = vsub.f32 %v9309, %v9315
  %v9326 = vsub.f32 %v9310, %v9318
  %v9327 = vsub.f32 %v9311, %v9321
  %v9328 = vsub.f32 %v9312, %v9324
  %v9329 = vmul.f32 %v9325, 1.442695
  %v9330 = vpow.pop %v9329
  %v9331 = vmul.f32 %v9326, 1.442695
  %v9332 = vpow.pop %v9331
  %v9333 = vmul.f32 %v9327, 1.442695
  %v9334 = vpow.pop %v9333
  %v9335 = vmul.f32 %v9328, 1.442695
  %v9336 = vpow.pop %v9335
  %v9337 = vsel %vm4363, %v9330, 0.0
  %9338 = vadd.xlane.f32.xlu0 %v9337
  %v9339 = vpop.xlane.xlu0 %9338
  %v9340 = vsel %vm4363, %v9332, 0.0
  %9341 = vadd.xlane.f32.xlu0 %v9340
  %v9342 = vpop.xlane.xlu0 %9341
  %v9343 = vsel %vm4363, %v9334, 0.0
  %9344 = vadd.xlane.f32.xlu0 %v9343
  %v9345 = vpop.xlane.xlu0 %9344
  %v9346 = vsel %vm4363, %v9336, 0.0
  %9347 = vadd.xlane.f32.xlu0 %v9346
  %v9348 = vpop.xlane.xlu0 %9347
  %v9349 = vrcp.pop %v9339
  %v9350 = vmul.f32 %v9330, %v9349
  %v9351 = vrcp.pop %v9342
  %v9352 = vmul.f32 %v9332, %v9351
  %v9353 = vrcp.pop %v9345
  %v9354 = vmul.f32 %v9334, %v9353
  %v9355 = vrcp.pop %v9348
  %v9356 = vmul.f32 %v9336, %v9355
  %v9357 = vpack.c.bf16 %v9352, %v9350
  %v9358 = vpack.c.bf16 %v9356, %v9354
  %9360 = vrot.lane.b32.xlu0 %v8955, 124
  %v9361 = vpop.permute.xlu0 %9360
  %v9363 = vsel %vm4363, %v9357, 0
  %v9366 = vsel %vm4413, %v9361, 0
  %9368 = vmatprep.subr.bf16.mxu0 0
  %9369 = vmatpush1.bf16.msra.mxu0 %v9366
  %9370 = vmatprep.subr.bf16.mxu0 0
  %9371 = vmatpush1.bf16.msra.mxu0 0
  %9372 = vmatprep.subr.bf16.mxu0 0
  %9373 = vmatpush1.bf16.msra.mxu0 0
  %9374 = vmatprep.subr.bf16.mxu0 0
  %9375 = vmatpush1.bf16.msra.mxu0 0
  %9376 = vmatprep.subr.bf16.mxu0 0
  %9377 = vmatpush1.bf16.msra.mxu0 0
  %9378 = vmatprep.subr.bf16.mxu0 0
  %9379 = vmatpush1.bf16.msra.mxu0 0
  %9380 = vmatprep.subr.bf16.mxu0 0
  %9381 = vmatpush1.bf16.msra.mxu0 0
  %9382 = vmatprep.subr.bf16.mxu0 0
  %9383 = vmatpush1.bf16.msra.mxu0 0
  %9384 = vmatprep.subr.bf16.mxu0 0
  %9385 = vmatpush1.bf16.msra.mxu0 0
  %9386 = vmatprep.subr.bf16.mxu0 0
  %9387 = vmatpush1.bf16.msra.mxu0 0
  %9388 = vmatprep.subr.bf16.mxu0 0
  %9389 = vmatpush1.bf16.msra.mxu0 0
  %9390 = vmatprep.subr.bf16.mxu0 0
  %9391 = vmatpush1.bf16.msra.mxu0 0
  %9392 = vmatprep.subr.bf16.mxu0 0
  %9393 = vmatpush1.bf16.msra.mxu0 0
  %9394 = vmatprep.subr.bf16.mxu0 0
  %9395 = vmatpush1.bf16.msra.mxu0 0
  %9396 = vmatprep.subr.bf16.mxu0 0
  %9397 = vmatpush1.bf16.msra.mxu0 0
  %9398 = vmatprep.subr.bf16.mxu0 0
  %9399 = vmatpush1.bf16.msra.mxu0 0
  %9400 = vmatprep.mubr.bf16.mxu0 0
  %9401 = vmatmul.mubr.bf16.gmra.mrb[0].mxu0 %v9363
  %v9402 = vpop.f32.mrb[0].mxu0
  %v9403 = vadd.f32 0.0, %v9402
  %v9404 = vpop.f32.mrb[0].mxu0
  %v9405 = vpop.f32.mrb[0].mxu0
  %v9406 = vadd.f32 0.0, %v9405
  %v9407 = vpop.f32.mrb[0].mxu0
  %9408 = vdwg.mxu0
  %9410 = vrot.lane.b32.xlu0 %v8956, 124
  %v9411 = vpop.permute.xlu0 %9410
  %v9413 = vsel %vm4363, %v9358, 0
  %v9416 = vsel %vm4413, %v9411, 0
  %9418 = vmatprep.subr.bf16.mxu0 0
  %9419 = vmatpush1.bf16.msra.mxu0 %v9416
  %9420 = vmatprep.subr.bf16.mxu0 0
  %9421 = vmatpush1.bf16.msra.mxu0 0
  %9422 = vmatprep.subr.bf16.mxu0 0
  %9423 = vmatpush1.bf16.msra.mxu0 0
  %9424 = vmatprep.subr.bf16.mxu0 0
  %9425 = vmatpush1.bf16.msra.mxu0 0
  %9426 = vmatprep.subr.bf16.mxu0 0
  %9427 = vmatpush1.bf16.msra.mxu0 0
  %9428 = vmatprep.subr.bf16.mxu0 0
  %9429 = vmatpush1.bf16.msra.mxu0 0
  %9430 = vmatprep.subr.bf16.mxu0 0
  %9431 = vmatpush1.bf16.msra.mxu0 0
  %9432 = vmatprep.subr.bf16.mxu0 0
  %9433 = vmatpush1.bf16.msra.mxu0 0
  %9434 = vmatprep.subr.bf16.mxu0 0
  %9435 = vmatpush1.bf16.msra.mxu0 0
  %9436 = vmatprep.subr.bf16.mxu0 0
  %9437 = vmatpush1.bf16.msra.mxu0 0
  %9438 = vmatprep.subr.bf16.mxu0 0
  %9439 = vmatpush1.bf16.msra.mxu0 0
  %9440 = vmatprep.subr.bf16.mxu0 0
  %9441 = vmatpush1.bf16.msra.mxu0 0
  %9442 = vmatprep.subr.bf16.mxu0 0
  %9443 = vmatpush1.bf16.msra.mxu0 0
  %9444 = vmatprep.subr.bf16.mxu0 0
  %9445 = vmatpush1.bf16.msra.mxu0 0
  %9446 = vmatprep.subr.bf16.mxu0 0
  %9447 = vmatpush1.bf16.msra.mxu0 0
  %9448 = vmatprep.subr.bf16.mxu0 0
  %9449 = vmatpush1.bf16.msra.mxu0 0
  %9450 = vmatprep.mubr.bf16.mxu0 0
  %9451 = vmatmul.mubr.bf16.gmra.mrb[0].mxu0 %v9413
  %v9452 = vpop.f32.mrb[0].mxu0
  %v9453 = vadd.f32 0.0, %v9452
  %v9454 = vpop.f32.mrb[0].mxu0
  %v9455 = vpop.f32.mrb[0].mxu0
  %v9456 = vadd.f32 0.0, %v9455
  %v9457 = vpop.f32.mrb[0].mxu0
  %9458 = vdwg.mxu0
  %9463 = vrot.lane.b32.xlu0 %v9403, 4
  %v9464 = vpop.permute.xlu0 %9463
  %9465 = vrot.lane.b32.xlu0 %v9406, 4
  %v9466 = vpop.permute.xlu0 %9465
  %9467 = vrot.lane.b32.xlu0 %v9453, 4
  %v9468 = vpop.permute.xlu0 %9467
  %9469 = vrot.lane.b32.xlu0 %v9456, 4
  %v9470 = vpop.permute.xlu0 %9469
  %v9475 = vsel %vm4260, %v9146, %v9464
  %v9476 = vsel %vm4260, %v9149, %v9466
  %v9477 = vsel %vm4260, %v9193, %v9468
  %v9478 = vsel %vm4260, %v9196, %v9470
  %v9479 = vpack.c.bf16 %v9476, %v9475
  %v9480 = vpack.c.bf16 %v9478, %v9477
  %v9482 = vsel %vm841, %v9479, 0
  %v9485 = vsel %vm841, %v9480, 0
  %v9488 = vsel %vm972, %v8590, 0
  %9490 = vmatprep.subr.bf16.mxu0 0
  %9491 = vmatpush1.bf16.msra.mxu0 %v9488
  %9492 = vmatprep.subr.bf16.mxu0 0
  %9493 = vmatpush1.bf16.msra.mxu0 0
  %9494 = vmatprep.subr.bf16.mxu0 0
  %9495 = vmatpush1.bf16.msra.mxu0 0
  %9496 = vmatprep.subr.bf16.mxu0 0
  %9497 = vmatpush1.bf16.msra.mxu0 0
  %9498 = vmatprep.subr.bf16.mxu0 0
  %9499 = vmatpush1.bf16.msra.mxu0 0
  %9500 = vmatprep.subr.bf16.mxu0 0
  %9501 = vmatpush1.bf16.msra.mxu0 0
  %9502 = vmatprep.subr.bf16.mxu0 0
  %9503 = vmatpush1.bf16.msra.mxu0 0
  %9504 = vmatprep.subr.bf16.mxu0 0
  %9505 = vmatpush1.bf16.msra.mxu0 0
  %9506 = vmatprep.subr.bf16.mxu0 0
  %9507 = vmatpush1.bf16.msra.mxu0 0
  %9508 = vmatprep.subr.bf16.mxu0 0
  %9509 = vmatpush1.bf16.msra.mxu0 0
  %9510 = vmatprep.subr.bf16.mxu0 0
  %9511 = vmatpush1.bf16.msra.mxu0 0
  %9512 = vmatprep.subr.bf16.mxu0 0
  %9513 = vmatpush1.bf16.msra.mxu0 0
  %9514 = vmatprep.subr.bf16.mxu0 0
  %9515 = vmatpush1.bf16.msra.mxu0 0
  %9516 = vmatprep.subr.bf16.mxu0 0
  %9517 = vmatpush1.bf16.msra.mxu0 0
  %9518 = vmatprep.subr.bf16.mxu0 0
  %9519 = vmatpush1.bf16.msra.mxu0 0
  %9520 = vmatprep.subr.bf16.mxu0 0
  %9521 = vmatpush1.bf16.msra.mxu0 0
  %9522 = vmatprep.mubr.bf16.mxu0 0
  %9523 = vmatmul.mubr.bf16.gmra.mrb[0].mxu0 %v9482
  %v9524 = vpop.f32.mrb[0].mxu0
  %v9525 = vadd.f32 0.0, %v9524
  %v9526 = vpop.f32.mrb[0].mxu0
  %v9527 = vpop.f32.mrb[0].mxu0
  %v9528 = vadd.f32 0.0, %v9527
  %v9529 = vpop.f32.mrb[0].mxu0
  %9530 = vmatprep.mubr.bf16.mxu0 0
  %9531 = vmatmul.mubr.bf16.gmra.mrb[0].mxu0 %v9485
  %v9532 = vpop.f32.mrb[0].mxu0
  %v9533 = vadd.f32 0.0, %v9532
  %v9534 = vpop.f32.mrb[0].mxu0
  %v9535 = vpop.f32.mrb[0].mxu0
  %v9536 = vadd.f32 0.0, %v9535
  %v9537 = vpop.f32.mrb[0].mxu0
  %9538 = vdwg.mxu0
  %v9539 = vadd.f32 %v5115, %v9525
  %v9540 = vadd.f32 %v5116, %v9528
  %v9541 = vadd.f32 %v5117, %v9533
  %v9542 = vadd.f32 %v5118, %v9536
  %v9543 = vlaneseq
  %v9544 = vshrl.u32 %v9543, 7
  %v9545 = vsub.s32 1, %v9544
  %v9546 = vrot.slane %v8598, %v9545
  %v9547 = vadd.f32 %v9539, %v9546
  %v9548 = vadd.f32 %v9540, %v9546
  %v9549 = vadd.f32 %v9541, %v9546
  %v9550 = vadd.f32 %v9542, %v9546
  %v9551 = vsel %vm514, %v9547, 0.0
  %9552 = vadd.xlane.f32.xlu0 %v9551
  %v9553 = vpop.xlane.xlu0 %9552
  %v9554 = vsel %vm514, %v9548, 0.0
  %9555 = vadd.xlane.f32.xlu0 %v9554
  %v9556 = vpop.xlane.xlu0 %9555
  %v9557 = vsel %vm514, %v9549, 0.0
  %9558 = vadd.xlane.f32.xlu0 %v9557
  %v9559 = vpop.xlane.xlu0 %9558
  %v9560 = vsel %vm514, %v9550, 0.0
  %9561 = vadd.xlane.f32.xlu0 %v9560
  %v9562 = vpop.xlane.xlu0 %9561
  %v9563 = vmul.f32 %v9553, %v527
  %v9564 = vmul.f32 %v9556, %v527
  %v9565 = vmul.f32 %v9559, %v527
  %v9566 = vmul.f32 %v9562, %v527
  %v9567 = vsub.f32 %v9547, %v9563
  %v9568 = vsub.f32 %v9548, %v9564
  %v9569 = vsub.f32 %v9549, %v9565
  %v9570 = vsub.f32 %v9550, %v9566
  %v9571 = vmul.f32 %v9567, %v9567
  %v9572 = vmul.f32 %v9568, %v9568
  %v9573 = vmul.f32 %v9569, %v9569
  %v9574 = vmul.f32 %v9570, %v9570
  %v9575 = vsel %vm514, %v9571, 0.0
  %9576 = vadd.xlane.f32.xlu0 %v9575
  %v9577 = vpop.xlane.xlu0 %9576
  %v9578 = vsel %vm514, %v9572, 0.0
  %9579 = vadd.xlane.f32.xlu0 %v9578
  %v9580 = vpop.xlane.xlu0 %9579
  %v9581 = vsel %vm514, %v9573, 0.0
  %9582 = vadd.xlane.f32.xlu0 %v9581
  %v9583 = vpop.xlane.xlu0 %9582
  %v9584 = vsel %vm514, %v9574, 0.0
  %9585 = vadd.xlane.f32.xlu0 %v9584
  %v9586 = vpop.xlane.xlu0 %9585
  %v9587 = vmul.f32 %v9577, %v527
  %v9588 = vmul.f32 %v9580, %v527
  %v9589 = vmul.f32 %v9583, %v527
  %v9590 = vmul.f32 %v9586, %v527
  %v9591 = vadd.f32 %v9587, 1e-05
  %v9592 = vadd.f32 %v9588, 1e-05
  %v9593 = vadd.f32 %v9589, 1e-05
  %v9594 = vadd.f32 %v9590, 1e-05
  %v9595 = vrsqrt.pop %v9591
  %v9596 = vrsqrt.pop %v9592
  %v9597 = vrsqrt.pop %v9593
  %v9598 = vrsqrt.pop %v9594
  %v9599 = vmul.f32 %v9567, %v9595
  %v9600 = vmul.f32 %v9568, %v9596
  %v9601 = vmul.f32 %v9569, %v9597
  %v9602 = vmul.f32 %v9570, %v9598
  %v9603 = vlaneseq
  %v9604 = vshrl.u32 %v9603, 7
  %v9605 = vsub.s32 4, %v9604
  %v9606 = vrot.slane %v8597, %v9605
  %v9607 = vmul.f32 %v9599, %v9606
  %v9608 = vmul.f32 %v9600, %v9606
  %v9609 = vmul.f32 %v9601, %v9606
  %v9610 = vmul.f32 %v9602, %v9606
  %v9611 = vlaneseq
  %v9612 = vshrl.u32 %v9611, 7
  %v9613 = vsub.s32 5, %v9612
  %v9614 = vrot.slane %v8597, %v9613
  %v9615 = vadd.f32 %v9607, %v9614
  %v9616 = vadd.f32 %v9608, %v9614
  %v9617 = vadd.f32 %v9609, %v9614
  %v9618 = vadd.f32 %v9610, %v9614
  %v9619 = vpack.c.bf16 %v9616, %v9615
  %v9620 = vpack.c.bf16 %v9618, %v9617
  %v9621 = vunpack.c.h.b16 %v8582
  %v9622 = vunpack.c.h.b16 %v8584
  %v9623 = vunpack.c.h.b16 %v8586
  %v9624 = vunpack.c.h.b16 %v8588
  %v9625 = vpack.c.b16 %v9622, %v9621
  %v9626 = vpack.c.b16 %v9624, %v9623
  %v9630 = vsel %vm514, %v9619, 0
  %v9633 = vsel %vm514, %v9620, 0
  %9635 = vmatprep.subr.bf16.mxu0 0
  %9636 = vmatpush1.bf16.msra.mxu0 %v9625
  %9637 = vmatprep.subr.bf16.mxu0 0
  %9638 = vmatpush1.bf16.msra.mxu0 %v9626
  %9639 = vmatprep.subr.bf16.mxu0 0
  %9640 = vmatpush1.bf16.msra.mxu0 0
  %9641 = vmatprep.subr.bf16.mxu0 0
  %9642 = vmatpush1.bf16.msra.mxu0 0
  %9643 = vmatprep.subr.bf16.mxu0 0
  %9644 = vmatpush1.bf16.msra.mxu0 0
  %9645 = vmatprep.subr.bf16.mxu0 0
  %9646 = vmatpush1.bf16.msra.mxu0 0
  %9647 = vmatprep.subr.bf16.mxu0 0
  %9648 = vmatpush1.bf16.msra.mxu0 0
  %9649 = vmatprep.subr.bf16.mxu0 0
  %9650 = vmatpush1.bf16.msra.mxu0 0
  %9651 = vmatprep.subr.bf16.mxu0 0
  %9652 = vmatpush1.bf16.msra.mxu0 0
  %9653 = vmatprep.subr.bf16.mxu0 0
  %9654 = vmatpush1.bf16.msra.mxu0 0
  %9655 = vmatprep.subr.bf16.mxu0 0
  %9656 = vmatpush1.bf16.msra.mxu0 0
  %9657 = vmatprep.subr.bf16.mxu0 0
  %9658 = vmatpush1.bf16.msra.mxu0 0
  %9659 = vmatprep.subr.bf16.mxu0 0
  %9660 = vmatpush1.bf16.msra.mxu0 0
  %9661 = vmatprep.subr.bf16.mxu0 0
  %9662 = vmatpush1.bf16.msra.mxu0 0
  %9663 = vmatprep.subr.bf16.mxu0 0
  %9664 = vmatpush1.bf16.msra.mxu0 0
  %9665 = vmatprep.subr.bf16.mxu0 0
  %9666 = vmatpush1.bf16.msra.mxu0 0
  %9667 = vmatprep.mubr.bf16.mxu0 0
  %9668 = vmatmul.mubr.bf16.gmra.mrb[0].mxu0 %v9630
  %v9669 = vpop.f32.mrb[0].mxu0
  %v9670 = vadd.f32 0.0, %v9669
  %v9671 = vpop.f32.mrb[0].mxu0
  %v9672 = vpop.f32.mrb[0].mxu0
  %v9673 = vadd.f32 0.0, %v9672
  %v9674 = vpop.f32.mrb[0].mxu0
  %9675 = vmatprep.mubr.bf16.mxu0 0
  %9676 = vmatmul.mubr.bf16.gmra.mrb[0].mxu0 %v9633
  %v9677 = vpop.f32.mrb[0].mxu0
  %v9678 = vadd.f32 0.0, %v9677
  %v9679 = vpop.f32.mrb[0].mxu0
  %v9680 = vpop.f32.mrb[0].mxu0
  %v9681 = vadd.f32 0.0, %v9680
  %v9682 = vpop.f32.mrb[0].mxu0
  %9683 = vdwg.mxu0
  %v9684 = vlaneseq
  %v9685 = vshrl.u32 %v9684, 7
  %v9686 = vsub.s32 2, %v9685
  %v9687 = vrot.slane %v8598, %v9686
  %v9688 = vadd.f32 %v9670, %v9687
  %v9689 = vadd.f32 %v9673, %v9687
  %v9690 = vadd.f32 %v9678, %v9687
  %v9691 = vadd.f32 %v9681, %v9687
  %v9692 = vmul.f32 %v9688, %v9688
  %v9693 = vmul.f32 %v9689, %v9689
  %v9694 = vmul.f32 %v9690, %v9690
  %v9695 = vmul.f32 %v9691, %v9691
  %v9696 = vmul.f32 %v9688, %v9692
  %v9697 = vmul.f32 %v9689, %v9693
  %v9698 = vmul.f32 %v9690, %v9694
  %v9699 = vmul.f32 %v9691, %v9695
  %v9700 = vmul.f32 %v9696, 0.044715
  %v9701 = vmul.f32 %v9697, 0.044715
  %v9702 = vmul.f32 %v9698, 0.044715
  %v9703 = vmul.f32 %v9699, 0.044715
  %v9704 = vadd.f32 %v9688, %v9700
  %v9705 = vadd.f32 %v9689, %v9701
  %v9706 = vadd.f32 %v9690, %v9702
  %v9707 = vadd.f32 %v9691, %v9703
  %v9708 = vmul.f32 %v9704, 0.7978846
  %v9709 = vmul.f32 %v9705, 0.7978846
  %v9710 = vmul.f32 %v9706, 0.7978846
  %v9711 = vmul.f32 %v9707, 0.7978846
  %v9712 = vtanh.pop %v9708
  %v9713 = vtanh.pop %v9709
  %v9714 = vtanh.pop %v9710
  %v9715 = vtanh.pop %v9711
  %v9716 = vadd.f32 %v9712, 1.0
  %v9717 = vadd.f32 %v9713, 1.0
  %v9718 = vadd.f32 %v9714, 1.0
  %v9719 = vadd.f32 %v9715, 1.0
  %v9720 = vmul.f32 %v9716, 0.5
  %v9721 = vmul.f32 %v9717, 0.5
  %v9722 = vmul.f32 %v9718, 0.5
  %v9723 = vmul.f32 %v9719, 0.5
  %v9724 = vmul.f32 %v9688, %v9720
  %v9725 = vmul.f32 %v9689, %v9721
  %v9726 = vmul.f32 %v9690, %v9722
  %v9727 = vmul.f32 %v9691, %v9723
  %v9728 = vpack.c.bf16 %v9725, %v9724
  %v9729 = vpack.c.bf16 %v9727, %v9726
  %v9734 = vunpack.c.l.b16 %v8592
  %v9735 = vunpack.c.l.b16 %v8593
  %v9736 = vunpack.c.l.b16 %v8594
  %v9737 = vunpack.c.l.b16 %v8595
  %v9738 = vpack.c.b16 %v9735, %v9734
  %v9739 = vpack.c.b16 %v9737, %v9736
  %v9743 = vsel %vm514, %v9728, 0
  %v9746 = vsel %vm514, %v9729, 0
  %9748 = vmatprep.subr.bf16.mxu0 0
  %9749 = vmatpush1.bf16.msra.mxu0 %v9738
  %9750 = vmatprep.subr.bf16.mxu0 0
  %9751 = vmatpush1.bf16.msra.mxu0 %v9739
  %9752 = vmatprep.subr.bf16.mxu0 0
  %9753 = vmatpush1.bf16.msra.mxu0 0
  %9754 = vmatprep.subr.bf16.mxu0 0
  %9755 = vmatpush1.bf16.msra.mxu0 0
  %9756 = vmatprep.subr.bf16.mxu0 0
  %9757 = vmatpush1.bf16.msra.mxu0 0
  %9758 = vmatprep.subr.bf16.mxu0 0
  %9759 = vmatpush1.bf16.msra.mxu0 0
  %9760 = vmatprep.subr.bf16.mxu0 0
  %9761 = vmatpush1.bf16.msra.mxu0 0
  %9762 = vmatprep.subr.bf16.mxu0 0
  %9763 = vmatpush1.bf16.msra.mxu0 0
  %9764 = vmatprep.subr.bf16.mxu0 0
  %9765 = vmatpush1.bf16.msra.mxu0 0
  %9766 = vmatprep.subr.bf16.mxu0 0
  %9767 = vmatpush1.bf16.msra.mxu0 0
  %9768 = vmatprep.subr.bf16.mxu0 0
  %9769 = vmatpush1.bf16.msra.mxu0 0
  %9770 = vmatprep.subr.bf16.mxu0 0
  %9771 = vmatpush1.bf16.msra.mxu0 0
  %9772 = vmatprep.subr.bf16.mxu0 0
  %9773 = vmatpush1.bf16.msra.mxu0 0
  %9774 = vmatprep.subr.bf16.mxu0 0
  %9775 = vmatpush1.bf16.msra.mxu0 0
  %9776 = vmatprep.subr.bf16.mxu0 0
  %9777 = vmatpush1.bf16.msra.mxu0 0
  %9778 = vmatprep.subr.bf16.mxu0 0
  %9779 = vmatpush1.bf16.msra.mxu0 0
  %9780 = vmatprep.mubr.bf16.mxu0 0
  %9781 = vmatmul.mubr.bf16.gmra.mrb[0].mxu0 %v9743
  %v9782 = vpop.f32.mrb[0].mxu0
  %v9783 = vadd.f32 0.0, %v9782
  %v9784 = vpop.f32.mrb[0].mxu0
  %v9785 = vpop.f32.mrb[0].mxu0
  %v9786 = vadd.f32 0.0, %v9785
  %v9787 = vpop.f32.mrb[0].mxu0
  %9788 = vmatprep.mubr.bf16.mxu0 0
  %9789 = vmatmul.mubr.bf16.gmra.mrb[0].mxu0 %v9746
  %v9790 = vpop.f32.mrb[0].mxu0
  %v9791 = vadd.f32 0.0, %v9790
  %v9792 = vpop.f32.mrb[0].mxu0
  %v9793 = vpop.f32.mrb[0].mxu0
  %v9794 = vadd.f32 0.0, %v9793
  %v9795 = vpop.f32.mrb[0].mxu0
  %9796 = vdwg.mxu0
  %v9797 = vadd.f32 %v9547, %v9783
  %v9798 = vadd.f32 %v9548, %v9786
  %v9799 = vadd.f32 %v9549, %v9791
  %v9800 = vadd.f32 %v9550, %v9794
  %v9801 = vlaneseq
  %v9802 = vshrl.u32 %v9801, 7
  %v9803 = vsub.s32 3, %v9802
  %v9804 = vrot.slane %v8598, %v9803
  %v9805 = vadd.f32 %v9797, %v9804
  %v9806 = vadd.f32 %v9798, %v9804
  %v9807 = vadd.f32 %v9799, %v9804
  %v9808 = vadd.f32 %v9800, %v9804
  %v9809 = vmul.f32 %v9805, %v482
  %v9810 = vmul.f32 %v9806, %v483
  %v9811 = vmul.f32 %v9807, %v482
  %v9812 = vmul.f32 %v9808, %v483
  %v9813 = vld [vmem:[%s11] sm:$0x3f]
  %v9814 = vsel %vm514, %v6784, 0.0
  %9815 = vadd.xlane.f32.xlu0 %v9814
  %v9816 = vpop.xlane.xlu0 %9815
  %v9817 = vsel %vm514, %v6785, 0.0
  %9818 = vadd.xlane.f32.xlu0 %v9817
  %v9819 = vpop.xlane.xlu0 %9818
  %v9820 = vmul.f32 %v9816, %v527
  %v9821 = vmul.f32 %v9819, %v527
  %v9822 = vsub.f32 %v6784, %v9820
  %v9823 = vsub.f32 %v6785, %v9821
  %v9824 = vmul.f32 %v9822, %v9822
  %v9825 = vmul.f32 %v9823, %v9823
  %v9826 = vsel %vm514, %v9824, 0.0
  %9827 = vadd.xlane.f32.xlu0 %v9826
  %v9828 = vpop.xlane.xlu0 %9827
  %v9829 = vsel %vm514, %v9825, 0.0
  %9830 = vadd.xlane.f32.xlu0 %v9829
  %v9831 = vpop.xlane.xlu0 %9830
  %v9832 = vmul.f32 %v9828, %v527
  %v9833 = vmul.f32 %v9831, %v527
  %v9834 = vadd.f32 %v9832, 1e-05
  %v9835 = vadd.f32 %v9833, 1e-05
  %v9836 = vrsqrt.pop %v9834
  %v9837 = vrsqrt.pop %v9835
  %v9838 = vmul.f32 %v9822, %v9836
  %v9839 = vmul.f32 %v9823, %v9837
  %v9840 = vlaneseq
  %v9841 = vshrl.u32 %v9840, 7
  %v9842 = vsub.s32 0, %v9841
  %v9843 = vrot.slane %v9813, %v9842
  %v9844 = vmul.f32 %v9838, %v9843
  %v9845 = vmul.f32 %v9839, %v9843
  %v9846 = vlaneseq
  %v9847 = vshrl.u32 %v9846, 7
  %v9848 = vsub.s32 1, %v9847
  %v9849 = vrot.slane %v9813, %v9848
  %v9850 = vadd.f32 %v9844, %v9849
  %v9851 = vadd.f32 %v9845, %v9849
  %v9852 = vsel %vm2153, %v8578, 0.0
  %9853 = vadd.xlane.f32.xlu0 %v9852
  %v9854 = vpop.xlane.xlu0 %9853
  %v9855 = vsel %vm2153, %v8579, 0.0
  %9856 = vadd.xlane.f32.xlu0 %v9855
  %v9857 = vpop.xlane.xlu0 %9856
  %v9858 = vmul.f32 %v9854, %v527
  %v9859 = vmul.f32 %v9857, %v527
  %v9860 = vsub.f32 %v8578, %v9858
  %v9861 = vsub.f32 %v8579, %v9859
  %v9862 = vmul.f32 %v9860, %v9860
  %v9863 = vmul.f32 %v9861, %v9861
  %v9864 = vsel %vm2153, %v9862, 0.0
  %9865 = vadd.xlane.f32.xlu0 %v9864
  %v9866 = vpop.xlane.xlu0 %9865
  %v9867 = vsel %vm2153, %v9863, 0.0
  %9868 = vadd.xlane.f32.xlu0 %v9867
  %v9869 = vpop.xlane.xlu0 %9868
  %v9870 = vmul.f32 %v9866, %v527
  %v9871 = vmul.f32 %v9869, %v527
  %v9872 = vadd.f32 %v9870, 1e-05
  %v9873 = vadd.f32 %v9871, 1e-05
  %v9874 = vrsqrt.pop %v9872
  %v9875 = vrsqrt.pop %v9873
  %v9876 = vmul.f32 %v9860, %v9874
  %v9877 = vmul.f32 %v9861, %v9875
  %v9878 = vlaneseq
  %v9879 = vshrl.u32 %v9878, 7
  %v9880 = vsub.s32 2, %v9879
  %v9881 = vrot.slane %v9813, %v9880
  %v9882 = vmul.f32 %v9876, %v9881
  %v9883 = vmul.f32 %v9877, %v9881
  %v9884 = vlaneseq
  %v9885 = vshrl.u32 %v9884, 7
  %v9886 = vsub.s32 3, %v9885
  %v9887 = vrot.slane %v9813, %v9886
  %v9888 = vadd.f32 %v9882, %v9887
  %v9889 = vadd.f32 %v9883, %v9887
  %v9890 = vsel %vm514, %v9809, 0.0
  %9891 = vadd.xlane.f32.xlu0 %v9890
  %v9892 = vpop.xlane.xlu0 %9891
  %v9893 = vsel %vm514, %v9810, 0.0
  %9894 = vadd.xlane.f32.xlu0 %v9893
  %v9895 = vpop.xlane.xlu0 %9894
  %v9896 = vsel %vm514, %v9811, 0.0
  %9897 = vadd.xlane.f32.xlu0 %v9896
  %v9898 = vpop.xlane.xlu0 %9897
  %v9899 = vsel %vm514, %v9812, 0.0
  %9900 = vadd.xlane.f32.xlu0 %v9899
  %v9901 = vpop.xlane.xlu0 %9900
  %v9902 = vmul.f32 %v9892, %v527
  %v9903 = vmul.f32 %v9895, %v527
  %v9904 = vmul.f32 %v9898, %v527
  %v9905 = vmul.f32 %v9901, %v527
  %v9906 = vsub.f32 %v9809, %v9902
  %v9907 = vsub.f32 %v9810, %v9903
  %v9908 = vsub.f32 %v9811, %v9904
  %v9909 = vsub.f32 %v9812, %v9905
  %v9910 = vmul.f32 %v9906, %v9906
  %v9911 = vmul.f32 %v9907, %v9907
  %v9912 = vmul.f32 %v9908, %v9908
  %v9913 = vmul.f32 %v9909, %v9909
  %v9914 = vsel %vm514, %v9910, 0.0
  %9915 = vadd.xlane.f32.xlu0 %v9914
  %v9916 = vpop.xlane.xlu0 %9915
  %v9917 = vsel %vm514, %v9911, 0.0
  %9918 = vadd.xlane.f32.xlu0 %v9917
  %v9919 = vpop.xlane.xlu0 %9918
  %v9920 = vsel %vm514, %v9912, 0.0
  %9921 = vadd.xlane.f32.xlu0 %v9920
  %v9922 = vpop.xlane.xlu0 %9921
  %v9923 = vsel %vm514, %v9913, 0.0
  %9924 = vadd.xlane.f32.xlu0 %v9923
  %v9925 = vpop.xlane.xlu0 %9924
  %v9926 = vmul.f32 %v9916, %v527
  %v9927 = vmul.f32 %v9919, %v527
  %v9928 = vmul.f32 %v9922, %v527
  %v9929 = vmul.f32 %v9925, %v527
  %v9930 = vadd.f32 %v9926, 1e-05
  %v9931 = vadd.f32 %v9927, 1e-05
  %v9932 = vadd.f32 %v9928, 1e-05
  %v9933 = vadd.f32 %v9929, 1e-05
  %v9934 = vrsqrt.pop %v9930
  %v9935 = vrsqrt.pop %v9931
  %v9936 = vrsqrt.pop %v9932
  %v9937 = vrsqrt.pop %v9933
  %v9938 = vmul.f32 %v9906, %v9934
  %v9939 = vmul.f32 %v9907, %v9935
  %v9940 = vmul.f32 %v9908, %v9936
  %v9941 = vmul.f32 %v9909, %v9937
  %v9942 = vlaneseq
  %v9943 = vshrl.u32 %v9942, 7
  %v9944 = vsub.s32 4, %v9943
  %v9945 = vrot.slane %v9813, %v9944
  %v9946 = vmul.f32 %v9938, %v9945
  %v9947 = vmul.f32 %v9939, %v9945
  %v9948 = vmul.f32 %v9940, %v9945
  %v9949 = vmul.f32 %v9941, %v9945
  %v9950 = vlaneseq
  %v9951 = vshrl.u32 %v9950, 7
  %v9952 = vsub.s32 5, %v9951
  %v9953 = vrot.slane %v9813, %v9952
  %v9954 = vadd.f32 %v9946, %v9953
  %v9955 = vadd.f32 %v9947, %v9953
  %v9956 = vadd.f32 %v9948, %v9953
  %v9957 = vadd.f32 %v9949, %v9953
  %9958 = vst.msk [vmem:[%s12] sm:$0xff] %vm514, %v9850
  %9959 = vst.msk [vmem:[%s12 + $0x8] sm:$0xff] %vm514, %v9954
  %9960 = vst.msk [vmem:[%s12 + $0x10] sm:$0xff] %vm514, %v9955
  %9961 = vst.msk [vmem:[%s12 + $0x18] sm:$0xf] %vm2153, %v9888
  %9962 = vst.msk [vmem:[%s12 + $0x20] sm:$0xff] %vm514, %v9851
  %9963 = vst.msk [vmem:[%s12 + $0x28] sm:$0xff] %vm514, %v9956
  %9964 = vst.msk [vmem:[%s12 + $0x30] sm:$0xff] %vm514, %v9957
  %9965 = vst.msk [vmem:[%s12 + $0x38] sm:$0xf] %vm2153, %v9889
  // Predicated region
  $region50: #{video_earlyfusion_forward.1} parent=0 // pred_check
    _
  $region51: #{video_earlyfusion_forward.1} parent=0 // pred_check_branch
    %9967 = sbr.rel (0) target = $region53
  $region52: #{video_earlyfusion_forward.1} parent=0 // pred_region
    _
  $region53: #{video_earlyfusion_forward.1} parent=0 // pred_fallthru
    _
  // Predicated region
  $region54: #{video_earlyfusion_forward.1} parent=0 // pred_check
    _
  $region55: #{video_earlyfusion_forward.1} parent=0 // pred_check_branch
    %9969 = sbr.rel (0) target = $region57
  $region56: #{video_earlyfusion_forward.1} parent=0 // pred_region
    _
  $region57: #{video_earlyfusion_forward.1} parent=0 // pred_fallthru
    _

</llo_original>
